<compile_context>
chip_gen: v7x
topology: tpu7x:2x2x1
jax: 0.10.0
libtpu: 0.0.40
codegen_flags: <defaults>
</compile_context>

<pallas_src>
import functools

import jax
import jax.numpy as jnp
import numpy as np
from jax.experimental import pallas as pl
from jax.experimental.pallas import tpu as pltpu

LANE = 128


def _round_up(x, m):
    return ((x + m - 1) // m) * m


def _pick_batch_tile(n, max_b=8):
    """Largest per-step batch B (<= max_b) dividing n, preferring an even grid (megacore)."""
    for b in range(min(n, max_b), 0, -1):
        if n % b == 0 and (n // b) % 2 == 0:
            return b
    for b in range(min(n, max_b), 0, -1):
        if n % b == 0:
            return b
    return 1


def _has_bf16_vpu():
    """bf16 elementwise compute is worthwhile on v6e/v7x; keep f32 on v5e and older."""
    try:
        kind = jax.devices()[0].device_kind.lower()
    except Exception:
        return True
    return ("v6" in kind) or ("v7" in kind) or ("7x" in kind)


# ---------------------------------------------------------------------------
# Kernel factory: one grid step = B batch elements, full spatial extent,
# channels padded to lane multiples (128).
# ---------------------------------------------------------------------------
def make_block_kernel(B, H, W, Cinp, C1p, Coutp, stride, add_shortcut, conv_shortcut, cdt):
    Ho = (H - 1) // stride + 1
    Wo = (W - 1) // stride + 1
    Hp = H + 2
    WL = 8                                   # left-halo block width -> sublane-aligned interior
    Wtot = _round_up(WL + W + 1, 8)          # interior = [WL, WL+W), right halo at col WL+W
    M = B * H * W
    Mo = B * Ho * Wo

    def kernel(x_ref, w1_ref, w2_ref, w3_ref, b_ref, o_ref, hp_ref):
        # ---- conv1 (1x1) [+ fused 1x1 shortcut conv]; BN scales folded into the weights.
        ym = x_ref[...].reshape(M, Cinp)                               # bf16
        h1s = jnp.dot(ym, w1_ref[...], preferred_element_type=jnp.float32)
        h1 = jnp.maximum(h1s[:, :C1p] + b_ref[0:1, :C1p], 0.0)        # (M, C1p) f32

        if conv_shortcut:
            sc = h1s[:, C1p:] + b_ref[3:4, :Coutp]                     # (M, Coutp) f32, no ReLU

        # ---- conv2: 3x3 depthwise, pad=1, stride.
        # Zero only the halo ring (interior fully overwritten below).  Per-step on purpose:
        # each TensorCore has a private scratch under megacore, so a one-time init is unsafe.
        hp_ref[:, 0:1, :, :] = jnp.zeros((B, 1, Wtot, C1p), cdt)
        hp_ref[:, H + 1:H + 2, :, :] = jnp.zeros((B, 1, Wtot, C1p), cdt)
        hp_ref[:, 1:H + 1, 0:WL, :] = jnp.zeros((B, H, WL, C1p), cdt)
        hp_ref[:, 1:H + 1, WL + W:, :] = jnp.zeros((B, H, Wtot - WL - W, C1p), cdt)
        # Sublane-aligned interior store (W offset = 8).
        hp_ref[:, 1:H + 1, WL:WL + W, :] = h1.reshape(B, H, W, C1p).astype(cdt)

        w2 = w2_ref[...]                                               # (9, C1p), loaded once
        acc = None
        for kh in range(3):
            for kw in range(3):
                col0 = WL - 1 + kw                                     # padded col kw -> scratch col
                if stride == 1:
                    tap = hp_ref[:, kh:kh + Ho, col0:col0 + Wo, :]
                else:
                    # strided taps: only Ho x Wo outputs are computed
                    tap = hp_ref[:, pl.ds(kh, Ho, stride=stride),
                                 pl.ds(col0, Wo, stride=stride), :]
                wk = w2[kh * 3 + kw:kh * 3 + kw + 1, :].reshape(1, 1, 1, C1p)
                term = tap * wk
                acc = term.astype(jnp.float32) if acc is None else acc + term

        h2 = jnp.maximum(acc.reshape(Mo, C1p) + b_ref[1:2, :C1p], 0.0)

        # ---- conv3 (1x1) + BN3 (no ReLU)
        h3 = jnp.dot(h2.astype(jnp.bfloat16), w3_ref[...],
                     preferred_element_type=jnp.float32)
        h3 = h3 + b_ref[2:3, :Coutp]

        # ---- shortcut (only when stride == 1, as in the PyTorch module)
        if add_shortcut:
            if conv_shortcut:
                h3 = h3 + sc
            else:
                # identity: Cinp == Coutp (asserted).  Re-read x here so its live range
                # does not span the depthwise section.
                h3 = h3 + x_ref[...].reshape(M, Cinp).astype(jnp.float32)

        o_ref[...] = h3.reshape(B, Ho, Wo, Coutp).astype(o_ref.dtype)

    return kernel, Ho, Wo, Hp, Wtot


# ---------------------------------------------------------------------------
# Wrapper (NCHW in / NCHW out, matches PyTorch semantics)
# ---------------------------------------------------------------------------
@functools.partial(jax.jit, static_argnums=(2, 3))
def block_forward(y_nchw, params, stride, shortcut_flag, eps=1e-5):
    N, Cin, H, W = y_nchw.shape
    C1 = params['w1'].shape[0]
    C2 = params['w2'].shape[0]
    Cout = params['w3'].shape[0]
    assert C1 == C2, "depthwise conv requires out_planes_1 == out_planes_2"

    add_shortcut = (stride == 1)
    conv_shortcut = (stride == 1 and Cin != Cout and bool(shortcut_flag))
    if add_shortcut and not conv_shortcut:
        # PyTorch's Block would also fail on this config (identity shortcut with mismatched
        # channels), so reject it instead of silently diverging.
        assert Cin == Cout, "identity shortcut requires in_planes == out_planes"

    Cinp = _round_up(Cin, LANE)
    C1p = _round_up(C1, LANE)
    Coutp = _round_up(Cout, LANE)
    Cmaxp = max(C1p, Coutp)

    # Depthwise/elementwise compute dtype: bf16 on v6e/v7x with unstrided taps; f32 otherwise.
    cdt = jnp.bfloat16 if (_has_bf16_vpu() and stride == 1) else jnp.float32

    def fold_bn(g, b, m, v):
        s = g / jnp.sqrt(v + eps)
        return s, b - m * s

    s1, b1 = fold_bn(*params['bn1'])
    s2, b2 = fold_bn(*params['bn2'])
    s3, b3 = fold_bn(*params['bn3'])

    # Fold BN scales into the conv weights; zero-pad channels to lane multiples.
    w1 = params['w1'][:, :, 0, 0].T * s1[None, :]                                   # (Cin, C1)
    w2 = jnp.transpose(params['w2'][:, 0, :, :], (1, 2, 0)).reshape(9, C2) * s2[None, :]
    w3 = params['w3'][:, :, 0, 0].T * s3[None, :]                                   # (C2, Cout)

    w1p = jnp.zeros((Cinp, C1p), jnp.float32).at[:Cin, :C1].set(w1)
    w2p = jnp.zeros((9, C1p), jnp.float32).at[:, :C2].set(w2).astype(cdt)
    w3p = jnp.zeros((C1p, Coutp), jnp.float32).at[:C2, :Cout].set(w3).astype(jnp.bfloat16)

    bias = jnp.zeros((4, Cmaxp), jnp.float32)
    bias = bias.at[0, :C1].set(b1).at[1, :C2].set(b2).at[2, :Cout].set(b3)

    if conv_shortcut:
        ss, bs = fold_bn(*params['bns'])
        ws = params['ws'][:, :, 0, 0].T * ss[None, :]                               # (Cin, Cout)
        wsp = jnp.zeros((Cinp, Coutp), jnp.float32).at[:Cin, :Cout].set(ws)
        # Fuse conv1 + shortcut conv into one MXU matmul; result is lane-split in the kernel.
        w1f = jnp.concatenate([w1p, wsp], axis=1).astype(jnp.bfloat16)              # (Cinp, C1p+Coutp)
        bias = bias.at[3, :Cout].set(bs)
    else:
        w1f = w1p.astype(jnp.bfloat16)

    B = _pick_batch_tile(N)
    G = N // B

    kernel, Ho, Wo, Hp, Wtot = make_block_kernel(
        B, H, W, Cinp, C1p, Coutp, stride, add_shortcut, conv_shortcut, cdt)

    # bf16 NHWC activations (half the HBM traffic); lane padding sliced off after the call.
    x = jnp.transpose(y_nchw, (0, 2, 3, 1)).astype(jnp.bfloat16)
    x = jnp.pad(x, ((0, 0), (0, 0), (0, 0), (0, Cinp - Cin)))

    args = (w1f, w2p, w3p, bias)
    in_specs = [pl.BlockSpec((B, H, W, Cinp), lambda n: (n, 0, 0, 0))]
    in_specs += [pl.BlockSpec(a.shape, lambda n: (0, 0)) for a in args]   # params are 2D

    out = pl.pallas_call(
        kernel,
        out_shape=jax.ShapeDtypeStruct((N, Ho, Wo, Coutp), jnp.bfloat16),
        grid=(G,),
        in_specs=in_specs,
        out_specs=pl.BlockSpec((B, Ho, Wo, Coutp), lambda n: (n, 0, 0, 0)),
        scratch_shapes=[pltpu.VMEM((B, Hp, Wtot, C1p), cdt)],
        compiler_params=pltpu.CompilerParams(
            dimension_semantics=("parallel",),
            vmem_limit_bytes=32 * 1024 * 1024,
        ),
    )(x, *args)

    out = out[..., :Cout]                                               # drop lane padding
    return jnp.transpose(out, (0, 3, 1, 2)).astype(jnp.float32)         # back to NCHW f32


# ---------------------------------------------------------------------------
# Deterministic parameter init (shapes follow Block.__init__)
# ---------------------------------------------------------------------------
def init_params(key, cin, c1, c2, cout, conv_shortcut):
    ks = jax.random.split(key, 8)

    def bn_params(k, c):
        kg, kb, km, kv = jax.random.split(k, 4)
        gamma = 1.0 + 0.1 * jax.random.normal(kg, (c,), jnp.float32)
        beta = 0.1 * jax.random.normal(kb, (c,), jnp.float32)
        mean = 0.1 * jax.random.normal(km, (c,), jnp.float32)
        var = jax.random.uniform(kv, (c,), jnp.float32, minval=0.5, maxval=1.5)
        return (gamma, beta, mean, var)

    p = {
        'w1': 0.25 * jax.random.normal(ks[0], (c1, cin, 1, 1), jnp.float32),
        'bn1': bn_params(ks[1], c1),
        'w2': 0.25 * jax.random.normal(ks[2], (c2, 1, 3, 3), jnp.float32),
        'bn2': bn_params(ks[3], c2),
        'w3': 0.25 * jax.random.normal(ks[4], (cout, c2, 1, 1), jnp.float32),
        'bn3': bn_params(ks[5], cout),
    }
    if conv_shortcut:
        p['ws'] = 0.25 * jax.random.normal(ks[6], (cout, cin, 1, 1), jnp.float32)
        p['bns'] = bn_params(ks[7], cout)
    return p


# ---------------------------------------------------------------------------
# Pure-JAX f32 reference (for correctness check)
# ---------------------------------------------------------------------------
def ref_block(y_nchw, params, stride, shortcut_flag, eps=1e-5):
    x = jnp.transpose(y_nchw, (0, 2, 3, 1)).astype(jnp.float32)
    Cin = x.shape[-1]
    C2 = params['w2'].shape[0]
    Cout = params['w3'].shape[0]
    dn = ('NHWC', 'HWIO', 'NHWC')

    def bn(h, g, b, m, v):
        return (h - m) * (g / jnp.sqrt(v + eps)) + b

    w1 = jnp.transpose(params['w1'], (2, 3, 1, 0))
    h = jax.lax.conv_general_dilated(x, w1, (1, 1), 'VALID', dimension_numbers=dn)
    h = jax.nn.relu(bn(h, *params['bn1']))

    w2 = jnp.transpose(params['w2'], (2, 3, 1, 0))      # (3,3,1,C2)
    h = jax.lax.conv_general_dilated(h, w2, (stride, stride), ((1, 1), (1, 1)),
                                     dimension_numbers=dn, feature_group_count=C2)
    h = jax.nn.relu(bn(h, *params['bn2']))

    w3 = jnp.transpose(params['w3'], (2, 3, 1, 0))
    h = jax.lax.conv_general_dilated(h, w3, (1, 1), 'VALID', dimension_numbers=dn)
    h = bn(h, *params['bn3'])

    if stride == 1:
        if Cin != Cout and shortcut_flag:
            ws = jnp.transpose(params['ws'], (2, 3, 1, 0))
            sc = jax.lax.conv_general_dilated(x, ws, (1, 1), 'VALID', dimension_numbers=dn)
            sc = bn(sc, *params['bns'])
        else:
            sc = x
        h = h + sc
    return jnp.transpose(h, (0, 3, 1, 2))


# ---------------------------------------------------------------------------
if __name__ == "__main__":
    key = jax.random.PRNGKey(0)
    k_x, k_p1, k_p2, k_p3 = jax.random.split(key, 4)

    N, H, W = 8, 16, 16
    # bf16 activations + bf16 MXU operands (f32 accumulation) vs. f32 reference
    RTOL = ATOL = 6e-2

    # --- Case 1: stride=1, in_planes == out_planes -> identity shortcut add
    params1 = init_params(k_p1, 8, 16, 16, 8, conv_shortcut=False)
    y1 = jax.random.normal(k_x, (N, 8, H, W), jnp.float32)
    out1 = jax.block_until_ready(block_forward(y1, params1, 1, False))
    ref1 = ref_block(y1, params1, 1, False)
    np.testing.assert_allclose(np.asarray(out1), np.asarray(ref1), rtol=RTOL, atol=ATOL)

    # --- Case 2: stride=1, in_planes != out_planes, shortcut=True -> fused conv+BN shortcut
    params2 = init_params(k_p2, 8, 16, 16, 12, conv_shortcut=True)
    y2 = jax.random.normal(k_x, (N, 8, H, W), jnp.float32)
    out2 = jax.block_until_ready(block_forward(y2, params2, 1, True))
    ref2 = ref_block(y2, params2, 1, True)
    np.testing.assert_allclose(np.asarray(out2), np.asarray(ref2), rtol=RTOL, atol=ATOL)

    # --- Case 3: stride=2 -> strided depthwise taps, no shortcut add
    params3 = init_params(k_p3, 8, 16, 16, 12, conv_shortcut=False)
    y3 = jax.random.normal(k_x, (N, 8, H, W), jnp.float32)
    out3 = jax.block_until_ready(block_forward(y3, params3, 2, False))
    ref3 = ref_block(y3, params3, 2, False)
    np.testing.assert_allclose(np.asarray(out3), np.asarray(ref3), rtol=RTOL, atol=ATOL)

    print("KERNEL_OK")
</pallas_src>

<mosaic_0001>
module attributes {stable_mosaic.version = 11 : i64} {
  func.func @kernel(%arg0: i32, %arg1: memref<4x16x16x128xbf16, #tpu.memory_space<vmem>>, %arg2: memref<128x128xbf16, #tpu.memory_space<vmem>>, %arg3: memref<9x128xf32, #tpu.memory_space<vmem>>, %arg4: memref<128x128xbf16, #tpu.memory_space<vmem>>, %arg5: memref<4x128xf32, #tpu.memory_space<vmem>>, %arg6: memref<4x16x16x128xbf16, #tpu.memory_space<vmem>>, %arg7: memref<4x18x32x128xf32, #tpu.memory_space<vmem>>) attributes {dimension_semantics = [#tpu.dimension_semantics<parallel>], iteration_bounds = array<i64: 2>, scalar_prefetch = 0 : i64, scratch_operands = 1 : i64, tpu.core_type = #tpu.core_type<tc>, window_params = [{transform_indices = @transform_0, window_bounds = array<i64: 4, 16, 16, 128>}, {pipeline_mode = #tpu.pipeline_mode<synchronous>, transform_indices = @transform_1, window_bounds = array<i64: 128, 128>}, {pipeline_mode = #tpu.pipeline_mode<synchronous>, transform_indices = @transform_2, window_bounds = array<i64: 9, 128>}, {pipeline_mode = #tpu.pipeline_mode<synchronous>, transform_indices = @transform_3, window_bounds = array<i64: 128, 128>}, {pipeline_mode = #tpu.pipeline_mode<synchronous>, transform_indices = @transform_4, window_bounds = array<i64: 4, 128>}, {transform_indices = @transform_5, window_bounds = array<i64: 4, 16, 16, 128>}]} {
    %c0 = arith.constant 0 : index
    %c0_0 = arith.constant 0 : index
    %c0_1 = arith.constant 0 : index
    %c0_2 = arith.constant 0 : index
    %0 = vector.load %arg1[%c0, %c0_0, %c0_1, %c0_2] : memref<4x16x16x128xbf16, #tpu.memory_space<vmem>>, vector<4x16x16x128xbf16>
    %1 = vector.shape_cast %0 : vector<4x16x16x128xbf16> to vector<1024x128xbf16>
    %c0_3 = arith.constant 0 : index
    %c0_4 = arith.constant 0 : index
    %2 = vector.load %arg2[%c0_3, %c0_4] : memref<128x128xbf16, #tpu.memory_space<vmem>>, vector<128x128xbf16>
    %cst = arith.constant dense<0.000000e+00> : vector<1024x128xf32>
    %3 = tpu.matmul %1, %2, %cst {dimension_numbers = #tpu.dot_dimension_numbers<[1], [0], [0], [1], [0, 0, 1, 1], [], []>} : vector<1024x128xbf16>, vector<128x128xbf16>, vector<1024x128xf32> -> vector<1024x128xf32>
    %c0_5 = arith.constant 0 : index
    %c0_6 = arith.constant 0 : index
    %4 = vector.load %arg5[%c0_5, %c0_6] : memref<4x128xf32, #tpu.memory_space<vmem>>, vector<1x128xf32>
    %5 = vector.broadcast %4 : vector<1x128xf32> to vector<1024x128xf32>
    %6 = arith.addf %3, %5 : vector<1024x128xf32>
    %cst_7 = arith.constant 0.000000e+00 : f32
    %7 = vector.broadcast %cst_7 : f32 to vector<1024x128xf32>
    %8 = arith.maximumf %6, %7 : vector<1024x128xf32>
    %cst_8 = arith.constant 0.000000e+00 : f32
    %9 = vector.broadcast %cst_8 : f32 to vector<4x1x32x128xf32>
    %c0_9 = arith.constant 0 : index
    %c0_10 = arith.constant 0 : index
    %c0_11 = arith.constant 0 : index
    %c0_12 = arith.constant 0 : index
    %10 = vector.load %arg7[%c0_9, %c0_10, %c0_11, %c0_12] : memref<4x18x32x128xf32, #tpu.memory_space<vmem>>, vector<4x1x32x128xf32>
    tpu.vector_store %arg7[%c0_9, %c0_10, %c0_11, %c0_12], %9 {strides = array<i32>} : memref<4x18x32x128xf32, #tpu.memory_space<vmem>>, vector<4x1x32x128xf32>,
    %cst_13 = arith.constant 0.000000e+00 : f32
    %11 = vector.broadcast %cst_13 : f32 to vector<4x1x32x128xf32>
    %c0_14 = arith.constant 0 : index
    %c17 = arith.constant 17 : index
    %c0_15 = arith.constant 0 : index
    %c0_16 = arith.constant 0 : index
    %12 = vector.load %arg7[%c0_14, %c17, %c0_15, %c0_16] : memref<4x18x32x128xf32, #tpu.memory_space<vmem>>, vector<4x1x32x128xf32>
    tpu.vector_store %arg7[%c0_14, %c17, %c0_15, %c0_16], %11 {strides = array<i32>} : memref<4x18x32x128xf32, #tpu.memory_space<vmem>>, vector<4x1x32x128xf32>,
    %cst_17 = arith.constant 0.000000e+00 : f32
    %13 = vector.broadcast %cst_17 : f32 to vector<4x16x8x128xf32>
    %c0_18 = arith.constant 0 : index
    %c1 = arith.constant 1 : index
    %c0_19 = arith.constant 0 : index
    %c0_20 = arith.constant 0 : index
    %14 = vector.load %arg7[%c0_18, %c1, %c0_19, %c0_20] : memref<4x18x32x128xf32, #tpu.memory_space<vmem>>, vector<4x16x8x128xf32>
    tpu.vector_store %arg7[%c0_18, %c1, %c0_19, %c0_20], %13 {strides = array<i32>} : memref<4x18x32x128xf32, #tpu.memory_space<vmem>>, vector<4x16x8x128xf32>,
    %cst_21 = arith.constant 0.000000e+00 : f32
    %15 = vector.broadcast %cst_21 : f32 to vector<4x16x8x128xf32>
    %c0_22 = arith.constant 0 : index
    %c1_23 = arith.constant 1 : index
    %c24 = arith.constant 24 : index
    %c0_24 = arith.constant 0 : index
    %16 = vector.load %arg7[%c0_22, %c1_23, %c24, %c0_24] : memref<4x18x32x128xf32, #tpu.memory_space<vmem>>, vector<4x16x8x128xf32>
    tpu.vector_store %arg7[%c0_22, %c1_23, %c24, %c0_24], %15 {strides = array<i32>} : memref<4x18x32x128xf32, #tpu.memory_space<vmem>>, vector<4x16x8x128xf32>,
    %17 = vector.shape_cast %8 : vector<1024x128xf32> to vector<4x16x16x128xf32>
    %c0_25 = arith.constant 0 : index
    %c1_26 = arith.constant 1 : index
    %c8 = arith.constant 8 : index
    %c0_27 = arith.constant 0 : index
    %18 = vector.load %arg7[%c0_25, %c1_26, %c8, %c0_27] : memref<4x18x32x128xf32, #tpu.memory_space<vmem>>, vector<4x16x16x128xf32>
    tpu.vector_store %arg7[%c0_25, %c1_26, %c8, %c0_27], %17 {strides = array<i32>} : memref<4x18x32x128xf32, #tpu.memory_space<vmem>>, vector<4x16x16x128xf32>,
    %c0_28 = arith.constant 0 : index
    %c0_29 = arith.constant 0 : index
    %19 = vector.load %arg3[%c0_28, %c0_29] : memref<9x128xf32, #tpu.memory_space<vmem>>, vector<9x128xf32>
    %c0_30 = arith.constant 0 : index
    %c0_31 = arith.constant 0 : index
    %c7 = arith.constant 7 : index
    %c0_32 = arith.constant 0 : index
    %20 = vector.load %arg7[%c0_30, %c0_31, %c7, %c0_32] : memref<4x18x32x128xf32, #tpu.memory_space<vmem>>, vector<4x16x16x128xf32>
    %21 = vector.extract_strided_slice %19 {offsets = [0, 0], sizes = [1, 128], strides = [1, 1]} : vector<9x128xf32> to vector<1x128xf32>
    %22 = vector.shape_cast %21 : vector<1x128xf32> to vector<1x1x1x128xf32>
    %23 = vector.broadcast %22 : vector<1x1x1x128xf32> to vector<4x16x16x128xf32>
    %24 = arith.mulf %20, %23 : vector<4x16x16x128xf32>
    %c0_33 = arith.constant 0 : index
    %c0_34 = arith.constant 0 : index
    %c8_35 = arith.constant 8 : index
    %c0_36 = arith.constant 0 : index
    %25 = vector.load %arg7[%c0_33, %c0_34, %c8_35, %c0_36] : memref<4x18x32x128xf32, #tpu.memory_space<vmem>>, vector<4x16x16x128xf32>
    %26 = vector.extract_strided_slice %19 {offsets = [1, 0], sizes = [1, 128], strides = [1, 1]} : vector<9x128xf32> to vector<1x128xf32>
    %27 = vector.shape_cast %26 : vector<1x128xf32> to vector<1x1x1x128xf32>
    %28 = vector.broadcast %27 : vector<1x1x1x128xf32> to vector<4x16x16x128xf32>
    %29 = arith.mulf %25, %28 : vector<4x16x16x128xf32>
    %30 = arith.addf %24, %29 : vector<4x16x16x128xf32>
    %c0_37 = arith.constant 0 : index
    %c0_38 = arith.constant 0 : index
    %c9 = arith.constant 9 : index
    %c0_39 = arith.constant 0 : index
    %31 = vector.load %arg7[%c0_37, %c0_38, %c9, %c0_39] : memref<4x18x32x128xf32, #tpu.memory_space<vmem>>, vector<4x16x16x128xf32>
    %32 = vector.extract_strided_slice %19 {offsets = [2, 0], sizes = [1, 128], strides = [1, 1]} : vector<9x128xf32> to vector<1x128xf32>
    %33 = vector.shape_cast %32 : vector<1x128xf32> to vector<1x1x1x128xf32>
    %34 = vector.broadcast %33 : vector<1x1x1x128xf32> to vector<4x16x16x128xf32>
    %35 = arith.mulf %31, %34 : vector<4x16x16x128xf32>
    %36 = arith.addf %30, %35 : vector<4x16x16x128xf32>
    %c0_40 = arith.constant 0 : index
    %c1_41 = arith.constant 1 : index
    %c7_42 = arith.constant 7 : index
    %c0_43 = arith.constant 0 : index
    %37 = vector.load %arg7[%c0_40, %c1_41, %c7_42, %c0_43] : memref<4x18x32x128xf32, #tpu.memory_space<vmem>>, vector<4x16x16x128xf32>
    %38 = vector.extract_strided_slice %19 {offsets = [3, 0], sizes = [1, 128], strides = [1, 1]} : vector<9x128xf32> to vector<1x128xf32>
    %39 = vector.shape_cast %38 : vector<1x128xf32> to vector<1x1x1x128xf32>
    %40 = vector.broadcast %39 : vector<1x1x1x128xf32> to vector<4x16x16x128xf32>
    %41 = arith.mulf %37, %40 : vector<4x16x16x128xf32>
    %42 = arith.addf %36, %41 : vector<4x16x16x128xf32>
    %c0_44 = arith.constant 0 : index
    %c1_45 = arith.constant 1 : index
    %c8_46 = arith.constant 8 : index
    %c0_47 = arith.constant 0 : index
    %43 = vector.load %arg7[%c0_44, %c1_45, %c8_46, %c0_47] : memref<4x18x32x128xf32, #tpu.memory_space<vmem>>, vector<4x16x16x128xf32>
    %44 = vector.extract_strided_slice %19 {offsets = [4, 0], sizes = [1, 128], strides = [1, 1]} : vector<9x128xf32> to vector<1x128xf32>
    %45 = vector.shape_cast %44 : vector<1x128xf32> to vector<1x1x1x128xf32>
    %46 = vector.broadcast %45 : vector<1x1x1x128xf32> to vector<4x16x16x128xf32>
    %47 = arith.mulf %43, %46 : vector<4x16x16x128xf32>
    %48 = arith.addf %42, %47 : vector<4x16x16x128xf32>
    %c0_48 = arith.constant 0 : index
    %c1_49 = arith.constant 1 : index
    %c9_50 = arith.constant 9 : index
    %c0_51 = arith.constant 0 : index
    %49 = vector.load %arg7[%c0_48, %c1_49, %c9_50, %c0_51] : memref<4x18x32x128xf32, #tpu.memory_space<vmem>>, vector<4x16x16x128xf32>
    %50 = vector.extract_strided_slice %19 {offsets = [5, 0], sizes = [1, 128], strides = [1, 1]} : vector<9x128xf32> to vector<1x128xf32>
    %51 = vector.shape_cast %50 : vector<1x128xf32> to vector<1x1x1x128xf32>
    %52 = vector.broadcast %51 : vector<1x1x1x128xf32> to vector<4x16x16x128xf32>
    %53 = arith.mulf %49, %52 : vector<4x16x16x128xf32>
    %54 = arith.addf %48, %53 : vector<4x16x16x128xf32>
    %c0_52 = arith.constant 0 : index
    %c2 = arith.constant 2 : index
    %c7_53 = arith.constant 7 : index
    %c0_54 = arith.constant 0 : index
    %55 = vector.load %arg7[%c0_52, %c2, %c7_53, %c0_54] : memref<4x18x32x128xf32, #tpu.memory_space<vmem>>, vector<4x16x16x128xf32>
    %56 = vector.extract_strided_slice %19 {offsets = [6, 0], sizes = [1, 128], strides = [1, 1]} : vector<9x128xf32> to vector<1x128xf32>
    %57 = vector.shape_cast %56 : vector<1x128xf32> to vector<1x1x1x128xf32>
    %58 = vector.broadcast %57 : vector<1x1x1x128xf32> to vector<4x16x16x128xf32>
    %59 = arith.mulf %55, %58 : vector<4x16x16x128xf32>
    %60 = arith.addf %54, %59 : vector<4x16x16x128xf32>
    %c0_55 = arith.constant 0 : index
    %c2_56 = arith.constant 2 : index
    %c8_57 = arith.constant 8 : index
    %c0_58 = arith.constant 0 : index
    %61 = vector.load %arg7[%c0_55, %c2_56, %c8_57, %c0_58] : memref<4x18x32x128xf32, #tpu.memory_space<vmem>>, vector<4x16x16x128xf32>
    %62 = vector.extract_strided_slice %19 {offsets = [7, 0], sizes = [1, 128], strides = [1, 1]} : vector<9x128xf32> to vector<1x128xf32>
    %63 = vector.shape_cast %62 : vector<1x128xf32> to vector<1x1x1x128xf32>
    %64 = vector.broadcast %63 : vector<1x1x1x128xf32> to vector<4x16x16x128xf32>
    %65 = arith.mulf %61, %64 : vector<4x16x16x128xf32>
    %66 = arith.addf %60, %65 : vector<4x16x16x128xf32>
    %c0_59 = arith.constant 0 : index
    %c2_60 = arith.constant 2 : index
    %c9_61 = arith.constant 9 : index
    %c0_62 = arith.constant 0 : index
    %67 = vector.load %arg7[%c0_59, %c2_60, %c9_61, %c0_62] : memref<4x18x32x128xf32, #tpu.memory_space<vmem>>, vector<4x16x16x128xf32>
    %68 = vector.extract_strided_slice %19 {offsets = [8, 0], sizes = [1, 128], strides = [1, 1]} : vector<9x128xf32> to vector<1x128xf32>
    %69 = vector.shape_cast %68 : vector<1x128xf32> to vector<1x1x1x128xf32>
    %70 = vector.broadcast %69 : vector<1x1x1x128xf32> to vector<4x16x16x128xf32>
    %71 = arith.mulf %67, %70 : vector<4x16x16x128xf32>
    %72 = arith.addf %66, %71 : vector<4x16x16x128xf32>
    %73 = vector.shape_cast %72 : vector<4x16x16x128xf32> to vector<1024x128xf32>
    %c1_63 = arith.constant 1 : index
    %c0_64 = arith.constant 0 : index
    %74 = vector.load %arg5[%c1_63, %c0_64] : memref<4x128xf32, #tpu.memory_space<vmem>>, vector<1x128xf32>
    %75 = vector.broadcast %74 : vector<1x128xf32> to vector<1024x128xf32>
    %76 = arith.addf %73, %75 : vector<1024x128xf32>
    %cst_65 = arith.constant 0.000000e+00 : f32
    %77 = vector.broadcast %cst_65 : f32 to vector<1024x128xf32>
    %78 = arith.maximumf %76, %77 : vector<1024x128xf32>
    %79 = arith.truncf %78 : vector<1024x128xf32> to vector<1024x128xbf16>
    %c0_66 = arith.constant 0 : index
    %c0_67 = arith.constant 0 : index
    %80 = vector.load %arg4[%c0_66, %c0_67] : memref<128x128xbf16, #tpu.memory_space<vmem>>, vector<128x128xbf16>
    %cst_68 = arith.constant dense<0.000000e+00> : vector<1024x128xf32>
    %81 = tpu.matmul %79, %80, %cst_68 {dimension_numbers = #tpu.dot_dimension_numbers<[1], [0], [0], [1], [0, 0, 1, 1], [], []>} : vector<1024x128xbf16>, vector<128x128xbf16>, vector<1024x128xf32> -> vector<1024x128xf32>
    %c2_69 = arith.constant 2 : index
    %c0_70 = arith.constant 0 : index
    %82 = vector.load %arg5[%c2_69, %c0_70] : memref<4x128xf32, #tpu.memory_space<vmem>>, vector<1x128xf32>
    %83 = vector.broadcast %82 : vector<1x128xf32> to vector<1024x128xf32>
    %84 = arith.addf %81, %83 : vector<1024x128xf32>
    %c0_71 = arith.constant 0 : index
    %c0_72 = arith.constant 0 : index
    %c0_73 = arith.constant 0 : index
    %c0_74 = arith.constant 0 : index
    %85 = vector.load %arg1[%c0_71, %c0_72, %c0_73, %c0_74] : memref<4x16x16x128xbf16, #tpu.memory_space<vmem>>, vector<4x16x16x128xbf16>
    %86 = vector.shape_cast %85 : vector<4x16x16x128xbf16> to vector<1024x128xbf16>
    %87 = arith.extf %86 : vector<1024x128xbf16> to vector<1024x128xf32>
    %88 = arith.addf %84, %87 : vector<1024x128xf32>
    %89 = vector.shape_cast %88 : vector<1024x128xf32> to vector<4x16x16x128xf32>
    %90 = arith.truncf %89 : vector<4x16x16x128xf32> to vector<4x16x16x128xbf16>
    %c0_75 = arith.constant 0 : index
    %c0_76 = arith.constant 0 : index
    %c0_77 = arith.constant 0 : index
    %c0_78 = arith.constant 0 : index
    %91 = vector.load %arg6[%c0_75, %c0_76, %c0_77, %c0_78] : memref<4x16x16x128xbf16, #tpu.memory_space<vmem>>, vector<4x16x16x128xbf16>
    tpu.vector_store %arg6[%c0_75, %c0_76, %c0_77, %c0_78], %90 {strides = array<i32>} : memref<4x16x16x128xbf16, #tpu.memory_space<vmem>>, vector<4x16x16x128xbf16>,
    return
  }
  func.func @transform_0(%arg0: i32) -> (i32, i32, i32, i32) {
    %c0_i32 = arith.constant 0 : i32
    %c0_i32_0 = arith.constant 0 : i32
    %c0_i32_1 = arith.constant 0 : i32
    %c0_i32_2 = arith.constant 0 : i32
    return %arg0, %c0_i32, %c0_i32_0, %c0_i32_1 : i32, i32, i32, i32
  }
  func.func @transform_1(%arg0: i32) -> (i32, i32) {
    %c0_i32 = arith.constant 0 : i32
    %c0_i32_0 = arith.constant 0 : i32
    %c0_i32_1 = arith.constant 0 : i32
    return %c0_i32, %c0_i32_0 : i32, i32
  }
  func.func @transform_2(%arg0: i32) -> (i32, i32) {
    %c0_i32 = arith.constant 0 : i32
    %c0_i32_0 = arith.constant 0 : i32
    %c0_i32_1 = arith.constant 0 : i32
    return %c0_i32, %c0_i32_0 : i32, i32
  }
  func.func @transform_3(%arg0: i32) -> (i32, i32) {
    %c0_i32 = arith.constant 0 : i32
    %c0_i32_0 = arith.constant 0 : i32
    %c0_i32_1 = arith.constant 0 : i32
    return %c0_i32, %c0_i32_0 : i32, i32
  }
  func.func @transform_4(%arg0: i32) -> (i32, i32) {
    %c0_i32 = arith.constant 0 : i32
    %c0_i32_0 = arith.constant 0 : i32
    %c0_i32_1 = arith.constant 0 : i32
    return %c0_i32, %c0_i32_0 : i32, i32
  }
  func.func @transform_5(%arg0: i32) -> (i32, i32, i32, i32) {
    %c0_i32 = arith.constant 0 : i32
    %c0_i32_0 = arith.constant 0 : i32
    %c0_i32_1 = arith.constant 0 : i32
    %c0_i32_2 = arith.constant 0 : i32
    return %arg0, %c0_i32, %c0_i32_0, %c0_i32_1 : i32, i32, i32, i32
  }
}

</mosaic_0001>

<llo_original>
// kernel: block_forward.1
$region0: #{block_forward.1}
  #allocation0 [shape = 'u32[]', space=smem, size = 0x4, offset = 0x4, fixed_abs, tag = 'smem constant byte address 0x4 - core index']
  #allocation1 [shape = 'u32[144,128]{1,0:T(1,128)}', space=vmem, size = 0x12000, scoped, tag = 'internal scratch']
  #allocation2 [shape = 'f32[4,18,32,128]{3,2,1,0:T(8,128)}', space=vmem, size = 0x120000, scoped, tag = 'scratch operand']
  %s0 = inlined_call_operand.vmem [shape: bf16[8,16,16,128], index: 0, kind: input, shape index: {}]
  %s1 = inlined_call_operand.vmem [shape: bf16[128,128], index: 1, kind: input, shape index: {}]
  %s2 = inlined_call_operand.vmem [shape: f32[9,128], index: 2, kind: input, shape index: {}]
  %s3 = inlined_call_operand.vmem [shape: bf16[128,128], index: 3, kind: input, shape index: {}]
  %s4 = inlined_call_operand.vmem [shape: f32[4,128], index: 4, kind: input, shape index: {}]
  %s5 = inlined_call_operand.vmem [shape: bf16[8,16,16,128], index: 5, kind: output, shape index: {}]
  %s6 = sld [smem:[#allocation0]]
  $region53: #{block_forward.1} parent=0
    _
  %s8 = ssub.s32 1, %s6
  %s9 = scalar_select 0, %s8, %s6
  loop: start=0, step=1, limit=4
  $region2: #{block_forward.1} parent=0 // loop_pre_header
    _
  $region3: #{block_forward.1} parent=0 // loop_header
    %s11 = sphi 0, %s15
    %p12 = scmp.ge.s32.totalorder %s11, 4
    %s21 = sphi 0, %s23
    %s24 = sphi 0, %s21
    %s25 = sphi 0, %s24
    %s41 = sphi 0, %s25
    %s45 = sphi 0, %s45
    %s47 = sphi 0, %s45
    %s48 = sphi 0, %s47
    %s62 = sphi 0, %s48
    %s66 = sphi 0, %s66
    %s68 = sphi 0, %s66
    %s69 = sphi 0, %s68
    %s83 = sphi 0, %s69
    %s87 = sphi 0, %s87
    %s89 = sphi 0, %s87
    %s90 = sphi 0, %s89
    %s104 = sphi 0, %s90
    %s108 = sphi 0, %s108
    %s110 = sphi 0, %s108
    %s111 = sphi 0, %s110
    %s125 = sphi 0, %s111
    %s131 = sphi 0, %s133
    %s134 = sphi 0, %s131
    %s135 = sphi 0, %s134
    %s151 = sphi 0, %s135
  $region4: #{block_forward.1} parent=0 // loop_header_branch
    %14 = sbr.rel (%p12) target = $region8
  $region5: #{block_forward.1} parent=0 // loop_body
    %s16 = ssub.s32 %s11, 1
    %s17 = ssub.s32 %s11, 2
    %s18 = sadd.s32 %s11, 1
    %s19 = ssub.s32 %s11, %s18
    %p20 = scmp.eq.s32.totalorder %s19, 0
    %s22 = sadd.s32 %s21, 1
    %s23 = scalar_select %p20, %s21, %s22
    %p26 = pneg %p20
    %p27 = scmp.eq.s32.totalorder %s11, 1
    %p28 = por %p26, %p27
    %p29 = scmp.ne.s32.totalorder %s21, %s24
    %p30 = scmp.eq.s32.totalorder %s11, 0
    %p31 = por %p29, %p30
    %p32 = scmp.ne.s32.totalorder %s21, %s24
    %p33 = scmp.eq.s32.totalorder %s16, 1
    %p34 = por %p32, %p33
    %p35 = scmp.ne.s32.totalorder %s24, %s25
    %p36 = scmp.eq.s32.totalorder %s16, 0
    %p37 = por %p35, %p36
    %p38 = scmp.ne.s32.totalorder %s24, %s25
    %p39 = scmp.eq.s32.totalorder %s17, 1
    %p40 = por %p38, %p39
    %p42 = scmp.ne.s32.totalorder %s25, %s41
    %p43 = scmp.eq.s32.totalorder %s17, 0
    %p44 = por %p42, %p43
    %s46 = sadd.s32 %s45, 1
    %p49 = scmp.eq.s32.totalorder %s11, 1
    %p50 = scmp.ne.s32.totalorder %s45, %s47
    %p51 = scmp.eq.s32.totalorder %s11, 0
    %p52 = por %p50, %p51
    %p53 = scmp.ne.s32.totalorder %s45, %s47
    %p54 = scmp.eq.s32.totalorder %s16, 1
    %p55 = por %p53, %p54
    %p56 = scmp.ne.s32.totalorder %s47, %s48
    %p57 = scmp.eq.s32.totalorder %s16, 0
    %p58 = por %p56, %p57
    %p59 = scmp.ne.s32.totalorder %s47, %s48
    %p60 = scmp.eq.s32.totalorder %s17, 1
    %p61 = por %p59, %p60
    %p63 = scmp.ne.s32.totalorder %s48, %s62
    %p64 = scmp.eq.s32.totalorder %s17, 0
    %p65 = por %p63, %p64
    %s67 = sadd.s32 %s66, 1
    %p70 = scmp.eq.s32.totalorder %s11, 1
    %p71 = scmp.ne.s32.totalorder %s66, %s68
    %p72 = scmp.eq.s32.totalorder %s11, 0
    %p73 = por %p71, %p72
    %p74 = scmp.ne.s32.totalorder %s66, %s68
    %p75 = scmp.eq.s32.totalorder %s16, 1
    %p76 = por %p74, %p75
    %p77 = scmp.ne.s32.totalorder %s68, %s69
    %p78 = scmp.eq.s32.totalorder %s16, 0
    %p79 = por %p77, %p78
    %p80 = scmp.ne.s32.totalorder %s68, %s69
    %p81 = scmp.eq.s32.totalorder %s17, 1
    %p82 = por %p80, %p81
    %p84 = scmp.ne.s32.totalorder %s69, %s83
    %p85 = scmp.eq.s32.totalorder %s17, 0
    %p86 = por %p84, %p85
    %s88 = sadd.s32 %s87, 1
    %p91 = scmp.eq.s32.totalorder %s11, 1
    %p92 = scmp.ne.s32.totalorder %s87, %s89
    %p93 = scmp.eq.s32.totalorder %s11, 0
    %p94 = por %p92, %p93
    %p95 = scmp.ne.s32.totalorder %s87, %s89
    %p96 = scmp.eq.s32.totalorder %s16, 1
    %p97 = por %p95, %p96
    %p98 = scmp.ne.s32.totalorder %s89, %s90
    %p99 = scmp.eq.s32.totalorder %s16, 0
    %p100 = por %p98, %p99
    %p101 = scmp.ne.s32.totalorder %s89, %s90
    %p102 = scmp.eq.s32.totalorder %s17, 1
    %p103 = por %p101, %p102
    %p105 = scmp.ne.s32.totalorder %s90, %s104
    %p106 = scmp.eq.s32.totalorder %s17, 0
    %p107 = por %p105, %p106
    %s109 = sadd.s32 %s108, 1
    %p112 = scmp.eq.s32.totalorder %s11, 1
    %p113 = scmp.ne.s32.totalorder %s108, %s110
    %p114 = scmp.eq.s32.totalorder %s11, 0
    %p115 = por %p113, %p114
    %p116 = scmp.ne.s32.totalorder %s108, %s110
    %p117 = scmp.eq.s32.totalorder %s16, 1
    %p118 = por %p116, %p117
    %p119 = scmp.ne.s32.totalorder %s110, %s111
    %p120 = scmp.eq.s32.totalorder %s16, 0
    %p121 = por %p119, %p120
    %p122 = scmp.ne.s32.totalorder %s110, %s111
    %p123 = scmp.eq.s32.totalorder %s17, 1
    %p124 = por %p122, %p123
    %p126 = scmp.ne.s32.totalorder %s111, %s125
    %p127 = scmp.eq.s32.totalorder %s17, 0
    %p128 = por %p126, %p127
    %s129 = ssub.s32 %s11, %s18
    %p130 = scmp.eq.s32.totalorder %s129, 0
    %s132 = sadd.s32 %s131, 1
    %s133 = scalar_select %p130, %s131, %s132
    %p136 = pneg %p130
    %p137 = scmp.eq.s32.totalorder %s11, 1
    %p138 = por %p136, %p137
    %p139 = scmp.ne.s32.totalorder %s131, %s134
    %p140 = scmp.eq.s32.totalorder %s11, 0
    %p141 = por %p139, %p140
    %p142 = scmp.ne.s32.totalorder %s131, %s134
    %p143 = scmp.eq.s32.totalorder %s16, 1
    %p144 = por %p142, %p143
    %p145 = scmp.ne.s32.totalorder %s134, %s135
    %p146 = scmp.eq.s32.totalorder %s16, 0
    %p147 = por %p145, %p146
    %p148 = scmp.ne.s32.totalorder %s134, %s135
    %p149 = scmp.eq.s32.totalorder %s17, 1
    %p150 = por %p148, %p149
    %p152 = scmp.ne.s32.totalorder %s135, %s151
    %p153 = scmp.eq.s32.totalorder %s17, 0
    %p154 = por %p152, %p153
    %p155 = scmp.le.s32.totalorder 1, %s11
    %p156 = scmp.lt.s32.totalorder %s11, 3
    %p157 = pnand %p155, %p156
    %p158 = pneg %p157
    // Predicated region
    $region9: #{block_forward.1} parent=5 // pred_check
      _
    $region10: #{block_forward.1} parent=5 // pred_check_branch
      %160 = sbr.rel (%p157) target = $region12
    $region11: #{block_forward.1} parent=5 // pred_region
      %s161 = ssub.s32 %s11, 1
      // Predicated region
      $region13: #{block_forward.1} parent=11 // pred_check
        %p162 = pneg %p58
      $region14: #{block_forward.1} parent=11 // pred_check_branch
        %164 = sbr.rel (%p162) target = $region16
      $region15: #{block_forward.1} parent=11 // pred_region
        _
      $region16: #{block_forward.1} parent=11 // pred_fallthru
        _
      // Predicated region
      $region17: #{block_forward.1} parent=11 // pred_check
        %p165 = pneg %p79
      $region18: #{block_forward.1} parent=11 // pred_check_branch
        %167 = sbr.rel (%p165) target = $region20
      $region19: #{block_forward.1} parent=11 // pred_region
        _
      $region20: #{block_forward.1} parent=11 // pred_fallthru
        _
      // Predicated region
      $region21: #{block_forward.1} parent=11 // pred_check
        %p168 = pneg %p100
      $region22: #{block_forward.1} parent=11 // pred_check_branch
        %170 = sbr.rel (%p168) target = $region24
      $region23: #{block_forward.1} parent=11 // pred_region
        _
      $region24: #{block_forward.1} parent=11 // pred_fallthru
        _
      // Predicated region
      $region25: #{block_forward.1} parent=11 // pred_check
        %p171 = pneg %p121
      $region26: #{block_forward.1} parent=11 // pred_check_branch
        %173 = sbr.rel (%p171) target = $region28
      $region27: #{block_forward.1} parent=11 // pred_region
        _
      $region28: #{block_forward.1} parent=11 // pred_fallthru
        _
    $region12: #{block_forward.1} parent=5 // pred_fallthru
      _
    %p174 = scmp.lt.s32.totalorder %s11, 2
    // Predicated region
    $region29: #{block_forward.1} parent=5 // pred_check
      %p175 = pneg %p174
    $region30: #{block_forward.1} parent=5 // pred_check_branch
      %177 = sbr.rel (%p175) target = $region32
    $region31: #{block_forward.1} parent=5 // pred_region
      // Predicated region
      $region33: #{block_forward.1} parent=31 // pred_check
        %p178 = pneg %p31
      $region34: #{block_forward.1} parent=31 // pred_check_branch
        %180 = sbr.rel (%p178) target = $region36
      $region35: #{block_forward.1} parent=31 // pred_region
        %s181 = smul.u32 4, %s11
        %p182 = scmp.lt.s32.totalorder %s181, 7
        %s183 = scalar_select %p182, %s181, 7
        %s184 = smul.addr %s183, 32
        %s185 = smul.addr %s184, 4
        %s186 = scalar_lea.vmem %s0, %s185
        %s187 = smul.u32 4, %s11
      $region36: #{block_forward.1} parent=31 // pred_fallthru
        _
    $region32: #{block_forward.1} parent=5 // pred_fallthru
      _
    %p188 = scmp.le.s32.totalorder 1, %s11
    %p189 = scmp.lt.s32.totalorder %s11, 3
    %p190 = pnand %p188, %p189
    %p191 = pneg %p190
    // Predicated region
    $region37: #{block_forward.1} parent=5 // pred_check
      _
    $region38: #{block_forward.1} parent=5 // pred_check_branch
      %193 = sbr.rel (%p190) target = $region40
    $region39: #{block_forward.1} parent=5 // pred_region
      %s194 = ssub.s32 %s11, 1
      %s195 = smul.u32 4, %s16
      %p196 = scmp.lt.s32.totalorder %s195, 7
      %s197 = scalar_select %p196, %s195, 7
      %s198 = smul.addr %s197, 32
      %s199 = smul.addr %s198, 4
      %s200 = scalar_lea.vmem %s0, %s199
      %p201 = pneg %p37
      %p202 = pneg %p34
      %p203 = pneg %p58
      %p204 = pneg %p55
      %p205 = pneg %p79
      %p206 = pneg %p76
      %p207 = pneg %p100
      %p208 = pneg %p97
      %p209 = pneg %p121
      %p210 = pneg %p118
      %p211 = pneg %p147
      %p212 = pneg %p144
      %s213 = smul.u32 4, %s16
      %p214 = scmp.lt.s32.totalorder %s213, 7
      %s215 = scalar_select %p214, %s213, 7
      %s216 = smul.addr %s215, 32
      %s217 = smul.addr %s216, 4
      %s218 = scalar_lea.vmem %s5, %s217
      %s219 = smul.u32 4, %s16
      %p220 = scmp.lt.s32.totalorder %s219, 7
      %s221 = scalar_select %p220, %s219, 7
      %s222 = smul.addr %s221, 32
      %s223 = smul.addr %s222, 4
      %s224 = scalar_lea.vmem %s0, %s223
      %s225 = smul.u32 4, %s16
      %s226 = smul.u32 4, %s16
      %p227 = scmp.lt.s32.totalorder %s226, 7
      %s228 = scalar_select %p227, %s226, 7
      %s229 = smul.addr %s228, 32
      %s230 = smul.addr %s229, 4
      %s231 = scalar_lea.vmem %s5, %s230
      %s232 = smul.u32 4, %s16
      %v234 = vld [vmem:[%s224] sm:$0xf]
      %v235 = vld [vmem:[%s224 + $0x4] sm:$0xf]
      %v236 = vld [vmem:[%s224 + $0x8] sm:$0xf]
      %v237 = vld [vmem:[%s224 + $0xc] sm:$0xf]
      %v238 = vld [vmem:[%s224 + $0x10] sm:$0xf]
      %v239 = vld [vmem:[%s224 + $0x14] sm:$0xf]
      %v240 = vld [vmem:[%s224 + $0x18] sm:$0xf]
      %v241 = vld [vmem:[%s224 + $0x1c] sm:$0xf]
      %v242 = vld [vmem:[%s224 + $0x20] sm:$0xf]
      %v243 = vld [vmem:[%s224 + $0x24] sm:$0xf]
      %v244 = vld [vmem:[%s224 + $0x28] sm:$0xf]
      %v245 = vld [vmem:[%s224 + $0x2c] sm:$0xf]
      %v246 = vld [vmem:[%s224 + $0x30] sm:$0xf]
      %v247 = vld [vmem:[%s224 + $0x34] sm:$0xf]
      %v248 = vld [vmem:[%s224 + $0x38] sm:$0xf]
      %v249 = vld [vmem:[%s224 + $0x3c] sm:$0xf]
      %v250 = vld [vmem:[%s224 + $0x40] sm:$0xf]
      %v251 = vld [vmem:[%s224 + $0x44] sm:$0xf]
      %v252 = vld [vmem:[%s224 + $0x48] sm:$0xf]
      %v253 = vld [vmem:[%s224 + $0x4c] sm:$0xf]
      %v254 = vld [vmem:[%s224 + $0x50] sm:$0xf]
      %v255 = vld [vmem:[%s224 + $0x54] sm:$0xf]
      %v256 = vld [vmem:[%s224 + $0x58] sm:$0xf]
      %v257 = vld [vmem:[%s224 + $0x5c] sm:$0xf]
      %v258 = vld [vmem:[%s224 + $0x60] sm:$0xf]
      %v259 = vld [vmem:[%s224 + $0x64] sm:$0xf]
      %v260 = vld [vmem:[%s224 + $0x68] sm:$0xf]
      %v261 = vld [vmem:[%s224 + $0x6c] sm:$0xf]
      %v262 = vld [vmem:[%s224 + $0x70] sm:$0xf]
      %v263 = vld [vmem:[%s224 + $0x74] sm:$0xf]
      %v264 = vld [vmem:[%s224 + $0x78] sm:$0xf]
      %v265 = vld [vmem:[%s224 + $0x7c] sm:$0xf]
      %v266 = vld [vmem:[%s224 + $0x80] sm:$0xf]
      %v267 = vld [vmem:[%s224 + $0x84] sm:$0xf]
      %v268 = vld [vmem:[%s224 + $0x88] sm:$0xf]
      %v269 = vld [vmem:[%s224 + $0x8c] sm:$0xf]
      %v270 = vld [vmem:[%s224 + $0x90] sm:$0xf]
      %v271 = vld [vmem:[%s224 + $0x94] sm:$0xf]
      %v272 = vld [vmem:[%s224 + $0x98] sm:$0xf]
      %v273 = vld [vmem:[%s224 + $0x9c] sm:$0xf]
      %v274 = vld [vmem:[%s224 + $0xa0] sm:$0xf]
      %v275 = vld [vmem:[%s224 + $0xa4] sm:$0xf]
      %v276 = vld [vmem:[%s224 + $0xa8] sm:$0xf]
      %v277 = vld [vmem:[%s224 + $0xac] sm:$0xf]
      %v278 = vld [vmem:[%s224 + $0xb0] sm:$0xf]
      %v279 = vld [vmem:[%s224 + $0xb4] sm:$0xf]
      %v280 = vld [vmem:[%s224 + $0xb8] sm:$0xf]
      %v281 = vld [vmem:[%s224 + $0xbc] sm:$0xf]
      %v282 = vld [vmem:[%s224 + $0xc0] sm:$0xf]
      %v283 = vld [vmem:[%s224 + $0xc4] sm:$0xf]
      %v284 = vld [vmem:[%s224 + $0xc8] sm:$0xf]
      %v285 = vld [vmem:[%s224 + $0xcc] sm:$0xf]
      %v286 = vld [vmem:[%s224 + $0xd0] sm:$0xf]
      %v287 = vld [vmem:[%s224 + $0xd4] sm:$0xf]
      %v288 = vld [vmem:[%s224 + $0xd8] sm:$0xf]
      %v289 = vld [vmem:[%s224 + $0xdc] sm:$0xf]
      %v290 = vld [vmem:[%s224 + $0xe0] sm:$0xf]
      %v291 = vld [vmem:[%s224 + $0xe4] sm:$0xf]
      %v292 = vld [vmem:[%s224 + $0xe8] sm:$0xf]
      %v293 = vld [vmem:[%s224 + $0xec] sm:$0xf]
      %v294 = vld [vmem:[%s224 + $0xf0] sm:$0xf]
      %v295 = vld [vmem:[%s224 + $0xf4] sm:$0xf]
      %v296 = vld [vmem:[%s224 + $0xf8] sm:$0xf]
      %v297 = vld [vmem:[%s224 + $0xfc] sm:$0xf]
      %v298 = vld [vmem:[%s224 + $0x100] sm:$0xf]
      %v299 = vld [vmem:[%s224 + $0x104] sm:$0xf]
      %v300 = vld [vmem:[%s224 + $0x108] sm:$0xf]
      %v301 = vld [vmem:[%s224 + $0x10c] sm:$0xf]
      %v302 = vld [vmem:[%s224 + $0x110] sm:$0xf]
      %v303 = vld [vmem:[%s224 + $0x114] sm:$0xf]
      %v304 = vld [vmem:[%s224 + $0x118] sm:$0xf]
      %v305 = vld [vmem:[%s224 + $0x11c] sm:$0xf]
      %v306 = vld [vmem:[%s224 + $0x120] sm:$0xf]
      %v307 = vld [vmem:[%s224 + $0x124] sm:$0xf]
      %v308 = vld [vmem:[%s224 + $0x128] sm:$0xf]
      %v309 = vld [vmem:[%s224 + $0x12c] sm:$0xf]
      %v310 = vld [vmem:[%s224 + $0x130] sm:$0xf]
      %v311 = vld [vmem:[%s224 + $0x134] sm:$0xf]
      %v312 = vld [vmem:[%s224 + $0x138] sm:$0xf]
      %v313 = vld [vmem:[%s224 + $0x13c] sm:$0xf]
      %v314 = vld [vmem:[%s224 + $0x140] sm:$0xf]
      %v315 = vld [vmem:[%s224 + $0x144] sm:$0xf]
      %v316 = vld [vmem:[%s224 + $0x148] sm:$0xf]
      %v317 = vld [vmem:[%s224 + $0x14c] sm:$0xf]
      %v318 = vld [vmem:[%s224 + $0x150] sm:$0xf]
      %v319 = vld [vmem:[%s224 + $0x154] sm:$0xf]
      %v320 = vld [vmem:[%s224 + $0x158] sm:$0xf]
      %v321 = vld [vmem:[%s224 + $0x15c] sm:$0xf]
      %v322 = vld [vmem:[%s224 + $0x160] sm:$0xf]
      %v323 = vld [vmem:[%s224 + $0x164] sm:$0xf]
      %v324 = vld [vmem:[%s224 + $0x168] sm:$0xf]
      %v325 = vld [vmem:[%s224 + $0x16c] sm:$0xf]
      %v326 = vld [vmem:[%s224 + $0x170] sm:$0xf]
      %v327 = vld [vmem:[%s224 + $0x174] sm:$0xf]
      %v328 = vld [vmem:[%s224 + $0x178] sm:$0xf]
      %v329 = vld [vmem:[%s224 + $0x17c] sm:$0xf]
      %v330 = vld [vmem:[%s224 + $0x180] sm:$0xf]
      %v331 = vld [vmem:[%s224 + $0x184] sm:$0xf]
      %v332 = vld [vmem:[%s224 + $0x188] sm:$0xf]
      %v333 = vld [vmem:[%s224 + $0x18c] sm:$0xf]
      %v334 = vld [vmem:[%s224 + $0x190] sm:$0xf]
      %v335 = vld [vmem:[%s224 + $0x194] sm:$0xf]
      %v336 = vld [vmem:[%s224 + $0x198] sm:$0xf]
      %v337 = vld [vmem:[%s224 + $0x19c] sm:$0xf]
      %v338 = vld [vmem:[%s224 + $0x1a0] sm:$0xf]
      %v339 = vld [vmem:[%s224 + $0x1a4] sm:$0xf]
      %v340 = vld [vmem:[%s224 + $0x1a8] sm:$0xf]
      %v341 = vld [vmem:[%s224 + $0x1ac] sm:$0xf]
      %v342 = vld [vmem:[%s224 + $0x1b0] sm:$0xf]
      %v343 = vld [vmem:[%s224 + $0x1b4] sm:$0xf]
      %v344 = vld [vmem:[%s224 + $0x1b8] sm:$0xf]
      %v345 = vld [vmem:[%s224 + $0x1bc] sm:$0xf]
      %v346 = vld [vmem:[%s224 + $0x1c0] sm:$0xf]
      %v347 = vld [vmem:[%s224 + $0x1c4] sm:$0xf]
      %v348 = vld [vmem:[%s224 + $0x1c8] sm:$0xf]
      %v349 = vld [vmem:[%s224 + $0x1cc] sm:$0xf]
      %v350 = vld [vmem:[%s224 + $0x1d0] sm:$0xf]
      %v351 = vld [vmem:[%s224 + $0x1d4] sm:$0xf]
      %v352 = vld [vmem:[%s224 + $0x1d8] sm:$0xf]
      %v353 = vld [vmem:[%s224 + $0x1dc] sm:$0xf]
      %v354 = vld [vmem:[%s224 + $0x1e0] sm:$0xf]
      %v355 = vld [vmem:[%s224 + $0x1e4] sm:$0xf]
      %v356 = vld [vmem:[%s224 + $0x1e8] sm:$0xf]
      %v357 = vld [vmem:[%s224 + $0x1ec] sm:$0xf]
      %v358 = vld [vmem:[%s224 + $0x1f0] sm:$0xf]
      %v359 = vld [vmem:[%s224 + $0x1f4] sm:$0xf]
      %v360 = vld [vmem:[%s224 + $0x1f8] sm:$0xf]
      %v361 = vld [vmem:[%s224 + $0x1fc] sm:$0xf]
      %v362 = vld [vmem:[%s1] sm:$0xf]
      %v363 = vld [vmem:[%s1 + $0x4] sm:$0xf]
      %v364 = vld [vmem:[%s1 + $0x8] sm:$0xf]
      %v365 = vld [vmem:[%s1 + $0xc] sm:$0xf]
      %v366 = vld [vmem:[%s1 + $0x10] sm:$0xf]
      %v367 = vld [vmem:[%s1 + $0x14] sm:$0xf]
      %v368 = vld [vmem:[%s1 + $0x18] sm:$0xf]
      %v369 = vld [vmem:[%s1 + $0x1c] sm:$0xf]
      %v370 = vld [vmem:[%s1 + $0x20] sm:$0xf]
      %v371 = vld [vmem:[%s1 + $0x24] sm:$0xf]
      %v372 = vld [vmem:[%s1 + $0x28] sm:$0xf]
      %v373 = vld [vmem:[%s1 + $0x2c] sm:$0xf]
      %v374 = vld [vmem:[%s1 + $0x30] sm:$0xf]
      %v375 = vld [vmem:[%s1 + $0x34] sm:$0xf]
      %v376 = vld [vmem:[%s1 + $0x38] sm:$0xf]
      %v377 = vld [vmem:[%s1 + $0x3c] sm:$0xf]
      %v378 = vld [vmem:[%s4] sm:$0x1]
      %v379 = vlaneseq
      %v380 = vshrl.u32 %v379, 7
      %v381 = vsub.s32 0, %v380
      %v382 = vrot.slane %v378, %v381
      %v511 = vunpack.c.l.b16 %v234
      %v512 = vunpack.c.l.b16 %v235
      %v513 = vunpack.c.l.b16 %v236
      %v514 = vunpack.c.l.b16 %v237
      %v515 = vunpack.c.l.b16 %v238
      %v516 = vunpack.c.l.b16 %v239
      %v517 = vunpack.c.l.b16 %v240
      %v518 = vunpack.c.l.b16 %v241
      %v519 = vunpack.c.l.b16 %v242
      %v520 = vunpack.c.l.b16 %v243
      %v521 = vunpack.c.l.b16 %v244
      %v522 = vunpack.c.l.b16 %v245
      %v523 = vunpack.c.l.b16 %v246
      %v524 = vunpack.c.l.b16 %v247
      %v525 = vunpack.c.l.b16 %v248
      %v526 = vunpack.c.l.b16 %v249
      %v527 = vunpack.c.l.b16 %v250
      %v528 = vunpack.c.l.b16 %v251
      %v529 = vunpack.c.l.b16 %v252
      %v530 = vunpack.c.l.b16 %v253
      %v531 = vunpack.c.l.b16 %v254
      %v532 = vunpack.c.l.b16 %v255
      %v533 = vunpack.c.l.b16 %v256
      %v534 = vunpack.c.l.b16 %v257
      %v535 = vunpack.c.l.b16 %v258
      %v536 = vunpack.c.l.b16 %v259
      %v537 = vunpack.c.l.b16 %v260
      %v538 = vunpack.c.l.b16 %v261
      %v539 = vunpack.c.l.b16 %v262
      %v540 = vunpack.c.l.b16 %v263
      %v541 = vunpack.c.l.b16 %v264
      %v542 = vunpack.c.l.b16 %v265
      %v543 = vunpack.c.l.b16 %v266
      %v544 = vunpack.c.l.b16 %v267
      %v545 = vunpack.c.l.b16 %v268
      %v546 = vunpack.c.l.b16 %v269
      %v547 = vunpack.c.l.b16 %v270
      %v548 = vunpack.c.l.b16 %v271
      %v549 = vunpack.c.l.b16 %v272
      %v550 = vunpack.c.l.b16 %v273
      %v551 = vunpack.c.l.b16 %v274
      %v552 = vunpack.c.l.b16 %v275
      %v553 = vunpack.c.l.b16 %v276
      %v554 = vunpack.c.l.b16 %v277
      %v555 = vunpack.c.l.b16 %v278
      %v556 = vunpack.c.l.b16 %v279
      %v557 = vunpack.c.l.b16 %v280
      %v558 = vunpack.c.l.b16 %v281
      %v559 = vunpack.c.l.b16 %v282
      %v560 = vunpack.c.l.b16 %v283
      %v561 = vunpack.c.l.b16 %v284
      %v562 = vunpack.c.l.b16 %v285
      %v563 = vunpack.c.l.b16 %v286
      %v564 = vunpack.c.l.b16 %v287
      %v565 = vunpack.c.l.b16 %v288
      %v566 = vunpack.c.l.b16 %v289
      %v567 = vunpack.c.l.b16 %v290
      %v568 = vunpack.c.l.b16 %v291
      %v569 = vunpack.c.l.b16 %v292
      %v570 = vunpack.c.l.b16 %v293
      %v571 = vunpack.c.l.b16 %v294
      %v572 = vunpack.c.l.b16 %v295
      %v573 = vunpack.c.l.b16 %v296
      %v574 = vunpack.c.l.b16 %v297
      %v575 = vunpack.c.l.b16 %v298
      %v576 = vunpack.c.l.b16 %v299
      %v577 = vunpack.c.l.b16 %v300
      %v578 = vunpack.c.l.b16 %v301
      %v579 = vunpack.c.l.b16 %v302
      %v580 = vunpack.c.l.b16 %v303
      %v581 = vunpack.c.l.b16 %v304
      %v582 = vunpack.c.l.b16 %v305
      %v583 = vunpack.c.l.b16 %v306
      %v584 = vunpack.c.l.b16 %v307
      %v585 = vunpack.c.l.b16 %v308
      %v586 = vunpack.c.l.b16 %v309
      %v587 = vunpack.c.l.b16 %v310
      %v588 = vunpack.c.l.b16 %v311
      %v589 = vunpack.c.l.b16 %v312
      %v590 = vunpack.c.l.b16 %v313
      %v591 = vunpack.c.l.b16 %v314
      %v592 = vunpack.c.l.b16 %v315
      %v593 = vunpack.c.l.b16 %v316
      %v594 = vunpack.c.l.b16 %v317
      %v595 = vunpack.c.l.b16 %v318
      %v596 = vunpack.c.l.b16 %v319
      %v597 = vunpack.c.l.b16 %v320
      %v598 = vunpack.c.l.b16 %v321
      %v599 = vunpack.c.l.b16 %v322
      %v600 = vunpack.c.l.b16 %v323
      %v601 = vunpack.c.l.b16 %v324
      %v602 = vunpack.c.l.b16 %v325
      %v603 = vunpack.c.l.b16 %v326
      %v604 = vunpack.c.l.b16 %v327
      %v605 = vunpack.c.l.b16 %v328
      %v606 = vunpack.c.l.b16 %v329
      %v607 = vunpack.c.l.b16 %v330
      %v608 = vunpack.c.l.b16 %v331
      %v609 = vunpack.c.l.b16 %v332
      %v610 = vunpack.c.l.b16 %v333
      %v611 = vunpack.c.l.b16 %v334
      %v612 = vunpack.c.l.b16 %v335
      %v613 = vunpack.c.l.b16 %v336
      %v614 = vunpack.c.l.b16 %v337
      %v615 = vunpack.c.l.b16 %v338
      %v616 = vunpack.c.l.b16 %v339
      %v617 = vunpack.c.l.b16 %v340
      %v618 = vunpack.c.l.b16 %v341
      %v619 = vunpack.c.l.b16 %v342
      %v620 = vunpack.c.l.b16 %v343
      %v621 = vunpack.c.l.b16 %v344
      %v622 = vunpack.c.l.b16 %v345
      %v623 = vunpack.c.l.b16 %v346
      %v624 = vunpack.c.l.b16 %v347
      %v625 = vunpack.c.l.b16 %v348
      %v626 = vunpack.c.l.b16 %v349
      %v627 = vunpack.c.l.b16 %v350
      %v628 = vunpack.c.l.b16 %v351
      %v629 = vunpack.c.l.b16 %v352
      %v630 = vunpack.c.l.b16 %v353
      %v631 = vunpack.c.l.b16 %v354
      %v632 = vunpack.c.l.b16 %v355
      %v633 = vunpack.c.l.b16 %v356
      %v634 = vunpack.c.l.b16 %v357
      %v635 = vunpack.c.l.b16 %v358
      %v636 = vunpack.c.l.b16 %v359
      %v637 = vunpack.c.l.b16 %v360
      %v638 = vunpack.c.l.b16 %v361
      %v639 = vpack.c.b16 %v512, %v511
      %v640 = vpack.c.b16 %v514, %v513
      %v641 = vpack.c.b16 %v516, %v515
      %v642 = vpack.c.b16 %v518, %v517
      %v643 = vpack.c.b16 %v520, %v519
      %v644 = vpack.c.b16 %v522, %v521
      %v645 = vpack.c.b16 %v524, %v523
      %v646 = vpack.c.b16 %v526, %v525
      %v647 = vpack.c.b16 %v528, %v527
      %v648 = vpack.c.b16 %v530, %v529
      %v649 = vpack.c.b16 %v532, %v531
      %v650 = vpack.c.b16 %v534, %v533
      %v651 = vpack.c.b16 %v536, %v535
      %v652 = vpack.c.b16 %v538, %v537
      %v653 = vpack.c.b16 %v540, %v539
      %v654 = vpack.c.b16 %v542, %v541
      %v655 = vpack.c.b16 %v544, %v543
      %v656 = vpack.c.b16 %v546, %v545
      %v657 = vpack.c.b16 %v548, %v547
      %v658 = vpack.c.b16 %v550, %v549
      %v659 = vpack.c.b16 %v552, %v551
      %v660 = vpack.c.b16 %v554, %v553
      %v661 = vpack.c.b16 %v556, %v555
      %v662 = vpack.c.b16 %v558, %v557
      %v663 = vpack.c.b16 %v560, %v559
      %v664 = vpack.c.b16 %v562, %v561
      %v665 = vpack.c.b16 %v564, %v563
      %v666 = vpack.c.b16 %v566, %v565
      %v667 = vpack.c.b16 %v568, %v567
      %v668 = vpack.c.b16 %v570, %v569
      %v669 = vpack.c.b16 %v572, %v571
      %v670 = vpack.c.b16 %v574, %v573
      %v671 = vpack.c.b16 %v576, %v575
      %v672 = vpack.c.b16 %v578, %v577
      %v673 = vpack.c.b16 %v580, %v579
      %v674 = vpack.c.b16 %v582, %v581
      %v675 = vpack.c.b16 %v584, %v583
      %v676 = vpack.c.b16 %v586, %v585
      %v677 = vpack.c.b16 %v588, %v587
      %v678 = vpack.c.b16 %v590, %v589
      %v679 = vpack.c.b16 %v592, %v591
      %v680 = vpack.c.b16 %v594, %v593
      %v681 = vpack.c.b16 %v596, %v595
      %v682 = vpack.c.b16 %v598, %v597
      %v683 = vpack.c.b16 %v600, %v599
      %v684 = vpack.c.b16 %v602, %v601
      %v685 = vpack.c.b16 %v604, %v603
      %v686 = vpack.c.b16 %v606, %v605
      %v687 = vpack.c.b16 %v608, %v607
      %v688 = vpack.c.b16 %v610, %v609
      %v689 = vpack.c.b16 %v612, %v611
      %v690 = vpack.c.b16 %v614, %v613
      %v691 = vpack.c.b16 %v616, %v615
      %v692 = vpack.c.b16 %v618, %v617
      %v693 = vpack.c.b16 %v620, %v619
      %v694 = vpack.c.b16 %v622, %v621
      %v695 = vpack.c.b16 %v624, %v623
      %v696 = vpack.c.b16 %v626, %v625
      %v697 = vpack.c.b16 %v628, %v627
      %v698 = vpack.c.b16 %v630, %v629
      %v699 = vpack.c.b16 %v632, %v631
      %v700 = vpack.c.b16 %v634, %v633
      %v701 = vpack.c.b16 %v636, %v635
      %v702 = vpack.c.b16 %v638, %v637
      %v783 = vunpack.c.l.b16 %v362
      %v784 = vunpack.c.l.b16 %v363
      %v785 = vunpack.c.l.b16 %v364
      %v786 = vunpack.c.l.b16 %v365
      %v787 = vunpack.c.l.b16 %v366
      %v788 = vunpack.c.l.b16 %v367
      %v789 = vunpack.c.l.b16 %v368
      %v790 = vunpack.c.l.b16 %v369
      %v791 = vunpack.c.l.b16 %v370
      %v792 = vunpack.c.l.b16 %v371
      %v793 = vunpack.c.l.b16 %v372
      %v794 = vunpack.c.l.b16 %v373
      %v795 = vunpack.c.l.b16 %v374
      %v796 = vunpack.c.l.b16 %v375
      %v797 = vunpack.c.l.b16 %v376
      %v798 = vunpack.c.l.b16 %v377
      %v799 = vpack.c.b16 %v784, %v783
      %v800 = vpack.c.b16 %v786, %v785
      %v801 = vpack.c.b16 %v788, %v787
      %v802 = vpack.c.b16 %v790, %v789
      %v803 = vpack.c.b16 %v792, %v791
      %v804 = vpack.c.b16 %v794, %v793
      %v805 = vpack.c.b16 %v796, %v795
      %v806 = vpack.c.b16 %v798, %v797
      %815 = vmatprep.subr.bf16.mxu0 0
      %816 = vmatpush1.bf16.msra.mxu0 %v799
      %817 = vmatprep.subr.bf16.mxu0 0
      %818 = vmatpush1.bf16.msra.mxu0 %v800
      %819 = vmatprep.subr.bf16.mxu0 0
      %820 = vmatpush1.bf16.msra.mxu0 %v801
      %821 = vmatprep.subr.bf16.mxu0 0
      %822 = vmatpush1.bf16.msra.mxu0 %v802
      %823 = vmatprep.subr.bf16.mxu0 0
      %824 = vmatpush1.bf16.msra.mxu0 %v803
      %825 = vmatprep.subr.bf16.mxu0 0
      %826 = vmatpush1.bf16.msra.mxu0 %v804
      %827 = vmatprep.subr.bf16.mxu0 0
      %828 = vmatpush1.bf16.msra.mxu0 %v805
      %829 = vmatprep.subr.bf16.mxu0 0
      %830 = vmatpush1.bf16.msra.mxu0 %v806
      %831 = vmatprep.subr.bf16.mxu0 0
      %832 = vmatpush1.bf16.msra.mxu0 0
      %833 = vmatprep.subr.bf16.mxu0 0
      %834 = vmatpush1.bf16.msra.mxu0 0
      %835 = vmatprep.subr.bf16.mxu0 0
      %836 = vmatpush1.bf16.msra.mxu0 0
      %837 = vmatprep.subr.bf16.mxu0 0
      %838 = vmatpush1.bf16.msra.mxu0 0
      %839 = vmatprep.subr.bf16.mxu0 0
      %840 = vmatpush1.bf16.msra.mxu0 0
      %841 = vmatprep.subr.bf16.mxu0 0
      %842 = vmatpush1.bf16.msra.mxu0 0
      %843 = vmatprep.subr.bf16.mxu0 0
      %844 = vmatpush1.bf16.msra.mxu0 0
      %845 = vmatprep.subr.bf16.mxu0 0
      %846 = vmatpush1.bf16.msra.mxu0 0
      %847 = vmatprep.mubr.bf16.mxu0 0
      %848 = vmatmul.mubr.bf16.gmra.mrb[0].mxu0 %v639
      %v849 = vpop.f32.mrb[0].mxu0
      %v850 = vadd.f32 %v382, %v849
      %v851 = vpop.f32.mrb[0].mxu0
      %v852 = vpop.f32.mrb[0].mxu0
      %v853 = vadd.f32 %v382, %v852
      %v854 = vpop.f32.mrb[0].mxu0
      %855 = vmatprep.mubr.bf16.mxu0 0
      %856 = vmatmul.mubr.bf16.gmra.mrb[0].mxu0 %v640
      %v857 = vpop.f32.mrb[0].mxu0
      %v858 = vadd.f32 %v382, %v857
      %v859 = vpop.f32.mrb[0].mxu0
      %v860 = vpop.f32.mrb[0].mxu0
      %v861 = vadd.f32 %v382, %v860
      %v862 = vpop.f32.mrb[0].mxu0
      %863 = vmatprep.mubr.bf16.mxu0 0
      %864 = vmatmul.mubr.bf16.gmra.mrb[0].mxu0 %v641
      %v865 = vpop.f32.mrb[0].mxu0
      %v866 = vadd.f32 %v382, %v865
      %v867 = vpop.f32.mrb[0].mxu0
      %v868 = vpop.f32.mrb[0].mxu0
      %v869 = vadd.f32 %v382, %v868
      %v870 = vpop.f32.mrb[0].mxu0
      %871 = vmatprep.mubr.bf16.mxu0 0
      %872 = vmatmul.mubr.bf16.gmra.mrb[0].mxu0 %v642
      %v873 = vpop.f32.mrb[0].mxu0
      %v874 = vadd.f32 %v382, %v873
      %v875 = vpop.f32.mrb[0].mxu0
      %v876 = vpop.f32.mrb[0].mxu0
      %v877 = vadd.f32 %v382, %v876
      %v878 = vpop.f32.mrb[0].mxu0
      %879 = vmatprep.mubr.bf16.mxu0 0
      %880 = vmatmul.mubr.bf16.gmra.mrb[0].mxu0 %v643
      %v881 = vpop.f32.mrb[0].mxu0
      %v882 = vadd.f32 %v382, %v881
      %v883 = vpop.f32.mrb[0].mxu0
      %v884 = vpop.f32.mrb[0].mxu0
      %v885 = vadd.f32 %v382, %v884
      %v886 = vpop.f32.mrb[0].mxu0
      %887 = vmatprep.mubr.bf16.mxu0 0
      %888 = vmatmul.mubr.bf16.gmra.mrb[0].mxu0 %v644
      %v889 = vpop.f32.mrb[0].mxu0
      %v890 = vadd.f32 %v382, %v889
      %v891 = vpop.f32.mrb[0].mxu0
      %v892 = vpop.f32.mrb[0].mxu0
      %v893 = vadd.f32 %v382, %v892
      %v894 = vpop.f32.mrb[0].mxu0
      %895 = vmatprep.mubr.bf16.mxu0 0
      %896 = vmatmul.mubr.bf16.gmra.mrb[0].mxu0 %v645
      %v897 = vpop.f32.mrb[0].mxu0
      %v898 = vadd.f32 %v382, %v897
      %v899 = vpop.f32.mrb[0].mxu0
      %v900 = vpop.f32.mrb[0].mxu0
      %v901 = vadd.f32 %v382, %v900
      %v902 = vpop.f32.mrb[0].mxu0
      %903 = vmatprep.mubr.bf16.mxu0 0
      %904 = vmatmul.mubr.bf16.gmra.mrb[0].mxu0 %v646
      %v905 = vpop.f32.mrb[0].mxu0
      %v906 = vadd.f32 %v382, %v905
      %v907 = vpop.f32.mrb[0].mxu0
      %v908 = vpop.f32.mrb[0].mxu0
      %v909 = vadd.f32 %v382, %v908
      %v910 = vpop.f32.mrb[0].mxu0
      %911 = vmatprep.mubr.bf16.mxu0 0
      %912 = vmatmul.mubr.bf16.gmra.mrb[0].mxu0 %v647
      %v913 = vpop.f32.mrb[0].mxu0
      %v914 = vadd.f32 %v382, %v913
      %v915 = vpop.f32.mrb[0].mxu0
      %v916 = vpop.f32.mrb[0].mxu0
      %v917 = vadd.f32 %v382, %v916
      %v918 = vpop.f32.mrb[0].mxu0
      %919 = vmatprep.mubr.bf16.mxu0 0
      %920 = vmatmul.mubr.bf16.gmra.mrb[0].mxu0 %v648
      %v921 = vpop.f32.mrb[0].mxu0
      %v922 = vadd.f32 %v382, %v921
      %v923 = vpop.f32.mrb[0].mxu0
      %v924 = vpop.f32.mrb[0].mxu0
      %v925 = vadd.f32 %v382, %v924
      %v926 = vpop.f32.mrb[0].mxu0
      %927 = vmatprep.mubr.bf16.mxu0 0
      %928 = vmatmul.mubr.bf16.gmra.mrb[0].mxu0 %v649
      %v929 = vpop.f32.mrb[0].mxu0
      %v930 = vadd.f32 %v382, %v929
      %v931 = vpop.f32.mrb[0].mxu0
      %v932 = vpop.f32.mrb[0].mxu0
      %v933 = vadd.f32 %v382, %v932
      %v934 = vpop.f32.mrb[0].mxu0
      %935 = vmatprep.mubr.bf16.mxu0 0
      %936 = vmatmul.mubr.bf16.gmra.mrb[0].mxu0 %v650
      %v937 = vpop.f32.mrb[0].mxu0
      %v938 = vadd.f32 %v382, %v937
      %v939 = vpop.f32.mrb[0].mxu0
      %v940 = vpop.f32.mrb[0].mxu0
      %v941 = vadd.f32 %v382, %v940
      %v942 = vpop.f32.mrb[0].mxu0
      %943 = vmatprep.mubr.bf16.mxu0 0
      %944 = vmatmul.mubr.bf16.gmra.mrb[0].mxu0 %v651
      %v945 = vpop.f32.mrb[0].mxu0
      %v946 = vadd.f32 %v382, %v945
      %v947 = vpop.f32.mrb[0].mxu0
      %v948 = vpop.f32.mrb[0].mxu0
      %v949 = vadd.f32 %v382, %v948
      %v950 = vpop.f32.mrb[0].mxu0
      %951 = vmatprep.mubr.bf16.mxu0 0
      %952 = vmatmul.mubr.bf16.gmra.mrb[0].mxu0 %v652
      %v953 = vpop.f32.mrb[0].mxu0
      %v954 = vadd.f32 %v382, %v953
      %v955 = vpop.f32.mrb[0].mxu0
      %v956 = vpop.f32.mrb[0].mxu0
      %v957 = vadd.f32 %v382, %v956
      %v958 = vpop.f32.mrb[0].mxu0
      %959 = vmatprep.mubr.bf16.mxu0 0
      %960 = vmatmul.mubr.bf16.gmra.mrb[0].mxu0 %v653
      %v961 = vpop.f32.mrb[0].mxu0
      %v962 = vadd.f32 %v382, %v961
      %v963 = vpop.f32.mrb[0].mxu0
      %v964 = vpop.f32.mrb[0].mxu0
      %v965 = vadd.f32 %v382, %v964
      %v966 = vpop.f32.mrb[0].mxu0
      %967 = vmatprep.mubr.bf16.mxu0 0
      %968 = vmatmul.mubr.bf16.gmra.mrb[0].mxu0 %v654
      %v969 = vpop.f32.mrb[0].mxu0
      %v970 = vadd.f32 %v382, %v969
      %v971 = vpop.f32.mrb[0].mxu0
      %v972 = vpop.f32.mrb[0].mxu0
      %v973 = vadd.f32 %v382, %v972
      %v974 = vpop.f32.mrb[0].mxu0
      %975 = vmatprep.mubr.bf16.mxu0 0
      %976 = vmatmul.mubr.bf16.gmra.mrb[0].mxu0 %v655
      %v977 = vpop.f32.mrb[0].mxu0
      %v978 = vadd.f32 %v382, %v977
      %v979 = vpop.f32.mrb[0].mxu0
      %v980 = vpop.f32.mrb[0].mxu0
      %v981 = vadd.f32 %v382, %v980
      %v982 = vpop.f32.mrb[0].mxu0
      %983 = vmatprep.mubr.bf16.mxu0 0
      %984 = vmatmul.mubr.bf16.gmra.mrb[0].mxu0 %v656
      %v985 = vpop.f32.mrb[0].mxu0
      %v986 = vadd.f32 %v382, %v985
      %v987 = vpop.f32.mrb[0].mxu0
      %v988 = vpop.f32.mrb[0].mxu0
      %v989 = vadd.f32 %v382, %v988
      %v990 = vpop.f32.mrb[0].mxu0
      %991 = vmatprep.mubr.bf16.mxu0 0
      %992 = vmatmul.mubr.bf16.gmra.mrb[0].mxu0 %v657
      %v993 = vpop.f32.mrb[0].mxu0
      %v994 = vadd.f32 %v382, %v993
      %v995 = vpop.f32.mrb[0].mxu0
      %v996 = vpop.f32.mrb[0].mxu0
      %v997 = vadd.f32 %v382, %v996
      %v998 = vpop.f32.mrb[0].mxu0
      %999 = vmatprep.mubr.bf16.mxu0 0
      %1000 = vmatmul.mubr.bf16.gmra.mrb[0].mxu0 %v658
      %v1001 = vpop.f32.mrb[0].mxu0
      %v1002 = vadd.f32 %v382, %v1001
      %v1003 = vpop.f32.mrb[0].mxu0
      %v1004 = vpop.f32.mrb[0].mxu0
      %v1005 = vadd.f32 %v382, %v1004
      %v1006 = vpop.f32.mrb[0].mxu0
      %1007 = vmatprep.mubr.bf16.mxu0 0
      %1008 = vmatmul.mubr.bf16.gmra.mrb[0].mxu0 %v659
      %v1009 = vpop.f32.mrb[0].mxu0
      %v1010 = vadd.f32 %v382, %v1009
      %v1011 = vpop.f32.mrb[0].mxu0
      %v1012 = vpop.f32.mrb[0].mxu0
      %v1013 = vadd.f32 %v382, %v1012
      %v1014 = vpop.f32.mrb[0].mxu0
      %1015 = vmatprep.mubr.bf16.mxu0 0
      %1016 = vmatmul.mubr.bf16.gmra.mrb[0].mxu0 %v660
      %v1017 = vpop.f32.mrb[0].mxu0
      %v1018 = vadd.f32 %v382, %v1017
      %v1019 = vpop.f32.mrb[0].mxu0
      %v1020 = vpop.f32.mrb[0].mxu0
      %v1021 = vadd.f32 %v382, %v1020
      %v1022 = vpop.f32.mrb[0].mxu0
      %1023 = vmatprep.mubr.bf16.mxu0 0
      %1024 = vmatmul.mubr.bf16.gmra.mrb[0].mxu0 %v661
      %v1025 = vpop.f32.mrb[0].mxu0
      %v1026 = vadd.f32 %v382, %v1025
      %v1027 = vpop.f32.mrb[0].mxu0
      %v1028 = vpop.f32.mrb[0].mxu0
      %v1029 = vadd.f32 %v382, %v1028
      %v1030 = vpop.f32.mrb[0].mxu0
      %1031 = vmatprep.mubr.bf16.mxu0 0
      %1032 = vmatmul.mubr.bf16.gmra.mrb[0].mxu0 %v662
      %v1033 = vpop.f32.mrb[0].mxu0
      %v1034 = vadd.f32 %v382, %v1033
      %v1035 = vpop.f32.mrb[0].mxu0
      %v1036 = vpop.f32.mrb[0].mxu0
      %v1037 = vadd.f32 %v382, %v1036
      %v1038 = vpop.f32.mrb[0].mxu0
      %1039 = vmatprep.mubr.bf16.mxu0 0
      %1040 = vmatmul.mubr.bf16.gmra.mrb[0].mxu0 %v663
      %v1041 = vpop.f32.mrb[0].mxu0
      %v1042 = vadd.f32 %v382, %v1041
      %v1043 = vpop.f32.mrb[0].mxu0
      %v1044 = vpop.f32.mrb[0].mxu0
      %v1045 = vadd.f32 %v382, %v1044
      %v1046 = vpop.f32.mrb[0].mxu0
      %1047 = vmatprep.mubr.bf16.mxu0 0
      %1048 = vmatmul.mubr.bf16.gmra.mrb[0].mxu0 %v664
      %v1049 = vpop.f32.mrb[0].mxu0
      %v1050 = vadd.f32 %v382, %v1049
      %v1051 = vpop.f32.mrb[0].mxu0
      %v1052 = vpop.f32.mrb[0].mxu0
      %v1053 = vadd.f32 %v382, %v1052
      %v1054 = vpop.f32.mrb[0].mxu0
      %1055 = vmatprep.mubr.bf16.mxu0 0
      %1056 = vmatmul.mubr.bf16.gmra.mrb[0].mxu0 %v665
      %v1057 = vpop.f32.mrb[0].mxu0
      %v1058 = vadd.f32 %v382, %v1057
      %v1059 = vpop.f32.mrb[0].mxu0
      %v1060 = vpop.f32.mrb[0].mxu0
      %v1061 = vadd.f32 %v382, %v1060
      %v1062 = vpop.f32.mrb[0].mxu0
      %1063 = vmatprep.mubr.bf16.mxu0 0
      %1064 = vmatmul.mubr.bf16.gmra.mrb[0].mxu0 %v666
      %v1065 = vpop.f32.mrb[0].mxu0
      %v1066 = vadd.f32 %v382, %v1065
      %v1067 = vpop.f32.mrb[0].mxu0
      %v1068 = vpop.f32.mrb[0].mxu0
      %v1069 = vadd.f32 %v382, %v1068
      %v1070 = vpop.f32.mrb[0].mxu0
      %1071 = vmatprep.mubr.bf16.mxu0 0
      %1072 = vmatmul.mubr.bf16.gmra.mrb[0].mxu0 %v667
      %v1073 = vpop.f32.mrb[0].mxu0
      %v1074 = vadd.f32 %v382, %v1073
      %v1075 = vpop.f32.mrb[0].mxu0
      %v1076 = vpop.f32.mrb[0].mxu0
      %v1077 = vadd.f32 %v382, %v1076
      %v1078 = vpop.f32.mrb[0].mxu0
      %1079 = vmatprep.mubr.bf16.mxu0 0
      %1080 = vmatmul.mubr.bf16.gmra.mrb[0].mxu0 %v668
      %v1081 = vpop.f32.mrb[0].mxu0
      %v1082 = vadd.f32 %v382, %v1081
      %v1083 = vpop.f32.mrb[0].mxu0
      %v1084 = vpop.f32.mrb[0].mxu0
      %v1085 = vadd.f32 %v382, %v1084
      %v1086 = vpop.f32.mrb[0].mxu0
      %1087 = vmatprep.mubr.bf16.mxu0 0
      %1088 = vmatmul.mubr.bf16.gmra.mrb[0].mxu0 %v669
      %v1089 = vpop.f32.mrb[0].mxu0
      %v1090 = vadd.f32 %v382, %v1089
      %v1091 = vpop.f32.mrb[0].mxu0
      %v1092 = vpop.f32.mrb[0].mxu0
      %v1093 = vadd.f32 %v382, %v1092
      %v1094 = vpop.f32.mrb[0].mxu0
      %1095 = vmatprep.mubr.bf16.mxu0 0
      %1096 = vmatmul.mubr.bf16.gmra.mrb[0].mxu0 %v670
      %v1097 = vpop.f32.mrb[0].mxu0
      %v1098 = vadd.f32 %v382, %v1097
      %v1099 = vpop.f32.mrb[0].mxu0
      %v1100 = vpop.f32.mrb[0].mxu0
      %v1101 = vadd.f32 %v382, %v1100
      %v1102 = vpop.f32.mrb[0].mxu0
      %1103 = vmatprep.mubr.bf16.mxu0 0
      %1104 = vmatmul.mubr.bf16.gmra.mrb[0].mxu0 %v671
      %v1105 = vpop.f32.mrb[0].mxu0
      %v1106 = vadd.f32 %v382, %v1105
      %v1107 = vpop.f32.mrb[0].mxu0
      %v1108 = vpop.f32.mrb[0].mxu0
      %v1109 = vadd.f32 %v382, %v1108
      %v1110 = vpop.f32.mrb[0].mxu0
      %1111 = vmatprep.mubr.bf16.mxu0 0
      %1112 = vmatmul.mubr.bf16.gmra.mrb[0].mxu0 %v672
      %v1113 = vpop.f32.mrb[0].mxu0
      %v1114 = vadd.f32 %v382, %v1113
      %v1115 = vpop.f32.mrb[0].mxu0
      %v1116 = vpop.f32.mrb[0].mxu0
      %v1117 = vadd.f32 %v382, %v1116
      %v1118 = vpop.f32.mrb[0].mxu0
      %1119 = vmatprep.mubr.bf16.mxu0 0
      %1120 = vmatmul.mubr.bf16.gmra.mrb[0].mxu0 %v673
      %v1121 = vpop.f32.mrb[0].mxu0
      %v1122 = vadd.f32 %v382, %v1121
      %v1123 = vpop.f32.mrb[0].mxu0
      %v1124 = vpop.f32.mrb[0].mxu0
      %v1125 = vadd.f32 %v382, %v1124
      %v1126 = vpop.f32.mrb[0].mxu0
      %1127 = vmatprep.mubr.bf16.mxu0 0
      %1128 = vmatmul.mubr.bf16.gmra.mrb[0].mxu0 %v674
      %v1129 = vpop.f32.mrb[0].mxu0
      %v1130 = vadd.f32 %v382, %v1129
      %v1131 = vpop.f32.mrb[0].mxu0
      %v1132 = vpop.f32.mrb[0].mxu0
      %v1133 = vadd.f32 %v382, %v1132
      %v1134 = vpop.f32.mrb[0].mxu0
      %1135 = vmatprep.mubr.bf16.mxu0 0
      %1136 = vmatmul.mubr.bf16.gmra.mrb[0].mxu0 %v675
      %v1137 = vpop.f32.mrb[0].mxu0
      %v1138 = vadd.f32 %v382, %v1137
      %v1139 = vpop.f32.mrb[0].mxu0
      %v1140 = vpop.f32.mrb[0].mxu0
      %v1141 = vadd.f32 %v382, %v1140
      %v1142 = vpop.f32.mrb[0].mxu0
      %1143 = vmatprep.mubr.bf16.mxu0 0
      %1144 = vmatmul.mubr.bf16.gmra.mrb[0].mxu0 %v676
      %v1145 = vpop.f32.mrb[0].mxu0
      %v1146 = vadd.f32 %v382, %v1145
      %v1147 = vpop.f32.mrb[0].mxu0
      %v1148 = vpop.f32.mrb[0].mxu0
      %v1149 = vadd.f32 %v382, %v1148
      %v1150 = vpop.f32.mrb[0].mxu0
      %1151 = vmatprep.mubr.bf16.mxu0 0
      %1152 = vmatmul.mubr.bf16.gmra.mrb[0].mxu0 %v677
      %v1153 = vpop.f32.mrb[0].mxu0
      %v1154 = vadd.f32 %v382, %v1153
      %v1155 = vpop.f32.mrb[0].mxu0
      %v1156 = vpop.f32.mrb[0].mxu0
      %v1157 = vadd.f32 %v382, %v1156
      %v1158 = vpop.f32.mrb[0].mxu0
      %1159 = vmatprep.mubr.bf16.mxu0 0
      %1160 = vmatmul.mubr.bf16.gmra.mrb[0].mxu0 %v678
      %v1161 = vpop.f32.mrb[0].mxu0
      %v1162 = vadd.f32 %v382, %v1161
      %v1163 = vpop.f32.mrb[0].mxu0
      %v1164 = vpop.f32.mrb[0].mxu0
      %v1165 = vadd.f32 %v382, %v1164
      %v1166 = vpop.f32.mrb[0].mxu0
      %1167 = vmatprep.mubr.bf16.mxu0 0
      %1168 = vmatmul.mubr.bf16.gmra.mrb[0].mxu0 %v679
      %v1169 = vpop.f32.mrb[0].mxu0
      %v1170 = vadd.f32 %v382, %v1169
      %v1171 = vpop.f32.mrb[0].mxu0
      %v1172 = vpop.f32.mrb[0].mxu0
      %v1173 = vadd.f32 %v382, %v1172
      %v1174 = vpop.f32.mrb[0].mxu0
      %1175 = vmatprep.mubr.bf16.mxu0 0
      %1176 = vmatmul.mubr.bf16.gmra.mrb[0].mxu0 %v680
      %v1177 = vpop.f32.mrb[0].mxu0
      %v1178 = vadd.f32 %v382, %v1177
      %v1179 = vpop.f32.mrb[0].mxu0
      %v1180 = vpop.f32.mrb[0].mxu0
      %v1181 = vadd.f32 %v382, %v1180
      %v1182 = vpop.f32.mrb[0].mxu0
      %1183 = vmatprep.mubr.bf16.mxu0 0
      %1184 = vmatmul.mubr.bf16.gmra.mrb[0].mxu0 %v681
      %v1185 = vpop.f32.mrb[0].mxu0
      %v1186 = vadd.f32 %v382, %v1185
      %v1187 = vpop.f32.mrb[0].mxu0
      %v1188 = vpop.f32.mrb[0].mxu0
      %v1189 = vadd.f32 %v382, %v1188
      %v1190 = vpop.f32.mrb[0].mxu0
      %1191 = vmatprep.mubr.bf16.mxu0 0
      %1192 = vmatmul.mubr.bf16.gmra.mrb[0].mxu0 %v682
      %v1193 = vpop.f32.mrb[0].mxu0
      %v1194 = vadd.f32 %v382, %v1193
      %v1195 = vpop.f32.mrb[0].mxu0
      %v1196 = vpop.f32.mrb[0].mxu0
      %v1197 = vadd.f32 %v382, %v1196
      %v1198 = vpop.f32.mrb[0].mxu0
      %1199 = vmatprep.mubr.bf16.mxu0 0
      %1200 = vmatmul.mubr.bf16.gmra.mrb[0].mxu0 %v683
      %v1201 = vpop.f32.mrb[0].mxu0
      %v1202 = vadd.f32 %v382, %v1201
      %v1203 = vpop.f32.mrb[0].mxu0
      %v1204 = vpop.f32.mrb[0].mxu0
      %v1205 = vadd.f32 %v382, %v1204
      %v1206 = vpop.f32.mrb[0].mxu0
      %1207 = vmatprep.mubr.bf16.mxu0 0
      %1208 = vmatmul.mubr.bf16.gmra.mrb[0].mxu0 %v684
      %v1209 = vpop.f32.mrb[0].mxu0
      %v1210 = vadd.f32 %v382, %v1209
      %v1211 = vpop.f32.mrb[0].mxu0
      %v1212 = vpop.f32.mrb[0].mxu0
      %v1213 = vadd.f32 %v382, %v1212
      %v1214 = vpop.f32.mrb[0].mxu0
      %1215 = vmatprep.mubr.bf16.mxu0 0
      %1216 = vmatmul.mubr.bf16.gmra.mrb[0].mxu0 %v685
      %v1217 = vpop.f32.mrb[0].mxu0
      %v1218 = vadd.f32 %v382, %v1217
      %v1219 = vpop.f32.mrb[0].mxu0
      %v1220 = vpop.f32.mrb[0].mxu0
      %v1221 = vadd.f32 %v382, %v1220
      %v1222 = vpop.f32.mrb[0].mxu0
      %1223 = vmatprep.mubr.bf16.mxu0 0
      %1224 = vmatmul.mubr.bf16.gmra.mrb[0].mxu0 %v686
      %v1225 = vpop.f32.mrb[0].mxu0
      %v1226 = vadd.f32 %v382, %v1225
      %v1227 = vpop.f32.mrb[0].mxu0
      %v1228 = vpop.f32.mrb[0].mxu0
      %v1229 = vadd.f32 %v382, %v1228
      %v1230 = vpop.f32.mrb[0].mxu0
      %1231 = vmatprep.mubr.bf16.mxu0 0
      %1232 = vmatmul.mubr.bf16.gmra.mrb[0].mxu0 %v687
      %v1233 = vpop.f32.mrb[0].mxu0
      %v1234 = vadd.f32 %v382, %v1233
      %v1235 = vpop.f32.mrb[0].mxu0
      %v1236 = vpop.f32.mrb[0].mxu0
      %v1237 = vadd.f32 %v382, %v1236
      %v1238 = vpop.f32.mrb[0].mxu0
      %1239 = vmatprep.mubr.bf16.mxu0 0
      %1240 = vmatmul.mubr.bf16.gmra.mrb[0].mxu0 %v688
      %v1241 = vpop.f32.mrb[0].mxu0
      %v1242 = vadd.f32 %v382, %v1241
      %v1243 = vpop.f32.mrb[0].mxu0
      %v1244 = vpop.f32.mrb[0].mxu0
      %v1245 = vadd.f32 %v382, %v1244
      %v1246 = vpop.f32.mrb[0].mxu0
      %1247 = vmatprep.mubr.bf16.mxu0 0
      %1248 = vmatmul.mubr.bf16.gmra.mrb[0].mxu0 %v689
      %v1249 = vpop.f32.mrb[0].mxu0
      %v1250 = vadd.f32 %v382, %v1249
      %v1251 = vpop.f32.mrb[0].mxu0
      %v1252 = vpop.f32.mrb[0].mxu0
      %v1253 = vadd.f32 %v382, %v1252
      %v1254 = vpop.f32.mrb[0].mxu0
      %1255 = vmatprep.mubr.bf16.mxu0 0
      %1256 = vmatmul.mubr.bf16.gmra.mrb[0].mxu0 %v690
      %v1257 = vpop.f32.mrb[0].mxu0
      %v1258 = vadd.f32 %v382, %v1257
      %v1259 = vpop.f32.mrb[0].mxu0
      %v1260 = vpop.f32.mrb[0].mxu0
      %v1261 = vadd.f32 %v382, %v1260
      %v1262 = vpop.f32.mrb[0].mxu0
      %1263 = vmatprep.mubr.bf16.mxu0 0
      %1264 = vmatmul.mubr.bf16.gmra.mrb[0].mxu0 %v691
      %v1265 = vpop.f32.mrb[0].mxu0
      %v1266 = vadd.f32 %v382, %v1265
      %v1267 = vpop.f32.mrb[0].mxu0
      %v1268 = vpop.f32.mrb[0].mxu0
      %v1269 = vadd.f32 %v382, %v1268
      %v1270 = vpop.f32.mrb[0].mxu0
      %1271 = vmatprep.mubr.bf16.mxu0 0
      %1272 = vmatmul.mubr.bf16.gmra.mrb[0].mxu0 %v692
      %v1273 = vpop.f32.mrb[0].mxu0
      %v1274 = vadd.f32 %v382, %v1273
      %v1275 = vpop.f32.mrb[0].mxu0
      %v1276 = vpop.f32.mrb[0].mxu0
      %v1277 = vadd.f32 %v382, %v1276
      %v1278 = vpop.f32.mrb[0].mxu0
      %1279 = vmatprep.mubr.bf16.mxu0 0
      %1280 = vmatmul.mubr.bf16.gmra.mrb[0].mxu0 %v693
      %v1281 = vpop.f32.mrb[0].mxu0
      %v1282 = vadd.f32 %v382, %v1281
      %v1283 = vpop.f32.mrb[0].mxu0
      %v1284 = vpop.f32.mrb[0].mxu0
      %v1285 = vadd.f32 %v382, %v1284
      %v1286 = vpop.f32.mrb[0].mxu0
      %1287 = vmatprep.mubr.bf16.mxu0 0
      %1288 = vmatmul.mubr.bf16.gmra.mrb[0].mxu0 %v694
      %v1289 = vpop.f32.mrb[0].mxu0
      %v1290 = vadd.f32 %v382, %v1289
      %v1291 = vpop.f32.mrb[0].mxu0
      %v1292 = vpop.f32.mrb[0].mxu0
      %v1293 = vadd.f32 %v382, %v1292
      %v1294 = vpop.f32.mrb[0].mxu0
      %1295 = vmatprep.mubr.bf16.mxu0 0
      %1296 = vmatmul.mubr.bf16.gmra.mrb[0].mxu0 %v695
      %v1297 = vpop.f32.mrb[0].mxu0
      %v1298 = vadd.f32 %v382, %v1297
      %v1299 = vpop.f32.mrb[0].mxu0
      %v1300 = vpop.f32.mrb[0].mxu0
      %v1301 = vadd.f32 %v382, %v1300
      %v1302 = vpop.f32.mrb[0].mxu0
      %1303 = vmatprep.mubr.bf16.mxu0 0
      %1304 = vmatmul.mubr.bf16.gmra.mrb[0].mxu0 %v696
      %v1305 = vpop.f32.mrb[0].mxu0
      %v1306 = vadd.f32 %v382, %v1305
      %v1307 = vpop.f32.mrb[0].mxu0
      %v1308 = vpop.f32.mrb[0].mxu0
      %v1309 = vadd.f32 %v382, %v1308
      %v1310 = vpop.f32.mrb[0].mxu0
      %1311 = vmatprep.mubr.bf16.mxu0 0
      %1312 = vmatmul.mubr.bf16.gmra.mrb[0].mxu0 %v697
      %v1313 = vpop.f32.mrb[0].mxu0
      %v1314 = vadd.f32 %v382, %v1313
      %v1315 = vpop.f32.mrb[0].mxu0
      %v1316 = vpop.f32.mrb[0].mxu0
      %v1317 = vadd.f32 %v382, %v1316
      %v1318 = vpop.f32.mrb[0].mxu0
      %1319 = vmatprep.mubr.bf16.mxu0 0
      %1320 = vmatmul.mubr.bf16.gmra.mrb[0].mxu0 %v698
      %v1321 = vpop.f32.mrb[0].mxu0
      %v1322 = vadd.f32 %v382, %v1321
      %v1323 = vpop.f32.mrb[0].mxu0
      %v1324 = vpop.f32.mrb[0].mxu0
      %v1325 = vadd.f32 %v382, %v1324
      %v1326 = vpop.f32.mrb[0].mxu0
      %1327 = vmatprep.mubr.bf16.mxu0 0
      %1328 = vmatmul.mubr.bf16.gmra.mrb[0].mxu0 %v699
      %v1329 = vpop.f32.mrb[0].mxu0
      %v1330 = vadd.f32 %v382, %v1329
      %v1331 = vpop.f32.mrb[0].mxu0
      %v1332 = vpop.f32.mrb[0].mxu0
      %v1333 = vadd.f32 %v382, %v1332
      %v1334 = vpop.f32.mrb[0].mxu0
      %1335 = vmatprep.mubr.bf16.mxu0 0
      %1336 = vmatmul.mubr.bf16.gmra.mrb[0].mxu0 %v700
      %v1337 = vpop.f32.mrb[0].mxu0
      %v1338 = vadd.f32 %v382, %v1337
      %v1339 = vpop.f32.mrb[0].mxu0
      %v1340 = vpop.f32.mrb[0].mxu0
      %v1341 = vadd.f32 %v382, %v1340
      %v1342 = vpop.f32.mrb[0].mxu0
      %1343 = vmatprep.mubr.bf16.mxu0 0
      %1344 = vmatmul.mubr.bf16.gmra.mrb[0].mxu0 %v701
      %v1345 = vpop.f32.mrb[0].mxu0
      %v1346 = vadd.f32 %v382, %v1345
      %v1347 = vpop.f32.mrb[0].mxu0
      %v1348 = vpop.f32.mrb[0].mxu0
      %v1349 = vadd.f32 %v382, %v1348
      %v1350 = vpop.f32.mrb[0].mxu0
      %1351 = vmatprep.mubr.bf16.mxu0 0
      %1352 = vmatmul.mubr.bf16.gmra.mrb[0].mxu0 %v702
      %v1353 = vpop.f32.mrb[0].mxu0
      %v1354 = vadd.f32 %v382, %v1353
      %v1355 = vpop.f32.mrb[0].mxu0
      %v1356 = vpop.f32.mrb[0].mxu0
      %v1357 = vadd.f32 %v382, %v1356
      %v1358 = vpop.f32.mrb[0].mxu0
      %1359 = vdwg.mxu0
      %v1360 = vmax.f32 %v850, 0.0
      %v1361 = vmax.f32 %v853, 0.0
      %v1362 = vmax.f32 %v858, 0.0
      %v1363 = vmax.f32 %v861, 0.0
      %v1364 = vmax.f32 %v866, 0.0
      %v1365 = vmax.f32 %v869, 0.0
      %v1366 = vmax.f32 %v874, 0.0
      %v1367 = vmax.f32 %v877, 0.0
      %v1368 = vmax.f32 %v882, 0.0
      %v1369 = vmax.f32 %v885, 0.0
      %v1370 = vmax.f32 %v890, 0.0
      %v1371 = vmax.f32 %v893, 0.0
      %v1372 = vmax.f32 %v898, 0.0
      %v1373 = vmax.f32 %v901, 0.0
      %v1374 = vmax.f32 %v906, 0.0
      %v1375 = vmax.f32 %v909, 0.0
      %v1376 = vmax.f32 %v914, 0.0
      %v1377 = vmax.f32 %v917, 0.0
      %v1378 = vmax.f32 %v922, 0.0
      %v1379 = vmax.f32 %v925, 0.0
      %v1380 = vmax.f32 %v930, 0.0
      %v1381 = vmax.f32 %v933, 0.0
      %v1382 = vmax.f32 %v938, 0.0
      %v1383 = vmax.f32 %v941, 0.0
      %v1384 = vmax.f32 %v946, 0.0
      %v1385 = vmax.f32 %v949, 0.0
      %v1386 = vmax.f32 %v954, 0.0
      %v1387 = vmax.f32 %v957, 0.0
      %v1388 = vmax.f32 %v962, 0.0
      %v1389 = vmax.f32 %v965, 0.0
      %v1390 = vmax.f32 %v970, 0.0
      %v1391 = vmax.f32 %v973, 0.0
      %v1392 = vmax.f32 %v978, 0.0
      %v1393 = vmax.f32 %v981, 0.0
      %v1394 = vmax.f32 %v986, 0.0
      %v1395 = vmax.f32 %v989, 0.0
      %v1396 = vmax.f32 %v994, 0.0
      %v1397 = vmax.f32 %v997, 0.0
      %v1398 = vmax.f32 %v1002, 0.0
      %v1399 = vmax.f32 %v1005, 0.0
      %v1400 = vmax.f32 %v1010, 0.0
      %v1401 = vmax.f32 %v1013, 0.0
      %v1402 = vmax.f32 %v1018, 0.0
      %v1403 = vmax.f32 %v1021, 0.0
      %v1404 = vmax.f32 %v1026, 0.0
      %v1405 = vmax.f32 %v1029, 0.0
      %v1406 = vmax.f32 %v1034, 0.0
      %v1407 = vmax.f32 %v1037, 0.0
      %v1408 = vmax.f32 %v1042, 0.0
      %v1409 = vmax.f32 %v1045, 0.0
      %v1410 = vmax.f32 %v1050, 0.0
      %v1411 = vmax.f32 %v1053, 0.0
      %v1412 = vmax.f32 %v1058, 0.0
      %v1413 = vmax.f32 %v1061, 0.0
      %v1414 = vmax.f32 %v1066, 0.0
      %v1415 = vmax.f32 %v1069, 0.0
      %v1416 = vmax.f32 %v1074, 0.0
      %v1417 = vmax.f32 %v1077, 0.0
      %v1418 = vmax.f32 %v1082, 0.0
      %v1419 = vmax.f32 %v1085, 0.0
      %v1420 = vmax.f32 %v1090, 0.0
      %v1421 = vmax.f32 %v1093, 0.0
      %v1422 = vmax.f32 %v1098, 0.0
      %v1423 = vmax.f32 %v1101, 0.0
      %v1424 = vmax.f32 %v1106, 0.0
      %v1425 = vmax.f32 %v1109, 0.0
      %v1426 = vmax.f32 %v1114, 0.0
      %v1427 = vmax.f32 %v1117, 0.0
      %v1428 = vmax.f32 %v1122, 0.0
      %v1429 = vmax.f32 %v1125, 0.0
      %v1430 = vmax.f32 %v1130, 0.0
      %v1431 = vmax.f32 %v1133, 0.0
      %v1432 = vmax.f32 %v1138, 0.0
      %v1433 = vmax.f32 %v1141, 0.0
      %v1434 = vmax.f32 %v1146, 0.0
      %v1435 = vmax.f32 %v1149, 0.0
      %v1436 = vmax.f32 %v1154, 0.0
      %v1437 = vmax.f32 %v1157, 0.0
      %v1438 = vmax.f32 %v1162, 0.0
      %v1439 = vmax.f32 %v1165, 0.0
      %v1440 = vmax.f32 %v1170, 0.0
      %v1441 = vmax.f32 %v1173, 0.0
      %v1442 = vmax.f32 %v1178, 0.0
      %v1443 = vmax.f32 %v1181, 0.0
      %v1444 = vmax.f32 %v1186, 0.0
      %v1445 = vmax.f32 %v1189, 0.0
      %v1446 = vmax.f32 %v1194, 0.0
      %v1447 = vmax.f32 %v1197, 0.0
      %v1448 = vmax.f32 %v1202, 0.0
      %v1449 = vmax.f32 %v1205, 0.0
      %v1450 = vmax.f32 %v1210, 0.0
      %v1451 = vmax.f32 %v1213, 0.0
      %v1452 = vmax.f32 %v1218, 0.0
      %v1453 = vmax.f32 %v1221, 0.0
      %v1454 = vmax.f32 %v1226, 0.0
      %v1455 = vmax.f32 %v1229, 0.0
      %v1456 = vmax.f32 %v1234, 0.0
      %v1457 = vmax.f32 %v1237, 0.0
      %v1458 = vmax.f32 %v1242, 0.0
      %v1459 = vmax.f32 %v1245, 0.0
      %v1460 = vmax.f32 %v1250, 0.0
      %v1461 = vmax.f32 %v1253, 0.0
      %v1462 = vmax.f32 %v1258, 0.0
      %v1463 = vmax.f32 %v1261, 0.0
      %v1464 = vmax.f32 %v1266, 0.0
      %v1465 = vmax.f32 %v1269, 0.0
      %v1466 = vmax.f32 %v1274, 0.0
      %v1467 = vmax.f32 %v1277, 0.0
      %v1468 = vmax.f32 %v1282, 0.0
      %v1469 = vmax.f32 %v1285, 0.0
      %v1470 = vmax.f32 %v1290, 0.0
      %v1471 = vmax.f32 %v1293, 0.0
      %v1472 = vmax.f32 %v1298, 0.0
      %v1473 = vmax.f32 %v1301, 0.0
      %v1474 = vmax.f32 %v1306, 0.0
      %v1475 = vmax.f32 %v1309, 0.0
      %v1476 = vmax.f32 %v1314, 0.0
      %v1477 = vmax.f32 %v1317, 0.0
      %v1478 = vmax.f32 %v1322, 0.0
      %v1479 = vmax.f32 %v1325, 0.0
      %v1480 = vmax.f32 %v1330, 0.0
      %v1481 = vmax.f32 %v1333, 0.0
      %v1482 = vmax.f32 %v1338, 0.0
      %v1483 = vmax.f32 %v1341, 0.0
      %v1484 = vmax.f32 %v1346, 0.0
      %v1485 = vmax.f32 %v1349, 0.0
      %v1486 = vmax.f32 %v1354, 0.0
      %v1487 = vmax.f32 %v1357, 0.0
      %1488 = vst [vmem:[#allocation2] sm:$0xff] 0.0
      %1489 = vst [vmem:[#allocation2 + $0x8] sm:$0xff] 0.0
      %1490 = vst [vmem:[#allocation2 + $0x10] sm:$0xff] 0.0
      %1491 = vst [vmem:[#allocation2 + $0x18] sm:$0xff] 0.0
      %1492 = vst [vmem:[#allocation2 + $0x240] sm:$0xff] 0.0
      %1493 = vst [vmem:[#allocation2 + $0x248] sm:$0xff] 0.0
      %1494 = vst [vmem:[#allocation2 + $0x250] sm:$0xff] 0.0
      %1495 = vst [vmem:[#allocation2 + $0x258] sm:$0xff] 0.0
      %1496 = vst [vmem:[#allocation2 + $0x480] sm:$0xff] 0.0
      %1497 = vst [vmem:[#allocation2 + $0x488] sm:$0xff] 0.0
      %1498 = vst [vmem:[#allocation2 + $0x490] sm:$0xff] 0.0
      %1499 = vst [vmem:[#allocation2 + $0x498] sm:$0xff] 0.0
      %1500 = vst [vmem:[#allocation2 + $0x6c0] sm:$0xff] 0.0
      %1501 = vst [vmem:[#allocation2 + $0x6c8] sm:$0xff] 0.0
      %1502 = vst [vmem:[#allocation2 + $0x6d0] sm:$0xff] 0.0
      %1503 = vst [vmem:[#allocation2 + $0x6d8] sm:$0xff] 0.0
      %s1504 = scalar_lea.vmem [#allocation2], 544
      %1505 = vst [vmem:[%s1504] sm:$0xff] 0.0
      %1506 = vst [vmem:[%s1504 + $0x8] sm:$0xff] 0.0
      %1507 = vst [vmem:[%s1504 + $0x10] sm:$0xff] 0.0
      %1508 = vst [vmem:[%s1504 + $0x18] sm:$0xff] 0.0
      %1509 = vst [vmem:[%s1504 + $0x240] sm:$0xff] 0.0
      %1510 = vst [vmem:[%s1504 + $0x248] sm:$0xff] 0.0
      %1511 = vst [vmem:[%s1504 + $0x250] sm:$0xff] 0.0
      %1512 = vst [vmem:[%s1504 + $0x258] sm:$0xff] 0.0
      %1513 = vst [vmem:[%s1504 + $0x480] sm:$0xff] 0.0
      %1514 = vst [vmem:[%s1504 + $0x488] sm:$0xff] 0.0
      %1515 = vst [vmem:[%s1504 + $0x490] sm:$0xff] 0.0
      %1516 = vst [vmem:[%s1504 + $0x498] sm:$0xff] 0.0
      %1517 = vst [vmem:[%s1504 + $0x6c0] sm:$0xff] 0.0
      %1518 = vst [vmem:[%s1504 + $0x6c8] sm:$0xff] 0.0
      %1519 = vst [vmem:[%s1504 + $0x6d0] sm:$0xff] 0.0
      %1520 = vst [vmem:[%s1504 + $0x6d8] sm:$0xff] 0.0
      %s1521 = scalar_lea.vmem [#allocation2], 32
      %1522 = vst [vmem:[%s1521] sm:$0xff] 0.0
      %1523 = vst [vmem:[%s1521 + $0x20] sm:$0xff] 0.0
      %1524 = vst [vmem:[%s1521 + $0x40] sm:$0xff] 0.0
      %1525 = vst [vmem:[%s1521 + $0x60] sm:$0xff] 0.0
      %1526 = vst [vmem:[%s1521 + $0x80] sm:$0xff] 0.0
      %1527 = vst [vmem:[%s1521 + $0xa0] sm:$0xff] 0.0
      %1528 = vst [vmem:[%s1521 + $0xc0] sm:$0xff] 0.0
      %1529 = vst [vmem:[%s1521 + $0xe0] sm:$0xff] 0.0
      %1530 = vst [vmem:[%s1521 + $0x100] sm:$0xff] 0.0
      %1531 = vst [vmem:[%s1521 + $0x120] sm:$0xff] 0.0
      %1532 = vst [vmem:[%s1521 + $0x140] sm:$0xff] 0.0
      %1533 = vst [vmem:[%s1521 + $0x160] sm:$0xff] 0.0
      %1534 = vst [vmem:[%s1521 + $0x180] sm:$0xff] 0.0
      %1535 = vst [vmem:[%s1521 + $0x1a0] sm:$0xff] 0.0
      %1536 = vst [vmem:[%s1521 + $0x1c0] sm:$0xff] 0.0
      %1537 = vst [vmem:[%s1521 + $0x1e0] sm:$0xff] 0.0
      %1538 = vst [vmem:[%s1521 + $0x240] sm:$0xff] 0.0
      %1539 = vst [vmem:[%s1521 + $0x260] sm:$0xff] 0.0
      %1540 = vst [vmem:[%s1521 + $0x280] sm:$0xff] 0.0
      %1541 = vst [vmem:[%s1521 + $0x2a0] sm:$0xff] 0.0
      %1542 = vst [vmem:[%s1521 + $0x2c0] sm:$0xff] 0.0
      %1543 = vst [vmem:[%s1521 + $0x2e0] sm:$0xff] 0.0
      %1544 = vst [vmem:[%s1521 + $0x300] sm:$0xff] 0.0
      %1545 = vst [vmem:[%s1521 + $0x320] sm:$0xff] 0.0
      %1546 = vst [vmem:[%s1521 + $0x340] sm:$0xff] 0.0
      %1547 = vst [vmem:[%s1521 + $0x360] sm:$0xff] 0.0
      %1548 = vst [vmem:[%s1521 + $0x380] sm:$0xff] 0.0
      %1549 = vst [vmem:[%s1521 + $0x3a0] sm:$0xff] 0.0
      %1550 = vst [vmem:[%s1521 + $0x3c0] sm:$0xff] 0.0
      %1551 = vst [vmem:[%s1521 + $0x3e0] sm:$0xff] 0.0
      %1552 = vst [vmem:[%s1521 + $0x400] sm:$0xff] 0.0
      %1553 = vst [vmem:[%s1521 + $0x420] sm:$0xff] 0.0
      %1554 = vst [vmem:[%s1521 + $0x480] sm:$0xff] 0.0
      %1555 = vst [vmem:[%s1521 + $0x4a0] sm:$0xff] 0.0
      %1556 = vst [vmem:[%s1521 + $0x4c0] sm:$0xff] 0.0
      %1557 = vst [vmem:[%s1521 + $0x4e0] sm:$0xff] 0.0
      %1558 = vst [vmem:[%s1521 + $0x500] sm:$0xff] 0.0
      %1559 = vst [vmem:[%s1521 + $0x520] sm:$0xff] 0.0
      %1560 = vst [vmem:[%s1521 + $0x540] sm:$0xff] 0.0
      %1561 = vst [vmem:[%s1521 + $0x560] sm:$0xff] 0.0
      %1562 = vst [vmem:[%s1521 + $0x580] sm:$0xff] 0.0
      %1563 = vst [vmem:[%s1521 + $0x5a0] sm:$0xff] 0.0
      %1564 = vst [vmem:[%s1521 + $0x5c0] sm:$0xff] 0.0
      %1565 = vst [vmem:[%s1521 + $0x5e0] sm:$0xff] 0.0
      %1566 = vst [vmem:[%s1521 + $0x600] sm:$0xff] 0.0
      %1567 = vst [vmem:[%s1521 + $0x620] sm:$0xff] 0.0
      %1568 = vst [vmem:[%s1521 + $0x640] sm:$0xff] 0.0
      %1569 = vst [vmem:[%s1521 + $0x660] sm:$0xff] 0.0
      %1570 = vst [vmem:[%s1521 + $0x6c0] sm:$0xff] 0.0
      %1571 = vst [vmem:[%s1521 + $0x6e0] sm:$0xff] 0.0
      %1572 = vst [vmem:[%s1521 + $0x700] sm:$0xff] 0.0
      %1573 = vst [vmem:[%s1521 + $0x720] sm:$0xff] 0.0
      %1574 = vst [vmem:[%s1521 + $0x740] sm:$0xff] 0.0
      %1575 = vst [vmem:[%s1521 + $0x760] sm:$0xff] 0.0
      %1576 = vst [vmem:[%s1521 + $0x780] sm:$0xff] 0.0
      %1577 = vst [vmem:[%s1521 + $0x7a0] sm:$0xff] 0.0
      %1578 = vst [vmem:[%s1521 + $0x7c0] sm:$0xff] 0.0
      %1579 = vst [vmem:[%s1521 + $0x7e0] sm:$0xff] 0.0
      %1580 = vst [vmem:[%s1521 + $0x800] sm:$0xff] 0.0
      %1581 = vst [vmem:[%s1521 + $0x820] sm:$0xff] 0.0
      %1582 = vst [vmem:[%s1521 + $0x840] sm:$0xff] 0.0
      %1583 = vst [vmem:[%s1521 + $0x860] sm:$0xff] 0.0
      %1584 = vst [vmem:[%s1521 + $0x880] sm:$0xff] 0.0
      %1585 = vst [vmem:[%s1521 + $0x8a0] sm:$0xff] 0.0
      %1586 = vst [vmem:[%s1521 + $0x18] sm:$0xff] 0.0
      %1587 = vst [vmem:[%s1521 + $0x38] sm:$0xff] 0.0
      %1588 = vst [vmem:[%s1521 + $0x58] sm:$0xff] 0.0
      %1589 = vst [vmem:[%s1521 + $0x78] sm:$0xff] 0.0
      %1590 = vst [vmem:[%s1521 + $0x98] sm:$0xff] 0.0
      %1591 = vst [vmem:[%s1521 + $0xb8] sm:$0xff] 0.0
      %1592 = vst [vmem:[%s1521 + $0xd8] sm:$0xff] 0.0
      %1593 = vst [vmem:[%s1521 + $0xf8] sm:$0xff] 0.0
      %1594 = vst [vmem:[%s1521 + $0x118] sm:$0xff] 0.0
      %1595 = vst [vmem:[%s1521 + $0x138] sm:$0xff] 0.0
      %1596 = vst [vmem:[%s1521 + $0x158] sm:$0xff] 0.0
      %1597 = vst [vmem:[%s1521 + $0x178] sm:$0xff] 0.0
      %1598 = vst [vmem:[%s1521 + $0x198] sm:$0xff] 0.0
      %1599 = vst [vmem:[%s1521 + $0x1b8] sm:$0xff] 0.0
      %1600 = vst [vmem:[%s1521 + $0x1d8] sm:$0xff] 0.0
      %1601 = vst [vmem:[%s1521 + $0x1f8] sm:$0xff] 0.0
      %1602 = vst [vmem:[%s1521 + $0x258] sm:$0xff] 0.0
      %1603 = vst [vmem:[%s1521 + $0x278] sm:$0xff] 0.0
      %1604 = vst [vmem:[%s1521 + $0x298] sm:$0xff] 0.0
      %1605 = vst [vmem:[%s1521 + $0x2b8] sm:$0xff] 0.0
      %1606 = vst [vmem:[%s1521 + $0x2d8] sm:$0xff] 0.0
      %1607 = vst [vmem:[%s1521 + $0x2f8] sm:$0xff] 0.0
      %1608 = vst [vmem:[%s1521 + $0x318] sm:$0xff] 0.0
      %1609 = vst [vmem:[%s1521 + $0x338] sm:$0xff] 0.0
      %1610 = vst [vmem:[%s1521 + $0x358] sm:$0xff] 0.0
      %1611 = vst [vmem:[%s1521 + $0x378] sm:$0xff] 0.0
      %1612 = vst [vmem:[%s1521 + $0x398] sm:$0xff] 0.0
      %1613 = vst [vmem:[%s1521 + $0x3b8] sm:$0xff] 0.0
      %1614 = vst [vmem:[%s1521 + $0x3d8] sm:$0xff] 0.0
      %1615 = vst [vmem:[%s1521 + $0x3f8] sm:$0xff] 0.0
      %1616 = vst [vmem:[%s1521 + $0x418] sm:$0xff] 0.0
      %1617 = vst [vmem:[%s1521 + $0x438] sm:$0xff] 0.0
      %1618 = vst [vmem:[%s1521 + $0x498] sm:$0xff] 0.0
      %1619 = vst [vmem:[%s1521 + $0x4b8] sm:$0xff] 0.0
      %1620 = vst [vmem:[%s1521 + $0x4d8] sm:$0xff] 0.0
      %1621 = vst [vmem:[%s1521 + $0x4f8] sm:$0xff] 0.0
      %1622 = vst [vmem:[%s1521 + $0x518] sm:$0xff] 0.0
      %1623 = vst [vmem:[%s1521 + $0x538] sm:$0xff] 0.0
      %1624 = vst [vmem:[%s1521 + $0x558] sm:$0xff] 0.0
      %1625 = vst [vmem:[%s1521 + $0x578] sm:$0xff] 0.0
      %1626 = vst [vmem:[%s1521 + $0x598] sm:$0xff] 0.0
      %1627 = vst [vmem:[%s1521 + $0x5b8] sm:$0xff] 0.0
      %1628 = vst [vmem:[%s1521 + $0x5d8] sm:$0xff] 0.0
      %1629 = vst [vmem:[%s1521 + $0x5f8] sm:$0xff] 0.0
      %1630 = vst [vmem:[%s1521 + $0x618] sm:$0xff] 0.0
      %1631 = vst [vmem:[%s1521 + $0x638] sm:$0xff] 0.0
      %1632 = vst [vmem:[%s1521 + $0x658] sm:$0xff] 0.0
      %1633 = vst [vmem:[%s1521 + $0x678] sm:$0xff] 0.0
      %1634 = vst [vmem:[%s1521 + $0x6d8] sm:$0xff] 0.0
      %1635 = vst [vmem:[%s1521 + $0x6f8] sm:$0xff] 0.0
      %1636 = vst [vmem:[%s1521 + $0x718] sm:$0xff] 0.0
      %1637 = vst [vmem:[%s1521 + $0x738] sm:$0xff] 0.0
      %1638 = vst [vmem:[%s1521 + $0x758] sm:$0xff] 0.0
      %1639 = vst [vmem:[%s1521 + $0x778] sm:$0xff] 0.0
      %1640 = vst [vmem:[%s1521 + $0x798] sm:$0xff] 0.0
      %1641 = vst [vmem:[%s1521 + $0x7b8] sm:$0xff] 0.0
      %1642 = vst [vmem:[%s1521 + $0x7d8] sm:$0xff] 0.0
      %1643 = vst [vmem:[%s1521 + $0x7f8] sm:$0xff] 0.0
      %1644 = vst [vmem:[%s1521 + $0x818] sm:$0xff] 0.0
      %1645 = vst [vmem:[%s1521 + $0x838] sm:$0xff] 0.0
      %1646 = vst [vmem:[%s1521 + $0x858] sm:$0xff] 0.0
      %1647 = vst [vmem:[%s1521 + $0x878] sm:$0xff] 0.0
      %1648 = vst [vmem:[%s1521 + $0x898] sm:$0xff] 0.0
      %1649 = vst [vmem:[%s1521 + $0x8b8] sm:$0xff] 0.0
      %1650 = vst [vmem:[%s1521 + $0x8] sm:$0xff] %v1360
      %1651 = vst [vmem:[%s1521 + $0x10] sm:$0xff] %v1361
      %1652 = vst [vmem:[%s1521 + $0x28] sm:$0xff] %v1362
      %1653 = vst [vmem:[%s1521 + $0x30] sm:$0xff] %v1363
      %1654 = vst [vmem:[%s1521 + $0x48] sm:$0xff] %v1364
      %1655 = vst [vmem:[%s1521 + $0x50] sm:$0xff] %v1365
      %1656 = vst [vmem:[%s1521 + $0x68] sm:$0xff] %v1366
      %1657 = vst [vmem:[%s1521 + $0x70] sm:$0xff] %v1367
      %1658 = vst [vmem:[%s1521 + $0x88] sm:$0xff] %v1368
      %1659 = vst [vmem:[%s1521 + $0x90] sm:$0xff] %v1369
      %1660 = vst [vmem:[%s1521 + $0xa8] sm:$0xff] %v1370
      %1661 = vst [vmem:[%s1521 + $0xb0] sm:$0xff] %v1371
      %1662 = vst [vmem:[%s1521 + $0xc8] sm:$0xff] %v1372
      %1663 = vst [vmem:[%s1521 + $0xd0] sm:$0xff] %v1373
      %1664 = vst [vmem:[%s1521 + $0xe8] sm:$0xff] %v1374
      %1665 = vst [vmem:[%s1521 + $0xf0] sm:$0xff] %v1375
      %1666 = vst [vmem:[%s1521 + $0x108] sm:$0xff] %v1376
      %1667 = vst [vmem:[%s1521 + $0x110] sm:$0xff] %v1377
      %1668 = vst [vmem:[%s1521 + $0x128] sm:$0xff] %v1378
      %1669 = vst [vmem:[%s1521 + $0x130] sm:$0xff] %v1379
      %1670 = vst [vmem:[%s1521 + $0x148] sm:$0xff] %v1380
      %1671 = vst [vmem:[%s1521 + $0x150] sm:$0xff] %v1381
      %1672 = vst [vmem:[%s1521 + $0x168] sm:$0xff] %v1382
      %1673 = vst [vmem:[%s1521 + $0x170] sm:$0xff] %v1383
      %1674 = vst [vmem:[%s1521 + $0x188] sm:$0xff] %v1384
      %1675 = vst [vmem:[%s1521 + $0x190] sm:$0xff] %v1385
      %1676 = vst [vmem:[%s1521 + $0x1a8] sm:$0xff] %v1386
      %1677 = vst [vmem:[%s1521 + $0x1b0] sm:$0xff] %v1387
      %1678 = vst [vmem:[%s1521 + $0x1c8] sm:$0xff] %v1388
      %1679 = vst [vmem:[%s1521 + $0x1d0] sm:$0xff] %v1389
      %1680 = vst [vmem:[%s1521 + $0x1e8] sm:$0xff] %v1390
      %1681 = vst [vmem:[%s1521 + $0x1f0] sm:$0xff] %v1391
      %1682 = vst [vmem:[%s1521 + $0x248] sm:$0xff] %v1392
      %1683 = vst [vmem:[%s1521 + $0x250] sm:$0xff] %v1393
      %1684 = vst [vmem:[%s1521 + $0x268] sm:$0xff] %v1394
      %1685 = vst [vmem:[%s1521 + $0x270] sm:$0xff] %v1395
      %1686 = vst [vmem:[%s1521 + $0x288] sm:$0xff] %v1396
      %1687 = vst [vmem:[%s1521 + $0x290] sm:$0xff] %v1397
      %1688 = vst [vmem:[%s1521 + $0x2a8] sm:$0xff] %v1398
      %1689 = vst [vmem:[%s1521 + $0x2b0] sm:$0xff] %v1399
      %1690 = vst [vmem:[%s1521 + $0x2c8] sm:$0xff] %v1400
      %1691 = vst [vmem:[%s1521 + $0x2d0] sm:$0xff] %v1401
      %1692 = vst [vmem:[%s1521 + $0x2e8] sm:$0xff] %v1402
      %1693 = vst [vmem:[%s1521 + $0x2f0] sm:$0xff] %v1403
      %1694 = vst [vmem:[%s1521 + $0x308] sm:$0xff] %v1404
      %1695 = vst [vmem:[%s1521 + $0x310] sm:$0xff] %v1405
      %1696 = vst [vmem:[%s1521 + $0x328] sm:$0xff] %v1406
      %1697 = vst [vmem:[%s1521 + $0x330] sm:$0xff] %v1407
      %1698 = vst [vmem:[%s1521 + $0x348] sm:$0xff] %v1408
      %1699 = vst [vmem:[%s1521 + $0x350] sm:$0xff] %v1409
      %1700 = vst [vmem:[%s1521 + $0x368] sm:$0xff] %v1410
      %1701 = vst [vmem:[%s1521 + $0x370] sm:$0xff] %v1411
      %1702 = vst [vmem:[%s1521 + $0x388] sm:$0xff] %v1412
      %1703 = vst [vmem:[%s1521 + $0x390] sm:$0xff] %v1413
      %1704 = vst [vmem:[%s1521 + $0x3a8] sm:$0xff] %v1414
      %1705 = vst [vmem:[%s1521 + $0x3b0] sm:$0xff] %v1415
      %1706 = vst [vmem:[%s1521 + $0x3c8] sm:$0xff] %v1416
      %1707 = vst [vmem:[%s1521 + $0x3d0] sm:$0xff] %v1417
      %1708 = vst [vmem:[%s1521 + $0x3e8] sm:$0xff] %v1418
      %1709 = vst [vmem:[%s1521 + $0x3f0] sm:$0xff] %v1419
      %1710 = vst [vmem:[%s1521 + $0x408] sm:$0xff] %v1420
      %1711 = vst [vmem:[%s1521 + $0x410] sm:$0xff] %v1421
      %1712 = vst [vmem:[%s1521 + $0x428] sm:$0xff] %v1422
      %1713 = vst [vmem:[%s1521 + $0x430] sm:$0xff] %v1423
      %1714 = vst [vmem:[%s1521 + $0x488] sm:$0xff] %v1424
      %1715 = vst [vmem:[%s1521 + $0x490] sm:$0xff] %v1425
      %1716 = vst [vmem:[%s1521 + $0x4a8] sm:$0xff] %v1426
      %1717 = vst [vmem:[%s1521 + $0x4b0] sm:$0xff] %v1427
      %1718 = vst [vmem:[%s1521 + $0x4c8] sm:$0xff] %v1428
      %1719 = vst [vmem:[%s1521 + $0x4d0] sm:$0xff] %v1429
      %1720 = vst [vmem:[%s1521 + $0x4e8] sm:$0xff] %v1430
      %1721 = vst [vmem:[%s1521 + $0x4f0] sm:$0xff] %v1431
      %1722 = vst [vmem:[%s1521 + $0x508] sm:$0xff] %v1432
      %1723 = vst [vmem:[%s1521 + $0x510] sm:$0xff] %v1433
      %1724 = vst [vmem:[%s1521 + $0x528] sm:$0xff] %v1434
      %1725 = vst [vmem:[%s1521 + $0x530] sm:$0xff] %v1435
      %1726 = vst [vmem:[%s1521 + $0x548] sm:$0xff] %v1436
      %1727 = vst [vmem:[%s1521 + $0x550] sm:$0xff] %v1437
      %1728 = vst [vmem:[%s1521 + $0x568] sm:$0xff] %v1438
      %1729 = vst [vmem:[%s1521 + $0x570] sm:$0xff] %v1439
      %1730 = vst [vmem:[%s1521 + $0x588] sm:$0xff] %v1440
      %1731 = vst [vmem:[%s1521 + $0x590] sm:$0xff] %v1441
      %1732 = vst [vmem:[%s1521 + $0x5a8] sm:$0xff] %v1442
      %1733 = vst [vmem:[%s1521 + $0x5b0] sm:$0xff] %v1443
      %1734 = vst [vmem:[%s1521 + $0x5c8] sm:$0xff] %v1444
      %1735 = vst [vmem:[%s1521 + $0x5d0] sm:$0xff] %v1445
      %1736 = vst [vmem:[%s1521 + $0x5e8] sm:$0xff] %v1446
      %1737 = vst [vmem:[%s1521 + $0x5f0] sm:$0xff] %v1447
      %1738 = vst [vmem:[%s1521 + $0x608] sm:$0xff] %v1448
      %1739 = vst [vmem:[%s1521 + $0x610] sm:$0xff] %v1449
      %1740 = vst [vmem:[%s1521 + $0x628] sm:$0xff] %v1450
      %1741 = vst [vmem:[%s1521 + $0x630] sm:$0xff] %v1451
      %1742 = vst [vmem:[%s1521 + $0x648] sm:$0xff] %v1452
      %1743 = vst [vmem:[%s1521 + $0x650] sm:$0xff] %v1453
      %1744 = vst [vmem:[%s1521 + $0x668] sm:$0xff] %v1454
      %1745 = vst [vmem:[%s1521 + $0x670] sm:$0xff] %v1455
      %1746 = vst [vmem:[%s1521 + $0x6c8] sm:$0xff] %v1456
      %1747 = vst [vmem:[%s1521 + $0x6d0] sm:$0xff] %v1457
      %1748 = vst [vmem:[%s1521 + $0x6e8] sm:$0xff] %v1458
      %1749 = vst [vmem:[%s1521 + $0x6f0] sm:$0xff] %v1459
      %1750 = vst [vmem:[%s1521 + $0x708] sm:$0xff] %v1460
      %1751 = vst [vmem:[%s1521 + $0x710] sm:$0xff] %v1461
      %1752 = vst [vmem:[%s1521 + $0x728] sm:$0xff] %v1462
      %1753 = vst [vmem:[%s1521 + $0x730] sm:$0xff] %v1463
      %1754 = vst [vmem:[%s1521 + $0x748] sm:$0xff] %v1464
      %1755 = vst [vmem:[%s1521 + $0x750] sm:$0xff] %v1465
      %1756 = vst [vmem:[%s1521 + $0x768] sm:$0xff] %v1466
      %1757 = vst [vmem:[%s1521 + $0x770] sm:$0xff] %v1467
      %1758 = vst [vmem:[%s1521 + $0x788] sm:$0xff] %v1468
      %1759 = vst [vmem:[%s1521 + $0x790] sm:$0xff] %v1469
      %1760 = vst [vmem:[%s1521 + $0x7a8] sm:$0xff] %v1470
      %1761 = vst [vmem:[%s1521 + $0x7b0] sm:$0xff] %v1471
      %1762 = vst [vmem:[%s1521 + $0x7c8] sm:$0xff] %v1472
      %1763 = vst [vmem:[%s1521 + $0x7d0] sm:$0xff] %v1473
      %1764 = vst [vmem:[%s1521 + $0x7e8] sm:$0xff] %v1474
      %1765 = vst [vmem:[%s1521 + $0x7f0] sm:$0xff] %v1475
      %1766 = vst [vmem:[%s1521 + $0x808] sm:$0xff] %v1476
      %1767 = vst [vmem:[%s1521 + $0x810] sm:$0xff] %v1477
      %1768 = vst [vmem:[%s1521 + $0x828] sm:$0xff] %v1478
      %1769 = vst [vmem:[%s1521 + $0x830] sm:$0xff] %v1479
      %1770 = vst [vmem:[%s1521 + $0x848] sm:$0xff] %v1480
      %1771 = vst [vmem:[%s1521 + $0x850] sm:$0xff] %v1481
      %1772 = vst [vmem:[%s1521 + $0x868] sm:$0xff] %v1482
      %1773 = vst [vmem:[%s1521 + $0x870] sm:$0xff] %v1483
      %1774 = vst [vmem:[%s1521 + $0x888] sm:$0xff] %v1484
      %1775 = vst [vmem:[%s1521 + $0x890] sm:$0xff] %v1485
      %1776 = vst [vmem:[%s1521 + $0x8a8] sm:$0xff] %v1486
      %1777 = vst [vmem:[%s1521 + $0x8b0] sm:$0xff] %v1487
      %v1778 = vld [vmem:[%s2] sm:$0xff]
      %v1779 = vld [vmem:[%s2 + $0x8] sm:$0x1]
      %v1780 = vld [vmem:[#allocation2 + $0x7] sm:$0xff]
      %v1781 = vld [vmem:[#allocation2 + $0xf] sm:$0xff]
      %v1782 = vld [vmem:[#allocation2 + $0x27] sm:$0xff]
      %v1783 = vld [vmem:[#allocation2 + $0x2f] sm:$0xff]
      %v1784 = vld [vmem:[#allocation2 + $0x47] sm:$0xff]
      %v1785 = vld [vmem:[#allocation2 + $0x4f] sm:$0xff]
      %v1786 = vld [vmem:[#allocation2 + $0x67] sm:$0xff]
      %v1787 = vld [vmem:[#allocation2 + $0x6f] sm:$0xff]
      %v1788 = vld [vmem:[#allocation2 + $0x87] sm:$0xff]
      %v1789 = vld [vmem:[#allocation2 + $0x8f] sm:$0xff]
      %v1790 = vld [vmem:[#allocation2 + $0xa7] sm:$0xff]
      %v1791 = vld [vmem:[#allocation2 + $0xaf] sm:$0xff]
      %v1792 = vld [vmem:[#allocation2 + $0xc7] sm:$0xff]
      %v1793 = vld [vmem:[#allocation2 + $0xcf] sm:$0xff]
      %v1794 = vld [vmem:[#allocation2 + $0xe7] sm:$0xff]
      %v1795 = vld [vmem:[#allocation2 + $0xef] sm:$0xff]
      %v1796 = vld [vmem:[#allocation2 + $0x107] sm:$0xff]
      %v1797 = vld [vmem:[#allocation2 + $0x10f] sm:$0xff]
      %v1798 = vld [vmem:[#allocation2 + $0x127] sm:$0xff]
      %v1799 = vld [vmem:[#allocation2 + $0x12f] sm:$0xff]
      %v1800 = vld [vmem:[#allocation2 + $0x147] sm:$0xff]
      %v1801 = vld [vmem:[#allocation2 + $0x14f] sm:$0xff]
      %v1802 = vld [vmem:[#allocation2 + $0x167] sm:$0xff]
      %v1803 = vld [vmem:[#allocation2 + $0x16f] sm:$0xff]
      %v1804 = vld [vmem:[#allocation2 + $0x187] sm:$0xff]
      %v1805 = vld [vmem:[#allocation2 + $0x18f] sm:$0xff]
      %v1806 = vld [vmem:[#allocation2 + $0x1a7] sm:$0xff]
      %v1807 = vld [vmem:[#allocation2 + $0x1af] sm:$0xff]
      %v1808 = vld [vmem:[#allocation2 + $0x1c7] sm:$0xff]
      %v1809 = vld [vmem:[#allocation2 + $0x1cf] sm:$0xff]
      %v1810 = vld [vmem:[#allocation2 + $0x1e7] sm:$0xff]
      %v1811 = vld [vmem:[#allocation2 + $0x1ef] sm:$0xff]
      %v1812 = vld [vmem:[#allocation2 + $0x247] sm:$0xff]
      %v1813 = vld [vmem:[#allocation2 + $0x24f] sm:$0xff]
      %v1814 = vld [vmem:[#allocation2 + $0x267] sm:$0xff]
      %v1815 = vld [vmem:[#allocation2 + $0x26f] sm:$0xff]
      %v1816 = vld [vmem:[#allocation2 + $0x287] sm:$0xff]
      %v1817 = vld [vmem:[#allocation2 + $0x28f] sm:$0xff]
      %v1818 = vld [vmem:[#allocation2 + $0x2a7] sm:$0xff]
      %v1819 = vld [vmem:[#allocation2 + $0x2af] sm:$0xff]
      %v1820 = vld [vmem:[#allocation2 + $0x2c7] sm:$0xff]
      %v1821 = vld [vmem:[#allocation2 + $0x2cf] sm:$0xff]
      %v1822 = vld [vmem:[#allocation2 + $0x2e7] sm:$0xff]
      %v1823 = vld [vmem:[#allocation2 + $0x2ef] sm:$0xff]
      %v1824 = vld [vmem:[#allocation2 + $0x307] sm:$0xff]
      %v1825 = vld [vmem:[#allocation2 + $0x30f] sm:$0xff]
      %v1826 = vld [vmem:[#allocation2 + $0x327] sm:$0xff]
      %v1827 = vld [vmem:[#allocation2 + $0x32f] sm:$0xff]
      %v1828 = vld [vmem:[#allocation2 + $0x347] sm:$0xff]
      %v1829 = vld [vmem:[#allocation2 + $0x34f] sm:$0xff]
      %v1830 = vld [vmem:[#allocation2 + $0x367] sm:$0xff]
      %v1831 = vld [vmem:[#allocation2 + $0x36f] sm:$0xff]
      %v1832 = vld [vmem:[#allocation2 + $0x387] sm:$0xff]
      %v1833 = vld [vmem:[#allocation2 + $0x38f] sm:$0xff]
      %v1834 = vld [vmem:[#allocation2 + $0x3a7] sm:$0xff]
      %v1835 = vld [vmem:[#allocation2 + $0x3af] sm:$0xff]
      %v1836 = vld [vmem:[#allocation2 + $0x3c7] sm:$0xff]
      %v1837 = vld [vmem:[#allocation2 + $0x3cf] sm:$0xff]
      %v1838 = vld [vmem:[#allocation2 + $0x3e7] sm:$0xff]
      %v1839 = vld [vmem:[#allocation2 + $0x3ef] sm:$0xff]
      %v1840 = vld [vmem:[#allocation2 + $0x407] sm:$0xff]
      %v1841 = vld [vmem:[#allocation2 + $0x40f] sm:$0xff]
      %v1842 = vld [vmem:[#allocation2 + $0x427] sm:$0xff]
      %v1843 = vld [vmem:[#allocation2 + $0x42f] sm:$0xff]
      %v1844 = vld [vmem:[#allocation2 + $0x487] sm:$0xff]
      %v1845 = vld [vmem:[#allocation2 + $0x48f] sm:$0xff]
      %v1846 = vld [vmem:[#allocation2 + $0x4a7] sm:$0xff]
      %v1847 = vld [vmem:[#allocation2 + $0x4af] sm:$0xff]
      %v1848 = vld [vmem:[#allocation2 + $0x4c7] sm:$0xff]
      %v1849 = vld [vmem:[#allocation2 + $0x4cf] sm:$0xff]
      %v1850 = vld [vmem:[#allocation2 + $0x4e7] sm:$0xff]
      %v1851 = vld [vmem:[#allocation2 + $0x4ef] sm:$0xff]
      %v1852 = vld [vmem:[#allocation2 + $0x507] sm:$0xff]
      %v1853 = vld [vmem:[#allocation2 + $0x50f] sm:$0xff]
      %v1854 = vld [vmem:[#allocation2 + $0x527] sm:$0xff]
      %v1855 = vld [vmem:[#allocation2 + $0x52f] sm:$0xff]
      %v1856 = vld [vmem:[#allocation2 + $0x547] sm:$0xff]
      %v1857 = vld [vmem:[#allocation2 + $0x54f] sm:$0xff]
      %v1858 = vld [vmem:[#allocation2 + $0x567] sm:$0xff]
      %v1859 = vld [vmem:[#allocation2 + $0x56f] sm:$0xff]
      %v1860 = vld [vmem:[#allocation2 + $0x587] sm:$0xff]
      %v1861 = vld [vmem:[#allocation2 + $0x58f] sm:$0xff]
      %v1862 = vld [vmem:[#allocation2 + $0x5a7] sm:$0xff]
      %v1863 = vld [vmem:[#allocation2 + $0x5af] sm:$0xff]
      %v1864 = vld [vmem:[#allocation2 + $0x5c7] sm:$0xff]
      %v1865 = vld [vmem:[#allocation2 + $0x5cf] sm:$0xff]
      %v1866 = vld [vmem:[#allocation2 + $0x5e7] sm:$0xff]
      %v1867 = vld [vmem:[#allocation2 + $0x5ef] sm:$0xff]
      %v1868 = vld [vmem:[#allocation2 + $0x607] sm:$0xff]
      %v1869 = vld [vmem:[#allocation2 + $0x60f] sm:$0xff]
      %v1870 = vld [vmem:[#allocation2 + $0x627] sm:$0xff]
      %v1871 = vld [vmem:[#allocation2 + $0x62f] sm:$0xff]
      %v1872 = vld [vmem:[#allocation2 + $0x647] sm:$0xff]
      %v1873 = vld [vmem:[#allocation2 + $0x64f] sm:$0xff]
      %v1874 = vld [vmem:[#allocation2 + $0x667] sm:$0xff]
      %v1875 = vld [vmem:[#allocation2 + $0x66f] sm:$0xff]
      %v1876 = vld [vmem:[#allocation2 + $0x6c7] sm:$0xff]
      %v1877 = vld [vmem:[#allocation2 + $0x6cf] sm:$0xff]
      %v1878 = vld [vmem:[#allocation2 + $0x6e7] sm:$0xff]
      %v1879 = vld [vmem:[#allocation2 + $0x6ef] sm:$0xff]
      %v1880 = vld [vmem:[#allocation2 + $0x707] sm:$0xff]
      %v1881 = vld [vmem:[#allocation2 + $0x70f] sm:$0xff]
      %v1882 = vld [vmem:[#allocation2 + $0x727] sm:$0xff]
      %v1883 = vld [vmem:[#allocation2 + $0x72f] sm:$0xff]
      %v1884 = vld [vmem:[#allocation2 + $0x747] sm:$0xff]
      %v1885 = vld [vmem:[#allocation2 + $0x74f] sm:$0xff]
      %v1886 = vld [vmem:[#allocation2 + $0x767] sm:$0xff]
      %v1887 = vld [vmem:[#allocation2 + $0x76f] sm:$0xff]
      %v1888 = vld [vmem:[#allocation2 + $0x787] sm:$0xff]
      %v1889 = vld [vmem:[#allocation2 + $0x78f] sm:$0xff]
      %v1890 = vld [vmem:[#allocation2 + $0x7a7] sm:$0xff]
      %v1891 = vld [vmem:[#allocation2 + $0x7af] sm:$0xff]
      %v1892 = vld [vmem:[#allocation2 + $0x7c7] sm:$0xff]
      %v1893 = vld [vmem:[#allocation2 + $0x7cf] sm:$0xff]
      %v1894 = vld [vmem:[#allocation2 + $0x7e7] sm:$0xff]
      %v1895 = vld [vmem:[#allocation2 + $0x7ef] sm:$0xff]
      %v1896 = vld [vmem:[#allocation2 + $0x807] sm:$0xff]
      %v1897 = vld [vmem:[#allocation2 + $0x80f] sm:$0xff]
      %v1898 = vld [vmem:[#allocation2 + $0x827] sm:$0xff]
      %v1899 = vld [vmem:[#allocation2 + $0x82f] sm:$0xff]
      %v1900 = vld [vmem:[#allocation2 + $0x847] sm:$0xff]
      %v1901 = vld [vmem:[#allocation2 + $0x84f] sm:$0xff]
      %v1902 = vld [vmem:[#allocation2 + $0x867] sm:$0xff]
      %v1903 = vld [vmem:[#allocation2 + $0x86f] sm:$0xff]
      %v1904 = vld [vmem:[#allocation2 + $0x887] sm:$0xff]
      %v1905 = vld [vmem:[#allocation2 + $0x88f] sm:$0xff]
      %v1906 = vld [vmem:[#allocation2 + $0x8a7] sm:$0xff]
      %v1907 = vld [vmem:[#allocation2 + $0x8af] sm:$0xff]
      %v1908 = vlaneseq
      %v1909 = vshrl.u32 %v1908, 7
      %v1910 = vsub.s32 0, %v1909
      %v1911 = vrot.slane %v1778, %v1910
      %v1912 = vmul.f32 %v1780, %v1911
      %v1913 = vmul.f32 %v1781, %v1911
      %v1914 = vmul.f32 %v1782, %v1911
      %v1915 = vmul.f32 %v1783, %v1911
      %v1916 = vmul.f32 %v1784, %v1911
      %v1917 = vmul.f32 %v1785, %v1911
      %v1918 = vmul.f32 %v1786, %v1911
      %v1919 = vmul.f32 %v1787, %v1911
      %v1920 = vmul.f32 %v1788, %v1911
      %v1921 = vmul.f32 %v1789, %v1911
      %v1922 = vmul.f32 %v1790, %v1911
      %v1923 = vmul.f32 %v1791, %v1911
      %v1924 = vmul.f32 %v1792, %v1911
      %v1925 = vmul.f32 %v1793, %v1911
      %v1926 = vmul.f32 %v1794, %v1911
      %v1927 = vmul.f32 %v1795, %v1911
      %v1928 = vmul.f32 %v1796, %v1911
      %v1929 = vmul.f32 %v1797, %v1911
      %v1930 = vmul.f32 %v1798, %v1911
      %v1931 = vmul.f32 %v1799, %v1911
      %v1932 = vmul.f32 %v1800, %v1911
      %v1933 = vmul.f32 %v1801, %v1911
      %v1934 = vmul.f32 %v1802, %v1911
      %v1935 = vmul.f32 %v1803, %v1911
      %v1936 = vmul.f32 %v1804, %v1911
      %v1937 = vmul.f32 %v1805, %v1911
      %v1938 = vmul.f32 %v1806, %v1911
      %v1939 = vmul.f32 %v1807, %v1911
      %v1940 = vmul.f32 %v1808, %v1911
      %v1941 = vmul.f32 %v1809, %v1911
      %v1942 = vmul.f32 %v1810, %v1911
      %v1943 = vmul.f32 %v1811, %v1911
      %v1944 = vmul.f32 %v1812, %v1911
      %v1945 = vmul.f32 %v1813, %v1911
      %v1946 = vmul.f32 %v1814, %v1911
      %v1947 = vmul.f32 %v1815, %v1911
      %v1948 = vmul.f32 %v1816, %v1911
      %v1949 = vmul.f32 %v1817, %v1911
      %v1950 = vmul.f32 %v1818, %v1911
      %v1951 = vmul.f32 %v1819, %v1911
      %v1952 = vmul.f32 %v1820, %v1911
      %v1953 = vmul.f32 %v1821, %v1911
      %v1954 = vmul.f32 %v1822, %v1911
      %v1955 = vmul.f32 %v1823, %v1911
      %v1956 = vmul.f32 %v1824, %v1911
      %v1957 = vmul.f32 %v1825, %v1911
      %v1958 = vmul.f32 %v1826, %v1911
      %v1959 = vmul.f32 %v1827, %v1911
      %v1960 = vmul.f32 %v1828, %v1911
      %v1961 = vmul.f32 %v1829, %v1911
      %v1962 = vmul.f32 %v1830, %v1911
      %v1963 = vmul.f32 %v1831, %v1911
      %v1964 = vmul.f32 %v1832, %v1911
      %v1965 = vmul.f32 %v1833, %v1911
      %v1966 = vmul.f32 %v1834, %v1911
      %v1967 = vmul.f32 %v1835, %v1911
      %v1968 = vmul.f32 %v1836, %v1911
      %v1969 = vmul.f32 %v1837, %v1911
      %v1970 = vmul.f32 %v1838, %v1911
      %v1971 = vmul.f32 %v1839, %v1911
      %v1972 = vmul.f32 %v1840, %v1911
      %v1973 = vmul.f32 %v1841, %v1911
      %v1974 = vmul.f32 %v1842, %v1911
      %v1975 = vmul.f32 %v1843, %v1911
      %v1976 = vmul.f32 %v1844, %v1911
      %v1977 = vmul.f32 %v1845, %v1911
      %v1978 = vmul.f32 %v1846, %v1911
      %v1979 = vmul.f32 %v1847, %v1911
      %v1980 = vmul.f32 %v1848, %v1911
      %v1981 = vmul.f32 %v1849, %v1911
      %v1982 = vmul.f32 %v1850, %v1911
      %v1983 = vmul.f32 %v1851, %v1911
      %v1984 = vmul.f32 %v1852, %v1911
      %v1985 = vmul.f32 %v1853, %v1911
      %v1986 = vmul.f32 %v1854, %v1911
      %v1987 = vmul.f32 %v1855, %v1911
      %v1988 = vmul.f32 %v1856, %v1911
      %v1989 = vmul.f32 %v1857, %v1911
      %v1990 = vmul.f32 %v1858, %v1911
      %v1991 = vmul.f32 %v1859, %v1911
      %v1992 = vmul.f32 %v1860, %v1911
      %v1993 = vmul.f32 %v1861, %v1911
      %v1994 = vmul.f32 %v1862, %v1911
      %v1995 = vmul.f32 %v1863, %v1911
      %v1996 = vmul.f32 %v1864, %v1911
      %v1997 = vmul.f32 %v1865, %v1911
      %v1998 = vmul.f32 %v1866, %v1911
      %v1999 = vmul.f32 %v1867, %v1911
      %v2000 = vmul.f32 %v1868, %v1911
      %v2001 = vmul.f32 %v1869, %v1911
      %v2002 = vmul.f32 %v1870, %v1911
      %v2003 = vmul.f32 %v1871, %v1911
      %v2004 = vmul.f32 %v1872, %v1911
      %v2005 = vmul.f32 %v1873, %v1911
      %v2006 = vmul.f32 %v1874, %v1911
      %v2007 = vmul.f32 %v1875, %v1911
      %v2008 = vmul.f32 %v1876, %v1911
      %v2009 = vmul.f32 %v1877, %v1911
      %v2010 = vmul.f32 %v1878, %v1911
      %v2011 = vmul.f32 %v1879, %v1911
      %v2012 = vmul.f32 %v1880, %v1911
      %v2013 = vmul.f32 %v1881, %v1911
      %v2014 = vmul.f32 %v1882, %v1911
      %v2015 = vmul.f32 %v1883, %v1911
      %v2016 = vmul.f32 %v1884, %v1911
      %v2017 = vmul.f32 %v1885, %v1911
      %v2018 = vmul.f32 %v1886, %v1911
      %v2019 = vmul.f32 %v1887, %v1911
      %v2020 = vmul.f32 %v1888, %v1911
      %v2021 = vmul.f32 %v1889, %v1911
      %v2022 = vmul.f32 %v1890, %v1911
      %v2023 = vmul.f32 %v1891, %v1911
      %v2024 = vmul.f32 %v1892, %v1911
      %v2025 = vmul.f32 %v1893, %v1911
      %v2026 = vmul.f32 %v1894, %v1911
      %v2027 = vmul.f32 %v1895, %v1911
      %v2028 = vmul.f32 %v1896, %v1911
      %v2029 = vmul.f32 %v1897, %v1911
      %v2030 = vmul.f32 %v1898, %v1911
      %v2031 = vmul.f32 %v1899, %v1911
      %v2032 = vmul.f32 %v1900, %v1911
      %v2033 = vmul.f32 %v1901, %v1911
      %v2034 = vmul.f32 %v1902, %v1911
      %v2035 = vmul.f32 %v1903, %v1911
      %v2036 = vmul.f32 %v1904, %v1911
      %v2037 = vmul.f32 %v1905, %v1911
      %v2038 = vmul.f32 %v1906, %v1911
      %v2039 = vmul.f32 %v1907, %v1911
      %v2040 = vld [vmem:[#allocation2 + $0x8] sm:$0xff]
      %v2041 = vld [vmem:[#allocation2 + $0x10] sm:$0xff]
      %v2042 = vld [vmem:[#allocation2 + $0x28] sm:$0xff]
      %v2043 = vld [vmem:[#allocation2 + $0x30] sm:$0xff]
      %v2044 = vld [vmem:[#allocation2 + $0x48] sm:$0xff]
      %v2045 = vld [vmem:[#allocation2 + $0x50] sm:$0xff]
      %v2046 = vld [vmem:[#allocation2 + $0x68] sm:$0xff]
      %v2047 = vld [vmem:[#allocation2 + $0x70] sm:$0xff]
      %v2048 = vld [vmem:[#allocation2 + $0x88] sm:$0xff]
      %v2049 = vld [vmem:[#allocation2 + $0x90] sm:$0xff]
      %v2050 = vld [vmem:[#allocation2 + $0xa8] sm:$0xff]
      %v2051 = vld [vmem:[#allocation2 + $0xb0] sm:$0xff]
      %v2052 = vld [vmem:[#allocation2 + $0xc8] sm:$0xff]
      %v2053 = vld [vmem:[#allocation2 + $0xd0] sm:$0xff]
      %v2054 = vld [vmem:[#allocation2 + $0xe8] sm:$0xff]
      %v2055 = vld [vmem:[#allocation2 + $0xf0] sm:$0xff]
      %v2056 = vld [vmem:[#allocation2 + $0x108] sm:$0xff]
      %v2057 = vld [vmem:[#allocation2 + $0x110] sm:$0xff]
      %v2058 = vld [vmem:[#allocation2 + $0x128] sm:$0xff]
      %v2059 = vld [vmem:[#allocation2 + $0x130] sm:$0xff]
      %v2060 = vld [vmem:[#allocation2 + $0x148] sm:$0xff]
      %v2061 = vld [vmem:[#allocation2 + $0x150] sm:$0xff]
      %v2062 = vld [vmem:[#allocation2 + $0x168] sm:$0xff]
      %v2063 = vld [vmem:[#allocation2 + $0x170] sm:$0xff]
      %v2064 = vld [vmem:[#allocation2 + $0x188] sm:$0xff]
      %v2065 = vld [vmem:[#allocation2 + $0x190] sm:$0xff]
      %v2066 = vld [vmem:[#allocation2 + $0x1a8] sm:$0xff]
      %v2067 = vld [vmem:[#allocation2 + $0x1b0] sm:$0xff]
      %v2068 = vld [vmem:[#allocation2 + $0x1c8] sm:$0xff]
      %v2069 = vld [vmem:[#allocation2 + $0x1d0] sm:$0xff]
      %v2070 = vld [vmem:[#allocation2 + $0x1e8] sm:$0xff]
      %v2071 = vld [vmem:[#allocation2 + $0x1f0] sm:$0xff]
      %v2072 = vld [vmem:[#allocation2 + $0x248] sm:$0xff]
      %v2073 = vld [vmem:[#allocation2 + $0x250] sm:$0xff]
      %v2074 = vld [vmem:[#allocation2 + $0x268] sm:$0xff]
      %v2075 = vld [vmem:[#allocation2 + $0x270] sm:$0xff]
      %v2076 = vld [vmem:[#allocation2 + $0x288] sm:$0xff]
      %v2077 = vld [vmem:[#allocation2 + $0x290] sm:$0xff]
      %v2078 = vld [vmem:[#allocation2 + $0x2a8] sm:$0xff]
      %v2079 = vld [vmem:[#allocation2 + $0x2b0] sm:$0xff]
      %v2080 = vld [vmem:[#allocation2 + $0x2c8] sm:$0xff]
      %v2081 = vld [vmem:[#allocation2 + $0x2d0] sm:$0xff]
      %v2082 = vld [vmem:[#allocation2 + $0x2e8] sm:$0xff]
      %v2083 = vld [vmem:[#allocation2 + $0x2f0] sm:$0xff]
      %v2084 = vld [vmem:[#allocation2 + $0x308] sm:$0xff]
      %v2085 = vld [vmem:[#allocation2 + $0x310] sm:$0xff]
      %v2086 = vld [vmem:[#allocation2 + $0x328] sm:$0xff]
      %v2087 = vld [vmem:[#allocation2 + $0x330] sm:$0xff]
      %v2088 = vld [vmem:[#allocation2 + $0x348] sm:$0xff]
      %v2089 = vld [vmem:[#allocation2 + $0x350] sm:$0xff]
      %v2090 = vld [vmem:[#allocation2 + $0x368] sm:$0xff]
      %v2091 = vld [vmem:[#allocation2 + $0x370] sm:$0xff]
      %v2092 = vld [vmem:[#allocation2 + $0x388] sm:$0xff]
      %v2093 = vld [vmem:[#allocation2 + $0x390] sm:$0xff]
      %v2094 = vld [vmem:[#allocation2 + $0x3a8] sm:$0xff]
      %v2095 = vld [vmem:[#allocation2 + $0x3b0] sm:$0xff]
      %v2096 = vld [vmem:[#allocation2 + $0x3c8] sm:$0xff]
      %v2097 = vld [vmem:[#allocation2 + $0x3d0] sm:$0xff]
      %v2098 = vld [vmem:[#allocation2 + $0x3e8] sm:$0xff]
      %v2099 = vld [vmem:[#allocation2 + $0x3f0] sm:$0xff]
      %v2100 = vld [vmem:[#allocation2 + $0x408] sm:$0xff]
      %v2101 = vld [vmem:[#allocation2 + $0x410] sm:$0xff]
      %v2102 = vld [vmem:[#allocation2 + $0x428] sm:$0xff]
      %v2103 = vld [vmem:[#allocation2 + $0x430] sm:$0xff]
      %v2104 = vld [vmem:[#allocation2 + $0x488] sm:$0xff]
      %v2105 = vld [vmem:[#allocation2 + $0x490] sm:$0xff]
      %v2106 = vld [vmem:[#allocation2 + $0x4a8] sm:$0xff]
      %v2107 = vld [vmem:[#allocation2 + $0x4b0] sm:$0xff]
      %v2108 = vld [vmem:[#allocation2 + $0x4c8] sm:$0xff]
      %v2109 = vld [vmem:[#allocation2 + $0x4d0] sm:$0xff]
      %v2110 = vld [vmem:[#allocation2 + $0x4e8] sm:$0xff]
      %v2111 = vld [vmem:[#allocation2 + $0x4f0] sm:$0xff]
      %v2112 = vld [vmem:[#allocation2 + $0x508] sm:$0xff]
      %v2113 = vld [vmem:[#allocation2 + $0x510] sm:$0xff]
      %v2114 = vld [vmem:[#allocation2 + $0x528] sm:$0xff]
      %v2115 = vld [vmem:[#allocation2 + $0x530] sm:$0xff]
      %v2116 = vld [vmem:[#allocation2 + $0x548] sm:$0xff]
      %v2117 = vld [vmem:[#allocation2 + $0x550] sm:$0xff]
      %v2118 = vld [vmem:[#allocation2 + $0x568] sm:$0xff]
      %v2119 = vld [vmem:[#allocation2 + $0x570] sm:$0xff]
      %v2120 = vld [vmem:[#allocation2 + $0x588] sm:$0xff]
      %v2121 = vld [vmem:[#allocation2 + $0x590] sm:$0xff]
      %v2122 = vld [vmem:[#allocation2 + $0x5a8] sm:$0xff]
      %v2123 = vld [vmem:[#allocation2 + $0x5b0] sm:$0xff]
      %v2124 = vld [vmem:[#allocation2 + $0x5c8] sm:$0xff]
      %v2125 = vld [vmem:[#allocation2 + $0x5d0] sm:$0xff]
      %v2126 = vld [vmem:[#allocation2 + $0x5e8] sm:$0xff]
      %v2127 = vld [vmem:[#allocation2 + $0x5f0] sm:$0xff]
      %v2128 = vld [vmem:[#allocation2 + $0x608] sm:$0xff]
      %v2129 = vld [vmem:[#allocation2 + $0x610] sm:$0xff]
      %v2130 = vld [vmem:[#allocation2 + $0x628] sm:$0xff]
      %v2131 = vld [vmem:[#allocation2 + $0x630] sm:$0xff]
      %v2132 = vld [vmem:[#allocation2 + $0x648] sm:$0xff]
      %v2133 = vld [vmem:[#allocation2 + $0x650] sm:$0xff]
      %v2134 = vld [vmem:[#allocation2 + $0x668] sm:$0xff]
      %v2135 = vld [vmem:[#allocation2 + $0x670] sm:$0xff]
      %v2136 = vld [vmem:[#allocation2 + $0x6c8] sm:$0xff]
      %v2137 = vld [vmem:[#allocation2 + $0x6d0] sm:$0xff]
      %v2138 = vld [vmem:[#allocation2 + $0x6e8] sm:$0xff]
      %v2139 = vld [vmem:[#allocation2 + $0x6f0] sm:$0xff]
      %v2140 = vld [vmem:[#allocation2 + $0x708] sm:$0xff]
      %v2141 = vld [vmem:[#allocation2 + $0x710] sm:$0xff]
      %v2142 = vld [vmem:[#allocation2 + $0x728] sm:$0xff]
      %v2143 = vld [vmem:[#allocation2 + $0x730] sm:$0xff]
      %v2144 = vld [vmem:[#allocation2 + $0x748] sm:$0xff]
      %v2145 = vld [vmem:[#allocation2 + $0x750] sm:$0xff]
      %v2146 = vld [vmem:[#allocation2 + $0x768] sm:$0xff]
      %v2147 = vld [vmem:[#allocation2 + $0x770] sm:$0xff]
      %v2148 = vld [vmem:[#allocation2 + $0x788] sm:$0xff]
      %v2149 = vld [vmem:[#allocation2 + $0x790] sm:$0xff]
      %v2150 = vld [vmem:[#allocation2 + $0x7a8] sm:$0xff]
      %v2151 = vld [vmem:[#allocation2 + $0x7b0] sm:$0xff]
      %v2152 = vld [vmem:[#allocation2 + $0x7c8] sm:$0xff]
      %v2153 = vld [vmem:[#allocation2 + $0x7d0] sm:$0xff]
      %v2154 = vld [vmem:[#allocation2 + $0x7e8] sm:$0xff]
      %v2155 = vld [vmem:[#allocation2 + $0x7f0] sm:$0xff]
      %v2156 = vld [vmem:[#allocation2 + $0x808] sm:$0xff]
      %v2157 = vld [vmem:[#allocation2 + $0x810] sm:$0xff]
      %v2158 = vld [vmem:[#allocation2 + $0x828] sm:$0xff]
      %v2159 = vld [vmem:[#allocation2 + $0x830] sm:$0xff]
      %v2160 = vld [vmem:[#allocation2 + $0x848] sm:$0xff]
      %v2161 = vld [vmem:[#allocation2 + $0x850] sm:$0xff]
      %v2162 = vld [vmem:[#allocation2 + $0x868] sm:$0xff]
      %v2163 = vld [vmem:[#allocation2 + $0x870] sm:$0xff]
      %v2164 = vld [vmem:[#allocation2 + $0x888] sm:$0xff]
      %v2165 = vld [vmem:[#allocation2 + $0x890] sm:$0xff]
      %v2166 = vld [vmem:[#allocation2 + $0x8a8] sm:$0xff]
      %v2167 = vld [vmem:[#allocation2 + $0x8b0] sm:$0xff]
      %v2168 = vlaneseq
      %v2169 = vshrl.u32 %v2168, 7
      %v2170 = vsub.s32 1, %v2169
      %v2171 = vrot.slane %v1778, %v2170
      %v2172 = vmul.f32 %v2040, %v2171
      %v2173 = vmul.f32 %v2041, %v2171
      %v2174 = vmul.f32 %v2042, %v2171
      %v2175 = vmul.f32 %v2043, %v2171
      %v2176 = vmul.f32 %v2044, %v2171
      %v2177 = vmul.f32 %v2045, %v2171
      %v2178 = vmul.f32 %v2046, %v2171
      %v2179 = vmul.f32 %v2047, %v2171
      %v2180 = vmul.f32 %v2048, %v2171
      %v2181 = vmul.f32 %v2049, %v2171
      %v2182 = vmul.f32 %v2050, %v2171
      %v2183 = vmul.f32 %v2051, %v2171
      %v2184 = vmul.f32 %v2052, %v2171
      %v2185 = vmul.f32 %v2053, %v2171
      %v2186 = vmul.f32 %v2054, %v2171
      %v2187 = vmul.f32 %v2055, %v2171
      %v2188 = vmul.f32 %v2056, %v2171
      %v2189 = vmul.f32 %v2057, %v2171
      %v2190 = vmul.f32 %v2058, %v2171
      %v2191 = vmul.f32 %v2059, %v2171
      %v2192 = vmul.f32 %v2060, %v2171
      %v2193 = vmul.f32 %v2061, %v2171
      %v2194 = vmul.f32 %v2062, %v2171
      %v2195 = vmul.f32 %v2063, %v2171
      %v2196 = vmul.f32 %v2064, %v2171
      %v2197 = vmul.f32 %v2065, %v2171
      %v2198 = vmul.f32 %v2066, %v2171
      %v2199 = vmul.f32 %v2067, %v2171
      %v2200 = vmul.f32 %v2068, %v2171
      %v2201 = vmul.f32 %v2069, %v2171
      %v2202 = vmul.f32 %v2070, %v2171
      %v2203 = vmul.f32 %v2071, %v2171
      %v2204 = vmul.f32 %v2072, %v2171
      %v2205 = vmul.f32 %v2073, %v2171
      %v2206 = vmul.f32 %v2074, %v2171
      %v2207 = vmul.f32 %v2075, %v2171
      %v2208 = vmul.f32 %v2076, %v2171
      %v2209 = vmul.f32 %v2077, %v2171
      %v2210 = vmul.f32 %v2078, %v2171
      %v2211 = vmul.f32 %v2079, %v2171
      %v2212 = vmul.f32 %v2080, %v2171
      %v2213 = vmul.f32 %v2081, %v2171
      %v2214 = vmul.f32 %v2082, %v2171
      %v2215 = vmul.f32 %v2083, %v2171
      %v2216 = vmul.f32 %v2084, %v2171
      %v2217 = vmul.f32 %v2085, %v2171
      %v2218 = vmul.f32 %v2086, %v2171
      %v2219 = vmul.f32 %v2087, %v2171
      %v2220 = vmul.f32 %v2088, %v2171
      %v2221 = vmul.f32 %v2089, %v2171
      %v2222 = vmul.f32 %v2090, %v2171
      %v2223 = vmul.f32 %v2091, %v2171
      %v2224 = vmul.f32 %v2092, %v2171
      %v2225 = vmul.f32 %v2093, %v2171
      %v2226 = vmul.f32 %v2094, %v2171
      %v2227 = vmul.f32 %v2095, %v2171
      %v2228 = vmul.f32 %v2096, %v2171
      %v2229 = vmul.f32 %v2097, %v2171
      %v2230 = vmul.f32 %v2098, %v2171
      %v2231 = vmul.f32 %v2099, %v2171
      %v2232 = vmul.f32 %v2100, %v2171
      %v2233 = vmul.f32 %v2101, %v2171
      %v2234 = vmul.f32 %v2102, %v2171
      %v2235 = vmul.f32 %v2103, %v2171
      %v2236 = vmul.f32 %v2104, %v2171
      %v2237 = vmul.f32 %v2105, %v2171
      %v2238 = vmul.f32 %v2106, %v2171
      %v2239 = vmul.f32 %v2107, %v2171
      %v2240 = vmul.f32 %v2108, %v2171
      %v2241 = vmul.f32 %v2109, %v2171
      %v2242 = vmul.f32 %v2110, %v2171
      %v2243 = vmul.f32 %v2111, %v2171
      %v2244 = vmul.f32 %v2112, %v2171
      %v2245 = vmul.f32 %v2113, %v2171
      %v2246 = vmul.f32 %v2114, %v2171
      %v2247 = vmul.f32 %v2115, %v2171
      %v2248 = vmul.f32 %v2116, %v2171
      %v2249 = vmul.f32 %v2117, %v2171
      %v2250 = vmul.f32 %v2118, %v2171
      %v2251 = vmul.f32 %v2119, %v2171
      %v2252 = vmul.f32 %v2120, %v2171
      %v2253 = vmul.f32 %v2121, %v2171
      %v2254 = vmul.f32 %v2122, %v2171
      %v2255 = vmul.f32 %v2123, %v2171
      %v2256 = vmul.f32 %v2124, %v2171
      %v2257 = vmul.f32 %v2125, %v2171
      %v2258 = vmul.f32 %v2126, %v2171
      %v2259 = vmul.f32 %v2127, %v2171
      %v2260 = vmul.f32 %v2128, %v2171
      %v2261 = vmul.f32 %v2129, %v2171
      %v2262 = vmul.f32 %v2130, %v2171
      %v2263 = vmul.f32 %v2131, %v2171
      %v2264 = vmul.f32 %v2132, %v2171
      %v2265 = vmul.f32 %v2133, %v2171
      %v2266 = vmul.f32 %v2134, %v2171
      %v2267 = vmul.f32 %v2135, %v2171
      %v2268 = vmul.f32 %v2136, %v2171
      %v2269 = vmul.f32 %v2137, %v2171
      %v2270 = vmul.f32 %v2138, %v2171
      %v2271 = vmul.f32 %v2139, %v2171
      %v2272 = vmul.f32 %v2140, %v2171
      %v2273 = vmul.f32 %v2141, %v2171
      %v2274 = vmul.f32 %v2142, %v2171
      %v2275 = vmul.f32 %v2143, %v2171
      %v2276 = vmul.f32 %v2144, %v2171
      %v2277 = vmul.f32 %v2145, %v2171
      %v2278 = vmul.f32 %v2146, %v2171
      %v2279 = vmul.f32 %v2147, %v2171
      %v2280 = vmul.f32 %v2148, %v2171
      %v2281 = vmul.f32 %v2149, %v2171
      %v2282 = vmul.f32 %v2150, %v2171
      %v2283 = vmul.f32 %v2151, %v2171
      %v2284 = vmul.f32 %v2152, %v2171
      %v2285 = vmul.f32 %v2153, %v2171
      %v2286 = vmul.f32 %v2154, %v2171
      %v2287 = vmul.f32 %v2155, %v2171
      %v2288 = vmul.f32 %v2156, %v2171
      %v2289 = vmul.f32 %v2157, %v2171
      %v2290 = vmul.f32 %v2158, %v2171
      %v2291 = vmul.f32 %v2159, %v2171
      %v2292 = vmul.f32 %v2160, %v2171
      %v2293 = vmul.f32 %v2161, %v2171
      %v2294 = vmul.f32 %v2162, %v2171
      %v2295 = vmul.f32 %v2163, %v2171
      %v2296 = vmul.f32 %v2164, %v2171
      %v2297 = vmul.f32 %v2165, %v2171
      %v2298 = vmul.f32 %v2166, %v2171
      %v2299 = vmul.f32 %v2167, %v2171
      %v2300 = vadd.f32 %v1912, %v2172
      %v2301 = vadd.f32 %v1913, %v2173
      %v2302 = vadd.f32 %v1914, %v2174
      %v2303 = vadd.f32 %v1915, %v2175
      %v2304 = vadd.f32 %v1916, %v2176
      %v2305 = vadd.f32 %v1917, %v2177
      %v2306 = vadd.f32 %v1918, %v2178
      %v2307 = vadd.f32 %v1919, %v2179
      %v2308 = vadd.f32 %v1920, %v2180
      %v2309 = vadd.f32 %v1921, %v2181
      %v2310 = vadd.f32 %v1922, %v2182
      %v2311 = vadd.f32 %v1923, %v2183
      %v2312 = vadd.f32 %v1924, %v2184
      %v2313 = vadd.f32 %v1925, %v2185
      %v2314 = vadd.f32 %v1926, %v2186
      %v2315 = vadd.f32 %v1927, %v2187
      %v2316 = vadd.f32 %v1928, %v2188
      %v2317 = vadd.f32 %v1929, %v2189
      %v2318 = vadd.f32 %v1930, %v2190
      %v2319 = vadd.f32 %v1931, %v2191
      %v2320 = vadd.f32 %v1932, %v2192
      %v2321 = vadd.f32 %v1933, %v2193
      %v2322 = vadd.f32 %v1934, %v2194
      %v2323 = vadd.f32 %v1935, %v2195
      %v2324 = vadd.f32 %v1936, %v2196
      %v2325 = vadd.f32 %v1937, %v2197
      %v2326 = vadd.f32 %v1938, %v2198
      %v2327 = vadd.f32 %v1939, %v2199
      %v2328 = vadd.f32 %v1940, %v2200
      %v2329 = vadd.f32 %v1941, %v2201
      %v2330 = vadd.f32 %v1942, %v2202
      %v2331 = vadd.f32 %v1943, %v2203
      %v2332 = vadd.f32 %v1944, %v2204
      %v2333 = vadd.f32 %v1945, %v2205
      %v2334 = vadd.f32 %v1946, %v2206
      %v2335 = vadd.f32 %v1947, %v2207
      %v2336 = vadd.f32 %v1948, %v2208
      %v2337 = vadd.f32 %v1949, %v2209
      %v2338 = vadd.f32 %v1950, %v2210
      %v2339 = vadd.f32 %v1951, %v2211
      %v2340 = vadd.f32 %v1952, %v2212
      %v2341 = vadd.f32 %v1953, %v2213
      %v2342 = vadd.f32 %v1954, %v2214
      %v2343 = vadd.f32 %v1955, %v2215
      %v2344 = vadd.f32 %v1956, %v2216
      %v2345 = vadd.f32 %v1957, %v2217
      %v2346 = vadd.f32 %v1958, %v2218
      %v2347 = vadd.f32 %v1959, %v2219
      %v2348 = vadd.f32 %v1960, %v2220
      %v2349 = vadd.f32 %v1961, %v2221
      %v2350 = vadd.f32 %v1962, %v2222
      %v2351 = vadd.f32 %v1963, %v2223
      %v2352 = vadd.f32 %v1964, %v2224
      %v2353 = vadd.f32 %v1965, %v2225
      %v2354 = vadd.f32 %v1966, %v2226
      %v2355 = vadd.f32 %v1967, %v2227
      %v2356 = vadd.f32 %v1968, %v2228
      %v2357 = vadd.f32 %v1969, %v2229
      %v2358 = vadd.f32 %v1970, %v2230
      %v2359 = vadd.f32 %v1971, %v2231
      %v2360 = vadd.f32 %v1972, %v2232
      %v2361 = vadd.f32 %v1973, %v2233
      %v2362 = vadd.f32 %v1974, %v2234
      %v2363 = vadd.f32 %v1975, %v2235
      %v2364 = vadd.f32 %v1976, %v2236
      %v2365 = vadd.f32 %v1977, %v2237
      %v2366 = vadd.f32 %v1978, %v2238
      %v2367 = vadd.f32 %v1979, %v2239
      %v2368 = vadd.f32 %v1980, %v2240
      %v2369 = vadd.f32 %v1981, %v2241
      %v2370 = vadd.f32 %v1982, %v2242
      %v2371 = vadd.f32 %v1983, %v2243
      %v2372 = vadd.f32 %v1984, %v2244
      %v2373 = vadd.f32 %v1985, %v2245
      %v2374 = vadd.f32 %v1986, %v2246
      %v2375 = vadd.f32 %v1987, %v2247
      %v2376 = vadd.f32 %v1988, %v2248
      %v2377 = vadd.f32 %v1989, %v2249
      %v2378 = vadd.f32 %v1990, %v2250
      %v2379 = vadd.f32 %v1991, %v2251
      %v2380 = vadd.f32 %v1992, %v2252
      %v2381 = vadd.f32 %v1993, %v2253
      %v2382 = vadd.f32 %v1994, %v2254
      %v2383 = vadd.f32 %v1995, %v2255
      %v2384 = vadd.f32 %v1996, %v2256
      %v2385 = vadd.f32 %v1997, %v2257
      %v2386 = vadd.f32 %v1998, %v2258
      %v2387 = vadd.f32 %v1999, %v2259
      %v2388 = vadd.f32 %v2000, %v2260
      %v2389 = vadd.f32 %v2001, %v2261
      %v2390 = vadd.f32 %v2002, %v2262
      %v2391 = vadd.f32 %v2003, %v2263
      %v2392 = vadd.f32 %v2004, %v2264
      %v2393 = vadd.f32 %v2005, %v2265
      %v2394 = vadd.f32 %v2006, %v2266
      %v2395 = vadd.f32 %v2007, %v2267
      %v2396 = vadd.f32 %v2008, %v2268
      %v2397 = vadd.f32 %v2009, %v2269
      %v2398 = vadd.f32 %v2010, %v2270
      %v2399 = vadd.f32 %v2011, %v2271
      %v2400 = vadd.f32 %v2012, %v2272
      %v2401 = vadd.f32 %v2013, %v2273
      %v2402 = vadd.f32 %v2014, %v2274
      %v2403 = vadd.f32 %v2015, %v2275
      %v2404 = vadd.f32 %v2016, %v2276
      %v2405 = vadd.f32 %v2017, %v2277
      %v2406 = vadd.f32 %v2018, %v2278
      %v2407 = vadd.f32 %v2019, %v2279
      %v2408 = vadd.f32 %v2020, %v2280
      %v2409 = vadd.f32 %v2021, %v2281
      %v2410 = vadd.f32 %v2022, %v2282
      %v2411 = vadd.f32 %v2023, %v2283
      %v2412 = vadd.f32 %v2024, %v2284
      %v2413 = vadd.f32 %v2025, %v2285
      %v2414 = vadd.f32 %v2026, %v2286
      %v2415 = vadd.f32 %v2027, %v2287
      %v2416 = vadd.f32 %v2028, %v2288
      %v2417 = vadd.f32 %v2029, %v2289
      %v2418 = vadd.f32 %v2030, %v2290
      %v2419 = vadd.f32 %v2031, %v2291
      %v2420 = vadd.f32 %v2032, %v2292
      %v2421 = vadd.f32 %v2033, %v2293
      %v2422 = vadd.f32 %v2034, %v2294
      %v2423 = vadd.f32 %v2035, %v2295
      %v2424 = vadd.f32 %v2036, %v2296
      %v2425 = vadd.f32 %v2037, %v2297
      %v2426 = vadd.f32 %v2038, %v2298
      %v2427 = vadd.f32 %v2039, %v2299
      %v2428 = vld [vmem:[#allocation2 + $0x9] sm:$0xff]
      %v2429 = vld [vmem:[#allocation2 + $0x11] sm:$0xff]
      %v2430 = vld [vmem:[#allocation2 + $0x29] sm:$0xff]
      %v2431 = vld [vmem:[#allocation2 + $0x31] sm:$0xff]
      %v2432 = vld [vmem:[#allocation2 + $0x49] sm:$0xff]
      %v2433 = vld [vmem:[#allocation2 + $0x51] sm:$0xff]
      %v2434 = vld [vmem:[#allocation2 + $0x69] sm:$0xff]
      %v2435 = vld [vmem:[#allocation2 + $0x71] sm:$0xff]
      %v2436 = vld [vmem:[#allocation2 + $0x89] sm:$0xff]
      %v2437 = vld [vmem:[#allocation2 + $0x91] sm:$0xff]
      %v2438 = vld [vmem:[#allocation2 + $0xa9] sm:$0xff]
      %v2439 = vld [vmem:[#allocation2 + $0xb1] sm:$0xff]
      %v2440 = vld [vmem:[#allocation2 + $0xc9] sm:$0xff]
      %v2441 = vld [vmem:[#allocation2 + $0xd1] sm:$0xff]
      %v2442 = vld [vmem:[#allocation2 + $0xe9] sm:$0xff]
      %v2443 = vld [vmem:[#allocation2 + $0xf1] sm:$0xff]
      %v2444 = vld [vmem:[#allocation2 + $0x109] sm:$0xff]
      %v2445 = vld [vmem:[#allocation2 + $0x111] sm:$0xff]
      %v2446 = vld [vmem:[#allocation2 + $0x129] sm:$0xff]
      %v2447 = vld [vmem:[#allocation2 + $0x131] sm:$0xff]
      %v2448 = vld [vmem:[#allocation2 + $0x149] sm:$0xff]
      %v2449 = vld [vmem:[#allocation2 + $0x151] sm:$0xff]
      %v2450 = vld [vmem:[#allocation2 + $0x169] sm:$0xff]
      %v2451 = vld [vmem:[#allocation2 + $0x171] sm:$0xff]
      %v2452 = vld [vmem:[#allocation2 + $0x189] sm:$0xff]
      %v2453 = vld [vmem:[#allocation2 + $0x191] sm:$0xff]
      %v2454 = vld [vmem:[#allocation2 + $0x1a9] sm:$0xff]
      %v2455 = vld [vmem:[#allocation2 + $0x1b1] sm:$0xff]
      %v2456 = vld [vmem:[#allocation2 + $0x1c9] sm:$0xff]
      %v2457 = vld [vmem:[#allocation2 + $0x1d1] sm:$0xff]
      %v2458 = vld [vmem:[#allocation2 + $0x1e9] sm:$0xff]
      %v2459 = vld [vmem:[#allocation2 + $0x1f1] sm:$0xff]
      %v2460 = vld [vmem:[#allocation2 + $0x249] sm:$0xff]
      %v2461 = vld [vmem:[#allocation2 + $0x251] sm:$0xff]
      %v2462 = vld [vmem:[#allocation2 + $0x269] sm:$0xff]
      %v2463 = vld [vmem:[#allocation2 + $0x271] sm:$0xff]
      %v2464 = vld [vmem:[#allocation2 + $0x289] sm:$0xff]
      %v2465 = vld [vmem:[#allocation2 + $0x291] sm:$0xff]
      %v2466 = vld [vmem:[#allocation2 + $0x2a9] sm:$0xff]
      %v2467 = vld [vmem:[#allocation2 + $0x2b1] sm:$0xff]
      %v2468 = vld [vmem:[#allocation2 + $0x2c9] sm:$0xff]
      %v2469 = vld [vmem:[#allocation2 + $0x2d1] sm:$0xff]
      %v2470 = vld [vmem:[#allocation2 + $0x2e9] sm:$0xff]
      %v2471 = vld [vmem:[#allocation2 + $0x2f1] sm:$0xff]
      %v2472 = vld [vmem:[#allocation2 + $0x309] sm:$0xff]
      %v2473 = vld [vmem:[#allocation2 + $0x311] sm:$0xff]
      %v2474 = vld [vmem:[#allocation2 + $0x329] sm:$0xff]
      %v2475 = vld [vmem:[#allocation2 + $0x331] sm:$0xff]
      %v2476 = vld [vmem:[#allocation2 + $0x349] sm:$0xff]
      %v2477 = vld [vmem:[#allocation2 + $0x351] sm:$0xff]
      %v2478 = vld [vmem:[#allocation2 + $0x369] sm:$0xff]
      %v2479 = vld [vmem:[#allocation2 + $0x371] sm:$0xff]
      %v2480 = vld [vmem:[#allocation2 + $0x389] sm:$0xff]
      %v2481 = vld [vmem:[#allocation2 + $0x391] sm:$0xff]
      %v2482 = vld [vmem:[#allocation2 + $0x3a9] sm:$0xff]
      %v2483 = vld [vmem:[#allocation2 + $0x3b1] sm:$0xff]
      %v2484 = vld [vmem:[#allocation2 + $0x3c9] sm:$0xff]
      %v2485 = vld [vmem:[#allocation2 + $0x3d1] sm:$0xff]
      %v2486 = vld [vmem:[#allocation2 + $0x3e9] sm:$0xff]
      %v2487 = vld [vmem:[#allocation2 + $0x3f1] sm:$0xff]
      %v2488 = vld [vmem:[#allocation2 + $0x409] sm:$0xff]
      %v2489 = vld [vmem:[#allocation2 + $0x411] sm:$0xff]
      %v2490 = vld [vmem:[#allocation2 + $0x429] sm:$0xff]
      %v2491 = vld [vmem:[#allocation2 + $0x431] sm:$0xff]
      %v2492 = vld [vmem:[#allocation2 + $0x489] sm:$0xff]
      %v2493 = vld [vmem:[#allocation2 + $0x491] sm:$0xff]
      %v2494 = vld [vmem:[#allocation2 + $0x4a9] sm:$0xff]
      %v2495 = vld [vmem:[#allocation2 + $0x4b1] sm:$0xff]
      %v2496 = vld [vmem:[#allocation2 + $0x4c9] sm:$0xff]
      %v2497 = vld [vmem:[#allocation2 + $0x4d1] sm:$0xff]
      %v2498 = vld [vmem:[#allocation2 + $0x4e9] sm:$0xff]
      %v2499 = vld [vmem:[#allocation2 + $0x4f1] sm:$0xff]
      %v2500 = vld [vmem:[#allocation2 + $0x509] sm:$0xff]
      %v2501 = vld [vmem:[#allocation2 + $0x511] sm:$0xff]
      %v2502 = vld [vmem:[#allocation2 + $0x529] sm:$0xff]
      %v2503 = vld [vmem:[#allocation2 + $0x531] sm:$0xff]
      %v2504 = vld [vmem:[#allocation2 + $0x549] sm:$0xff]
      %v2505 = vld [vmem:[#allocation2 + $0x551] sm:$0xff]
      %v2506 = vld [vmem:[#allocation2 + $0x569] sm:$0xff]
      %v2507 = vld [vmem:[#allocation2 + $0x571] sm:$0xff]
      %v2508 = vld [vmem:[#allocation2 + $0x589] sm:$0xff]
      %v2509 = vld [vmem:[#allocation2 + $0x591] sm:$0xff]
      %v2510 = vld [vmem:[#allocation2 + $0x5a9] sm:$0xff]
      %v2511 = vld [vmem:[#allocation2 + $0x5b1] sm:$0xff]
      %v2512 = vld [vmem:[#allocation2 + $0x5c9] sm:$0xff]
      %v2513 = vld [vmem:[#allocation2 + $0x5d1] sm:$0xff]
      %v2514 = vld [vmem:[#allocation2 + $0x5e9] sm:$0xff]
      %v2515 = vld [vmem:[#allocation2 + $0x5f1] sm:$0xff]
      %v2516 = vld [vmem:[#allocation2 + $0x609] sm:$0xff]
      %v2517 = vld [vmem:[#allocation2 + $0x611] sm:$0xff]
      %v2518 = vld [vmem:[#allocation2 + $0x629] sm:$0xff]
      %v2519 = vld [vmem:[#allocation2 + $0x631] sm:$0xff]
      %v2520 = vld [vmem:[#allocation2 + $0x649] sm:$0xff]
      %v2521 = vld [vmem:[#allocation2 + $0x651] sm:$0xff]
      %v2522 = vld [vmem:[#allocation2 + $0x669] sm:$0xff]
      %v2523 = vld [vmem:[#allocation2 + $0x671] sm:$0xff]
      %v2524 = vld [vmem:[#allocation2 + $0x6c9] sm:$0xff]
      %v2525 = vld [vmem:[#allocation2 + $0x6d1] sm:$0xff]
      %v2526 = vld [vmem:[#allocation2 + $0x6e9] sm:$0xff]
      %v2527 = vld [vmem:[#allocation2 + $0x6f1] sm:$0xff]
      %v2528 = vld [vmem:[#allocation2 + $0x709] sm:$0xff]
      %v2529 = vld [vmem:[#allocation2 + $0x711] sm:$0xff]
      %v2530 = vld [vmem:[#allocation2 + $0x729] sm:$0xff]
      %v2531 = vld [vmem:[#allocation2 + $0x731] sm:$0xff]
      %v2532 = vld [vmem:[#allocation2 + $0x749] sm:$0xff]
      %v2533 = vld [vmem:[#allocation2 + $0x751] sm:$0xff]
      %v2534 = vld [vmem:[#allocation2 + $0x769] sm:$0xff]
      %v2535 = vld [vmem:[#allocation2 + $0x771] sm:$0xff]
      %v2536 = vld [vmem:[#allocation2 + $0x789] sm:$0xff]
      %v2537 = vld [vmem:[#allocation2 + $0x791] sm:$0xff]
      %v2538 = vld [vmem:[#allocation2 + $0x7a9] sm:$0xff]
      %v2539 = vld [vmem:[#allocation2 + $0x7b1] sm:$0xff]
      %v2540 = vld [vmem:[#allocation2 + $0x7c9] sm:$0xff]
      %v2541 = vld [vmem:[#allocation2 + $0x7d1] sm:$0xff]
      %v2542 = vld [vmem:[#allocation2 + $0x7e9] sm:$0xff]
      %v2543 = vld [vmem:[#allocation2 + $0x7f1] sm:$0xff]
      %v2544 = vld [vmem:[#allocation2 + $0x809] sm:$0xff]
      %v2545 = vld [vmem:[#allocation2 + $0x811] sm:$0xff]
      %v2546 = vld [vmem:[#allocation2 + $0x829] sm:$0xff]
      %v2547 = vld [vmem:[#allocation2 + $0x831] sm:$0xff]
      %v2548 = vld [vmem:[#allocation2 + $0x849] sm:$0xff]
      %v2549 = vld [vmem:[#allocation2 + $0x851] sm:$0xff]
      %v2550 = vld [vmem:[#allocation2 + $0x869] sm:$0xff]
      %v2551 = vld [vmem:[#allocation2 + $0x871] sm:$0xff]
      %v2552 = vld [vmem:[#allocation2 + $0x889] sm:$0xff]
      %v2553 = vld [vmem:[#allocation2 + $0x891] sm:$0xff]
      %v2554 = vld [vmem:[#allocation2 + $0x8a9] sm:$0xff]
      %v2555 = vld [vmem:[#allocation2 + $0x8b1] sm:$0xff]
      %v2556 = vlaneseq
      %v2557 = vshrl.u32 %v2556, 7
      %v2558 = vsub.s32 2, %v2557
      %v2559 = vrot.slane %v1778, %v2558
      %v2560 = vmul.f32 %v2428, %v2559
      %v2561 = vmul.f32 %v2429, %v2559
      %v2562 = vmul.f32 %v2430, %v2559
      %v2563 = vmul.f32 %v2431, %v2559
      %v2564 = vmul.f32 %v2432, %v2559
      %v2565 = vmul.f32 %v2433, %v2559
      %v2566 = vmul.f32 %v2434, %v2559
      %v2567 = vmul.f32 %v2435, %v2559
      %v2568 = vmul.f32 %v2436, %v2559
      %v2569 = vmul.f32 %v2437, %v2559
      %v2570 = vmul.f32 %v2438, %v2559
      %v2571 = vmul.f32 %v2439, %v2559
      %v2572 = vmul.f32 %v2440, %v2559
      %v2573 = vmul.f32 %v2441, %v2559
      %v2574 = vmul.f32 %v2442, %v2559
      %v2575 = vmul.f32 %v2443, %v2559
      %v2576 = vmul.f32 %v2444, %v2559
      %v2577 = vmul.f32 %v2445, %v2559
      %v2578 = vmul.f32 %v2446, %v2559
      %v2579 = vmul.f32 %v2447, %v2559
      %v2580 = vmul.f32 %v2448, %v2559
      %v2581 = vmul.f32 %v2449, %v2559
      %v2582 = vmul.f32 %v2450, %v2559
      %v2583 = vmul.f32 %v2451, %v2559
      %v2584 = vmul.f32 %v2452, %v2559
      %v2585 = vmul.f32 %v2453, %v2559
      %v2586 = vmul.f32 %v2454, %v2559
      %v2587 = vmul.f32 %v2455, %v2559
      %v2588 = vmul.f32 %v2456, %v2559
      %v2589 = vmul.f32 %v2457, %v2559
      %v2590 = vmul.f32 %v2458, %v2559
      %v2591 = vmul.f32 %v2459, %v2559
      %v2592 = vmul.f32 %v2460, %v2559
      %v2593 = vmul.f32 %v2461, %v2559
      %v2594 = vmul.f32 %v2462, %v2559
      %v2595 = vmul.f32 %v2463, %v2559
      %v2596 = vmul.f32 %v2464, %v2559
      %v2597 = vmul.f32 %v2465, %v2559
      %v2598 = vmul.f32 %v2466, %v2559
      %v2599 = vmul.f32 %v2467, %v2559
      %v2600 = vmul.f32 %v2468, %v2559
      %v2601 = vmul.f32 %v2469, %v2559
      %v2602 = vmul.f32 %v2470, %v2559
      %v2603 = vmul.f32 %v2471, %v2559
      %v2604 = vmul.f32 %v2472, %v2559
      %v2605 = vmul.f32 %v2473, %v2559
      %v2606 = vmul.f32 %v2474, %v2559
      %v2607 = vmul.f32 %v2475, %v2559
      %v2608 = vmul.f32 %v2476, %v2559
      %v2609 = vmul.f32 %v2477, %v2559
      %v2610 = vmul.f32 %v2478, %v2559
      %v2611 = vmul.f32 %v2479, %v2559
      %v2612 = vmul.f32 %v2480, %v2559
      %v2613 = vmul.f32 %v2481, %v2559
      %v2614 = vmul.f32 %v2482, %v2559
      %v2615 = vmul.f32 %v2483, %v2559
      %v2616 = vmul.f32 %v2484, %v2559
      %v2617 = vmul.f32 %v2485, %v2559
      %v2618 = vmul.f32 %v2486, %v2559
      %v2619 = vmul.f32 %v2487, %v2559
      %v2620 = vmul.f32 %v2488, %v2559
      %v2621 = vmul.f32 %v2489, %v2559
      %v2622 = vmul.f32 %v2490, %v2559
      %v2623 = vmul.f32 %v2491, %v2559
      %v2624 = vmul.f32 %v2492, %v2559
      %v2625 = vmul.f32 %v2493, %v2559
      %v2626 = vmul.f32 %v2494, %v2559
      %v2627 = vmul.f32 %v2495, %v2559
      %v2628 = vmul.f32 %v2496, %v2559
      %v2629 = vmul.f32 %v2497, %v2559
      %v2630 = vmul.f32 %v2498, %v2559
      %v2631 = vmul.f32 %v2499, %v2559
      %v2632 = vmul.f32 %v2500, %v2559
      %v2633 = vmul.f32 %v2501, %v2559
      %v2634 = vmul.f32 %v2502, %v2559
      %v2635 = vmul.f32 %v2503, %v2559
      %v2636 = vmul.f32 %v2504, %v2559
      %v2637 = vmul.f32 %v2505, %v2559
      %v2638 = vmul.f32 %v2506, %v2559
      %v2639 = vmul.f32 %v2507, %v2559
      %v2640 = vmul.f32 %v2508, %v2559
      %v2641 = vmul.f32 %v2509, %v2559
      %v2642 = vmul.f32 %v2510, %v2559
      %v2643 = vmul.f32 %v2511, %v2559
      %v2644 = vmul.f32 %v2512, %v2559
      %v2645 = vmul.f32 %v2513, %v2559
      %v2646 = vmul.f32 %v2514, %v2559
      %v2647 = vmul.f32 %v2515, %v2559
      %v2648 = vmul.f32 %v2516, %v2559
      %v2649 = vmul.f32 %v2517, %v2559
      %v2650 = vmul.f32 %v2518, %v2559
      %v2651 = vmul.f32 %v2519, %v2559
      %v2652 = vmul.f32 %v2520, %v2559
      %v2653 = vmul.f32 %v2521, %v2559
      %v2654 = vmul.f32 %v2522, %v2559
      %v2655 = vmul.f32 %v2523, %v2559
      %v2656 = vmul.f32 %v2524, %v2559
      %v2657 = vmul.f32 %v2525, %v2559
      %v2658 = vmul.f32 %v2526, %v2559
      %v2659 = vmul.f32 %v2527, %v2559
      %v2660 = vmul.f32 %v2528, %v2559
      %v2661 = vmul.f32 %v2529, %v2559
      %v2662 = vmul.f32 %v2530, %v2559
      %v2663 = vmul.f32 %v2531, %v2559
      %v2664 = vmul.f32 %v2532, %v2559
      %v2665 = vmul.f32 %v2533, %v2559
      %v2666 = vmul.f32 %v2534, %v2559
      %v2667 = vmul.f32 %v2535, %v2559
      %v2668 = vmul.f32 %v2536, %v2559
      %v2669 = vmul.f32 %v2537, %v2559
      %v2670 = vmul.f32 %v2538, %v2559
      %v2671 = vmul.f32 %v2539, %v2559
      %v2672 = vmul.f32 %v2540, %v2559
      %v2673 = vmul.f32 %v2541, %v2559
      %v2674 = vmul.f32 %v2542, %v2559
      %v2675 = vmul.f32 %v2543, %v2559
      %v2676 = vmul.f32 %v2544, %v2559
      %v2677 = vmul.f32 %v2545, %v2559
      %v2678 = vmul.f32 %v2546, %v2559
      %v2679 = vmul.f32 %v2547, %v2559
      %v2680 = vmul.f32 %v2548, %v2559
      %v2681 = vmul.f32 %v2549, %v2559
      %v2682 = vmul.f32 %v2550, %v2559
      %v2683 = vmul.f32 %v2551, %v2559
      %v2684 = vmul.f32 %v2552, %v2559
      %v2685 = vmul.f32 %v2553, %v2559
      %v2686 = vmul.f32 %v2554, %v2559
      %v2687 = vmul.f32 %v2555, %v2559
      %v2688 = vadd.f32 %v2300, %v2560
      %v2689 = vadd.f32 %v2301, %v2561
      %v2690 = vadd.f32 %v2302, %v2562
      %v2691 = vadd.f32 %v2303, %v2563
      %v2692 = vadd.f32 %v2304, %v2564
      %v2693 = vadd.f32 %v2305, %v2565
      %v2694 = vadd.f32 %v2306, %v2566
      %v2695 = vadd.f32 %v2307, %v2567
      %v2696 = vadd.f32 %v2308, %v2568
      %v2697 = vadd.f32 %v2309, %v2569
      %v2698 = vadd.f32 %v2310, %v2570
      %v2699 = vadd.f32 %v2311, %v2571
      %v2700 = vadd.f32 %v2312, %v2572
      %v2701 = vadd.f32 %v2313, %v2573
      %v2702 = vadd.f32 %v2314, %v2574
      %v2703 = vadd.f32 %v2315, %v2575
      %v2704 = vadd.f32 %v2316, %v2576
      %v2705 = vadd.f32 %v2317, %v2577
      %v2706 = vadd.f32 %v2318, %v2578
      %v2707 = vadd.f32 %v2319, %v2579
      %v2708 = vadd.f32 %v2320, %v2580
      %v2709 = vadd.f32 %v2321, %v2581
      %v2710 = vadd.f32 %v2322, %v2582
      %v2711 = vadd.f32 %v2323, %v2583
      %v2712 = vadd.f32 %v2324, %v2584
      %v2713 = vadd.f32 %v2325, %v2585
      %v2714 = vadd.f32 %v2326, %v2586
      %v2715 = vadd.f32 %v2327, %v2587
      %v2716 = vadd.f32 %v2328, %v2588
      %v2717 = vadd.f32 %v2329, %v2589
      %v2718 = vadd.f32 %v2330, %v2590
      %v2719 = vadd.f32 %v2331, %v2591
      %v2720 = vadd.f32 %v2332, %v2592
      %v2721 = vadd.f32 %v2333, %v2593
      %v2722 = vadd.f32 %v2334, %v2594
      %v2723 = vadd.f32 %v2335, %v2595
      %v2724 = vadd.f32 %v2336, %v2596
      %v2725 = vadd.f32 %v2337, %v2597
      %v2726 = vadd.f32 %v2338, %v2598
      %v2727 = vadd.f32 %v2339, %v2599
      %v2728 = vadd.f32 %v2340, %v2600
      %v2729 = vadd.f32 %v2341, %v2601
      %v2730 = vadd.f32 %v2342, %v2602
      %v2731 = vadd.f32 %v2343, %v2603
      %v2732 = vadd.f32 %v2344, %v2604
      %v2733 = vadd.f32 %v2345, %v2605
      %v2734 = vadd.f32 %v2346, %v2606
      %v2735 = vadd.f32 %v2347, %v2607
      %v2736 = vadd.f32 %v2348, %v2608
      %v2737 = vadd.f32 %v2349, %v2609
      %v2738 = vadd.f32 %v2350, %v2610
      %v2739 = vadd.f32 %v2351, %v2611
      %v2740 = vadd.f32 %v2352, %v2612
      %v2741 = vadd.f32 %v2353, %v2613
      %v2742 = vadd.f32 %v2354, %v2614
      %v2743 = vadd.f32 %v2355, %v2615
      %v2744 = vadd.f32 %v2356, %v2616
      %v2745 = vadd.f32 %v2357, %v2617
      %v2746 = vadd.f32 %v2358, %v2618
      %v2747 = vadd.f32 %v2359, %v2619
      %v2748 = vadd.f32 %v2360, %v2620
      %v2749 = vadd.f32 %v2361, %v2621
      %v2750 = vadd.f32 %v2362, %v2622
      %v2751 = vadd.f32 %v2363, %v2623
      %v2752 = vadd.f32 %v2364, %v2624
      %v2753 = vadd.f32 %v2365, %v2625
      %v2754 = vadd.f32 %v2366, %v2626
      %v2755 = vadd.f32 %v2367, %v2627
      %v2756 = vadd.f32 %v2368, %v2628
      %v2757 = vadd.f32 %v2369, %v2629
      %v2758 = vadd.f32 %v2370, %v2630
      %v2759 = vadd.f32 %v2371, %v2631
      %v2760 = vadd.f32 %v2372, %v2632
      %v2761 = vadd.f32 %v2373, %v2633
      %v2762 = vadd.f32 %v2374, %v2634
      %v2763 = vadd.f32 %v2375, %v2635
      %v2764 = vadd.f32 %v2376, %v2636
      %v2765 = vadd.f32 %v2377, %v2637
      %v2766 = vadd.f32 %v2378, %v2638
      %v2767 = vadd.f32 %v2379, %v2639
      %v2768 = vadd.f32 %v2380, %v2640
      %v2769 = vadd.f32 %v2381, %v2641
      %v2770 = vadd.f32 %v2382, %v2642
      %v2771 = vadd.f32 %v2383, %v2643
      %v2772 = vadd.f32 %v2384, %v2644
      %v2773 = vadd.f32 %v2385, %v2645
      %v2774 = vadd.f32 %v2386, %v2646
      %v2775 = vadd.f32 %v2387, %v2647
      %v2776 = vadd.f32 %v2388, %v2648
      %v2777 = vadd.f32 %v2389, %v2649
      %v2778 = vadd.f32 %v2390, %v2650
      %v2779 = vadd.f32 %v2391, %v2651
      %v2780 = vadd.f32 %v2392, %v2652
      %v2781 = vadd.f32 %v2393, %v2653
      %v2782 = vadd.f32 %v2394, %v2654
      %v2783 = vadd.f32 %v2395, %v2655
      %v2784 = vadd.f32 %v2396, %v2656
      %v2785 = vadd.f32 %v2397, %v2657
      %v2786 = vadd.f32 %v2398, %v2658
      %v2787 = vadd.f32 %v2399, %v2659
      %v2788 = vadd.f32 %v2400, %v2660
      %v2789 = vadd.f32 %v2401, %v2661
      %v2790 = vadd.f32 %v2402, %v2662
      %v2791 = vadd.f32 %v2403, %v2663
      %v2792 = vadd.f32 %v2404, %v2664
      %v2793 = vadd.f32 %v2405, %v2665
      %v2794 = vadd.f32 %v2406, %v2666
      %v2795 = vadd.f32 %v2407, %v2667
      %v2796 = vadd.f32 %v2408, %v2668
      %v2797 = vadd.f32 %v2409, %v2669
      %v2798 = vadd.f32 %v2410, %v2670
      %v2799 = vadd.f32 %v2411, %v2671
      %v2800 = vadd.f32 %v2412, %v2672
      %v2801 = vadd.f32 %v2413, %v2673
      %v2802 = vadd.f32 %v2414, %v2674
      %v2803 = vadd.f32 %v2415, %v2675
      %v2804 = vadd.f32 %v2416, %v2676
      %v2805 = vadd.f32 %v2417, %v2677
      %v2806 = vadd.f32 %v2418, %v2678
      %v2807 = vadd.f32 %v2419, %v2679
      %v2808 = vadd.f32 %v2420, %v2680
      %v2809 = vadd.f32 %v2421, %v2681
      %v2810 = vadd.f32 %v2422, %v2682
      %v2811 = vadd.f32 %v2423, %v2683
      %v2812 = vadd.f32 %v2424, %v2684
      %v2813 = vadd.f32 %v2425, %v2685
      %v2814 = vadd.f32 %v2426, %v2686
      %v2815 = vadd.f32 %v2427, %v2687
      %v2816 = vld [vmem:[%s1521 + $0x7] sm:$0xff]
      %v2817 = vld [vmem:[%s1521 + $0xf] sm:$0xff]
      %v2818 = vld [vmem:[%s1521 + $0x27] sm:$0xff]
      %v2819 = vld [vmem:[%s1521 + $0x2f] sm:$0xff]
      %v2820 = vld [vmem:[%s1521 + $0x47] sm:$0xff]
      %v2821 = vld [vmem:[%s1521 + $0x4f] sm:$0xff]
      %v2822 = vld [vmem:[%s1521 + $0x67] sm:$0xff]
      %v2823 = vld [vmem:[%s1521 + $0x6f] sm:$0xff]
      %v2824 = vld [vmem:[%s1521 + $0x87] sm:$0xff]
      %v2825 = vld [vmem:[%s1521 + $0x8f] sm:$0xff]
      %v2826 = vld [vmem:[%s1521 + $0xa7] sm:$0xff]
      %v2827 = vld [vmem:[%s1521 + $0xaf] sm:$0xff]
      %v2828 = vld [vmem:[%s1521 + $0xc7] sm:$0xff]
      %v2829 = vld [vmem:[%s1521 + $0xcf] sm:$0xff]
      %v2830 = vld [vmem:[%s1521 + $0xe7] sm:$0xff]
      %v2831 = vld [vmem:[%s1521 + $0xef] sm:$0xff]
      %v2832 = vld [vmem:[%s1521 + $0x107] sm:$0xff]
      %v2833 = vld [vmem:[%s1521 + $0x10f] sm:$0xff]
      %v2834 = vld [vmem:[%s1521 + $0x127] sm:$0xff]
      %v2835 = vld [vmem:[%s1521 + $0x12f] sm:$0xff]
      %v2836 = vld [vmem:[%s1521 + $0x147] sm:$0xff]
      %v2837 = vld [vmem:[%s1521 + $0x14f] sm:$0xff]
      %v2838 = vld [vmem:[%s1521 + $0x167] sm:$0xff]
      %v2839 = vld [vmem:[%s1521 + $0x16f] sm:$0xff]
      %v2840 = vld [vmem:[%s1521 + $0x187] sm:$0xff]
      %v2841 = vld [vmem:[%s1521 + $0x18f] sm:$0xff]
      %v2842 = vld [vmem:[%s1521 + $0x1a7] sm:$0xff]
      %v2843 = vld [vmem:[%s1521 + $0x1af] sm:$0xff]
      %v2844 = vld [vmem:[%s1521 + $0x1c7] sm:$0xff]
      %v2845 = vld [vmem:[%s1521 + $0x1cf] sm:$0xff]
      %v2846 = vld [vmem:[%s1521 + $0x1e7] sm:$0xff]
      %v2847 = vld [vmem:[%s1521 + $0x1ef] sm:$0xff]
      %v2848 = vld [vmem:[%s1521 + $0x247] sm:$0xff]
      %v2849 = vld [vmem:[%s1521 + $0x24f] sm:$0xff]
      %v2850 = vld [vmem:[%s1521 + $0x267] sm:$0xff]
      %v2851 = vld [vmem:[%s1521 + $0x26f] sm:$0xff]
      %v2852 = vld [vmem:[%s1521 + $0x287] sm:$0xff]
      %v2853 = vld [vmem:[%s1521 + $0x28f] sm:$0xff]
      %v2854 = vld [vmem:[%s1521 + $0x2a7] sm:$0xff]
      %v2855 = vld [vmem:[%s1521 + $0x2af] sm:$0xff]
      %v2856 = vld [vmem:[%s1521 + $0x2c7] sm:$0xff]
      %v2857 = vld [vmem:[%s1521 + $0x2cf] sm:$0xff]
      %v2858 = vld [vmem:[%s1521 + $0x2e7] sm:$0xff]
      %v2859 = vld [vmem:[%s1521 + $0x2ef] sm:$0xff]
      %v2860 = vld [vmem:[%s1521 + $0x307] sm:$0xff]
      %v2861 = vld [vmem:[%s1521 + $0x30f] sm:$0xff]
      %v2862 = vld [vmem:[%s1521 + $0x327] sm:$0xff]
      %v2863 = vld [vmem:[%s1521 + $0x32f] sm:$0xff]
      %v2864 = vld [vmem:[%s1521 + $0x347] sm:$0xff]
      %v2865 = vld [vmem:[%s1521 + $0x34f] sm:$0xff]
      %v2866 = vld [vmem:[%s1521 + $0x367] sm:$0xff]
      %v2867 = vld [vmem:[%s1521 + $0x36f] sm:$0xff]
      %v2868 = vld [vmem:[%s1521 + $0x387] sm:$0xff]
      %v2869 = vld [vmem:[%s1521 + $0x38f] sm:$0xff]
      %v2870 = vld [vmem:[%s1521 + $0x3a7] sm:$0xff]
      %v2871 = vld [vmem:[%s1521 + $0x3af] sm:$0xff]
      %v2872 = vld [vmem:[%s1521 + $0x3c7] sm:$0xff]
      %v2873 = vld [vmem:[%s1521 + $0x3cf] sm:$0xff]
      %v2874 = vld [vmem:[%s1521 + $0x3e7] sm:$0xff]
      %v2875 = vld [vmem:[%s1521 + $0x3ef] sm:$0xff]
      %v2876 = vld [vmem:[%s1521 + $0x407] sm:$0xff]
      %v2877 = vld [vmem:[%s1521 + $0x40f] sm:$0xff]
      %v2878 = vld [vmem:[%s1521 + $0x427] sm:$0xff]
      %v2879 = vld [vmem:[%s1521 + $0x42f] sm:$0xff]
      %v2880 = vld [vmem:[%s1521 + $0x487] sm:$0xff]
      %v2881 = vld [vmem:[%s1521 + $0x48f] sm:$0xff]
      %v2882 = vld [vmem:[%s1521 + $0x4a7] sm:$0xff]
      %v2883 = vld [vmem:[%s1521 + $0x4af] sm:$0xff]
      %v2884 = vld [vmem:[%s1521 + $0x4c7] sm:$0xff]
      %v2885 = vld [vmem:[%s1521 + $0x4cf] sm:$0xff]
      %v2886 = vld [vmem:[%s1521 + $0x4e7] sm:$0xff]
      %v2887 = vld [vmem:[%s1521 + $0x4ef] sm:$0xff]
      %v2888 = vld [vmem:[%s1521 + $0x507] sm:$0xff]
      %v2889 = vld [vmem:[%s1521 + $0x50f] sm:$0xff]
      %v2890 = vld [vmem:[%s1521 + $0x527] sm:$0xff]
      %v2891 = vld [vmem:[%s1521 + $0x52f] sm:$0xff]
      %v2892 = vld [vmem:[%s1521 + $0x547] sm:$0xff]
      %v2893 = vld [vmem:[%s1521 + $0x54f] sm:$0xff]
      %v2894 = vld [vmem:[%s1521 + $0x567] sm:$0xff]
      %v2895 = vld [vmem:[%s1521 + $0x56f] sm:$0xff]
      %v2896 = vld [vmem:[%s1521 + $0x587] sm:$0xff]
      %v2897 = vld [vmem:[%s1521 + $0x58f] sm:$0xff]
      %v2898 = vld [vmem:[%s1521 + $0x5a7] sm:$0xff]
      %v2899 = vld [vmem:[%s1521 + $0x5af] sm:$0xff]
      %v2900 = vld [vmem:[%s1521 + $0x5c7] sm:$0xff]
      %v2901 = vld [vmem:[%s1521 + $0x5cf] sm:$0xff]
      %v2902 = vld [vmem:[%s1521 + $0x5e7] sm:$0xff]
      %v2903 = vld [vmem:[%s1521 + $0x5ef] sm:$0xff]
      %v2904 = vld [vmem:[%s1521 + $0x607] sm:$0xff]
      %v2905 = vld [vmem:[%s1521 + $0x60f] sm:$0xff]
      %v2906 = vld [vmem:[%s1521 + $0x627] sm:$0xff]
      %v2907 = vld [vmem:[%s1521 + $0x62f] sm:$0xff]
      %v2908 = vld [vmem:[%s1521 + $0x647] sm:$0xff]
      %v2909 = vld [vmem:[%s1521 + $0x64f] sm:$0xff]
      %v2910 = vld [vmem:[%s1521 + $0x667] sm:$0xff]
      %v2911 = vld [vmem:[%s1521 + $0x66f] sm:$0xff]
      %v2912 = vld [vmem:[%s1521 + $0x6c7] sm:$0xff]
      %v2913 = vld [vmem:[%s1521 + $0x6cf] sm:$0xff]
      %v2914 = vld [vmem:[%s1521 + $0x6e7] sm:$0xff]
      %v2915 = vld [vmem:[%s1521 + $0x6ef] sm:$0xff]
      %v2916 = vld [vmem:[%s1521 + $0x707] sm:$0xff]
      %v2917 = vld [vmem:[%s1521 + $0x70f] sm:$0xff]
      %v2918 = vld [vmem:[%s1521 + $0x727] sm:$0xff]
      %v2919 = vld [vmem:[%s1521 + $0x72f] sm:$0xff]
      %v2920 = vld [vmem:[%s1521 + $0x747] sm:$0xff]
      %v2921 = vld [vmem:[%s1521 + $0x74f] sm:$0xff]
      %v2922 = vld [vmem:[%s1521 + $0x767] sm:$0xff]
      %v2923 = vld [vmem:[%s1521 + $0x76f] sm:$0xff]
      %v2924 = vld [vmem:[%s1521 + $0x787] sm:$0xff]
      %v2925 = vld [vmem:[%s1521 + $0x78f] sm:$0xff]
      %v2926 = vld [vmem:[%s1521 + $0x7a7] sm:$0xff]
      %v2927 = vld [vmem:[%s1521 + $0x7af] sm:$0xff]
      %v2928 = vld [vmem:[%s1521 + $0x7c7] sm:$0xff]
      %v2929 = vld [vmem:[%s1521 + $0x7cf] sm:$0xff]
      %v2930 = vld [vmem:[%s1521 + $0x7e7] sm:$0xff]
      %v2931 = vld [vmem:[%s1521 + $0x7ef] sm:$0xff]
      %v2932 = vld [vmem:[%s1521 + $0x807] sm:$0xff]
      %v2933 = vld [vmem:[%s1521 + $0x80f] sm:$0xff]
      %v2934 = vld [vmem:[%s1521 + $0x827] sm:$0xff]
      %v2935 = vld [vmem:[%s1521 + $0x82f] sm:$0xff]
      %v2936 = vld [vmem:[%s1521 + $0x847] sm:$0xff]
      %v2937 = vld [vmem:[%s1521 + $0x84f] sm:$0xff]
      %v2938 = vld [vmem:[%s1521 + $0x867] sm:$0xff]
      %v2939 = vld [vmem:[%s1521 + $0x86f] sm:$0xff]
      %v2940 = vld [vmem:[%s1521 + $0x887] sm:$0xff]
      %v2941 = vld [vmem:[%s1521 + $0x88f] sm:$0xff]
      %v2942 = vld [vmem:[%s1521 + $0x8a7] sm:$0xff]
      %v2943 = vld [vmem:[%s1521 + $0x8af] sm:$0xff]
      %v2944 = vlaneseq
      %v2945 = vshrl.u32 %v2944, 7
      %v2946 = vsub.s32 3, %v2945
      %v2947 = vrot.slane %v1778, %v2946
      %v2948 = vmul.f32 %v2816, %v2947
      %v2949 = vmul.f32 %v2817, %v2947
      %v2950 = vmul.f32 %v2818, %v2947
      %v2951 = vmul.f32 %v2819, %v2947
      %v2952 = vmul.f32 %v2820, %v2947
      %v2953 = vmul.f32 %v2821, %v2947
      %v2954 = vmul.f32 %v2822, %v2947
      %v2955 = vmul.f32 %v2823, %v2947
      %v2956 = vmul.f32 %v2824, %v2947
      %v2957 = vmul.f32 %v2825, %v2947
      %v2958 = vmul.f32 %v2826, %v2947
      %v2959 = vmul.f32 %v2827, %v2947
      %v2960 = vmul.f32 %v2828, %v2947
      %v2961 = vmul.f32 %v2829, %v2947
      %v2962 = vmul.f32 %v2830, %v2947
      %v2963 = vmul.f32 %v2831, %v2947
      %v2964 = vmul.f32 %v2832, %v2947
      %v2965 = vmul.f32 %v2833, %v2947
      %v2966 = vmul.f32 %v2834, %v2947
      %v2967 = vmul.f32 %v2835, %v2947
      %v2968 = vmul.f32 %v2836, %v2947
      %v2969 = vmul.f32 %v2837, %v2947
      %v2970 = vmul.f32 %v2838, %v2947
      %v2971 = vmul.f32 %v2839, %v2947
      %v2972 = vmul.f32 %v2840, %v2947
      %v2973 = vmul.f32 %v2841, %v2947
      %v2974 = vmul.f32 %v2842, %v2947
      %v2975 = vmul.f32 %v2843, %v2947
      %v2976 = vmul.f32 %v2844, %v2947
      %v2977 = vmul.f32 %v2845, %v2947
      %v2978 = vmul.f32 %v2846, %v2947
      %v2979 = vmul.f32 %v2847, %v2947
      %v2980 = vmul.f32 %v2848, %v2947
      %v2981 = vmul.f32 %v2849, %v2947
      %v2982 = vmul.f32 %v2850, %v2947
      %v2983 = vmul.f32 %v2851, %v2947
      %v2984 = vmul.f32 %v2852, %v2947
      %v2985 = vmul.f32 %v2853, %v2947
      %v2986 = vmul.f32 %v2854, %v2947
      %v2987 = vmul.f32 %v2855, %v2947
      %v2988 = vmul.f32 %v2856, %v2947
      %v2989 = vmul.f32 %v2857, %v2947
      %v2990 = vmul.f32 %v2858, %v2947
      %v2991 = vmul.f32 %v2859, %v2947
      %v2992 = vmul.f32 %v2860, %v2947
      %v2993 = vmul.f32 %v2861, %v2947
      %v2994 = vmul.f32 %v2862, %v2947
      %v2995 = vmul.f32 %v2863, %v2947
      %v2996 = vmul.f32 %v2864, %v2947
      %v2997 = vmul.f32 %v2865, %v2947
      %v2998 = vmul.f32 %v2866, %v2947
      %v2999 = vmul.f32 %v2867, %v2947
      %v3000 = vmul.f32 %v2868, %v2947
      %v3001 = vmul.f32 %v2869, %v2947
      %v3002 = vmul.f32 %v2870, %v2947
      %v3003 = vmul.f32 %v2871, %v2947
      %v3004 = vmul.f32 %v2872, %v2947
      %v3005 = vmul.f32 %v2873, %v2947
      %v3006 = vmul.f32 %v2874, %v2947
      %v3007 = vmul.f32 %v2875, %v2947
      %v3008 = vmul.f32 %v2876, %v2947
      %v3009 = vmul.f32 %v2877, %v2947
      %v3010 = vmul.f32 %v2878, %v2947
      %v3011 = vmul.f32 %v2879, %v2947
      %v3012 = vmul.f32 %v2880, %v2947
      %v3013 = vmul.f32 %v2881, %v2947
      %v3014 = vmul.f32 %v2882, %v2947
      %v3015 = vmul.f32 %v2883, %v2947
      %v3016 = vmul.f32 %v2884, %v2947
      %v3017 = vmul.f32 %v2885, %v2947
      %v3018 = vmul.f32 %v2886, %v2947
      %v3019 = vmul.f32 %v2887, %v2947
      %v3020 = vmul.f32 %v2888, %v2947
      %v3021 = vmul.f32 %v2889, %v2947
      %v3022 = vmul.f32 %v2890, %v2947
      %v3023 = vmul.f32 %v2891, %v2947
      %v3024 = vmul.f32 %v2892, %v2947
      %v3025 = vmul.f32 %v2893, %v2947
      %v3026 = vmul.f32 %v2894, %v2947
      %v3027 = vmul.f32 %v2895, %v2947
      %v3028 = vmul.f32 %v2896, %v2947
      %v3029 = vmul.f32 %v2897, %v2947
      %v3030 = vmul.f32 %v2898, %v2947
      %v3031 = vmul.f32 %v2899, %v2947
      %v3032 = vmul.f32 %v2900, %v2947
      %v3033 = vmul.f32 %v2901, %v2947
      %v3034 = vmul.f32 %v2902, %v2947
      %v3035 = vmul.f32 %v2903, %v2947
      %v3036 = vmul.f32 %v2904, %v2947
      %v3037 = vmul.f32 %v2905, %v2947
      %v3038 = vmul.f32 %v2906, %v2947
      %v3039 = vmul.f32 %v2907, %v2947
      %v3040 = vmul.f32 %v2908, %v2947
      %v3041 = vmul.f32 %v2909, %v2947
      %v3042 = vmul.f32 %v2910, %v2947
      %v3043 = vmul.f32 %v2911, %v2947
      %v3044 = vmul.f32 %v2912, %v2947
      %v3045 = vmul.f32 %v2913, %v2947
      %v3046 = vmul.f32 %v2914, %v2947
      %v3047 = vmul.f32 %v2915, %v2947
      %v3048 = vmul.f32 %v2916, %v2947
      %v3049 = vmul.f32 %v2917, %v2947
      %v3050 = vmul.f32 %v2918, %v2947
      %v3051 = vmul.f32 %v2919, %v2947
      %v3052 = vmul.f32 %v2920, %v2947
      %v3053 = vmul.f32 %v2921, %v2947
      %v3054 = vmul.f32 %v2922, %v2947
      %v3055 = vmul.f32 %v2923, %v2947
      %v3056 = vmul.f32 %v2924, %v2947
      %v3057 = vmul.f32 %v2925, %v2947
      %v3058 = vmul.f32 %v2926, %v2947
      %v3059 = vmul.f32 %v2927, %v2947
      %v3060 = vmul.f32 %v2928, %v2947
      %v3061 = vmul.f32 %v2929, %v2947
      %v3062 = vmul.f32 %v2930, %v2947
      %v3063 = vmul.f32 %v2931, %v2947
      %v3064 = vmul.f32 %v2932, %v2947
      %v3065 = vmul.f32 %v2933, %v2947
      %v3066 = vmul.f32 %v2934, %v2947
      %v3067 = vmul.f32 %v2935, %v2947
      %v3068 = vmul.f32 %v2936, %v2947
      %v3069 = vmul.f32 %v2937, %v2947
      %v3070 = vmul.f32 %v2938, %v2947
      %v3071 = vmul.f32 %v2939, %v2947
      %v3072 = vmul.f32 %v2940, %v2947
      %v3073 = vmul.f32 %v2941, %v2947
      %v3074 = vmul.f32 %v2942, %v2947
      %v3075 = vmul.f32 %v2943, %v2947
      %v3076 = vadd.f32 %v2688, %v2948
      %v3077 = vadd.f32 %v2689, %v2949
      %v3078 = vadd.f32 %v2690, %v2950
      %v3079 = vadd.f32 %v2691, %v2951
      %v3080 = vadd.f32 %v2692, %v2952
      %v3081 = vadd.f32 %v2693, %v2953
      %v3082 = vadd.f32 %v2694, %v2954
      %v3083 = vadd.f32 %v2695, %v2955
      %v3084 = vadd.f32 %v2696, %v2956
      %v3085 = vadd.f32 %v2697, %v2957
      %v3086 = vadd.f32 %v2698, %v2958
      %v3087 = vadd.f32 %v2699, %v2959
      %v3088 = vadd.f32 %v2700, %v2960
      %v3089 = vadd.f32 %v2701, %v2961
      %v3090 = vadd.f32 %v2702, %v2962
      %v3091 = vadd.f32 %v2703, %v2963
      %v3092 = vadd.f32 %v2704, %v2964
      %v3093 = vadd.f32 %v2705, %v2965
      %v3094 = vadd.f32 %v2706, %v2966
      %v3095 = vadd.f32 %v2707, %v2967
      %v3096 = vadd.f32 %v2708, %v2968
      %v3097 = vadd.f32 %v2709, %v2969
      %v3098 = vadd.f32 %v2710, %v2970
      %v3099 = vadd.f32 %v2711, %v2971
      %v3100 = vadd.f32 %v2712, %v2972
      %v3101 = vadd.f32 %v2713, %v2973
      %v3102 = vadd.f32 %v2714, %v2974
      %v3103 = vadd.f32 %v2715, %v2975
      %v3104 = vadd.f32 %v2716, %v2976
      %v3105 = vadd.f32 %v2717, %v2977
      %v3106 = vadd.f32 %v2718, %v2978
      %v3107 = vadd.f32 %v2719, %v2979
      %v3108 = vadd.f32 %v2720, %v2980
      %v3109 = vadd.f32 %v2721, %v2981
      %v3110 = vadd.f32 %v2722, %v2982
      %v3111 = vadd.f32 %v2723, %v2983
      %v3112 = vadd.f32 %v2724, %v2984
      %v3113 = vadd.f32 %v2725, %v2985
      %v3114 = vadd.f32 %v2726, %v2986
      %v3115 = vadd.f32 %v2727, %v2987
      %v3116 = vadd.f32 %v2728, %v2988
      %v3117 = vadd.f32 %v2729, %v2989
      %v3118 = vadd.f32 %v2730, %v2990
      %v3119 = vadd.f32 %v2731, %v2991
      %v3120 = vadd.f32 %v2732, %v2992
      %v3121 = vadd.f32 %v2733, %v2993
      %v3122 = vadd.f32 %v2734, %v2994
      %v3123 = vadd.f32 %v2735, %v2995
      %v3124 = vadd.f32 %v2736, %v2996
      %v3125 = vadd.f32 %v2737, %v2997
      %v3126 = vadd.f32 %v2738, %v2998
      %v3127 = vadd.f32 %v2739, %v2999
      %v3128 = vadd.f32 %v2740, %v3000
      %v3129 = vadd.f32 %v2741, %v3001
      %v3130 = vadd.f32 %v2742, %v3002
      %v3131 = vadd.f32 %v2743, %v3003
      %v3132 = vadd.f32 %v2744, %v3004
      %v3133 = vadd.f32 %v2745, %v3005
      %v3134 = vadd.f32 %v2746, %v3006
      %v3135 = vadd.f32 %v2747, %v3007
      %v3136 = vadd.f32 %v2748, %v3008
      %v3137 = vadd.f32 %v2749, %v3009
      %v3138 = vadd.f32 %v2750, %v3010
      %v3139 = vadd.f32 %v2751, %v3011
      %v3140 = vadd.f32 %v2752, %v3012
      %v3141 = vadd.f32 %v2753, %v3013
      %v3142 = vadd.f32 %v2754, %v3014
      %v3143 = vadd.f32 %v2755, %v3015
      %v3144 = vadd.f32 %v2756, %v3016
      %v3145 = vadd.f32 %v2757, %v3017
      %v3146 = vadd.f32 %v2758, %v3018
      %v3147 = vadd.f32 %v2759, %v3019
      %v3148 = vadd.f32 %v2760, %v3020
      %v3149 = vadd.f32 %v2761, %v3021
      %v3150 = vadd.f32 %v2762, %v3022
      %v3151 = vadd.f32 %v2763, %v3023
      %v3152 = vadd.f32 %v2764, %v3024
      %v3153 = vadd.f32 %v2765, %v3025
      %v3154 = vadd.f32 %v2766, %v3026
      %v3155 = vadd.f32 %v2767, %v3027
      %v3156 = vadd.f32 %v2768, %v3028
      %v3157 = vadd.f32 %v2769, %v3029
      %v3158 = vadd.f32 %v2770, %v3030
      %v3159 = vadd.f32 %v2771, %v3031
      %v3160 = vadd.f32 %v2772, %v3032
      %v3161 = vadd.f32 %v2773, %v3033
      %v3162 = vadd.f32 %v2774, %v3034
      %v3163 = vadd.f32 %v2775, %v3035
      %v3164 = vadd.f32 %v2776, %v3036
      %v3165 = vadd.f32 %v2777, %v3037
      %v3166 = vadd.f32 %v2778, %v3038
      %v3167 = vadd.f32 %v2779, %v3039
      %v3168 = vadd.f32 %v2780, %v3040
      %v3169 = vadd.f32 %v2781, %v3041
      %v3170 = vadd.f32 %v2782, %v3042
      %v3171 = vadd.f32 %v2783, %v3043
      %v3172 = vadd.f32 %v2784, %v3044
      %v3173 = vadd.f32 %v2785, %v3045
      %v3174 = vadd.f32 %v2786, %v3046
      %v3175 = vadd.f32 %v2787, %v3047
      %v3176 = vadd.f32 %v2788, %v3048
      %v3177 = vadd.f32 %v2789, %v3049
      %v3178 = vadd.f32 %v2790, %v3050
      %v3179 = vadd.f32 %v2791, %v3051
      %v3180 = vadd.f32 %v2792, %v3052
      %v3181 = vadd.f32 %v2793, %v3053
      %v3182 = vadd.f32 %v2794, %v3054
      %v3183 = vadd.f32 %v2795, %v3055
      %v3184 = vadd.f32 %v2796, %v3056
      %v3185 = vadd.f32 %v2797, %v3057
      %v3186 = vadd.f32 %v2798, %v3058
      %v3187 = vadd.f32 %v2799, %v3059
      %v3188 = vadd.f32 %v2800, %v3060
      %v3189 = vadd.f32 %v2801, %v3061
      %v3190 = vadd.f32 %v2802, %v3062
      %v3191 = vadd.f32 %v2803, %v3063
      %v3192 = vadd.f32 %v2804, %v3064
      %v3193 = vadd.f32 %v2805, %v3065
      %v3194 = vadd.f32 %v2806, %v3066
      %v3195 = vadd.f32 %v2807, %v3067
      %v3196 = vadd.f32 %v2808, %v3068
      %v3197 = vadd.f32 %v2809, %v3069
      %v3198 = vadd.f32 %v2810, %v3070
      %v3199 = vadd.f32 %v2811, %v3071
      %v3200 = vadd.f32 %v2812, %v3072
      %v3201 = vadd.f32 %v2813, %v3073
      %v3202 = vadd.f32 %v2814, %v3074
      %v3203 = vadd.f32 %v2815, %v3075
      %v3204 = vld [vmem:[%s1521 + $0x8] sm:$0xff]
      %v3205 = vld [vmem:[%s1521 + $0x10] sm:$0xff]
      %v3206 = vld [vmem:[%s1521 + $0x28] sm:$0xff]
      %v3207 = vld [vmem:[%s1521 + $0x30] sm:$0xff]
      %v3208 = vld [vmem:[%s1521 + $0x48] sm:$0xff]
      %v3209 = vld [vmem:[%s1521 + $0x50] sm:$0xff]
      %v3210 = vld [vmem:[%s1521 + $0x68] sm:$0xff]
      %v3211 = vld [vmem:[%s1521 + $0x70] sm:$0xff]
      %v3212 = vld [vmem:[%s1521 + $0x88] sm:$0xff]
      %v3213 = vld [vmem:[%s1521 + $0x90] sm:$0xff]
      %v3214 = vld [vmem:[%s1521 + $0xa8] sm:$0xff]
      %v3215 = vld [vmem:[%s1521 + $0xb0] sm:$0xff]
      %v3216 = vld [vmem:[%s1521 + $0xc8] sm:$0xff]
      %v3217 = vld [vmem:[%s1521 + $0xd0] sm:$0xff]
      %v3218 = vld [vmem:[%s1521 + $0xe8] sm:$0xff]
      %v3219 = vld [vmem:[%s1521 + $0xf0] sm:$0xff]
      %v3220 = vld [vmem:[%s1521 + $0x108] sm:$0xff]
      %v3221 = vld [vmem:[%s1521 + $0x110] sm:$0xff]
      %v3222 = vld [vmem:[%s1521 + $0x128] sm:$0xff]
      %v3223 = vld [vmem:[%s1521 + $0x130] sm:$0xff]
      %v3224 = vld [vmem:[%s1521 + $0x148] sm:$0xff]
      %v3225 = vld [vmem:[%s1521 + $0x150] sm:$0xff]
      %v3226 = vld [vmem:[%s1521 + $0x168] sm:$0xff]
      %v3227 = vld [vmem:[%s1521 + $0x170] sm:$0xff]
      %v3228 = vld [vmem:[%s1521 + $0x188] sm:$0xff]
      %v3229 = vld [vmem:[%s1521 + $0x190] sm:$0xff]
      %v3230 = vld [vmem:[%s1521 + $0x1a8] sm:$0xff]
      %v3231 = vld [vmem:[%s1521 + $0x1b0] sm:$0xff]
      %v3232 = vld [vmem:[%s1521 + $0x1c8] sm:$0xff]
      %v3233 = vld [vmem:[%s1521 + $0x1d0] sm:$0xff]
      %v3234 = vld [vmem:[%s1521 + $0x1e8] sm:$0xff]
      %v3235 = vld [vmem:[%s1521 + $0x1f0] sm:$0xff]
      %v3236 = vld [vmem:[%s1521 + $0x248] sm:$0xff]
      %v3237 = vld [vmem:[%s1521 + $0x250] sm:$0xff]
      %v3238 = vld [vmem:[%s1521 + $0x268] sm:$0xff]
      %v3239 = vld [vmem:[%s1521 + $0x270] sm:$0xff]
      %v3240 = vld [vmem:[%s1521 + $0x288] sm:$0xff]
      %v3241 = vld [vmem:[%s1521 + $0x290] sm:$0xff]
      %v3242 = vld [vmem:[%s1521 + $0x2a8] sm:$0xff]
      %v3243 = vld [vmem:[%s1521 + $0x2b0] sm:$0xff]
      %v3244 = vld [vmem:[%s1521 + $0x2c8] sm:$0xff]
      %v3245 = vld [vmem:[%s1521 + $0x2d0] sm:$0xff]
      %v3246 = vld [vmem:[%s1521 + $0x2e8] sm:$0xff]
      %v3247 = vld [vmem:[%s1521 + $0x2f0] sm:$0xff]
      %v3248 = vld [vmem:[%s1521 + $0x308] sm:$0xff]
      %v3249 = vld [vmem:[%s1521 + $0x310] sm:$0xff]
      %v3250 = vld [vmem:[%s1521 + $0x328] sm:$0xff]
      %v3251 = vld [vmem:[%s1521 + $0x330] sm:$0xff]
      %v3252 = vld [vmem:[%s1521 + $0x348] sm:$0xff]
      %v3253 = vld [vmem:[%s1521 + $0x350] sm:$0xff]
      %v3254 = vld [vmem:[%s1521 + $0x368] sm:$0xff]
      %v3255 = vld [vmem:[%s1521 + $0x370] sm:$0xff]
      %v3256 = vld [vmem:[%s1521 + $0x388] sm:$0xff]
      %v3257 = vld [vmem:[%s1521 + $0x390] sm:$0xff]
      %v3258 = vld [vmem:[%s1521 + $0x3a8] sm:$0xff]
      %v3259 = vld [vmem:[%s1521 + $0x3b0] sm:$0xff]
      %v3260 = vld [vmem:[%s1521 + $0x3c8] sm:$0xff]
      %v3261 = vld [vmem:[%s1521 + $0x3d0] sm:$0xff]
      %v3262 = vld [vmem:[%s1521 + $0x3e8] sm:$0xff]
      %v3263 = vld [vmem:[%s1521 + $0x3f0] sm:$0xff]
      %v3264 = vld [vmem:[%s1521 + $0x408] sm:$0xff]
      %v3265 = vld [vmem:[%s1521 + $0x410] sm:$0xff]
      %v3266 = vld [vmem:[%s1521 + $0x428] sm:$0xff]
      %v3267 = vld [vmem:[%s1521 + $0x430] sm:$0xff]
      %v3268 = vld [vmem:[%s1521 + $0x488] sm:$0xff]
      %v3269 = vld [vmem:[%s1521 + $0x490] sm:$0xff]
      %v3270 = vld [vmem:[%s1521 + $0x4a8] sm:$0xff]
      %v3271 = vld [vmem:[%s1521 + $0x4b0] sm:$0xff]
      %v3272 = vld [vmem:[%s1521 + $0x4c8] sm:$0xff]
      %v3273 = vld [vmem:[%s1521 + $0x4d0] sm:$0xff]
      %v3274 = vld [vmem:[%s1521 + $0x4e8] sm:$0xff]
      %v3275 = vld [vmem:[%s1521 + $0x4f0] sm:$0xff]
      %v3276 = vld [vmem:[%s1521 + $0x508] sm:$0xff]
      %v3277 = vld [vmem:[%s1521 + $0x510] sm:$0xff]
      %v3278 = vld [vmem:[%s1521 + $0x528] sm:$0xff]
      %v3279 = vld [vmem:[%s1521 + $0x530] sm:$0xff]
      %v3280 = vld [vmem:[%s1521 + $0x548] sm:$0xff]
      %v3281 = vld [vmem:[%s1521 + $0x550] sm:$0xff]
      %v3282 = vld [vmem:[%s1521 + $0x568] sm:$0xff]
      %v3283 = vld [vmem:[%s1521 + $0x570] sm:$0xff]
      %v3284 = vld [vmem:[%s1521 + $0x588] sm:$0xff]
      %v3285 = vld [vmem:[%s1521 + $0x590] sm:$0xff]
      %v3286 = vld [vmem:[%s1521 + $0x5a8] sm:$0xff]
      %v3287 = vld [vmem:[%s1521 + $0x5b0] sm:$0xff]
      %v3288 = vld [vmem:[%s1521 + $0x5c8] sm:$0xff]
      %v3289 = vld [vmem:[%s1521 + $0x5d0] sm:$0xff]
      %v3290 = vld [vmem:[%s1521 + $0x5e8] sm:$0xff]
      %v3291 = vld [vmem:[%s1521 + $0x5f0] sm:$0xff]
      %v3292 = vld [vmem:[%s1521 + $0x608] sm:$0xff]
      %v3293 = vld [vmem:[%s1521 + $0x610] sm:$0xff]
      %v3294 = vld [vmem:[%s1521 + $0x628] sm:$0xff]
      %v3295 = vld [vmem:[%s1521 + $0x630] sm:$0xff]
      %v3296 = vld [vmem:[%s1521 + $0x648] sm:$0xff]
      %v3297 = vld [vmem:[%s1521 + $0x650] sm:$0xff]
      %v3298 = vld [vmem:[%s1521 + $0x668] sm:$0xff]
      %v3299 = vld [vmem:[%s1521 + $0x670] sm:$0xff]
      %v3300 = vld [vmem:[%s1521 + $0x6c8] sm:$0xff]
      %v3301 = vld [vmem:[%s1521 + $0x6d0] sm:$0xff]
      %v3302 = vld [vmem:[%s1521 + $0x6e8] sm:$0xff]
      %v3303 = vld [vmem:[%s1521 + $0x6f0] sm:$0xff]
      %v3304 = vld [vmem:[%s1521 + $0x708] sm:$0xff]
      %v3305 = vld [vmem:[%s1521 + $0x710] sm:$0xff]
      %v3306 = vld [vmem:[%s1521 + $0x728] sm:$0xff]
      %v3307 = vld [vmem:[%s1521 + $0x730] sm:$0xff]
      %v3308 = vld [vmem:[%s1521 + $0x748] sm:$0xff]
      %v3309 = vld [vmem:[%s1521 + $0x750] sm:$0xff]
      %v3310 = vld [vmem:[%s1521 + $0x768] sm:$0xff]
      %v3311 = vld [vmem:[%s1521 + $0x770] sm:$0xff]
      %v3312 = vld [vmem:[%s1521 + $0x788] sm:$0xff]
      %v3313 = vld [vmem:[%s1521 + $0x790] sm:$0xff]
      %v3314 = vld [vmem:[%s1521 + $0x7a8] sm:$0xff]
      %v3315 = vld [vmem:[%s1521 + $0x7b0] sm:$0xff]
      %v3316 = vld [vmem:[%s1521 + $0x7c8] sm:$0xff]
      %v3317 = vld [vmem:[%s1521 + $0x7d0] sm:$0xff]
      %v3318 = vld [vmem:[%s1521 + $0x7e8] sm:$0xff]
      %v3319 = vld [vmem:[%s1521 + $0x7f0] sm:$0xff]
      %v3320 = vld [vmem:[%s1521 + $0x808] sm:$0xff]
      %v3321 = vld [vmem:[%s1521 + $0x810] sm:$0xff]
      %v3322 = vld [vmem:[%s1521 + $0x828] sm:$0xff]
      %v3323 = vld [vmem:[%s1521 + $0x830] sm:$0xff]
      %v3324 = vld [vmem:[%s1521 + $0x848] sm:$0xff]
      %v3325 = vld [vmem:[%s1521 + $0x850] sm:$0xff]
      %v3326 = vld [vmem:[%s1521 + $0x868] sm:$0xff]
      %v3327 = vld [vmem:[%s1521 + $0x870] sm:$0xff]
      %v3328 = vld [vmem:[%s1521 + $0x888] sm:$0xff]
      %v3329 = vld [vmem:[%s1521 + $0x890] sm:$0xff]
      %v3330 = vld [vmem:[%s1521 + $0x8a8] sm:$0xff]
      %v3331 = vld [vmem:[%s1521 + $0x8b0] sm:$0xff]
      %v3332 = vlaneseq
      %v3333 = vshrl.u32 %v3332, 7
      %v3334 = vsub.s32 4, %v3333
      %v3335 = vrot.slane %v1778, %v3334
      %v3336 = vmul.f32 %v3204, %v3335
      %v3337 = vmul.f32 %v3205, %v3335
      %v3338 = vmul.f32 %v3206, %v3335
      %v3339 = vmul.f32 %v3207, %v3335
      %v3340 = vmul.f32 %v3208, %v3335
      %v3341 = vmul.f32 %v3209, %v3335
      %v3342 = vmul.f32 %v3210, %v3335
      %v3343 = vmul.f32 %v3211, %v3335
      %v3344 = vmul.f32 %v3212, %v3335
      %v3345 = vmul.f32 %v3213, %v3335
      %v3346 = vmul.f32 %v3214, %v3335
      %v3347 = vmul.f32 %v3215, %v3335
      %v3348 = vmul.f32 %v3216, %v3335
      %v3349 = vmul.f32 %v3217, %v3335
      %v3350 = vmul.f32 %v3218, %v3335
      %v3351 = vmul.f32 %v3219, %v3335
      %v3352 = vmul.f32 %v3220, %v3335
      %v3353 = vmul.f32 %v3221, %v3335
      %v3354 = vmul.f32 %v3222, %v3335
      %v3355 = vmul.f32 %v3223, %v3335
      %v3356 = vmul.f32 %v3224, %v3335
      %v3357 = vmul.f32 %v3225, %v3335
      %v3358 = vmul.f32 %v3226, %v3335
      %v3359 = vmul.f32 %v3227, %v3335
      %v3360 = vmul.f32 %v3228, %v3335
      %v3361 = vmul.f32 %v3229, %v3335
      %v3362 = vmul.f32 %v3230, %v3335
      %v3363 = vmul.f32 %v3231, %v3335
      %v3364 = vmul.f32 %v3232, %v3335
      %v3365 = vmul.f32 %v3233, %v3335
      %v3366 = vmul.f32 %v3234, %v3335
      %v3367 = vmul.f32 %v3235, %v3335
      %v3368 = vmul.f32 %v3236, %v3335
      %v3369 = vmul.f32 %v3237, %v3335
      %v3370 = vmul.f32 %v3238, %v3335
      %v3371 = vmul.f32 %v3239, %v3335
      %v3372 = vmul.f32 %v3240, %v3335
      %v3373 = vmul.f32 %v3241, %v3335
      %v3374 = vmul.f32 %v3242, %v3335
      %v3375 = vmul.f32 %v3243, %v3335
      %v3376 = vmul.f32 %v3244, %v3335
      %v3377 = vmul.f32 %v3245, %v3335
      %v3378 = vmul.f32 %v3246, %v3335
      %v3379 = vmul.f32 %v3247, %v3335
      %v3380 = vmul.f32 %v3248, %v3335
      %v3381 = vmul.f32 %v3249, %v3335
      %v3382 = vmul.f32 %v3250, %v3335
      %v3383 = vmul.f32 %v3251, %v3335
      %v3384 = vmul.f32 %v3252, %v3335
      %v3385 = vmul.f32 %v3253, %v3335
      %v3386 = vmul.f32 %v3254, %v3335
      %v3387 = vmul.f32 %v3255, %v3335
      %v3388 = vmul.f32 %v3256, %v3335
      %v3389 = vmul.f32 %v3257, %v3335
      %v3390 = vmul.f32 %v3258, %v3335
      %v3391 = vmul.f32 %v3259, %v3335
      %v3392 = vmul.f32 %v3260, %v3335
      %v3393 = vmul.f32 %v3261, %v3335
      %v3394 = vmul.f32 %v3262, %v3335
      %v3395 = vmul.f32 %v3263, %v3335
      %v3396 = vmul.f32 %v3264, %v3335
      %v3397 = vmul.f32 %v3265, %v3335
      %v3398 = vmul.f32 %v3266, %v3335
      %v3399 = vmul.f32 %v3267, %v3335
      %v3400 = vmul.f32 %v3268, %v3335
      %v3401 = vmul.f32 %v3269, %v3335
      %v3402 = vmul.f32 %v3270, %v3335
      %v3403 = vmul.f32 %v3271, %v3335
      %v3404 = vmul.f32 %v3272, %v3335
      %v3405 = vmul.f32 %v3273, %v3335
      %v3406 = vmul.f32 %v3274, %v3335
      %v3407 = vmul.f32 %v3275, %v3335
      %v3408 = vmul.f32 %v3276, %v3335
      %v3409 = vmul.f32 %v3277, %v3335
      %v3410 = vmul.f32 %v3278, %v3335
      %v3411 = vmul.f32 %v3279, %v3335
      %v3412 = vmul.f32 %v3280, %v3335
      %v3413 = vmul.f32 %v3281, %v3335
      %v3414 = vmul.f32 %v3282, %v3335
      %v3415 = vmul.f32 %v3283, %v3335
      %v3416 = vmul.f32 %v3284, %v3335
      %v3417 = vmul.f32 %v3285, %v3335
      %v3418 = vmul.f32 %v3286, %v3335
      %v3419 = vmul.f32 %v3287, %v3335
      %v3420 = vmul.f32 %v3288, %v3335
      %v3421 = vmul.f32 %v3289, %v3335
      %v3422 = vmul.f32 %v3290, %v3335
      %v3423 = vmul.f32 %v3291, %v3335
      %v3424 = vmul.f32 %v3292, %v3335
      %v3425 = vmul.f32 %v3293, %v3335
      %v3426 = vmul.f32 %v3294, %v3335
      %v3427 = vmul.f32 %v3295, %v3335
      %v3428 = vmul.f32 %v3296, %v3335
      %v3429 = vmul.f32 %v3297, %v3335
      %v3430 = vmul.f32 %v3298, %v3335
      %v3431 = vmul.f32 %v3299, %v3335
      %v3432 = vmul.f32 %v3300, %v3335
      %v3433 = vmul.f32 %v3301, %v3335
      %v3434 = vmul.f32 %v3302, %v3335
      %v3435 = vmul.f32 %v3303, %v3335
      %v3436 = vmul.f32 %v3304, %v3335
      %v3437 = vmul.f32 %v3305, %v3335
      %v3438 = vmul.f32 %v3306, %v3335
      %v3439 = vmul.f32 %v3307, %v3335
      %v3440 = vmul.f32 %v3308, %v3335
      %v3441 = vmul.f32 %v3309, %v3335
      %v3442 = vmul.f32 %v3310, %v3335
      %v3443 = vmul.f32 %v3311, %v3335
      %v3444 = vmul.f32 %v3312, %v3335
      %v3445 = vmul.f32 %v3313, %v3335
      %v3446 = vmul.f32 %v3314, %v3335
      %v3447 = vmul.f32 %v3315, %v3335
      %v3448 = vmul.f32 %v3316, %v3335
      %v3449 = vmul.f32 %v3317, %v3335
      %v3450 = vmul.f32 %v3318, %v3335
      %v3451 = vmul.f32 %v3319, %v3335
      %v3452 = vmul.f32 %v3320, %v3335
      %v3453 = vmul.f32 %v3321, %v3335
      %v3454 = vmul.f32 %v3322, %v3335
      %v3455 = vmul.f32 %v3323, %v3335
      %v3456 = vmul.f32 %v3324, %v3335
      %v3457 = vmul.f32 %v3325, %v3335
      %v3458 = vmul.f32 %v3326, %v3335
      %v3459 = vmul.f32 %v3327, %v3335
      %v3460 = vmul.f32 %v3328, %v3335
      %v3461 = vmul.f32 %v3329, %v3335
      %v3462 = vmul.f32 %v3330, %v3335
      %v3463 = vmul.f32 %v3331, %v3335
      %v3464 = vadd.f32 %v3076, %v3336
      %v3465 = vadd.f32 %v3077, %v3337
      %v3466 = vadd.f32 %v3078, %v3338
      %v3467 = vadd.f32 %v3079, %v3339
      %v3468 = vadd.f32 %v3080, %v3340
      %v3469 = vadd.f32 %v3081, %v3341
      %v3470 = vadd.f32 %v3082, %v3342
      %v3471 = vadd.f32 %v3083, %v3343
      %v3472 = vadd.f32 %v3084, %v3344
      %v3473 = vadd.f32 %v3085, %v3345
      %v3474 = vadd.f32 %v3086, %v3346
      %v3475 = vadd.f32 %v3087, %v3347
      %v3476 = vadd.f32 %v3088, %v3348
      %v3477 = vadd.f32 %v3089, %v3349
      %v3478 = vadd.f32 %v3090, %v3350
      %v3479 = vadd.f32 %v3091, %v3351
      %v3480 = vadd.f32 %v3092, %v3352
      %v3481 = vadd.f32 %v3093, %v3353
      %v3482 = vadd.f32 %v3094, %v3354
      %v3483 = vadd.f32 %v3095, %v3355
      %v3484 = vadd.f32 %v3096, %v3356
      %v3485 = vadd.f32 %v3097, %v3357
      %v3486 = vadd.f32 %v3098, %v3358
      %v3487 = vadd.f32 %v3099, %v3359
      %v3488 = vadd.f32 %v3100, %v3360
      %v3489 = vadd.f32 %v3101, %v3361
      %v3490 = vadd.f32 %v3102, %v3362
      %v3491 = vadd.f32 %v3103, %v3363
      %v3492 = vadd.f32 %v3104, %v3364
      %v3493 = vadd.f32 %v3105, %v3365
      %v3494 = vadd.f32 %v3106, %v3366
      %v3495 = vadd.f32 %v3107, %v3367
      %v3496 = vadd.f32 %v3108, %v3368
      %v3497 = vadd.f32 %v3109, %v3369
      %v3498 = vadd.f32 %v3110, %v3370
      %v3499 = vadd.f32 %v3111, %v3371
      %v3500 = vadd.f32 %v3112, %v3372
      %v3501 = vadd.f32 %v3113, %v3373
      %v3502 = vadd.f32 %v3114, %v3374
      %v3503 = vadd.f32 %v3115, %v3375
      %v3504 = vadd.f32 %v3116, %v3376
      %v3505 = vadd.f32 %v3117, %v3377
      %v3506 = vadd.f32 %v3118, %v3378
      %v3507 = vadd.f32 %v3119, %v3379
      %v3508 = vadd.f32 %v3120, %v3380
      %v3509 = vadd.f32 %v3121, %v3381
      %v3510 = vadd.f32 %v3122, %v3382
      %v3511 = vadd.f32 %v3123, %v3383
      %v3512 = vadd.f32 %v3124, %v3384
      %v3513 = vadd.f32 %v3125, %v3385
      %v3514 = vadd.f32 %v3126, %v3386
      %v3515 = vadd.f32 %v3127, %v3387
      %v3516 = vadd.f32 %v3128, %v3388
      %v3517 = vadd.f32 %v3129, %v3389
      %v3518 = vadd.f32 %v3130, %v3390
      %v3519 = vadd.f32 %v3131, %v3391
      %v3520 = vadd.f32 %v3132, %v3392
      %v3521 = vadd.f32 %v3133, %v3393
      %v3522 = vadd.f32 %v3134, %v3394
      %v3523 = vadd.f32 %v3135, %v3395
      %v3524 = vadd.f32 %v3136, %v3396
      %v3525 = vadd.f32 %v3137, %v3397
      %v3526 = vadd.f32 %v3138, %v3398
      %v3527 = vadd.f32 %v3139, %v3399
      %v3528 = vadd.f32 %v3140, %v3400
      %v3529 = vadd.f32 %v3141, %v3401
      %v3530 = vadd.f32 %v3142, %v3402
      %v3531 = vadd.f32 %v3143, %v3403
      %v3532 = vadd.f32 %v3144, %v3404
      %v3533 = vadd.f32 %v3145, %v3405
      %v3534 = vadd.f32 %v3146, %v3406
      %v3535 = vadd.f32 %v3147, %v3407
      %v3536 = vadd.f32 %v3148, %v3408
      %v3537 = vadd.f32 %v3149, %v3409
      %v3538 = vadd.f32 %v3150, %v3410
      %v3539 = vadd.f32 %v3151, %v3411
      %v3540 = vadd.f32 %v3152, %v3412
      %v3541 = vadd.f32 %v3153, %v3413
      %v3542 = vadd.f32 %v3154, %v3414
      %v3543 = vadd.f32 %v3155, %v3415
      %v3544 = vadd.f32 %v3156, %v3416
      %v3545 = vadd.f32 %v3157, %v3417
      %v3546 = vadd.f32 %v3158, %v3418
      %v3547 = vadd.f32 %v3159, %v3419
      %v3548 = vadd.f32 %v3160, %v3420
      %v3549 = vadd.f32 %v3161, %v3421
      %v3550 = vadd.f32 %v3162, %v3422
      %v3551 = vadd.f32 %v3163, %v3423
      %v3552 = vadd.f32 %v3164, %v3424
      %v3553 = vadd.f32 %v3165, %v3425
      %v3554 = vadd.f32 %v3166, %v3426
      %v3555 = vadd.f32 %v3167, %v3427
      %v3556 = vadd.f32 %v3168, %v3428
      %v3557 = vadd.f32 %v3169, %v3429
      %v3558 = vadd.f32 %v3170, %v3430
      %v3559 = vadd.f32 %v3171, %v3431
      %v3560 = vadd.f32 %v3172, %v3432
      %v3561 = vadd.f32 %v3173, %v3433
      %v3562 = vadd.f32 %v3174, %v3434
      %v3563 = vadd.f32 %v3175, %v3435
      %v3564 = vadd.f32 %v3176, %v3436
      %v3565 = vadd.f32 %v3177, %v3437
      %v3566 = vadd.f32 %v3178, %v3438
      %v3567 = vadd.f32 %v3179, %v3439
      %v3568 = vadd.f32 %v3180, %v3440
      %v3569 = vadd.f32 %v3181, %v3441
      %v3570 = vadd.f32 %v3182, %v3442
      %v3571 = vadd.f32 %v3183, %v3443
      %v3572 = vadd.f32 %v3184, %v3444
      %v3573 = vadd.f32 %v3185, %v3445
      %v3574 = vadd.f32 %v3186, %v3446
      %v3575 = vadd.f32 %v3187, %v3447
      %v3576 = vadd.f32 %v3188, %v3448
      %v3577 = vadd.f32 %v3189, %v3449
      %v3578 = vadd.f32 %v3190, %v3450
      %v3579 = vadd.f32 %v3191, %v3451
      %v3580 = vadd.f32 %v3192, %v3452
      %v3581 = vadd.f32 %v3193, %v3453
      %v3582 = vadd.f32 %v3194, %v3454
      %v3583 = vadd.f32 %v3195, %v3455
      %v3584 = vadd.f32 %v3196, %v3456
      %v3585 = vadd.f32 %v3197, %v3457
      %v3586 = vadd.f32 %v3198, %v3458
      %v3587 = vadd.f32 %v3199, %v3459
      %v3588 = vadd.f32 %v3200, %v3460
      %v3589 = vadd.f32 %v3201, %v3461
      %v3590 = vadd.f32 %v3202, %v3462
      %v3591 = vadd.f32 %v3203, %v3463
      %v3592 = vld [vmem:[%s1521 + $0x9] sm:$0xff]
      %v3593 = vld [vmem:[%s1521 + $0x11] sm:$0xff]
      %v3594 = vld [vmem:[%s1521 + $0x29] sm:$0xff]
      %v3595 = vld [vmem:[%s1521 + $0x31] sm:$0xff]
      %v3596 = vld [vmem:[%s1521 + $0x49] sm:$0xff]
      %v3597 = vld [vmem:[%s1521 + $0x51] sm:$0xff]
      %v3598 = vld [vmem:[%s1521 + $0x69] sm:$0xff]
      %v3599 = vld [vmem:[%s1521 + $0x71] sm:$0xff]
      %v3600 = vld [vmem:[%s1521 + $0x89] sm:$0xff]
      %v3601 = vld [vmem:[%s1521 + $0x91] sm:$0xff]
      %v3602 = vld [vmem:[%s1521 + $0xa9] sm:$0xff]
      %v3603 = vld [vmem:[%s1521 + $0xb1] sm:$0xff]
      %v3604 = vld [vmem:[%s1521 + $0xc9] sm:$0xff]
      %v3605 = vld [vmem:[%s1521 + $0xd1] sm:$0xff]
      %v3606 = vld [vmem:[%s1521 + $0xe9] sm:$0xff]
      %v3607 = vld [vmem:[%s1521 + $0xf1] sm:$0xff]
      %v3608 = vld [vmem:[%s1521 + $0x109] sm:$0xff]
      %v3609 = vld [vmem:[%s1521 + $0x111] sm:$0xff]
      %v3610 = vld [vmem:[%s1521 + $0x129] sm:$0xff]
      %v3611 = vld [vmem:[%s1521 + $0x131] sm:$0xff]
      %v3612 = vld [vmem:[%s1521 + $0x149] sm:$0xff]
      %v3613 = vld [vmem:[%s1521 + $0x151] sm:$0xff]
      %v3614 = vld [vmem:[%s1521 + $0x169] sm:$0xff]
      %v3615 = vld [vmem:[%s1521 + $0x171] sm:$0xff]
      %v3616 = vld [vmem:[%s1521 + $0x189] sm:$0xff]
      %v3617 = vld [vmem:[%s1521 + $0x191] sm:$0xff]
      %v3618 = vld [vmem:[%s1521 + $0x1a9] sm:$0xff]
      %v3619 = vld [vmem:[%s1521 + $0x1b1] sm:$0xff]
      %v3620 = vld [vmem:[%s1521 + $0x1c9] sm:$0xff]
      %v3621 = vld [vmem:[%s1521 + $0x1d1] sm:$0xff]
      %v3622 = vld [vmem:[%s1521 + $0x1e9] sm:$0xff]
      %v3623 = vld [vmem:[%s1521 + $0x1f1] sm:$0xff]
      %v3624 = vld [vmem:[%s1521 + $0x249] sm:$0xff]
      %v3625 = vld [vmem:[%s1521 + $0x251] sm:$0xff]
      %v3626 = vld [vmem:[%s1521 + $0x269] sm:$0xff]
      %v3627 = vld [vmem:[%s1521 + $0x271] sm:$0xff]
      %v3628 = vld [vmem:[%s1521 + $0x289] sm:$0xff]
      %v3629 = vld [vmem:[%s1521 + $0x291] sm:$0xff]
      %v3630 = vld [vmem:[%s1521 + $0x2a9] sm:$0xff]
      %v3631 = vld [vmem:[%s1521 + $0x2b1] sm:$0xff]
      %v3632 = vld [vmem:[%s1521 + $0x2c9] sm:$0xff]
      %v3633 = vld [vmem:[%s1521 + $0x2d1] sm:$0xff]
      %v3634 = vld [vmem:[%s1521 + $0x2e9] sm:$0xff]
      %v3635 = vld [vmem:[%s1521 + $0x2f1] sm:$0xff]
      %v3636 = vld [vmem:[%s1521 + $0x309] sm:$0xff]
      %v3637 = vld [vmem:[%s1521 + $0x311] sm:$0xff]
      %v3638 = vld [vmem:[%s1521 + $0x329] sm:$0xff]
      %v3639 = vld [vmem:[%s1521 + $0x331] sm:$0xff]
      %v3640 = vld [vmem:[%s1521 + $0x349] sm:$0xff]
      %v3641 = vld [vmem:[%s1521 + $0x351] sm:$0xff]
      %v3642 = vld [vmem:[%s1521 + $0x369] sm:$0xff]
      %v3643 = vld [vmem:[%s1521 + $0x371] sm:$0xff]
      %v3644 = vld [vmem:[%s1521 + $0x389] sm:$0xff]
      %v3645 = vld [vmem:[%s1521 + $0x391] sm:$0xff]
      %v3646 = vld [vmem:[%s1521 + $0x3a9] sm:$0xff]
      %v3647 = vld [vmem:[%s1521 + $0x3b1] sm:$0xff]
      %v3648 = vld [vmem:[%s1521 + $0x3c9] sm:$0xff]
      %v3649 = vld [vmem:[%s1521 + $0x3d1] sm:$0xff]
      %v3650 = vld [vmem:[%s1521 + $0x3e9] sm:$0xff]
      %v3651 = vld [vmem:[%s1521 + $0x3f1] sm:$0xff]
      %v3652 = vld [vmem:[%s1521 + $0x409] sm:$0xff]
      %v3653 = vld [vmem:[%s1521 + $0x411] sm:$0xff]
      %v3654 = vld [vmem:[%s1521 + $0x429] sm:$0xff]
      %v3655 = vld [vmem:[%s1521 + $0x431] sm:$0xff]
      %v3656 = vld [vmem:[%s1521 + $0x489] sm:$0xff]
      %v3657 = vld [vmem:[%s1521 + $0x491] sm:$0xff]
      %v3658 = vld [vmem:[%s1521 + $0x4a9] sm:$0xff]
      %v3659 = vld [vmem:[%s1521 + $0x4b1] sm:$0xff]
      %v3660 = vld [vmem:[%s1521 + $0x4c9] sm:$0xff]
      %v3661 = vld [vmem:[%s1521 + $0x4d1] sm:$0xff]
      %v3662 = vld [vmem:[%s1521 + $0x4e9] sm:$0xff]
      %v3663 = vld [vmem:[%s1521 + $0x4f1] sm:$0xff]
      %v3664 = vld [vmem:[%s1521 + $0x509] sm:$0xff]
      %v3665 = vld [vmem:[%s1521 + $0x511] sm:$0xff]
      %v3666 = vld [vmem:[%s1521 + $0x529] sm:$0xff]
      %v3667 = vld [vmem:[%s1521 + $0x531] sm:$0xff]
      %v3668 = vld [vmem:[%s1521 + $0x549] sm:$0xff]
      %v3669 = vld [vmem:[%s1521 + $0x551] sm:$0xff]
      %v3670 = vld [vmem:[%s1521 + $0x569] sm:$0xff]
      %v3671 = vld [vmem:[%s1521 + $0x571] sm:$0xff]
      %v3672 = vld [vmem:[%s1521 + $0x589] sm:$0xff]
      %v3673 = vld [vmem:[%s1521 + $0x591] sm:$0xff]
      %v3674 = vld [vmem:[%s1521 + $0x5a9] sm:$0xff]
      %v3675 = vld [vmem:[%s1521 + $0x5b1] sm:$0xff]
      %v3676 = vld [vmem:[%s1521 + $0x5c9] sm:$0xff]
      %v3677 = vld [vmem:[%s1521 + $0x5d1] sm:$0xff]
      %v3678 = vld [vmem:[%s1521 + $0x5e9] sm:$0xff]
      %v3679 = vld [vmem:[%s1521 + $0x5f1] sm:$0xff]
      %v3680 = vld [vmem:[%s1521 + $0x609] sm:$0xff]
      %v3681 = vld [vmem:[%s1521 + $0x611] sm:$0xff]
      %v3682 = vld [vmem:[%s1521 + $0x629] sm:$0xff]
      %v3683 = vld [vmem:[%s1521 + $0x631] sm:$0xff]
      %v3684 = vld [vmem:[%s1521 + $0x649] sm:$0xff]
      %v3685 = vld [vmem:[%s1521 + $0x651] sm:$0xff]
      %v3686 = vld [vmem:[%s1521 + $0x669] sm:$0xff]
      %v3687 = vld [vmem:[%s1521 + $0x671] sm:$0xff]
      %v3688 = vld [vmem:[%s1521 + $0x6c9] sm:$0xff]
      %v3689 = vld [vmem:[%s1521 + $0x6d1] sm:$0xff]
      %v3690 = vld [vmem:[%s1521 + $0x6e9] sm:$0xff]
      %v3691 = vld [vmem:[%s1521 + $0x6f1] sm:$0xff]
      %v3692 = vld [vmem:[%s1521 + $0x709] sm:$0xff]
      %v3693 = vld [vmem:[%s1521 + $0x711] sm:$0xff]
      %v3694 = vld [vmem:[%s1521 + $0x729] sm:$0xff]
      %v3695 = vld [vmem:[%s1521 + $0x731] sm:$0xff]
      %v3696 = vld [vmem:[%s1521 + $0x749] sm:$0xff]
      %v3697 = vld [vmem:[%s1521 + $0x751] sm:$0xff]
      %v3698 = vld [vmem:[%s1521 + $0x769] sm:$0xff]
      %v3699 = vld [vmem:[%s1521 + $0x771] sm:$0xff]
      %v3700 = vld [vmem:[%s1521 + $0x789] sm:$0xff]
      %v3701 = vld [vmem:[%s1521 + $0x791] sm:$0xff]
      %v3702 = vld [vmem:[%s1521 + $0x7a9] sm:$0xff]
      %v3703 = vld [vmem:[%s1521 + $0x7b1] sm:$0xff]
      %v3704 = vld [vmem:[%s1521 + $0x7c9] sm:$0xff]
      %v3705 = vld [vmem:[%s1521 + $0x7d1] sm:$0xff]
      %v3706 = vld [vmem:[%s1521 + $0x7e9] sm:$0xff]
      %v3707 = vld [vmem:[%s1521 + $0x7f1] sm:$0xff]
      %v3708 = vld [vmem:[%s1521 + $0x809] sm:$0xff]
      %v3709 = vld [vmem:[%s1521 + $0x811] sm:$0xff]
      %v3710 = vld [vmem:[%s1521 + $0x829] sm:$0xff]
      %v3711 = vld [vmem:[%s1521 + $0x831] sm:$0xff]
      %v3712 = vld [vmem:[%s1521 + $0x849] sm:$0xff]
      %v3713 = vld [vmem:[%s1521 + $0x851] sm:$0xff]
      %v3714 = vld [vmem:[%s1521 + $0x869] sm:$0xff]
      %v3715 = vld [vmem:[%s1521 + $0x871] sm:$0xff]
      %v3716 = vld [vmem:[%s1521 + $0x889] sm:$0xff]
      %v3717 = vld [vmem:[%s1521 + $0x891] sm:$0xff]
      %v3718 = vld [vmem:[%s1521 + $0x8a9] sm:$0xff]
      %v3719 = vld [vmem:[%s1521 + $0x8b1] sm:$0xff]
      %v3720 = vlaneseq
      %v3721 = vshrl.u32 %v3720, 7
      %v3722 = vsub.s32 5, %v3721
      %v3723 = vrot.slane %v1778, %v3722
      %v3724 = vmul.f32 %v3592, %v3723
      %v3725 = vmul.f32 %v3593, %v3723
      %v3726 = vmul.f32 %v3594, %v3723
      %v3727 = vmul.f32 %v3595, %v3723
      %v3728 = vmul.f32 %v3596, %v3723
      %v3729 = vmul.f32 %v3597, %v3723
      %v3730 = vmul.f32 %v3598, %v3723
      %v3731 = vmul.f32 %v3599, %v3723
      %v3732 = vmul.f32 %v3600, %v3723
      %v3733 = vmul.f32 %v3601, %v3723
      %v3734 = vmul.f32 %v3602, %v3723
      %v3735 = vmul.f32 %v3603, %v3723
      %v3736 = vmul.f32 %v3604, %v3723
      %v3737 = vmul.f32 %v3605, %v3723
      %v3738 = vmul.f32 %v3606, %v3723
      %v3739 = vmul.f32 %v3607, %v3723
      %v3740 = vmul.f32 %v3608, %v3723
      %v3741 = vmul.f32 %v3609, %v3723
      %v3742 = vmul.f32 %v3610, %v3723
      %v3743 = vmul.f32 %v3611, %v3723
      %v3744 = vmul.f32 %v3612, %v3723
      %v3745 = vmul.f32 %v3613, %v3723
      %v3746 = vmul.f32 %v3614, %v3723
      %v3747 = vmul.f32 %v3615, %v3723
      %v3748 = vmul.f32 %v3616, %v3723
      %v3749 = vmul.f32 %v3617, %v3723
      %v3750 = vmul.f32 %v3618, %v3723
      %v3751 = vmul.f32 %v3619, %v3723
      %v3752 = vmul.f32 %v3620, %v3723
      %v3753 = vmul.f32 %v3621, %v3723
      %v3754 = vmul.f32 %v3622, %v3723
      %v3755 = vmul.f32 %v3623, %v3723
      %v3756 = vmul.f32 %v3624, %v3723
      %v3757 = vmul.f32 %v3625, %v3723
      %v3758 = vmul.f32 %v3626, %v3723
      %v3759 = vmul.f32 %v3627, %v3723
      %v3760 = vmul.f32 %v3628, %v3723
      %v3761 = vmul.f32 %v3629, %v3723
      %v3762 = vmul.f32 %v3630, %v3723
      %v3763 = vmul.f32 %v3631, %v3723
      %v3764 = vmul.f32 %v3632, %v3723
      %v3765 = vmul.f32 %v3633, %v3723
      %v3766 = vmul.f32 %v3634, %v3723
      %v3767 = vmul.f32 %v3635, %v3723
      %v3768 = vmul.f32 %v3636, %v3723
      %v3769 = vmul.f32 %v3637, %v3723
      %v3770 = vmul.f32 %v3638, %v3723
      %v3771 = vmul.f32 %v3639, %v3723
      %v3772 = vmul.f32 %v3640, %v3723
      %v3773 = vmul.f32 %v3641, %v3723
      %v3774 = vmul.f32 %v3642, %v3723
      %v3775 = vmul.f32 %v3643, %v3723
      %v3776 = vmul.f32 %v3644, %v3723
      %v3777 = vmul.f32 %v3645, %v3723
      %v3778 = vmul.f32 %v3646, %v3723
      %v3779 = vmul.f32 %v3647, %v3723
      %v3780 = vmul.f32 %v3648, %v3723
      %v3781 = vmul.f32 %v3649, %v3723
      %v3782 = vmul.f32 %v3650, %v3723
      %v3783 = vmul.f32 %v3651, %v3723
      %v3784 = vmul.f32 %v3652, %v3723
      %v3785 = vmul.f32 %v3653, %v3723
      %v3786 = vmul.f32 %v3654, %v3723
      %v3787 = vmul.f32 %v3655, %v3723
      %v3788 = vmul.f32 %v3656, %v3723
      %v3789 = vmul.f32 %v3657, %v3723
      %v3790 = vmul.f32 %v3658, %v3723
      %v3791 = vmul.f32 %v3659, %v3723
      %v3792 = vmul.f32 %v3660, %v3723
      %v3793 = vmul.f32 %v3661, %v3723
      %v3794 = vmul.f32 %v3662, %v3723
      %v3795 = vmul.f32 %v3663, %v3723
      %v3796 = vmul.f32 %v3664, %v3723
      %v3797 = vmul.f32 %v3665, %v3723
      %v3798 = vmul.f32 %v3666, %v3723
      %v3799 = vmul.f32 %v3667, %v3723
      %v3800 = vmul.f32 %v3668, %v3723
      %v3801 = vmul.f32 %v3669, %v3723
      %v3802 = vmul.f32 %v3670, %v3723
      %v3803 = vmul.f32 %v3671, %v3723
      %v3804 = vmul.f32 %v3672, %v3723
      %v3805 = vmul.f32 %v3673, %v3723
      %v3806 = vmul.f32 %v3674, %v3723
      %v3807 = vmul.f32 %v3675, %v3723
      %v3808 = vmul.f32 %v3676, %v3723
      %v3809 = vmul.f32 %v3677, %v3723
      %v3810 = vmul.f32 %v3678, %v3723
      %v3811 = vmul.f32 %v3679, %v3723
      %v3812 = vmul.f32 %v3680, %v3723
      %v3813 = vmul.f32 %v3681, %v3723
      %v3814 = vmul.f32 %v3682, %v3723
      %v3815 = vmul.f32 %v3683, %v3723
      %v3816 = vmul.f32 %v3684, %v3723
      %v3817 = vmul.f32 %v3685, %v3723
      %v3818 = vmul.f32 %v3686, %v3723
      %v3819 = vmul.f32 %v3687, %v3723
      %v3820 = vmul.f32 %v3688, %v3723
      %v3821 = vmul.f32 %v3689, %v3723
      %v3822 = vmul.f32 %v3690, %v3723
      %v3823 = vmul.f32 %v3691, %v3723
      %v3824 = vmul.f32 %v3692, %v3723
      %v3825 = vmul.f32 %v3693, %v3723
      %v3826 = vmul.f32 %v3694, %v3723
      %v3827 = vmul.f32 %v3695, %v3723
      %v3828 = vmul.f32 %v3696, %v3723
      %v3829 = vmul.f32 %v3697, %v3723
      %v3830 = vmul.f32 %v3698, %v3723
      %v3831 = vmul.f32 %v3699, %v3723
      %v3832 = vmul.f32 %v3700, %v3723
      %v3833 = vmul.f32 %v3701, %v3723
      %v3834 = vmul.f32 %v3702, %v3723
      %v3835 = vmul.f32 %v3703, %v3723
      %v3836 = vmul.f32 %v3704, %v3723
      %v3837 = vmul.f32 %v3705, %v3723
      %v3838 = vmul.f32 %v3706, %v3723
      %v3839 = vmul.f32 %v3707, %v3723
      %v3840 = vmul.f32 %v3708, %v3723
      %v3841 = vmul.f32 %v3709, %v3723
      %v3842 = vmul.f32 %v3710, %v3723
      %v3843 = vmul.f32 %v3711, %v3723
      %v3844 = vmul.f32 %v3712, %v3723
      %v3845 = vmul.f32 %v3713, %v3723
      %v3846 = vmul.f32 %v3714, %v3723
      %v3847 = vmul.f32 %v3715, %v3723
      %v3848 = vmul.f32 %v3716, %v3723
      %v3849 = vmul.f32 %v3717, %v3723
      %v3850 = vmul.f32 %v3718, %v3723
      %v3851 = vmul.f32 %v3719, %v3723
      %v3852 = vadd.f32 %v3464, %v3724
      %v3853 = vadd.f32 %v3465, %v3725
      %v3854 = vadd.f32 %v3466, %v3726
      %v3855 = vadd.f32 %v3467, %v3727
      %v3856 = vadd.f32 %v3468, %v3728
      %v3857 = vadd.f32 %v3469, %v3729
      %v3858 = vadd.f32 %v3470, %v3730
      %v3859 = vadd.f32 %v3471, %v3731
      %v3860 = vadd.f32 %v3472, %v3732
      %v3861 = vadd.f32 %v3473, %v3733
      %v3862 = vadd.f32 %v3474, %v3734
      %v3863 = vadd.f32 %v3475, %v3735
      %v3864 = vadd.f32 %v3476, %v3736
      %v3865 = vadd.f32 %v3477, %v3737
      %v3866 = vadd.f32 %v3478, %v3738
      %v3867 = vadd.f32 %v3479, %v3739
      %v3868 = vadd.f32 %v3480, %v3740
      %v3869 = vadd.f32 %v3481, %v3741
      %v3870 = vadd.f32 %v3482, %v3742
      %v3871 = vadd.f32 %v3483, %v3743
      %v3872 = vadd.f32 %v3484, %v3744
      %v3873 = vadd.f32 %v3485, %v3745
      %v3874 = vadd.f32 %v3486, %v3746
      %v3875 = vadd.f32 %v3487, %v3747
      %v3876 = vadd.f32 %v3488, %v3748
      %v3877 = vadd.f32 %v3489, %v3749
      %v3878 = vadd.f32 %v3490, %v3750
      %v3879 = vadd.f32 %v3491, %v3751
      %v3880 = vadd.f32 %v3492, %v3752
      %v3881 = vadd.f32 %v3493, %v3753
      %v3882 = vadd.f32 %v3494, %v3754
      %v3883 = vadd.f32 %v3495, %v3755
      %v3884 = vadd.f32 %v3496, %v3756
      %v3885 = vadd.f32 %v3497, %v3757
      %v3886 = vadd.f32 %v3498, %v3758
      %v3887 = vadd.f32 %v3499, %v3759
      %v3888 = vadd.f32 %v3500, %v3760
      %v3889 = vadd.f32 %v3501, %v3761
      %v3890 = vadd.f32 %v3502, %v3762
      %v3891 = vadd.f32 %v3503, %v3763
      %v3892 = vadd.f32 %v3504, %v3764
      %v3893 = vadd.f32 %v3505, %v3765
      %v3894 = vadd.f32 %v3506, %v3766
      %v3895 = vadd.f32 %v3507, %v3767
      %v3896 = vadd.f32 %v3508, %v3768
      %v3897 = vadd.f32 %v3509, %v3769
      %v3898 = vadd.f32 %v3510, %v3770
      %v3899 = vadd.f32 %v3511, %v3771
      %v3900 = vadd.f32 %v3512, %v3772
      %v3901 = vadd.f32 %v3513, %v3773
      %v3902 = vadd.f32 %v3514, %v3774
      %v3903 = vadd.f32 %v3515, %v3775
      %v3904 = vadd.f32 %v3516, %v3776
      %v3905 = vadd.f32 %v3517, %v3777
      %v3906 = vadd.f32 %v3518, %v3778
      %v3907 = vadd.f32 %v3519, %v3779
      %v3908 = vadd.f32 %v3520, %v3780
      %v3909 = vadd.f32 %v3521, %v3781
      %v3910 = vadd.f32 %v3522, %v3782
      %v3911 = vadd.f32 %v3523, %v3783
      %v3912 = vadd.f32 %v3524, %v3784
      %v3913 = vadd.f32 %v3525, %v3785
      %v3914 = vadd.f32 %v3526, %v3786
      %v3915 = vadd.f32 %v3527, %v3787
      %v3916 = vadd.f32 %v3528, %v3788
      %v3917 = vadd.f32 %v3529, %v3789
      %v3918 = vadd.f32 %v3530, %v3790
      %v3919 = vadd.f32 %v3531, %v3791
      %v3920 = vadd.f32 %v3532, %v3792
      %v3921 = vadd.f32 %v3533, %v3793
      %v3922 = vadd.f32 %v3534, %v3794
      %v3923 = vadd.f32 %v3535, %v3795
      %v3924 = vadd.f32 %v3536, %v3796
      %v3925 = vadd.f32 %v3537, %v3797
      %v3926 = vadd.f32 %v3538, %v3798
      %v3927 = vadd.f32 %v3539, %v3799
      %v3928 = vadd.f32 %v3540, %v3800
      %v3929 = vadd.f32 %v3541, %v3801
      %v3930 = vadd.f32 %v3542, %v3802
      %v3931 = vadd.f32 %v3543, %v3803
      %v3932 = vadd.f32 %v3544, %v3804
      %v3933 = vadd.f32 %v3545, %v3805
      %v3934 = vadd.f32 %v3546, %v3806
      %v3935 = vadd.f32 %v3547, %v3807
      %v3936 = vadd.f32 %v3548, %v3808
      %v3937 = vadd.f32 %v3549, %v3809
      %v3938 = vadd.f32 %v3550, %v3810
      %v3939 = vadd.f32 %v3551, %v3811
      %v3940 = vadd.f32 %v3552, %v3812
      %v3941 = vadd.f32 %v3553, %v3813
      %v3942 = vadd.f32 %v3554, %v3814
      %v3943 = vadd.f32 %v3555, %v3815
      %v3944 = vadd.f32 %v3556, %v3816
      %v3945 = vadd.f32 %v3557, %v3817
      %v3946 = vadd.f32 %v3558, %v3818
      %v3947 = vadd.f32 %v3559, %v3819
      %v3948 = vadd.f32 %v3560, %v3820
      %v3949 = vadd.f32 %v3561, %v3821
      %v3950 = vadd.f32 %v3562, %v3822
      %v3951 = vadd.f32 %v3563, %v3823
      %v3952 = vadd.f32 %v3564, %v3824
      %v3953 = vadd.f32 %v3565, %v3825
      %v3954 = vadd.f32 %v3566, %v3826
      %v3955 = vadd.f32 %v3567, %v3827
      %v3956 = vadd.f32 %v3568, %v3828
      %v3957 = vadd.f32 %v3569, %v3829
      %v3958 = vadd.f32 %v3570, %v3830
      %v3959 = vadd.f32 %v3571, %v3831
      %v3960 = vadd.f32 %v3572, %v3832
      %v3961 = vadd.f32 %v3573, %v3833
      %v3962 = vadd.f32 %v3574, %v3834
      %v3963 = vadd.f32 %v3575, %v3835
      %v3964 = vadd.f32 %v3576, %v3836
      %v3965 = vadd.f32 %v3577, %v3837
      %v3966 = vadd.f32 %v3578, %v3838
      %v3967 = vadd.f32 %v3579, %v3839
      %v3968 = vadd.f32 %v3580, %v3840
      %v3969 = vadd.f32 %v3581, %v3841
      %v3970 = vadd.f32 %v3582, %v3842
      %v3971 = vadd.f32 %v3583, %v3843
      %v3972 = vadd.f32 %v3584, %v3844
      %v3973 = vadd.f32 %v3585, %v3845
      %v3974 = vadd.f32 %v3586, %v3846
      %v3975 = vadd.f32 %v3587, %v3847
      %v3976 = vadd.f32 %v3588, %v3848
      %v3977 = vadd.f32 %v3589, %v3849
      %v3978 = vadd.f32 %v3590, %v3850
      %v3979 = vadd.f32 %v3591, %v3851
      %s3980 = scalar_lea.vmem [#allocation2], 64
      %v3981 = vld [vmem:[%s3980 + $0x7] sm:$0xff]
      %v3982 = vld [vmem:[%s3980 + $0xf] sm:$0xff]
      %v3983 = vld [vmem:[%s3980 + $0x27] sm:$0xff]
      %v3984 = vld [vmem:[%s3980 + $0x2f] sm:$0xff]
      %v3985 = vld [vmem:[%s3980 + $0x47] sm:$0xff]
      %v3986 = vld [vmem:[%s3980 + $0x4f] sm:$0xff]
      %v3987 = vld [vmem:[%s3980 + $0x67] sm:$0xff]
      %v3988 = vld [vmem:[%s3980 + $0x6f] sm:$0xff]
      %v3989 = vld [vmem:[%s3980 + $0x87] sm:$0xff]
      %v3990 = vld [vmem:[%s3980 + $0x8f] sm:$0xff]
      %v3991 = vld [vmem:[%s3980 + $0xa7] sm:$0xff]
      %v3992 = vld [vmem:[%s3980 + $0xaf] sm:$0xff]
      %v3993 = vld [vmem:[%s3980 + $0xc7] sm:$0xff]
      %v3994 = vld [vmem:[%s3980 + $0xcf] sm:$0xff]
      %v3995 = vld [vmem:[%s3980 + $0xe7] sm:$0xff]
      %v3996 = vld [vmem:[%s3980 + $0xef] sm:$0xff]
      %v3997 = vld [vmem:[%s3980 + $0x107] sm:$0xff]
      %v3998 = vld [vmem:[%s3980 + $0x10f] sm:$0xff]
      %v3999 = vld [vmem:[%s3980 + $0x127] sm:$0xff]
      %v4000 = vld [vmem:[%s3980 + $0x12f] sm:$0xff]
      %v4001 = vld [vmem:[%s3980 + $0x147] sm:$0xff]
      %v4002 = vld [vmem:[%s3980 + $0x14f] sm:$0xff]
      %v4003 = vld [vmem:[%s3980 + $0x167] sm:$0xff]
      %v4004 = vld [vmem:[%s3980 + $0x16f] sm:$0xff]
      %v4005 = vld [vmem:[%s3980 + $0x187] sm:$0xff]
      %v4006 = vld [vmem:[%s3980 + $0x18f] sm:$0xff]
      %v4007 = vld [vmem:[%s3980 + $0x1a7] sm:$0xff]
      %v4008 = vld [vmem:[%s3980 + $0x1af] sm:$0xff]
      %v4009 = vld [vmem:[%s3980 + $0x1c7] sm:$0xff]
      %v4010 = vld [vmem:[%s3980 + $0x1cf] sm:$0xff]
      %v4011 = vld [vmem:[%s3980 + $0x1e7] sm:$0xff]
      %v4012 = vld [vmem:[%s3980 + $0x1ef] sm:$0xff]
      %v4013 = vld [vmem:[%s3980 + $0x247] sm:$0xff]
      %v4014 = vld [vmem:[%s3980 + $0x24f] sm:$0xff]
      %v4015 = vld [vmem:[%s3980 + $0x267] sm:$0xff]
      %v4016 = vld [vmem:[%s3980 + $0x26f] sm:$0xff]
      %v4017 = vld [vmem:[%s3980 + $0x287] sm:$0xff]
      %v4018 = vld [vmem:[%s3980 + $0x28f] sm:$0xff]
      %v4019 = vld [vmem:[%s3980 + $0x2a7] sm:$0xff]
      %v4020 = vld [vmem:[%s3980 + $0x2af] sm:$0xff]
      %v4021 = vld [vmem:[%s3980 + $0x2c7] sm:$0xff]
      %v4022 = vld [vmem:[%s3980 + $0x2cf] sm:$0xff]
      %v4023 = vld [vmem:[%s3980 + $0x2e7] sm:$0xff]
      %v4024 = vld [vmem:[%s3980 + $0x2ef] sm:$0xff]
      %v4025 = vld [vmem:[%s3980 + $0x307] sm:$0xff]
      %v4026 = vld [vmem:[%s3980 + $0x30f] sm:$0xff]
      %v4027 = vld [vmem:[%s3980 + $0x327] sm:$0xff]
      %v4028 = vld [vmem:[%s3980 + $0x32f] sm:$0xff]
      %v4029 = vld [vmem:[%s3980 + $0x347] sm:$0xff]
      %v4030 = vld [vmem:[%s3980 + $0x34f] sm:$0xff]
      %v4031 = vld [vmem:[%s3980 + $0x367] sm:$0xff]
      %v4032 = vld [vmem:[%s3980 + $0x36f] sm:$0xff]
      %v4033 = vld [vmem:[%s3980 + $0x387] sm:$0xff]
      %v4034 = vld [vmem:[%s3980 + $0x38f] sm:$0xff]
      %v4035 = vld [vmem:[%s3980 + $0x3a7] sm:$0xff]
      %v4036 = vld [vmem:[%s3980 + $0x3af] sm:$0xff]
      %v4037 = vld [vmem:[%s3980 + $0x3c7] sm:$0xff]
      %v4038 = vld [vmem:[%s3980 + $0x3cf] sm:$0xff]
      %v4039 = vld [vmem:[%s3980 + $0x3e7] sm:$0xff]
      %v4040 = vld [vmem:[%s3980 + $0x3ef] sm:$0xff]
      %v4041 = vld [vmem:[%s3980 + $0x407] sm:$0xff]
      %v4042 = vld [vmem:[%s3980 + $0x40f] sm:$0xff]
      %v4043 = vld [vmem:[%s3980 + $0x427] sm:$0xff]
      %v4044 = vld [vmem:[%s3980 + $0x42f] sm:$0xff]
      %v4045 = vld [vmem:[%s3980 + $0x487] sm:$0xff]
      %v4046 = vld [vmem:[%s3980 + $0x48f] sm:$0xff]
      %v4047 = vld [vmem:[%s3980 + $0x4a7] sm:$0xff]
      %v4048 = vld [vmem:[%s3980 + $0x4af] sm:$0xff]
      %v4049 = vld [vmem:[%s3980 + $0x4c7] sm:$0xff]
      %v4050 = vld [vmem:[%s3980 + $0x4cf] sm:$0xff]
      %v4051 = vld [vmem:[%s3980 + $0x4e7] sm:$0xff]
      %v4052 = vld [vmem:[%s3980 + $0x4ef] sm:$0xff]
      %v4053 = vld [vmem:[%s3980 + $0x507] sm:$0xff]
      %v4054 = vld [vmem:[%s3980 + $0x50f] sm:$0xff]
      %v4055 = vld [vmem:[%s3980 + $0x527] sm:$0xff]
      %v4056 = vld [vmem:[%s3980 + $0x52f] sm:$0xff]
      %v4057 = vld [vmem:[%s3980 + $0x547] sm:$0xff]
      %v4058 = vld [vmem:[%s3980 + $0x54f] sm:$0xff]
      %v4059 = vld [vmem:[%s3980 + $0x567] sm:$0xff]
      %v4060 = vld [vmem:[%s3980 + $0x56f] sm:$0xff]
      %v4061 = vld [vmem:[%s3980 + $0x587] sm:$0xff]
      %v4062 = vld [vmem:[%s3980 + $0x58f] sm:$0xff]
      %v4063 = vld [vmem:[%s3980 + $0x5a7] sm:$0xff]
      %v4064 = vld [vmem:[%s3980 + $0x5af] sm:$0xff]
      %v4065 = vld [vmem:[%s3980 + $0x5c7] sm:$0xff]
      %v4066 = vld [vmem:[%s3980 + $0x5cf] sm:$0xff]
      %v4067 = vld [vmem:[%s3980 + $0x5e7] sm:$0xff]
      %v4068 = vld [vmem:[%s3980 + $0x5ef] sm:$0xff]
      %v4069 = vld [vmem:[%s3980 + $0x607] sm:$0xff]
      %v4070 = vld [vmem:[%s3980 + $0x60f] sm:$0xff]
      %v4071 = vld [vmem:[%s3980 + $0x627] sm:$0xff]
      %v4072 = vld [vmem:[%s3980 + $0x62f] sm:$0xff]
      %v4073 = vld [vmem:[%s3980 + $0x647] sm:$0xff]
      %v4074 = vld [vmem:[%s3980 + $0x64f] sm:$0xff]
      %v4075 = vld [vmem:[%s3980 + $0x667] sm:$0xff]
      %v4076 = vld [vmem:[%s3980 + $0x66f] sm:$0xff]
      %v4077 = vld [vmem:[%s3980 + $0x6c7] sm:$0xff]
      %v4078 = vld [vmem:[%s3980 + $0x6cf] sm:$0xff]
      %v4079 = vld [vmem:[%s3980 + $0x6e7] sm:$0xff]
      %v4080 = vld [vmem:[%s3980 + $0x6ef] sm:$0xff]
      %v4081 = vld [vmem:[%s3980 + $0x707] sm:$0xff]
      %v4082 = vld [vmem:[%s3980 + $0x70f] sm:$0xff]
      %v4083 = vld [vmem:[%s3980 + $0x727] sm:$0xff]
      %v4084 = vld [vmem:[%s3980 + $0x72f] sm:$0xff]
      %v4085 = vld [vmem:[%s3980 + $0x747] sm:$0xff]
      %v4086 = vld [vmem:[%s3980 + $0x74f] sm:$0xff]
      %v4087 = vld [vmem:[%s3980 + $0x767] sm:$0xff]
      %v4088 = vld [vmem:[%s3980 + $0x76f] sm:$0xff]
      %v4089 = vld [vmem:[%s3980 + $0x787] sm:$0xff]
      %v4090 = vld [vmem:[%s3980 + $0x78f] sm:$0xff]
      %v4091 = vld [vmem:[%s3980 + $0x7a7] sm:$0xff]
      %v4092 = vld [vmem:[%s3980 + $0x7af] sm:$0xff]
      %v4093 = vld [vmem:[%s3980 + $0x7c7] sm:$0xff]
      %v4094 = vld [vmem:[%s3980 + $0x7cf] sm:$0xff]
      %v4095 = vld [vmem:[%s3980 + $0x7e7] sm:$0xff]
      %v4096 = vld [vmem:[%s3980 + $0x7ef] sm:$0xff]
      %v4097 = vld [vmem:[%s3980 + $0x807] sm:$0xff]
      %v4098 = vld [vmem:[%s3980 + $0x80f] sm:$0xff]
      %v4099 = vld [vmem:[%s3980 + $0x827] sm:$0xff]
      %v4100 = vld [vmem:[%s3980 + $0x82f] sm:$0xff]
      %v4101 = vld [vmem:[%s3980 + $0x847] sm:$0xff]
      %v4102 = vld [vmem:[%s3980 + $0x84f] sm:$0xff]
      %v4103 = vld [vmem:[%s3980 + $0x867] sm:$0xff]
      %v4104 = vld [vmem:[%s3980 + $0x86f] sm:$0xff]
      %v4105 = vld [vmem:[%s3980 + $0x887] sm:$0xff]
      %v4106 = vld [vmem:[%s3980 + $0x88f] sm:$0xff]
      %v4107 = vld [vmem:[%s3980 + $0x8a7] sm:$0xff]
      %v4108 = vld [vmem:[%s3980 + $0x8af] sm:$0xff]
      %v4109 = vlaneseq
      %v4110 = vshrl.u32 %v4109, 7
      %v4111 = vsub.s32 6, %v4110
      %v4112 = vrot.slane %v1778, %v4111
      %v4113 = vmul.f32 %v3981, %v4112
      %v4114 = vmul.f32 %v3982, %v4112
      %v4115 = vmul.f32 %v3983, %v4112
      %v4116 = vmul.f32 %v3984, %v4112
      %v4117 = vmul.f32 %v3985, %v4112
      %v4118 = vmul.f32 %v3986, %v4112
      %v4119 = vmul.f32 %v3987, %v4112
      %v4120 = vmul.f32 %v3988, %v4112
      %v4121 = vmul.f32 %v3989, %v4112
      %v4122 = vmul.f32 %v3990, %v4112
      %v4123 = vmul.f32 %v3991, %v4112
      %v4124 = vmul.f32 %v3992, %v4112
      %v4125 = vmul.f32 %v3993, %v4112
      %v4126 = vmul.f32 %v3994, %v4112
      %v4127 = vmul.f32 %v3995, %v4112
      %v4128 = vmul.f32 %v3996, %v4112
      %v4129 = vmul.f32 %v3997, %v4112
      %v4130 = vmul.f32 %v3998, %v4112
      %v4131 = vmul.f32 %v3999, %v4112
      %v4132 = vmul.f32 %v4000, %v4112
      %v4133 = vmul.f32 %v4001, %v4112
      %v4134 = vmul.f32 %v4002, %v4112
      %v4135 = vmul.f32 %v4003, %v4112
      %v4136 = vmul.f32 %v4004, %v4112
      %v4137 = vmul.f32 %v4005, %v4112
      %v4138 = vmul.f32 %v4006, %v4112
      %v4139 = vmul.f32 %v4007, %v4112
      %v4140 = vmul.f32 %v4008, %v4112
      %v4141 = vmul.f32 %v4009, %v4112
      %v4142 = vmul.f32 %v4010, %v4112
      %v4143 = vmul.f32 %v4011, %v4112
      %v4144 = vmul.f32 %v4012, %v4112
      %v4145 = vmul.f32 %v4013, %v4112
      %v4146 = vmul.f32 %v4014, %v4112
      %v4147 = vmul.f32 %v4015, %v4112
      %v4148 = vmul.f32 %v4016, %v4112
      %v4149 = vmul.f32 %v4017, %v4112
      %v4150 = vmul.f32 %v4018, %v4112
      %v4151 = vmul.f32 %v4019, %v4112
      %v4152 = vmul.f32 %v4020, %v4112
      %v4153 = vmul.f32 %v4021, %v4112
      %v4154 = vmul.f32 %v4022, %v4112
      %v4155 = vmul.f32 %v4023, %v4112
      %v4156 = vmul.f32 %v4024, %v4112
      %v4157 = vmul.f32 %v4025, %v4112
      %v4158 = vmul.f32 %v4026, %v4112
      %v4159 = vmul.f32 %v4027, %v4112
      %v4160 = vmul.f32 %v4028, %v4112
      %v4161 = vmul.f32 %v4029, %v4112
      %v4162 = vmul.f32 %v4030, %v4112
      %v4163 = vmul.f32 %v4031, %v4112
      %v4164 = vmul.f32 %v4032, %v4112
      %v4165 = vmul.f32 %v4033, %v4112
      %v4166 = vmul.f32 %v4034, %v4112
      %v4167 = vmul.f32 %v4035, %v4112
      %v4168 = vmul.f32 %v4036, %v4112
      %v4169 = vmul.f32 %v4037, %v4112
      %v4170 = vmul.f32 %v4038, %v4112
      %v4171 = vmul.f32 %v4039, %v4112
      %v4172 = vmul.f32 %v4040, %v4112
      %v4173 = vmul.f32 %v4041, %v4112
      %v4174 = vmul.f32 %v4042, %v4112
      %v4175 = vmul.f32 %v4043, %v4112
      %v4176 = vmul.f32 %v4044, %v4112
      %v4177 = vmul.f32 %v4045, %v4112
      %v4178 = vmul.f32 %v4046, %v4112
      %v4179 = vmul.f32 %v4047, %v4112
      %v4180 = vmul.f32 %v4048, %v4112
      %v4181 = vmul.f32 %v4049, %v4112
      %v4182 = vmul.f32 %v4050, %v4112
      %v4183 = vmul.f32 %v4051, %v4112
      %v4184 = vmul.f32 %v4052, %v4112
      %v4185 = vmul.f32 %v4053, %v4112
      %v4186 = vmul.f32 %v4054, %v4112
      %v4187 = vmul.f32 %v4055, %v4112
      %v4188 = vmul.f32 %v4056, %v4112
      %v4189 = vmul.f32 %v4057, %v4112
      %v4190 = vmul.f32 %v4058, %v4112
      %v4191 = vmul.f32 %v4059, %v4112
      %v4192 = vmul.f32 %v4060, %v4112
      %v4193 = vmul.f32 %v4061, %v4112
      %v4194 = vmul.f32 %v4062, %v4112
      %v4195 = vmul.f32 %v4063, %v4112
      %v4196 = vmul.f32 %v4064, %v4112
      %v4197 = vmul.f32 %v4065, %v4112
      %v4198 = vmul.f32 %v4066, %v4112
      %v4199 = vmul.f32 %v4067, %v4112
      %v4200 = vmul.f32 %v4068, %v4112
      %v4201 = vmul.f32 %v4069, %v4112
      %v4202 = vmul.f32 %v4070, %v4112
      %v4203 = vmul.f32 %v4071, %v4112
      %v4204 = vmul.f32 %v4072, %v4112
      %v4205 = vmul.f32 %v4073, %v4112
      %v4206 = vmul.f32 %v4074, %v4112
      %v4207 = vmul.f32 %v4075, %v4112
      %v4208 = vmul.f32 %v4076, %v4112
      %v4209 = vmul.f32 %v4077, %v4112
      %v4210 = vmul.f32 %v4078, %v4112
      %v4211 = vmul.f32 %v4079, %v4112
      %v4212 = vmul.f32 %v4080, %v4112
      %v4213 = vmul.f32 %v4081, %v4112
      %v4214 = vmul.f32 %v4082, %v4112
      %v4215 = vmul.f32 %v4083, %v4112
      %v4216 = vmul.f32 %v4084, %v4112
      %v4217 = vmul.f32 %v4085, %v4112
      %v4218 = vmul.f32 %v4086, %v4112
      %v4219 = vmul.f32 %v4087, %v4112
      %v4220 = vmul.f32 %v4088, %v4112
      %v4221 = vmul.f32 %v4089, %v4112
      %v4222 = vmul.f32 %v4090, %v4112
      %v4223 = vmul.f32 %v4091, %v4112
      %v4224 = vmul.f32 %v4092, %v4112
      %v4225 = vmul.f32 %v4093, %v4112
      %v4226 = vmul.f32 %v4094, %v4112
      %v4227 = vmul.f32 %v4095, %v4112
      %v4228 = vmul.f32 %v4096, %v4112
      %v4229 = vmul.f32 %v4097, %v4112
      %v4230 = vmul.f32 %v4098, %v4112
      %v4231 = vmul.f32 %v4099, %v4112
      %v4232 = vmul.f32 %v4100, %v4112
      %v4233 = vmul.f32 %v4101, %v4112
      %v4234 = vmul.f32 %v4102, %v4112
      %v4235 = vmul.f32 %v4103, %v4112
      %v4236 = vmul.f32 %v4104, %v4112
      %v4237 = vmul.f32 %v4105, %v4112
      %v4238 = vmul.f32 %v4106, %v4112
      %v4239 = vmul.f32 %v4107, %v4112
      %v4240 = vmul.f32 %v4108, %v4112
      %v4241 = vadd.f32 %v3852, %v4113
      %v4242 = vadd.f32 %v3853, %v4114
      %v4243 = vadd.f32 %v3854, %v4115
      %v4244 = vadd.f32 %v3855, %v4116
      %v4245 = vadd.f32 %v3856, %v4117
      %v4246 = vadd.f32 %v3857, %v4118
      %v4247 = vadd.f32 %v3858, %v4119
      %v4248 = vadd.f32 %v3859, %v4120
      %v4249 = vadd.f32 %v3860, %v4121
      %v4250 = vadd.f32 %v3861, %v4122
      %v4251 = vadd.f32 %v3862, %v4123
      %v4252 = vadd.f32 %v3863, %v4124
      %v4253 = vadd.f32 %v3864, %v4125
      %v4254 = vadd.f32 %v3865, %v4126
      %v4255 = vadd.f32 %v3866, %v4127
      %v4256 = vadd.f32 %v3867, %v4128
      %v4257 = vadd.f32 %v3868, %v4129
      %v4258 = vadd.f32 %v3869, %v4130
      %v4259 = vadd.f32 %v3870, %v4131
      %v4260 = vadd.f32 %v3871, %v4132
      %v4261 = vadd.f32 %v3872, %v4133
      %v4262 = vadd.f32 %v3873, %v4134
      %v4263 = vadd.f32 %v3874, %v4135
      %v4264 = vadd.f32 %v3875, %v4136
      %v4265 = vadd.f32 %v3876, %v4137
      %v4266 = vadd.f32 %v3877, %v4138
      %v4267 = vadd.f32 %v3878, %v4139
      %v4268 = vadd.f32 %v3879, %v4140
      %v4269 = vadd.f32 %v3880, %v4141
      %v4270 = vadd.f32 %v3881, %v4142
      %v4271 = vadd.f32 %v3882, %v4143
      %v4272 = vadd.f32 %v3883, %v4144
      %v4273 = vadd.f32 %v3884, %v4145
      %v4274 = vadd.f32 %v3885, %v4146
      %v4275 = vadd.f32 %v3886, %v4147
      %v4276 = vadd.f32 %v3887, %v4148
      %v4277 = vadd.f32 %v3888, %v4149
      %v4278 = vadd.f32 %v3889, %v4150
      %v4279 = vadd.f32 %v3890, %v4151
      %v4280 = vadd.f32 %v3891, %v4152
      %v4281 = vadd.f32 %v3892, %v4153
      %v4282 = vadd.f32 %v3893, %v4154
      %v4283 = vadd.f32 %v3894, %v4155
      %v4284 = vadd.f32 %v3895, %v4156
      %v4285 = vadd.f32 %v3896, %v4157
      %v4286 = vadd.f32 %v3897, %v4158
      %v4287 = vadd.f32 %v3898, %v4159
      %v4288 = vadd.f32 %v3899, %v4160
      %v4289 = vadd.f32 %v3900, %v4161
      %v4290 = vadd.f32 %v3901, %v4162
      %v4291 = vadd.f32 %v3902, %v4163
      %v4292 = vadd.f32 %v3903, %v4164
      %v4293 = vadd.f32 %v3904, %v4165
      %v4294 = vadd.f32 %v3905, %v4166
      %v4295 = vadd.f32 %v3906, %v4167
      %v4296 = vadd.f32 %v3907, %v4168
      %v4297 = vadd.f32 %v3908, %v4169
      %v4298 = vadd.f32 %v3909, %v4170
      %v4299 = vadd.f32 %v3910, %v4171
      %v4300 = vadd.f32 %v3911, %v4172
      %v4301 = vadd.f32 %v3912, %v4173
      %v4302 = vadd.f32 %v3913, %v4174
      %v4303 = vadd.f32 %v3914, %v4175
      %v4304 = vadd.f32 %v3915, %v4176
      %v4305 = vadd.f32 %v3916, %v4177
      %v4306 = vadd.f32 %v3917, %v4178
      %v4307 = vadd.f32 %v3918, %v4179
      %v4308 = vadd.f32 %v3919, %v4180
      %v4309 = vadd.f32 %v3920, %v4181
      %v4310 = vadd.f32 %v3921, %v4182
      %v4311 = vadd.f32 %v3922, %v4183
      %v4312 = vadd.f32 %v3923, %v4184
      %v4313 = vadd.f32 %v3924, %v4185
      %v4314 = vadd.f32 %v3925, %v4186
      %v4315 = vadd.f32 %v3926, %v4187
      %v4316 = vadd.f32 %v3927, %v4188
      %v4317 = vadd.f32 %v3928, %v4189
      %v4318 = vadd.f32 %v3929, %v4190
      %v4319 = vadd.f32 %v3930, %v4191
      %v4320 = vadd.f32 %v3931, %v4192
      %v4321 = vadd.f32 %v3932, %v4193
      %v4322 = vadd.f32 %v3933, %v4194
      %v4323 = vadd.f32 %v3934, %v4195
      %v4324 = vadd.f32 %v3935, %v4196
      %v4325 = vadd.f32 %v3936, %v4197
      %v4326 = vadd.f32 %v3937, %v4198
      %v4327 = vadd.f32 %v3938, %v4199
      %v4328 = vadd.f32 %v3939, %v4200
      %v4329 = vadd.f32 %v3940, %v4201
      %v4330 = vadd.f32 %v3941, %v4202
      %v4331 = vadd.f32 %v3942, %v4203
      %v4332 = vadd.f32 %v3943, %v4204
      %v4333 = vadd.f32 %v3944, %v4205
      %v4334 = vadd.f32 %v3945, %v4206
      %v4335 = vadd.f32 %v3946, %v4207
      %v4336 = vadd.f32 %v3947, %v4208
      %v4337 = vadd.f32 %v3948, %v4209
      %v4338 = vadd.f32 %v3949, %v4210
      %v4339 = vadd.f32 %v3950, %v4211
      %v4340 = vadd.f32 %v3951, %v4212
      %v4341 = vadd.f32 %v3952, %v4213
      %v4342 = vadd.f32 %v3953, %v4214
      %v4343 = vadd.f32 %v3954, %v4215
      %v4344 = vadd.f32 %v3955, %v4216
      %v4345 = vadd.f32 %v3956, %v4217
      %v4346 = vadd.f32 %v3957, %v4218
      %v4347 = vadd.f32 %v3958, %v4219
      %v4348 = vadd.f32 %v3959, %v4220
      %v4349 = vadd.f32 %v3960, %v4221
      %v4350 = vadd.f32 %v3961, %v4222
      %v4351 = vadd.f32 %v3962, %v4223
      %v4352 = vadd.f32 %v3963, %v4224
      %v4353 = vadd.f32 %v3964, %v4225
      %v4354 = vadd.f32 %v3965, %v4226
      %v4355 = vadd.f32 %v3966, %v4227
      %v4356 = vadd.f32 %v3967, %v4228
      %v4357 = vadd.f32 %v3968, %v4229
      %v4358 = vadd.f32 %v3969, %v4230
      %v4359 = vadd.f32 %v3970, %v4231
      %v4360 = vadd.f32 %v3971, %v4232
      %v4361 = vadd.f32 %v3972, %v4233
      %v4362 = vadd.f32 %v3973, %v4234
      %v4363 = vadd.f32 %v3974, %v4235
      %v4364 = vadd.f32 %v3975, %v4236
      %v4365 = vadd.f32 %v3976, %v4237
      %v4366 = vadd.f32 %v3977, %v4238
      %v4367 = vadd.f32 %v3978, %v4239
      %v4368 = vadd.f32 %v3979, %v4240
      %v4369 = vld [vmem:[%s3980 + $0x8] sm:$0xff]
      %v4370 = vld [vmem:[%s3980 + $0x10] sm:$0xff]
      %v4371 = vld [vmem:[%s3980 + $0x28] sm:$0xff]
      %v4372 = vld [vmem:[%s3980 + $0x30] sm:$0xff]
      %v4373 = vld [vmem:[%s3980 + $0x48] sm:$0xff]
      %v4374 = vld [vmem:[%s3980 + $0x50] sm:$0xff]
      %v4375 = vld [vmem:[%s3980 + $0x68] sm:$0xff]
      %v4376 = vld [vmem:[%s3980 + $0x70] sm:$0xff]
      %v4377 = vld [vmem:[%s3980 + $0x88] sm:$0xff]
      %v4378 = vld [vmem:[%s3980 + $0x90] sm:$0xff]
      %v4379 = vld [vmem:[%s3980 + $0xa8] sm:$0xff]
      %v4380 = vld [vmem:[%s3980 + $0xb0] sm:$0xff]
      %v4381 = vld [vmem:[%s3980 + $0xc8] sm:$0xff]
      %v4382 = vld [vmem:[%s3980 + $0xd0] sm:$0xff]
      %v4383 = vld [vmem:[%s3980 + $0xe8] sm:$0xff]
      %v4384 = vld [vmem:[%s3980 + $0xf0] sm:$0xff]
      %v4385 = vld [vmem:[%s3980 + $0x108] sm:$0xff]
      %v4386 = vld [vmem:[%s3980 + $0x110] sm:$0xff]
      %v4387 = vld [vmem:[%s3980 + $0x128] sm:$0xff]
      %v4388 = vld [vmem:[%s3980 + $0x130] sm:$0xff]
      %v4389 = vld [vmem:[%s3980 + $0x148] sm:$0xff]
      %v4390 = vld [vmem:[%s3980 + $0x150] sm:$0xff]
      %v4391 = vld [vmem:[%s3980 + $0x168] sm:$0xff]
      %v4392 = vld [vmem:[%s3980 + $0x170] sm:$0xff]
      %v4393 = vld [vmem:[%s3980 + $0x188] sm:$0xff]
      %v4394 = vld [vmem:[%s3980 + $0x190] sm:$0xff]
      %v4395 = vld [vmem:[%s3980 + $0x1a8] sm:$0xff]
      %v4396 = vld [vmem:[%s3980 + $0x1b0] sm:$0xff]
      %v4397 = vld [vmem:[%s3980 + $0x1c8] sm:$0xff]
      %v4398 = vld [vmem:[%s3980 + $0x1d0] sm:$0xff]
      %v4399 = vld [vmem:[%s3980 + $0x1e8] sm:$0xff]
      %v4400 = vld [vmem:[%s3980 + $0x1f0] sm:$0xff]
      %v4401 = vld [vmem:[%s3980 + $0x248] sm:$0xff]
      %v4402 = vld [vmem:[%s3980 + $0x250] sm:$0xff]
      %v4403 = vld [vmem:[%s3980 + $0x268] sm:$0xff]
      %v4404 = vld [vmem:[%s3980 + $0x270] sm:$0xff]
      %v4405 = vld [vmem:[%s3980 + $0x288] sm:$0xff]
      %v4406 = vld [vmem:[%s3980 + $0x290] sm:$0xff]
      %v4407 = vld [vmem:[%s3980 + $0x2a8] sm:$0xff]
      %v4408 = vld [vmem:[%s3980 + $0x2b0] sm:$0xff]
      %v4409 = vld [vmem:[%s3980 + $0x2c8] sm:$0xff]
      %v4410 = vld [vmem:[%s3980 + $0x2d0] sm:$0xff]
      %v4411 = vld [vmem:[%s3980 + $0x2e8] sm:$0xff]
      %v4412 = vld [vmem:[%s3980 + $0x2f0] sm:$0xff]
      %v4413 = vld [vmem:[%s3980 + $0x308] sm:$0xff]
      %v4414 = vld [vmem:[%s3980 + $0x310] sm:$0xff]
      %v4415 = vld [vmem:[%s3980 + $0x328] sm:$0xff]
      %v4416 = vld [vmem:[%s3980 + $0x330] sm:$0xff]
      %v4417 = vld [vmem:[%s3980 + $0x348] sm:$0xff]
      %v4418 = vld [vmem:[%s3980 + $0x350] sm:$0xff]
      %v4419 = vld [vmem:[%s3980 + $0x368] sm:$0xff]
      %v4420 = vld [vmem:[%s3980 + $0x370] sm:$0xff]
      %v4421 = vld [vmem:[%s3980 + $0x388] sm:$0xff]
      %v4422 = vld [vmem:[%s3980 + $0x390] sm:$0xff]
      %v4423 = vld [vmem:[%s3980 + $0x3a8] sm:$0xff]
      %v4424 = vld [vmem:[%s3980 + $0x3b0] sm:$0xff]
      %v4425 = vld [vmem:[%s3980 + $0x3c8] sm:$0xff]
      %v4426 = vld [vmem:[%s3980 + $0x3d0] sm:$0xff]
      %v4427 = vld [vmem:[%s3980 + $0x3e8] sm:$0xff]
      %v4428 = vld [vmem:[%s3980 + $0x3f0] sm:$0xff]
      %v4429 = vld [vmem:[%s3980 + $0x408] sm:$0xff]
      %v4430 = vld [vmem:[%s3980 + $0x410] sm:$0xff]
      %v4431 = vld [vmem:[%s3980 + $0x428] sm:$0xff]
      %v4432 = vld [vmem:[%s3980 + $0x430] sm:$0xff]
      %v4433 = vld [vmem:[%s3980 + $0x488] sm:$0xff]
      %v4434 = vld [vmem:[%s3980 + $0x490] sm:$0xff]
      %v4435 = vld [vmem:[%s3980 + $0x4a8] sm:$0xff]
      %v4436 = vld [vmem:[%s3980 + $0x4b0] sm:$0xff]
      %v4437 = vld [vmem:[%s3980 + $0x4c8] sm:$0xff]
      %v4438 = vld [vmem:[%s3980 + $0x4d0] sm:$0xff]
      %v4439 = vld [vmem:[%s3980 + $0x4e8] sm:$0xff]
      %v4440 = vld [vmem:[%s3980 + $0x4f0] sm:$0xff]
      %v4441 = vld [vmem:[%s3980 + $0x508] sm:$0xff]
      %v4442 = vld [vmem:[%s3980 + $0x510] sm:$0xff]
      %v4443 = vld [vmem:[%s3980 + $0x528] sm:$0xff]
      %v4444 = vld [vmem:[%s3980 + $0x530] sm:$0xff]
      %v4445 = vld [vmem:[%s3980 + $0x548] sm:$0xff]
      %v4446 = vld [vmem:[%s3980 + $0x550] sm:$0xff]
      %v4447 = vld [vmem:[%s3980 + $0x568] sm:$0xff]
      %v4448 = vld [vmem:[%s3980 + $0x570] sm:$0xff]
      %v4449 = vld [vmem:[%s3980 + $0x588] sm:$0xff]
      %v4450 = vld [vmem:[%s3980 + $0x590] sm:$0xff]
      %v4451 = vld [vmem:[%s3980 + $0x5a8] sm:$0xff]
      %v4452 = vld [vmem:[%s3980 + $0x5b0] sm:$0xff]
      %v4453 = vld [vmem:[%s3980 + $0x5c8] sm:$0xff]
      %v4454 = vld [vmem:[%s3980 + $0x5d0] sm:$0xff]
      %v4455 = vld [vmem:[%s3980 + $0x5e8] sm:$0xff]
      %v4456 = vld [vmem:[%s3980 + $0x5f0] sm:$0xff]
      %v4457 = vld [vmem:[%s3980 + $0x608] sm:$0xff]
      %v4458 = vld [vmem:[%s3980 + $0x610] sm:$0xff]
      %v4459 = vld [vmem:[%s3980 + $0x628] sm:$0xff]
      %v4460 = vld [vmem:[%s3980 + $0x630] sm:$0xff]
      %v4461 = vld [vmem:[%s3980 + $0x648] sm:$0xff]
      %v4462 = vld [vmem:[%s3980 + $0x650] sm:$0xff]
      %v4463 = vld [vmem:[%s3980 + $0x668] sm:$0xff]
      %v4464 = vld [vmem:[%s3980 + $0x670] sm:$0xff]
      %v4465 = vld [vmem:[%s3980 + $0x6c8] sm:$0xff]
      %v4466 = vld [vmem:[%s3980 + $0x6d0] sm:$0xff]
      %v4467 = vld [vmem:[%s3980 + $0x6e8] sm:$0xff]
      %v4468 = vld [vmem:[%s3980 + $0x6f0] sm:$0xff]
      %v4469 = vld [vmem:[%s3980 + $0x708] sm:$0xff]
      %v4470 = vld [vmem:[%s3980 + $0x710] sm:$0xff]
      %v4471 = vld [vmem:[%s3980 + $0x728] sm:$0xff]
      %v4472 = vld [vmem:[%s3980 + $0x730] sm:$0xff]
      %v4473 = vld [vmem:[%s3980 + $0x748] sm:$0xff]
      %v4474 = vld [vmem:[%s3980 + $0x750] sm:$0xff]
      %v4475 = vld [vmem:[%s3980 + $0x768] sm:$0xff]
      %v4476 = vld [vmem:[%s3980 + $0x770] sm:$0xff]
      %v4477 = vld [vmem:[%s3980 + $0x788] sm:$0xff]
      %v4478 = vld [vmem:[%s3980 + $0x790] sm:$0xff]
      %v4479 = vld [vmem:[%s3980 + $0x7a8] sm:$0xff]
      %v4480 = vld [vmem:[%s3980 + $0x7b0] sm:$0xff]
      %v4481 = vld [vmem:[%s3980 + $0x7c8] sm:$0xff]
      %v4482 = vld [vmem:[%s3980 + $0x7d0] sm:$0xff]
      %v4483 = vld [vmem:[%s3980 + $0x7e8] sm:$0xff]
      %v4484 = vld [vmem:[%s3980 + $0x7f0] sm:$0xff]
      %v4485 = vld [vmem:[%s3980 + $0x808] sm:$0xff]
      %v4486 = vld [vmem:[%s3980 + $0x810] sm:$0xff]
      %v4487 = vld [vmem:[%s3980 + $0x828] sm:$0xff]
      %v4488 = vld [vmem:[%s3980 + $0x830] sm:$0xff]
      %v4489 = vld [vmem:[%s3980 + $0x848] sm:$0xff]
      %v4490 = vld [vmem:[%s3980 + $0x850] sm:$0xff]
      %v4491 = vld [vmem:[%s3980 + $0x868] sm:$0xff]
      %v4492 = vld [vmem:[%s3980 + $0x870] sm:$0xff]
      %v4493 = vld [vmem:[%s3980 + $0x888] sm:$0xff]
      %v4494 = vld [vmem:[%s3980 + $0x890] sm:$0xff]
      %v4495 = vld [vmem:[%s3980 + $0x8a8] sm:$0xff]
      %v4496 = vld [vmem:[%s3980 + $0x8b0] sm:$0xff]
      %v4497 = vlaneseq
      %v4498 = vshrl.u32 %v4497, 7
      %v4499 = vsub.s32 7, %v4498
      %v4500 = vrot.slane %v1778, %v4499
      %v4501 = vmul.f32 %v4369, %v4500
      %v4502 = vmul.f32 %v4370, %v4500
      %v4503 = vmul.f32 %v4371, %v4500
      %v4504 = vmul.f32 %v4372, %v4500
      %v4505 = vmul.f32 %v4373, %v4500
      %v4506 = vmul.f32 %v4374, %v4500
      %v4507 = vmul.f32 %v4375, %v4500
      %v4508 = vmul.f32 %v4376, %v4500
      %v4509 = vmul.f32 %v4377, %v4500
      %v4510 = vmul.f32 %v4378, %v4500
      %v4511 = vmul.f32 %v4379, %v4500
      %v4512 = vmul.f32 %v4380, %v4500
      %v4513 = vmul.f32 %v4381, %v4500
      %v4514 = vmul.f32 %v4382, %v4500
      %v4515 = vmul.f32 %v4383, %v4500
      %v4516 = vmul.f32 %v4384, %v4500
      %v4517 = vmul.f32 %v4385, %v4500
      %v4518 = vmul.f32 %v4386, %v4500
      %v4519 = vmul.f32 %v4387, %v4500
      %v4520 = vmul.f32 %v4388, %v4500
      %v4521 = vmul.f32 %v4389, %v4500
      %v4522 = vmul.f32 %v4390, %v4500
      %v4523 = vmul.f32 %v4391, %v4500
      %v4524 = vmul.f32 %v4392, %v4500
      %v4525 = vmul.f32 %v4393, %v4500
      %v4526 = vmul.f32 %v4394, %v4500
      %v4527 = vmul.f32 %v4395, %v4500
      %v4528 = vmul.f32 %v4396, %v4500
      %v4529 = vmul.f32 %v4397, %v4500
      %v4530 = vmul.f32 %v4398, %v4500
      %v4531 = vmul.f32 %v4399, %v4500
      %v4532 = vmul.f32 %v4400, %v4500
      %v4533 = vmul.f32 %v4401, %v4500
      %v4534 = vmul.f32 %v4402, %v4500
      %v4535 = vmul.f32 %v4403, %v4500
      %v4536 = vmul.f32 %v4404, %v4500
      %v4537 = vmul.f32 %v4405, %v4500
      %v4538 = vmul.f32 %v4406, %v4500
      %v4539 = vmul.f32 %v4407, %v4500
      %v4540 = vmul.f32 %v4408, %v4500
      %v4541 = vmul.f32 %v4409, %v4500
      %v4542 = vmul.f32 %v4410, %v4500
      %v4543 = vmul.f32 %v4411, %v4500
      %v4544 = vmul.f32 %v4412, %v4500
      %v4545 = vmul.f32 %v4413, %v4500
      %v4546 = vmul.f32 %v4414, %v4500
      %v4547 = vmul.f32 %v4415, %v4500
      %v4548 = vmul.f32 %v4416, %v4500
      %v4549 = vmul.f32 %v4417, %v4500
      %v4550 = vmul.f32 %v4418, %v4500
      %v4551 = vmul.f32 %v4419, %v4500
      %v4552 = vmul.f32 %v4420, %v4500
      %v4553 = vmul.f32 %v4421, %v4500
      %v4554 = vmul.f32 %v4422, %v4500
      %v4555 = vmul.f32 %v4423, %v4500
      %v4556 = vmul.f32 %v4424, %v4500
      %v4557 = vmul.f32 %v4425, %v4500
      %v4558 = vmul.f32 %v4426, %v4500
      %v4559 = vmul.f32 %v4427, %v4500
      %v4560 = vmul.f32 %v4428, %v4500
      %v4561 = vmul.f32 %v4429, %v4500
      %v4562 = vmul.f32 %v4430, %v4500
      %v4563 = vmul.f32 %v4431, %v4500
      %v4564 = vmul.f32 %v4432, %v4500
      %v4565 = vmul.f32 %v4433, %v4500
      %v4566 = vmul.f32 %v4434, %v4500
      %v4567 = vmul.f32 %v4435, %v4500
      %v4568 = vmul.f32 %v4436, %v4500
      %v4569 = vmul.f32 %v4437, %v4500
      %v4570 = vmul.f32 %v4438, %v4500
      %v4571 = vmul.f32 %v4439, %v4500
      %v4572 = vmul.f32 %v4440, %v4500
      %v4573 = vmul.f32 %v4441, %v4500
      %v4574 = vmul.f32 %v4442, %v4500
      %v4575 = vmul.f32 %v4443, %v4500
      %v4576 = vmul.f32 %v4444, %v4500
      %v4577 = vmul.f32 %v4445, %v4500
      %v4578 = vmul.f32 %v4446, %v4500
      %v4579 = vmul.f32 %v4447, %v4500
      %v4580 = vmul.f32 %v4448, %v4500
      %v4581 = vmul.f32 %v4449, %v4500
      %v4582 = vmul.f32 %v4450, %v4500
      %v4583 = vmul.f32 %v4451, %v4500
      %v4584 = vmul.f32 %v4452, %v4500
      %v4585 = vmul.f32 %v4453, %v4500
      %v4586 = vmul.f32 %v4454, %v4500
      %v4587 = vmul.f32 %v4455, %v4500
      %v4588 = vmul.f32 %v4456, %v4500
      %v4589 = vmul.f32 %v4457, %v4500
      %v4590 = vmul.f32 %v4458, %v4500
      %v4591 = vmul.f32 %v4459, %v4500
      %v4592 = vmul.f32 %v4460, %v4500
      %v4593 = vmul.f32 %v4461, %v4500
      %v4594 = vmul.f32 %v4462, %v4500
      %v4595 = vmul.f32 %v4463, %v4500
      %v4596 = vmul.f32 %v4464, %v4500
      %v4597 = vmul.f32 %v4465, %v4500
      %v4598 = vmul.f32 %v4466, %v4500
      %v4599 = vmul.f32 %v4467, %v4500
      %v4600 = vmul.f32 %v4468, %v4500
      %v4601 = vmul.f32 %v4469, %v4500
      %v4602 = vmul.f32 %v4470, %v4500
      %v4603 = vmul.f32 %v4471, %v4500
      %v4604 = vmul.f32 %v4472, %v4500
      %v4605 = vmul.f32 %v4473, %v4500
      %v4606 = vmul.f32 %v4474, %v4500
      %v4607 = vmul.f32 %v4475, %v4500
      %v4608 = vmul.f32 %v4476, %v4500
      %v4609 = vmul.f32 %v4477, %v4500
      %v4610 = vmul.f32 %v4478, %v4500
      %v4611 = vmul.f32 %v4479, %v4500
      %v4612 = vmul.f32 %v4480, %v4500
      %v4613 = vmul.f32 %v4481, %v4500
      %v4614 = vmul.f32 %v4482, %v4500
      %v4615 = vmul.f32 %v4483, %v4500
      %v4616 = vmul.f32 %v4484, %v4500
      %v4617 = vmul.f32 %v4485, %v4500
      %v4618 = vmul.f32 %v4486, %v4500
      %v4619 = vmul.f32 %v4487, %v4500
      %v4620 = vmul.f32 %v4488, %v4500
      %v4621 = vmul.f32 %v4489, %v4500
      %v4622 = vmul.f32 %v4490, %v4500
      %v4623 = vmul.f32 %v4491, %v4500
      %v4624 = vmul.f32 %v4492, %v4500
      %v4625 = vmul.f32 %v4493, %v4500
      %v4626 = vmul.f32 %v4494, %v4500
      %v4627 = vmul.f32 %v4495, %v4500
      %v4628 = vmul.f32 %v4496, %v4500
      %v4629 = vadd.f32 %v4241, %v4501
      %v4630 = vadd.f32 %v4242, %v4502
      %v4631 = vadd.f32 %v4243, %v4503
      %v4632 = vadd.f32 %v4244, %v4504
      %v4633 = vadd.f32 %v4245, %v4505
      %v4634 = vadd.f32 %v4246, %v4506
      %v4635 = vadd.f32 %v4247, %v4507
      %v4636 = vadd.f32 %v4248, %v4508
      %v4637 = vadd.f32 %v4249, %v4509
      %v4638 = vadd.f32 %v4250, %v4510
      %v4639 = vadd.f32 %v4251, %v4511
      %v4640 = vadd.f32 %v4252, %v4512
      %v4641 = vadd.f32 %v4253, %v4513
      %v4642 = vadd.f32 %v4254, %v4514
      %v4643 = vadd.f32 %v4255, %v4515
      %v4644 = vadd.f32 %v4256, %v4516
      %v4645 = vadd.f32 %v4257, %v4517
      %v4646 = vadd.f32 %v4258, %v4518
      %v4647 = vadd.f32 %v4259, %v4519
      %v4648 = vadd.f32 %v4260, %v4520
      %v4649 = vadd.f32 %v4261, %v4521
      %v4650 = vadd.f32 %v4262, %v4522
      %v4651 = vadd.f32 %v4263, %v4523
      %v4652 = vadd.f32 %v4264, %v4524
      %v4653 = vadd.f32 %v4265, %v4525
      %v4654 = vadd.f32 %v4266, %v4526
      %v4655 = vadd.f32 %v4267, %v4527
      %v4656 = vadd.f32 %v4268, %v4528
      %v4657 = vadd.f32 %v4269, %v4529
      %v4658 = vadd.f32 %v4270, %v4530
      %v4659 = vadd.f32 %v4271, %v4531
      %v4660 = vadd.f32 %v4272, %v4532
      %v4661 = vadd.f32 %v4273, %v4533
      %v4662 = vadd.f32 %v4274, %v4534
      %v4663 = vadd.f32 %v4275, %v4535
      %v4664 = vadd.f32 %v4276, %v4536
      %v4665 = vadd.f32 %v4277, %v4537
      %v4666 = vadd.f32 %v4278, %v4538
      %v4667 = vadd.f32 %v4279, %v4539
      %v4668 = vadd.f32 %v4280, %v4540
      %v4669 = vadd.f32 %v4281, %v4541
      %v4670 = vadd.f32 %v4282, %v4542
      %v4671 = vadd.f32 %v4283, %v4543
      %v4672 = vadd.f32 %v4284, %v4544
      %v4673 = vadd.f32 %v4285, %v4545
      %v4674 = vadd.f32 %v4286, %v4546
      %v4675 = vadd.f32 %v4287, %v4547
      %v4676 = vadd.f32 %v4288, %v4548
      %v4677 = vadd.f32 %v4289, %v4549
      %v4678 = vadd.f32 %v4290, %v4550
      %v4679 = vadd.f32 %v4291, %v4551
      %v4680 = vadd.f32 %v4292, %v4552
      %v4681 = vadd.f32 %v4293, %v4553
      %v4682 = vadd.f32 %v4294, %v4554
      %v4683 = vadd.f32 %v4295, %v4555
      %v4684 = vadd.f32 %v4296, %v4556
      %v4685 = vadd.f32 %v4297, %v4557
      %v4686 = vadd.f32 %v4298, %v4558
      %v4687 = vadd.f32 %v4299, %v4559
      %v4688 = vadd.f32 %v4300, %v4560
      %v4689 = vadd.f32 %v4301, %v4561
      %v4690 = vadd.f32 %v4302, %v4562
      %v4691 = vadd.f32 %v4303, %v4563
      %v4692 = vadd.f32 %v4304, %v4564
      %v4693 = vadd.f32 %v4305, %v4565
      %v4694 = vadd.f32 %v4306, %v4566
      %v4695 = vadd.f32 %v4307, %v4567
      %v4696 = vadd.f32 %v4308, %v4568
      %v4697 = vadd.f32 %v4309, %v4569
      %v4698 = vadd.f32 %v4310, %v4570
      %v4699 = vadd.f32 %v4311, %v4571
      %v4700 = vadd.f32 %v4312, %v4572
      %v4701 = vadd.f32 %v4313, %v4573
      %v4702 = vadd.f32 %v4314, %v4574
      %v4703 = vadd.f32 %v4315, %v4575
      %v4704 = vadd.f32 %v4316, %v4576
      %v4705 = vadd.f32 %v4317, %v4577
      %v4706 = vadd.f32 %v4318, %v4578
      %v4707 = vadd.f32 %v4319, %v4579
      %v4708 = vadd.f32 %v4320, %v4580
      %v4709 = vadd.f32 %v4321, %v4581
      %v4710 = vadd.f32 %v4322, %v4582
      %v4711 = vadd.f32 %v4323, %v4583
      %v4712 = vadd.f32 %v4324, %v4584
      %v4713 = vadd.f32 %v4325, %v4585
      %v4714 = vadd.f32 %v4326, %v4586
      %v4715 = vadd.f32 %v4327, %v4587
      %v4716 = vadd.f32 %v4328, %v4588
      %v4717 = vadd.f32 %v4329, %v4589
      %v4718 = vadd.f32 %v4330, %v4590
      %v4719 = vadd.f32 %v4331, %v4591
      %v4720 = vadd.f32 %v4332, %v4592
      %v4721 = vadd.f32 %v4333, %v4593
      %v4722 = vadd.f32 %v4334, %v4594
      %v4723 = vadd.f32 %v4335, %v4595
      %v4724 = vadd.f32 %v4336, %v4596
      %v4725 = vadd.f32 %v4337, %v4597
      %v4726 = vadd.f32 %v4338, %v4598
      %v4727 = vadd.f32 %v4339, %v4599
      %v4728 = vadd.f32 %v4340, %v4600
      %v4729 = vadd.f32 %v4341, %v4601
      %v4730 = vadd.f32 %v4342, %v4602
      %v4731 = vadd.f32 %v4343, %v4603
      %v4732 = vadd.f32 %v4344, %v4604
      %v4733 = vadd.f32 %v4345, %v4605
      %v4734 = vadd.f32 %v4346, %v4606
      %v4735 = vadd.f32 %v4347, %v4607
      %v4736 = vadd.f32 %v4348, %v4608
      %v4737 = vadd.f32 %v4349, %v4609
      %v4738 = vadd.f32 %v4350, %v4610
      %v4739 = vadd.f32 %v4351, %v4611
      %v4740 = vadd.f32 %v4352, %v4612
      %v4741 = vadd.f32 %v4353, %v4613
      %v4742 = vadd.f32 %v4354, %v4614
      %v4743 = vadd.f32 %v4355, %v4615
      %v4744 = vadd.f32 %v4356, %v4616
      %v4745 = vadd.f32 %v4357, %v4617
      %v4746 = vadd.f32 %v4358, %v4618
      %v4747 = vadd.f32 %v4359, %v4619
      %v4748 = vadd.f32 %v4360, %v4620
      %v4749 = vadd.f32 %v4361, %v4621
      %v4750 = vadd.f32 %v4362, %v4622
      %v4751 = vadd.f32 %v4363, %v4623
      %v4752 = vadd.f32 %v4364, %v4624
      %v4753 = vadd.f32 %v4365, %v4625
      %v4754 = vadd.f32 %v4366, %v4626
      %v4755 = vadd.f32 %v4367, %v4627
      %v4756 = vadd.f32 %v4368, %v4628
      %v4757 = vld [vmem:[%s3980 + $0x9] sm:$0xff]
      %v4758 = vld [vmem:[%s3980 + $0x11] sm:$0xff]
      %v4759 = vld [vmem:[%s3980 + $0x29] sm:$0xff]
      %v4760 = vld [vmem:[%s3980 + $0x31] sm:$0xff]
      %v4761 = vld [vmem:[%s3980 + $0x49] sm:$0xff]
      %v4762 = vld [vmem:[%s3980 + $0x51] sm:$0xff]
      %v4763 = vld [vmem:[%s3980 + $0x69] sm:$0xff]
      %v4764 = vld [vmem:[%s3980 + $0x71] sm:$0xff]
      %v4765 = vld [vmem:[%s3980 + $0x89] sm:$0xff]
      %v4766 = vld [vmem:[%s3980 + $0x91] sm:$0xff]
      %v4767 = vld [vmem:[%s3980 + $0xa9] sm:$0xff]
      %v4768 = vld [vmem:[%s3980 + $0xb1] sm:$0xff]
      %v4769 = vld [vmem:[%s3980 + $0xc9] sm:$0xff]
      %v4770 = vld [vmem:[%s3980 + $0xd1] sm:$0xff]
      %v4771 = vld [vmem:[%s3980 + $0xe9] sm:$0xff]
      %v4772 = vld [vmem:[%s3980 + $0xf1] sm:$0xff]
      %v4773 = vld [vmem:[%s3980 + $0x109] sm:$0xff]
      %v4774 = vld [vmem:[%s3980 + $0x111] sm:$0xff]
      %v4775 = vld [vmem:[%s3980 + $0x129] sm:$0xff]
      %v4776 = vld [vmem:[%s3980 + $0x131] sm:$0xff]
      %v4777 = vld [vmem:[%s3980 + $0x149] sm:$0xff]
      %v4778 = vld [vmem:[%s3980 + $0x151] sm:$0xff]
      %v4779 = vld [vmem:[%s3980 + $0x169] sm:$0xff]
      %v4780 = vld [vmem:[%s3980 + $0x171] sm:$0xff]
      %v4781 = vld [vmem:[%s3980 + $0x189] sm:$0xff]
      %v4782 = vld [vmem:[%s3980 + $0x191] sm:$0xff]
      %v4783 = vld [vmem:[%s3980 + $0x1a9] sm:$0xff]
      %v4784 = vld [vmem:[%s3980 + $0x1b1] sm:$0xff]
      %v4785 = vld [vmem:[%s3980 + $0x1c9] sm:$0xff]
      %v4786 = vld [vmem:[%s3980 + $0x1d1] sm:$0xff]
      %v4787 = vld [vmem:[%s3980 + $0x1e9] sm:$0xff]
      %v4788 = vld [vmem:[%s3980 + $0x1f1] sm:$0xff]
      %v4789 = vld [vmem:[%s3980 + $0x249] sm:$0xff]
      %v4790 = vld [vmem:[%s3980 + $0x251] sm:$0xff]
      %v4791 = vld [vmem:[%s3980 + $0x269] sm:$0xff]
      %v4792 = vld [vmem:[%s3980 + $0x271] sm:$0xff]
      %v4793 = vld [vmem:[%s3980 + $0x289] sm:$0xff]
      %v4794 = vld [vmem:[%s3980 + $0x291] sm:$0xff]
      %v4795 = vld [vmem:[%s3980 + $0x2a9] sm:$0xff]
      %v4796 = vld [vmem:[%s3980 + $0x2b1] sm:$0xff]
      %v4797 = vld [vmem:[%s3980 + $0x2c9] sm:$0xff]
      %v4798 = vld [vmem:[%s3980 + $0x2d1] sm:$0xff]
      %v4799 = vld [vmem:[%s3980 + $0x2e9] sm:$0xff]
      %v4800 = vld [vmem:[%s3980 + $0x2f1] sm:$0xff]
      %v4801 = vld [vmem:[%s3980 + $0x309] sm:$0xff]
      %v4802 = vld [vmem:[%s3980 + $0x311] sm:$0xff]
      %v4803 = vld [vmem:[%s3980 + $0x329] sm:$0xff]
      %v4804 = vld [vmem:[%s3980 + $0x331] sm:$0xff]
      %v4805 = vld [vmem:[%s3980 + $0x349] sm:$0xff]
      %v4806 = vld [vmem:[%s3980 + $0x351] sm:$0xff]
      %v4807 = vld [vmem:[%s3980 + $0x369] sm:$0xff]
      %v4808 = vld [vmem:[%s3980 + $0x371] sm:$0xff]
      %v4809 = vld [vmem:[%s3980 + $0x389] sm:$0xff]
      %v4810 = vld [vmem:[%s3980 + $0x391] sm:$0xff]
      %v4811 = vld [vmem:[%s3980 + $0x3a9] sm:$0xff]
      %v4812 = vld [vmem:[%s3980 + $0x3b1] sm:$0xff]
      %v4813 = vld [vmem:[%s3980 + $0x3c9] sm:$0xff]
      %v4814 = vld [vmem:[%s3980 + $0x3d1] sm:$0xff]
      %v4815 = vld [vmem:[%s3980 + $0x3e9] sm:$0xff]
      %v4816 = vld [vmem:[%s3980 + $0x3f1] sm:$0xff]
      %v4817 = vld [vmem:[%s3980 + $0x409] sm:$0xff]
      %v4818 = vld [vmem:[%s3980 + $0x411] sm:$0xff]
      %v4819 = vld [vmem:[%s3980 + $0x429] sm:$0xff]
      %v4820 = vld [vmem:[%s3980 + $0x431] sm:$0xff]
      %v4821 = vld [vmem:[%s3980 + $0x489] sm:$0xff]
      %v4822 = vld [vmem:[%s3980 + $0x491] sm:$0xff]
      %v4823 = vld [vmem:[%s3980 + $0x4a9] sm:$0xff]
      %v4824 = vld [vmem:[%s3980 + $0x4b1] sm:$0xff]
      %v4825 = vld [vmem:[%s3980 + $0x4c9] sm:$0xff]
      %v4826 = vld [vmem:[%s3980 + $0x4d1] sm:$0xff]
      %v4827 = vld [vmem:[%s3980 + $0x4e9] sm:$0xff]
      %v4828 = vld [vmem:[%s3980 + $0x4f1] sm:$0xff]
      %v4829 = vld [vmem:[%s3980 + $0x509] sm:$0xff]
      %v4830 = vld [vmem:[%s3980 + $0x511] sm:$0xff]
      %v4831 = vld [vmem:[%s3980 + $0x529] sm:$0xff]
      %v4832 = vld [vmem:[%s3980 + $0x531] sm:$0xff]
      %v4833 = vld [vmem:[%s3980 + $0x549] sm:$0xff]
      %v4834 = vld [vmem:[%s3980 + $0x551] sm:$0xff]
      %v4835 = vld [vmem:[%s3980 + $0x569] sm:$0xff]
      %v4836 = vld [vmem:[%s3980 + $0x571] sm:$0xff]
      %v4837 = vld [vmem:[%s3980 + $0x589] sm:$0xff]
      %v4838 = vld [vmem:[%s3980 + $0x591] sm:$0xff]
      %v4839 = vld [vmem:[%s3980 + $0x5a9] sm:$0xff]
      %v4840 = vld [vmem:[%s3980 + $0x5b1] sm:$0xff]
      %v4841 = vld [vmem:[%s3980 + $0x5c9] sm:$0xff]
      %v4842 = vld [vmem:[%s3980 + $0x5d1] sm:$0xff]
      %v4843 = vld [vmem:[%s3980 + $0x5e9] sm:$0xff]
      %v4844 = vld [vmem:[%s3980 + $0x5f1] sm:$0xff]
      %v4845 = vld [vmem:[%s3980 + $0x609] sm:$0xff]
      %v4846 = vld [vmem:[%s3980 + $0x611] sm:$0xff]
      %v4847 = vld [vmem:[%s3980 + $0x629] sm:$0xff]
      %v4848 = vld [vmem:[%s3980 + $0x631] sm:$0xff]
      %v4849 = vld [vmem:[%s3980 + $0x649] sm:$0xff]
      %v4850 = vld [vmem:[%s3980 + $0x651] sm:$0xff]
      %v4851 = vld [vmem:[%s3980 + $0x669] sm:$0xff]
      %v4852 = vld [vmem:[%s3980 + $0x671] sm:$0xff]
      %v4853 = vld [vmem:[%s3980 + $0x6c9] sm:$0xff]
      %v4854 = vld [vmem:[%s3980 + $0x6d1] sm:$0xff]
      %v4855 = vld [vmem:[%s3980 + $0x6e9] sm:$0xff]
      %v4856 = vld [vmem:[%s3980 + $0x6f1] sm:$0xff]
      %v4857 = vld [vmem:[%s3980 + $0x709] sm:$0xff]
      %v4858 = vld [vmem:[%s3980 + $0x711] sm:$0xff]
      %v4859 = vld [vmem:[%s3980 + $0x729] sm:$0xff]
      %v4860 = vld [vmem:[%s3980 + $0x731] sm:$0xff]
      %v4861 = vld [vmem:[%s3980 + $0x749] sm:$0xff]
      %v4862 = vld [vmem:[%s3980 + $0x751] sm:$0xff]
      %v4863 = vld [vmem:[%s3980 + $0x769] sm:$0xff]
      %v4864 = vld [vmem:[%s3980 + $0x771] sm:$0xff]
      %v4865 = vld [vmem:[%s3980 + $0x789] sm:$0xff]
      %v4866 = vld [vmem:[%s3980 + $0x791] sm:$0xff]
      %v4867 = vld [vmem:[%s3980 + $0x7a9] sm:$0xff]
      %v4868 = vld [vmem:[%s3980 + $0x7b1] sm:$0xff]
      %v4869 = vld [vmem:[%s3980 + $0x7c9] sm:$0xff]
      %v4870 = vld [vmem:[%s3980 + $0x7d1] sm:$0xff]
      %v4871 = vld [vmem:[%s3980 + $0x7e9] sm:$0xff]
      %v4872 = vld [vmem:[%s3980 + $0x7f1] sm:$0xff]
      %v4873 = vld [vmem:[%s3980 + $0x809] sm:$0xff]
      %v4874 = vld [vmem:[%s3980 + $0x811] sm:$0xff]
      %v4875 = vld [vmem:[%s3980 + $0x829] sm:$0xff]
      %v4876 = vld [vmem:[%s3980 + $0x831] sm:$0xff]
      %v4877 = vld [vmem:[%s3980 + $0x849] sm:$0xff]
      %v4878 = vld [vmem:[%s3980 + $0x851] sm:$0xff]
      %v4879 = vld [vmem:[%s3980 + $0x869] sm:$0xff]
      %v4880 = vld [vmem:[%s3980 + $0x871] sm:$0xff]
      %v4881 = vld [vmem:[%s3980 + $0x889] sm:$0xff]
      %v4882 = vld [vmem:[%s3980 + $0x891] sm:$0xff]
      %v4883 = vld [vmem:[%s3980 + $0x8a9] sm:$0xff]
      %v4884 = vld [vmem:[%s3980 + $0x8b1] sm:$0xff]
      %v4885 = vlaneseq
      %v4886 = vshrl.u32 %v4885, 7
      %v4887 = vsub.s32 0, %v4886
      %v4888 = vrot.slane %v1779, %v4887
      %v4889 = vmul.f32 %v4757, %v4888
      %v4890 = vmul.f32 %v4758, %v4888
      %v4891 = vmul.f32 %v4759, %v4888
      %v4892 = vmul.f32 %v4760, %v4888
      %v4893 = vmul.f32 %v4761, %v4888
      %v4894 = vmul.f32 %v4762, %v4888
      %v4895 = vmul.f32 %v4763, %v4888
      %v4896 = vmul.f32 %v4764, %v4888
      %v4897 = vmul.f32 %v4765, %v4888
      %v4898 = vmul.f32 %v4766, %v4888
      %v4899 = vmul.f32 %v4767, %v4888
      %v4900 = vmul.f32 %v4768, %v4888
      %v4901 = vmul.f32 %v4769, %v4888
      %v4902 = vmul.f32 %v4770, %v4888
      %v4903 = vmul.f32 %v4771, %v4888
      %v4904 = vmul.f32 %v4772, %v4888
      %v4905 = vmul.f32 %v4773, %v4888
      %v4906 = vmul.f32 %v4774, %v4888
      %v4907 = vmul.f32 %v4775, %v4888
      %v4908 = vmul.f32 %v4776, %v4888
      %v4909 = vmul.f32 %v4777, %v4888
      %v4910 = vmul.f32 %v4778, %v4888
      %v4911 = vmul.f32 %v4779, %v4888
      %v4912 = vmul.f32 %v4780, %v4888
      %v4913 = vmul.f32 %v4781, %v4888
      %v4914 = vmul.f32 %v4782, %v4888
      %v4915 = vmul.f32 %v4783, %v4888
      %v4916 = vmul.f32 %v4784, %v4888
      %v4917 = vmul.f32 %v4785, %v4888
      %v4918 = vmul.f32 %v4786, %v4888
      %v4919 = vmul.f32 %v4787, %v4888
      %v4920 = vmul.f32 %v4788, %v4888
      %v4921 = vmul.f32 %v4789, %v4888
      %v4922 = vmul.f32 %v4790, %v4888
      %v4923 = vmul.f32 %v4791, %v4888
      %v4924 = vmul.f32 %v4792, %v4888
      %v4925 = vmul.f32 %v4793, %v4888
      %v4926 = vmul.f32 %v4794, %v4888
      %v4927 = vmul.f32 %v4795, %v4888
      %v4928 = vmul.f32 %v4796, %v4888
      %v4929 = vmul.f32 %v4797, %v4888
      %v4930 = vmul.f32 %v4798, %v4888
      %v4931 = vmul.f32 %v4799, %v4888
      %v4932 = vmul.f32 %v4800, %v4888
      %v4933 = vmul.f32 %v4801, %v4888
      %v4934 = vmul.f32 %v4802, %v4888
      %v4935 = vmul.f32 %v4803, %v4888
      %v4936 = vmul.f32 %v4804, %v4888
      %v4937 = vmul.f32 %v4805, %v4888
      %v4938 = vmul.f32 %v4806, %v4888
      %v4939 = vmul.f32 %v4807, %v4888
      %v4940 = vmul.f32 %v4808, %v4888
      %v4941 = vmul.f32 %v4809, %v4888
      %v4942 = vmul.f32 %v4810, %v4888
      %v4943 = vmul.f32 %v4811, %v4888
      %v4944 = vmul.f32 %v4812, %v4888
      %v4945 = vmul.f32 %v4813, %v4888
      %v4946 = vmul.f32 %v4814, %v4888
      %v4947 = vmul.f32 %v4815, %v4888
      %v4948 = vmul.f32 %v4816, %v4888
      %v4949 = vmul.f32 %v4817, %v4888
      %v4950 = vmul.f32 %v4818, %v4888
      %v4951 = vmul.f32 %v4819, %v4888
      %v4952 = vmul.f32 %v4820, %v4888
      %v4953 = vmul.f32 %v4821, %v4888
      %v4954 = vmul.f32 %v4822, %v4888
      %v4955 = vmul.f32 %v4823, %v4888
      %v4956 = vmul.f32 %v4824, %v4888
      %v4957 = vmul.f32 %v4825, %v4888
      %v4958 = vmul.f32 %v4826, %v4888
      %v4959 = vmul.f32 %v4827, %v4888
      %v4960 = vmul.f32 %v4828, %v4888
      %v4961 = vmul.f32 %v4829, %v4888
      %v4962 = vmul.f32 %v4830, %v4888
      %v4963 = vmul.f32 %v4831, %v4888
      %v4964 = vmul.f32 %v4832, %v4888
      %v4965 = vmul.f32 %v4833, %v4888
      %v4966 = vmul.f32 %v4834, %v4888
      %v4967 = vmul.f32 %v4835, %v4888
      %v4968 = vmul.f32 %v4836, %v4888
      %v4969 = vmul.f32 %v4837, %v4888
      %v4970 = vmul.f32 %v4838, %v4888
      %v4971 = vmul.f32 %v4839, %v4888
      %v4972 = vmul.f32 %v4840, %v4888
      %v4973 = vmul.f32 %v4841, %v4888
      %v4974 = vmul.f32 %v4842, %v4888
      %v4975 = vmul.f32 %v4843, %v4888
      %v4976 = vmul.f32 %v4844, %v4888
      %v4977 = vmul.f32 %v4845, %v4888
      %v4978 = vmul.f32 %v4846, %v4888
      %v4979 = vmul.f32 %v4847, %v4888
      %v4980 = vmul.f32 %v4848, %v4888
      %v4981 = vmul.f32 %v4849, %v4888
      %v4982 = vmul.f32 %v4850, %v4888
      %v4983 = vmul.f32 %v4851, %v4888
      %v4984 = vmul.f32 %v4852, %v4888
      %v4985 = vmul.f32 %v4853, %v4888
      %v4986 = vmul.f32 %v4854, %v4888
      %v4987 = vmul.f32 %v4855, %v4888
      %v4988 = vmul.f32 %v4856, %v4888
      %v4989 = vmul.f32 %v4857, %v4888
      %v4990 = vmul.f32 %v4858, %v4888
      %v4991 = vmul.f32 %v4859, %v4888
      %v4992 = vmul.f32 %v4860, %v4888
      %v4993 = vmul.f32 %v4861, %v4888
      %v4994 = vmul.f32 %v4862, %v4888
      %v4995 = vmul.f32 %v4863, %v4888
      %v4996 = vmul.f32 %v4864, %v4888
      %v4997 = vmul.f32 %v4865, %v4888
      %v4998 = vmul.f32 %v4866, %v4888
      %v4999 = vmul.f32 %v4867, %v4888
      %v5000 = vmul.f32 %v4868, %v4888
      %v5001 = vmul.f32 %v4869, %v4888
      %v5002 = vmul.f32 %v4870, %v4888
      %v5003 = vmul.f32 %v4871, %v4888
      %v5004 = vmul.f32 %v4872, %v4888
      %v5005 = vmul.f32 %v4873, %v4888
      %v5006 = vmul.f32 %v4874, %v4888
      %v5007 = vmul.f32 %v4875, %v4888
      %v5008 = vmul.f32 %v4876, %v4888
      %v5009 = vmul.f32 %v4877, %v4888
      %v5010 = vmul.f32 %v4878, %v4888
      %v5011 = vmul.f32 %v4879, %v4888
      %v5012 = vmul.f32 %v4880, %v4888
      %v5013 = vmul.f32 %v4881, %v4888
      %v5014 = vmul.f32 %v4882, %v4888
      %v5015 = vmul.f32 %v4883, %v4888
      %v5016 = vmul.f32 %v4884, %v4888
      %v5017 = vadd.f32 %v4629, %v4889
      %v5018 = vadd.f32 %v4630, %v4890
      %v5019 = vadd.f32 %v4631, %v4891
      %v5020 = vadd.f32 %v4632, %v4892
      %v5021 = vadd.f32 %v4633, %v4893
      %v5022 = vadd.f32 %v4634, %v4894
      %v5023 = vadd.f32 %v4635, %v4895
      %v5024 = vadd.f32 %v4636, %v4896
      %v5025 = vadd.f32 %v4637, %v4897
      %v5026 = vadd.f32 %v4638, %v4898
      %v5027 = vadd.f32 %v4639, %v4899
      %v5028 = vadd.f32 %v4640, %v4900
      %v5029 = vadd.f32 %v4641, %v4901
      %v5030 = vadd.f32 %v4642, %v4902
      %v5031 = vadd.f32 %v4643, %v4903
      %v5032 = vadd.f32 %v4644, %v4904
      %v5033 = vadd.f32 %v4645, %v4905
      %v5034 = vadd.f32 %v4646, %v4906
      %v5035 = vadd.f32 %v4647, %v4907
      %v5036 = vadd.f32 %v4648, %v4908
      %v5037 = vadd.f32 %v4649, %v4909
      %v5038 = vadd.f32 %v4650, %v4910
      %v5039 = vadd.f32 %v4651, %v4911
      %v5040 = vadd.f32 %v4652, %v4912
      %v5041 = vadd.f32 %v4653, %v4913
      %v5042 = vadd.f32 %v4654, %v4914
      %v5043 = vadd.f32 %v4655, %v4915
      %v5044 = vadd.f32 %v4656, %v4916
      %v5045 = vadd.f32 %v4657, %v4917
      %v5046 = vadd.f32 %v4658, %v4918
      %v5047 = vadd.f32 %v4659, %v4919
      %v5048 = vadd.f32 %v4660, %v4920
      %v5049 = vadd.f32 %v4661, %v4921
      %v5050 = vadd.f32 %v4662, %v4922
      %v5051 = vadd.f32 %v4663, %v4923
      %v5052 = vadd.f32 %v4664, %v4924
      %v5053 = vadd.f32 %v4665, %v4925
      %v5054 = vadd.f32 %v4666, %v4926
      %v5055 = vadd.f32 %v4667, %v4927
      %v5056 = vadd.f32 %v4668, %v4928
      %v5057 = vadd.f32 %v4669, %v4929
      %v5058 = vadd.f32 %v4670, %v4930
      %v5059 = vadd.f32 %v4671, %v4931
      %v5060 = vadd.f32 %v4672, %v4932
      %v5061 = vadd.f32 %v4673, %v4933
      %v5062 = vadd.f32 %v4674, %v4934
      %v5063 = vadd.f32 %v4675, %v4935
      %v5064 = vadd.f32 %v4676, %v4936
      %v5065 = vadd.f32 %v4677, %v4937
      %v5066 = vadd.f32 %v4678, %v4938
      %v5067 = vadd.f32 %v4679, %v4939
      %v5068 = vadd.f32 %v4680, %v4940
      %v5069 = vadd.f32 %v4681, %v4941
      %v5070 = vadd.f32 %v4682, %v4942
      %v5071 = vadd.f32 %v4683, %v4943
      %v5072 = vadd.f32 %v4684, %v4944
      %v5073 = vadd.f32 %v4685, %v4945
      %v5074 = vadd.f32 %v4686, %v4946
      %v5075 = vadd.f32 %v4687, %v4947
      %v5076 = vadd.f32 %v4688, %v4948
      %v5077 = vadd.f32 %v4689, %v4949
      %v5078 = vadd.f32 %v4690, %v4950
      %v5079 = vadd.f32 %v4691, %v4951
      %v5080 = vadd.f32 %v4692, %v4952
      %v5081 = vadd.f32 %v4693, %v4953
      %v5082 = vadd.f32 %v4694, %v4954
      %v5083 = vadd.f32 %v4695, %v4955
      %v5084 = vadd.f32 %v4696, %v4956
      %v5085 = vadd.f32 %v4697, %v4957
      %v5086 = vadd.f32 %v4698, %v4958
      %v5087 = vadd.f32 %v4699, %v4959
      %v5088 = vadd.f32 %v4700, %v4960
      %v5089 = vadd.f32 %v4701, %v4961
      %v5090 = vadd.f32 %v4702, %v4962
      %v5091 = vadd.f32 %v4703, %v4963
      %v5092 = vadd.f32 %v4704, %v4964
      %v5093 = vadd.f32 %v4705, %v4965
      %v5094 = vadd.f32 %v4706, %v4966
      %v5095 = vadd.f32 %v4707, %v4967
      %v5096 = vadd.f32 %v4708, %v4968
      %v5097 = vadd.f32 %v4709, %v4969
      %v5098 = vadd.f32 %v4710, %v4970
      %v5099 = vadd.f32 %v4711, %v4971
      %v5100 = vadd.f32 %v4712, %v4972
      %v5101 = vadd.f32 %v4713, %v4973
      %v5102 = vadd.f32 %v4714, %v4974
      %v5103 = vadd.f32 %v4715, %v4975
      %v5104 = vadd.f32 %v4716, %v4976
      %v5105 = vadd.f32 %v4717, %v4977
      %v5106 = vadd.f32 %v4718, %v4978
      %v5107 = vadd.f32 %v4719, %v4979
      %v5108 = vadd.f32 %v4720, %v4980
      %v5109 = vadd.f32 %v4721, %v4981
      %v5110 = vadd.f32 %v4722, %v4982
      %v5111 = vadd.f32 %v4723, %v4983
      %v5112 = vadd.f32 %v4724, %v4984
      %v5113 = vadd.f32 %v4725, %v4985
      %v5114 = vadd.f32 %v4726, %v4986
      %v5115 = vadd.f32 %v4727, %v4987
      %v5116 = vadd.f32 %v4728, %v4988
      %v5117 = vadd.f32 %v4729, %v4989
      %v5118 = vadd.f32 %v4730, %v4990
      %v5119 = vadd.f32 %v4731, %v4991
      %v5120 = vadd.f32 %v4732, %v4992
      %v5121 = vadd.f32 %v4733, %v4993
      %v5122 = vadd.f32 %v4734, %v4994
      %v5123 = vadd.f32 %v4735, %v4995
      %v5124 = vadd.f32 %v4736, %v4996
      %v5125 = vadd.f32 %v4737, %v4997
      %v5126 = vadd.f32 %v4738, %v4998
      %v5127 = vadd.f32 %v4739, %v4999
      %v5128 = vadd.f32 %v4740, %v5000
      %v5129 = vadd.f32 %v4741, %v5001
      %v5130 = vadd.f32 %v4742, %v5002
      %v5131 = vadd.f32 %v4743, %v5003
      %v5132 = vadd.f32 %v4744, %v5004
      %v5133 = vadd.f32 %v4745, %v5005
      %v5134 = vadd.f32 %v4746, %v5006
      %v5135 = vadd.f32 %v4747, %v5007
      %v5136 = vadd.f32 %v4748, %v5008
      %v5137 = vadd.f32 %v4749, %v5009
      %v5138 = vadd.f32 %v4750, %v5010
      %v5139 = vadd.f32 %v4751, %v5011
      %v5140 = vadd.f32 %v4752, %v5012
      %v5141 = vadd.f32 %v4753, %v5013
      %v5142 = vadd.f32 %v4754, %v5014
      %v5143 = vadd.f32 %v4755, %v5015
      %v5144 = vadd.f32 %v4756, %v5016
      %v5145 = vld [vmem:[%s4 + $0x1] sm:$0x1]
      %v5146 = vlaneseq
      %v5147 = vshrl.u32 %v5146, 7
      %v5148 = vsub.s32 0, %v5147
      %v5149 = vrot.slane %v5145, %v5148
      %v5150 = vadd.f32 %v5017, %v5149
      %v5151 = vadd.f32 %v5018, %v5149
      %v5152 = vadd.f32 %v5019, %v5149
      %v5153 = vadd.f32 %v5020, %v5149
      %v5154 = vadd.f32 %v5021, %v5149
      %v5155 = vadd.f32 %v5022, %v5149
      %v5156 = vadd.f32 %v5023, %v5149
      %v5157 = vadd.f32 %v5024, %v5149
      %v5158 = vadd.f32 %v5025, %v5149
      %v5159 = vadd.f32 %v5026, %v5149
      %v5160 = vadd.f32 %v5027, %v5149
      %v5161 = vadd.f32 %v5028, %v5149
      %v5162 = vadd.f32 %v5029, %v5149
      %v5163 = vadd.f32 %v5030, %v5149
      %v5164 = vadd.f32 %v5031, %v5149
      %v5165 = vadd.f32 %v5032, %v5149
      %v5166 = vadd.f32 %v5033, %v5149
      %v5167 = vadd.f32 %v5034, %v5149
      %v5168 = vadd.f32 %v5035, %v5149
      %v5169 = vadd.f32 %v5036, %v5149
      %v5170 = vadd.f32 %v5037, %v5149
      %v5171 = vadd.f32 %v5038, %v5149
      %v5172 = vadd.f32 %v5039, %v5149
      %v5173 = vadd.f32 %v5040, %v5149
      %v5174 = vadd.f32 %v5041, %v5149
      %v5175 = vadd.f32 %v5042, %v5149
      %v5176 = vadd.f32 %v5043, %v5149
      %v5177 = vadd.f32 %v5044, %v5149
      %v5178 = vadd.f32 %v5045, %v5149
      %v5179 = vadd.f32 %v5046, %v5149
      %v5180 = vadd.f32 %v5047, %v5149
      %v5181 = vadd.f32 %v5048, %v5149
      %v5182 = vadd.f32 %v5049, %v5149
      %v5183 = vadd.f32 %v5050, %v5149
      %v5184 = vadd.f32 %v5051, %v5149
      %v5185 = vadd.f32 %v5052, %v5149
      %v5186 = vadd.f32 %v5053, %v5149
      %v5187 = vadd.f32 %v5054, %v5149
      %v5188 = vadd.f32 %v5055, %v5149
      %v5189 = vadd.f32 %v5056, %v5149
      %v5190 = vadd.f32 %v5057, %v5149
      %v5191 = vadd.f32 %v5058, %v5149
      %v5192 = vadd.f32 %v5059, %v5149
      %v5193 = vadd.f32 %v5060, %v5149
      %v5194 = vadd.f32 %v5061, %v5149
      %v5195 = vadd.f32 %v5062, %v5149
      %v5196 = vadd.f32 %v5063, %v5149
      %v5197 = vadd.f32 %v5064, %v5149
      %v5198 = vadd.f32 %v5065, %v5149
      %v5199 = vadd.f32 %v5066, %v5149
      %v5200 = vadd.f32 %v5067, %v5149
      %v5201 = vadd.f32 %v5068, %v5149
      %v5202 = vadd.f32 %v5069, %v5149
      %v5203 = vadd.f32 %v5070, %v5149
      %v5204 = vadd.f32 %v5071, %v5149
      %v5205 = vadd.f32 %v5072, %v5149
      %v5206 = vadd.f32 %v5073, %v5149
      %v5207 = vadd.f32 %v5074, %v5149
      %v5208 = vadd.f32 %v5075, %v5149
      %v5209 = vadd.f32 %v5076, %v5149
      %v5210 = vadd.f32 %v5077, %v5149
      %v5211 = vadd.f32 %v5078, %v5149
      %v5212 = vadd.f32 %v5079, %v5149
      %v5213 = vadd.f32 %v5080, %v5149
      %v5214 = vadd.f32 %v5081, %v5149
      %v5215 = vadd.f32 %v5082, %v5149
      %v5216 = vadd.f32 %v5083, %v5149
      %v5217 = vadd.f32 %v5084, %v5149
      %v5218 = vadd.f32 %v5085, %v5149
      %v5219 = vadd.f32 %v5086, %v5149
      %v5220 = vadd.f32 %v5087, %v5149
      %v5221 = vadd.f32 %v5088, %v5149
      %v5222 = vadd.f32 %v5089, %v5149
      %v5223 = vadd.f32 %v5090, %v5149
      %v5224 = vadd.f32 %v5091, %v5149
      %v5225 = vadd.f32 %v5092, %v5149
      %v5226 = vadd.f32 %v5093, %v5149
      %v5227 = vadd.f32 %v5094, %v5149
      %v5228 = vadd.f32 %v5095, %v5149
      %v5229 = vadd.f32 %v5096, %v5149
      %v5230 = vadd.f32 %v5097, %v5149
      %v5231 = vadd.f32 %v5098, %v5149
      %v5232 = vadd.f32 %v5099, %v5149
      %v5233 = vadd.f32 %v5100, %v5149
      %v5234 = vadd.f32 %v5101, %v5149
      %v5235 = vadd.f32 %v5102, %v5149
      %v5236 = vadd.f32 %v5103, %v5149
      %v5237 = vadd.f32 %v5104, %v5149
      %v5238 = vadd.f32 %v5105, %v5149
      %v5239 = vadd.f32 %v5106, %v5149
      %v5240 = vadd.f32 %v5107, %v5149
      %v5241 = vadd.f32 %v5108, %v5149
      %v5242 = vadd.f32 %v5109, %v5149
      %v5243 = vadd.f32 %v5110, %v5149
      %v5244 = vadd.f32 %v5111, %v5149
      %v5245 = vadd.f32 %v5112, %v5149
      %v5246 = vadd.f32 %v5113, %v5149
      %v5247 = vadd.f32 %v5114, %v5149
      %v5248 = vadd.f32 %v5115, %v5149
      %v5249 = vadd.f32 %v5116, %v5149
      %v5250 = vadd.f32 %v5117, %v5149
      %v5251 = vadd.f32 %v5118, %v5149
      %v5252 = vadd.f32 %v5119, %v5149
      %v5253 = vadd.f32 %v5120, %v5149
      %v5254 = vadd.f32 %v5121, %v5149
      %v5255 = vadd.f32 %v5122, %v5149
      %v5256 = vadd.f32 %v5123, %v5149
      %v5257 = vadd.f32 %v5124, %v5149
      %v5258 = vadd.f32 %v5125, %v5149
      %v5259 = vadd.f32 %v5126, %v5149
      %v5260 = vadd.f32 %v5127, %v5149
      %v5261 = vadd.f32 %v5128, %v5149
      %v5262 = vadd.f32 %v5129, %v5149
      %v5263 = vadd.f32 %v5130, %v5149
      %v5264 = vadd.f32 %v5131, %v5149
      %v5265 = vadd.f32 %v5132, %v5149
      %v5266 = vadd.f32 %v5133, %v5149
      %v5267 = vadd.f32 %v5134, %v5149
      %v5268 = vadd.f32 %v5135, %v5149
      %v5269 = vadd.f32 %v5136, %v5149
      %v5270 = vadd.f32 %v5137, %v5149
      %v5271 = vadd.f32 %v5138, %v5149
      %v5272 = vadd.f32 %v5139, %v5149
      %v5273 = vadd.f32 %v5140, %v5149
      %v5274 = vadd.f32 %v5141, %v5149
      %v5275 = vadd.f32 %v5142, %v5149
      %v5276 = vadd.f32 %v5143, %v5149
      %v5277 = vadd.f32 %v5144, %v5149
      %v5278 = vmax.f32 %v5150, 0.0
      %v5279 = vmax.f32 %v5151, 0.0
      %v5280 = vmax.f32 %v5152, 0.0
      %v5281 = vmax.f32 %v5153, 0.0
      %v5282 = vmax.f32 %v5154, 0.0
      %v5283 = vmax.f32 %v5155, 0.0
      %v5284 = vmax.f32 %v5156, 0.0
      %v5285 = vmax.f32 %v5157, 0.0
      %v5286 = vmax.f32 %v5158, 0.0
      %v5287 = vmax.f32 %v5159, 0.0
      %v5288 = vmax.f32 %v5160, 0.0
      %v5289 = vmax.f32 %v5161, 0.0
      %v5290 = vmax.f32 %v5162, 0.0
      %v5291 = vmax.f32 %v5163, 0.0
      %v5292 = vmax.f32 %v5164, 0.0
      %v5293 = vmax.f32 %v5165, 0.0
      %v5294 = vmax.f32 %v5166, 0.0
      %v5295 = vmax.f32 %v5167, 0.0
      %v5296 = vmax.f32 %v5168, 0.0
      %v5297 = vmax.f32 %v5169, 0.0
      %v5298 = vmax.f32 %v5170, 0.0
      %v5299 = vmax.f32 %v5171, 0.0
      %v5300 = vmax.f32 %v5172, 0.0
      %v5301 = vmax.f32 %v5173, 0.0
      %v5302 = vmax.f32 %v5174, 0.0
      %v5303 = vmax.f32 %v5175, 0.0
      %v5304 = vmax.f32 %v5176, 0.0
      %v5305 = vmax.f32 %v5177, 0.0
      %v5306 = vmax.f32 %v5178, 0.0
      %v5307 = vmax.f32 %v5179, 0.0
      %v5308 = vmax.f32 %v5180, 0.0
      %v5309 = vmax.f32 %v5181, 0.0
      %v5310 = vmax.f32 %v5182, 0.0
      %v5311 = vmax.f32 %v5183, 0.0
      %v5312 = vmax.f32 %v5184, 0.0
      %v5313 = vmax.f32 %v5185, 0.0
      %v5314 = vmax.f32 %v5186, 0.0
      %v5315 = vmax.f32 %v5187, 0.0
      %v5316 = vmax.f32 %v5188, 0.0
      %v5317 = vmax.f32 %v5189, 0.0
      %v5318 = vmax.f32 %v5190, 0.0
      %v5319 = vmax.f32 %v5191, 0.0
      %v5320 = vmax.f32 %v5192, 0.0
      %v5321 = vmax.f32 %v5193, 0.0
      %v5322 = vmax.f32 %v5194, 0.0
      %v5323 = vmax.f32 %v5195, 0.0
      %v5324 = vmax.f32 %v5196, 0.0
      %v5325 = vmax.f32 %v5197, 0.0
      %v5326 = vmax.f32 %v5198, 0.0
      %v5327 = vmax.f32 %v5199, 0.0
      %v5328 = vmax.f32 %v5200, 0.0
      %v5329 = vmax.f32 %v5201, 0.0
      %v5330 = vmax.f32 %v5202, 0.0
      %v5331 = vmax.f32 %v5203, 0.0
      %v5332 = vmax.f32 %v5204, 0.0
      %v5333 = vmax.f32 %v5205, 0.0
      %v5334 = vmax.f32 %v5206, 0.0
      %v5335 = vmax.f32 %v5207, 0.0
      %v5336 = vmax.f32 %v5208, 0.0
      %v5337 = vmax.f32 %v5209, 0.0
      %v5338 = vmax.f32 %v5210, 0.0
      %v5339 = vmax.f32 %v5211, 0.0
      %v5340 = vmax.f32 %v5212, 0.0
      %v5341 = vmax.f32 %v5213, 0.0
      %v5342 = vmax.f32 %v5214, 0.0
      %v5343 = vmax.f32 %v5215, 0.0
      %v5344 = vmax.f32 %v5216, 0.0
      %v5345 = vmax.f32 %v5217, 0.0
      %v5346 = vmax.f32 %v5218, 0.0
      %v5347 = vmax.f32 %v5219, 0.0
      %v5348 = vmax.f32 %v5220, 0.0
      %v5349 = vmax.f32 %v5221, 0.0
      %v5350 = vmax.f32 %v5222, 0.0
      %v5351 = vmax.f32 %v5223, 0.0
      %v5352 = vmax.f32 %v5224, 0.0
      %v5353 = vmax.f32 %v5225, 0.0
      %v5354 = vmax.f32 %v5226, 0.0
      %v5355 = vmax.f32 %v5227, 0.0
      %v5356 = vmax.f32 %v5228, 0.0
      %v5357 = vmax.f32 %v5229, 0.0
      %v5358 = vmax.f32 %v5230, 0.0
      %v5359 = vmax.f32 %v5231, 0.0
      %v5360 = vmax.f32 %v5232, 0.0
      %v5361 = vmax.f32 %v5233, 0.0
      %v5362 = vmax.f32 %v5234, 0.0
      %v5363 = vmax.f32 %v5235, 0.0
      %v5364 = vmax.f32 %v5236, 0.0
      %v5365 = vmax.f32 %v5237, 0.0
      %v5366 = vmax.f32 %v5238, 0.0
      %v5367 = vmax.f32 %v5239, 0.0
      %v5368 = vmax.f32 %v5240, 0.0
      %v5369 = vmax.f32 %v5241, 0.0
      %v5370 = vmax.f32 %v5242, 0.0
      %v5371 = vmax.f32 %v5243, 0.0
      %v5372 = vmax.f32 %v5244, 0.0
      %v5373 = vmax.f32 %v5245, 0.0
      %v5374 = vmax.f32 %v5246, 0.0
      %v5375 = vmax.f32 %v5247, 0.0
      %v5376 = vmax.f32 %v5248, 0.0
      %v5377 = vmax.f32 %v5249, 0.0
      %v5378 = vmax.f32 %v5250, 0.0
      %v5379 = vmax.f32 %v5251, 0.0
      %v5380 = vmax.f32 %v5252, 0.0
      %v5381 = vmax.f32 %v5253, 0.0
      %v5382 = vmax.f32 %v5254, 0.0
      %v5383 = vmax.f32 %v5255, 0.0
      %v5384 = vmax.f32 %v5256, 0.0
      %v5385 = vmax.f32 %v5257, 0.0
      %v5386 = vmax.f32 %v5258, 0.0
      %v5387 = vmax.f32 %v5259, 0.0
      %v5388 = vmax.f32 %v5260, 0.0
      %v5389 = vmax.f32 %v5261, 0.0
      %v5390 = vmax.f32 %v5262, 0.0
      %v5391 = vmax.f32 %v5263, 0.0
      %v5392 = vmax.f32 %v5264, 0.0
      %v5393 = vmax.f32 %v5265, 0.0
      %v5394 = vmax.f32 %v5266, 0.0
      %v5395 = vmax.f32 %v5267, 0.0
      %v5396 = vmax.f32 %v5268, 0.0
      %v5397 = vmax.f32 %v5269, 0.0
      %v5398 = vmax.f32 %v5270, 0.0
      %v5399 = vmax.f32 %v5271, 0.0
      %v5400 = vmax.f32 %v5272, 0.0
      %v5401 = vmax.f32 %v5273, 0.0
      %v5402 = vmax.f32 %v5274, 0.0
      %v5403 = vmax.f32 %v5275, 0.0
      %v5404 = vmax.f32 %v5276, 0.0
      %v5405 = vmax.f32 %v5277, 0.0
      %v5406 = vpack.c.bf16 %v5279, %v5278
      %v5407 = vpack.c.bf16 %v5281, %v5280
      %v5408 = vpack.c.bf16 %v5283, %v5282
      %v5409 = vpack.c.bf16 %v5285, %v5284
      %v5410 = vpack.c.bf16 %v5287, %v5286
      %v5411 = vpack.c.bf16 %v5289, %v5288
      %v5412 = vpack.c.bf16 %v5291, %v5290
      %v5413 = vpack.c.bf16 %v5293, %v5292
      %v5414 = vpack.c.bf16 %v5295, %v5294
      %v5415 = vpack.c.bf16 %v5297, %v5296
      %v5416 = vpack.c.bf16 %v5299, %v5298
      %v5417 = vpack.c.bf16 %v5301, %v5300
      %v5418 = vpack.c.bf16 %v5303, %v5302
      %v5419 = vpack.c.bf16 %v5305, %v5304
      %v5420 = vpack.c.bf16 %v5307, %v5306
      %v5421 = vpack.c.bf16 %v5309, %v5308
      %v5422 = vpack.c.bf16 %v5311, %v5310
      %v5423 = vpack.c.bf16 %v5313, %v5312
      %v5424 = vpack.c.bf16 %v5315, %v5314
      %v5425 = vpack.c.bf16 %v5317, %v5316
      %v5426 = vpack.c.bf16 %v5319, %v5318
      %v5427 = vpack.c.bf16 %v5321, %v5320
      %v5428 = vpack.c.bf16 %v5323, %v5322
      %v5429 = vpack.c.bf16 %v5325, %v5324
      %v5430 = vpack.c.bf16 %v5327, %v5326
      %v5431 = vpack.c.bf16 %v5329, %v5328
      %v5432 = vpack.c.bf16 %v5331, %v5330
      %v5433 = vpack.c.bf16 %v5333, %v5332
      %v5434 = vpack.c.bf16 %v5335, %v5334
      %v5435 = vpack.c.bf16 %v5337, %v5336
      %v5436 = vpack.c.bf16 %v5339, %v5338
      %v5437 = vpack.c.bf16 %v5341, %v5340
      %v5438 = vpack.c.bf16 %v5343, %v5342
      %v5439 = vpack.c.bf16 %v5345, %v5344
      %v5440 = vpack.c.bf16 %v5347, %v5346
      %v5441 = vpack.c.bf16 %v5349, %v5348
      %v5442 = vpack.c.bf16 %v5351, %v5350
      %v5443 = vpack.c.bf16 %v5353, %v5352
      %v5444 = vpack.c.bf16 %v5355, %v5354
      %v5445 = vpack.c.bf16 %v5357, %v5356
      %v5446 = vpack.c.bf16 %v5359, %v5358
      %v5447 = vpack.c.bf16 %v5361, %v5360
      %v5448 = vpack.c.bf16 %v5363, %v5362
      %v5449 = vpack.c.bf16 %v5365, %v5364
      %v5450 = vpack.c.bf16 %v5367, %v5366
      %v5451 = vpack.c.bf16 %v5369, %v5368
      %v5452 = vpack.c.bf16 %v5371, %v5370
      %v5453 = vpack.c.bf16 %v5373, %v5372
      %v5454 = vpack.c.bf16 %v5375, %v5374
      %v5455 = vpack.c.bf16 %v5377, %v5376
      %v5456 = vpack.c.bf16 %v5379, %v5378
      %v5457 = vpack.c.bf16 %v5381, %v5380
      %v5458 = vpack.c.bf16 %v5383, %v5382
      %v5459 = vpack.c.bf16 %v5385, %v5384
      %v5460 = vpack.c.bf16 %v5387, %v5386
      %v5461 = vpack.c.bf16 %v5389, %v5388
      %v5462 = vpack.c.bf16 %v5391, %v5390
      %v5463 = vpack.c.bf16 %v5393, %v5392
      %v5464 = vpack.c.bf16 %v5395, %v5394
      %v5465 = vpack.c.bf16 %v5397, %v5396
      %v5466 = vpack.c.bf16 %v5399, %v5398
      %v5467 = vpack.c.bf16 %v5401, %v5400
      %v5468 = vpack.c.bf16 %v5403, %v5402
      %v5469 = vpack.c.bf16 %v5405, %v5404
      %v5470 = vld [vmem:[%s3] sm:$0xf]
      %v5471 = vld [vmem:[%s3 + $0x4] sm:$0xf]
      %v5472 = vld [vmem:[%s3 + $0x8] sm:$0xf]
      %v5473 = vld [vmem:[%s3 + $0xc] sm:$0xf]
      %v5474 = vld [vmem:[%s3 + $0x10] sm:$0xf]
      %v5475 = vld [vmem:[%s3 + $0x14] sm:$0xf]
      %v5476 = vld [vmem:[%s3 + $0x18] sm:$0xf]
      %v5477 = vld [vmem:[%s3 + $0x1c] sm:$0xf]
      %v5478 = vld [vmem:[%s3 + $0x20] sm:$0xf]
      %v5479 = vld [vmem:[%s3 + $0x24] sm:$0xf]
      %v5480 = vld [vmem:[%s3 + $0x28] sm:$0xf]
      %v5481 = vld [vmem:[%s3 + $0x2c] sm:$0xf]
      %v5482 = vld [vmem:[%s3 + $0x30] sm:$0xf]
      %v5483 = vld [vmem:[%s3 + $0x34] sm:$0xf]
      %v5484 = vld [vmem:[%s3 + $0x38] sm:$0xf]
      %v5485 = vld [vmem:[%s3 + $0x3c] sm:$0xf]
      %v5486 = vld [vmem:[%s4 + $0x2] sm:$0x1]
      %v5487 = vlaneseq
      %v5488 = vshrl.u32 %v5487, 7
      %v5489 = vsub.s32 0, %v5488
      %v5490 = vrot.slane %v5486, %v5489
      %v5507 = vunpack.c.l.b16 %v5470
      %v5508 = vunpack.c.l.b16 %v5471
      %v5509 = vunpack.c.l.b16 %v5472
      %v5510 = vunpack.c.l.b16 %v5473
      %v5511 = vunpack.c.l.b16 %v5474
      %v5512 = vunpack.c.l.b16 %v5475
      %v5513 = vunpack.c.l.b16 %v5476
      %v5514 = vunpack.c.l.b16 %v5477
      %v5515 = vunpack.c.l.b16 %v5478
      %v5516 = vunpack.c.l.b16 %v5479
      %v5517 = vunpack.c.l.b16 %v5480
      %v5518 = vunpack.c.l.b16 %v5481
      %v5519 = vunpack.c.l.b16 %v5482
      %v5520 = vunpack.c.l.b16 %v5483
      %v5521 = vunpack.c.l.b16 %v5484
      %v5522 = vunpack.c.l.b16 %v5485
      %v5523 = vpack.c.b16 %v5508, %v5507
      %v5524 = vpack.c.b16 %v5510, %v5509
      %v5525 = vpack.c.b16 %v5512, %v5511
      %v5526 = vpack.c.b16 %v5514, %v5513
      %v5527 = vpack.c.b16 %v5516, %v5515
      %v5528 = vpack.c.b16 %v5518, %v5517
      %v5529 = vpack.c.b16 %v5520, %v5519
      %v5530 = vpack.c.b16 %v5522, %v5521
      %5539 = vmatprep.subr.bf16.mxu0 0
      %5540 = vmatpush1.bf16.msra.mxu0 %v5523
      %5541 = vmatprep.subr.bf16.mxu0 0
      %5542 = vmatpush1.bf16.msra.mxu0 %v5524
      %5543 = vmatprep.subr.bf16.mxu0 0
      %5544 = vmatpush1.bf16.msra.mxu0 %v5525
      %5545 = vmatprep.subr.bf16.mxu0 0
      %5546 = vmatpush1.bf16.msra.mxu0 %v5526
      %5547 = vmatprep.subr.bf16.mxu0 0
      %5548 = vmatpush1.bf16.msra.mxu0 %v5527
      %5549 = vmatprep.subr.bf16.mxu0 0
      %5550 = vmatpush1.bf16.msra.mxu0 %v5528
      %5551 = vmatprep.subr.bf16.mxu0 0
      %5552 = vmatpush1.bf16.msra.mxu0 %v5529
      %5553 = vmatprep.subr.bf16.mxu0 0
      %5554 = vmatpush1.bf16.msra.mxu0 %v5530
      %5555 = vmatprep.subr.bf16.mxu0 0
      %5556 = vmatpush1.bf16.msra.mxu0 0
      %5557 = vmatprep.subr.bf16.mxu0 0
      %5558 = vmatpush1.bf16.msra.mxu0 0
      %5559 = vmatprep.subr.bf16.mxu0 0
      %5560 = vmatpush1.bf16.msra.mxu0 0
      %5561 = vmatprep.subr.bf16.mxu0 0
      %5562 = vmatpush1.bf16.msra.mxu0 0
      %5563 = vmatprep.subr.bf16.mxu0 0
      %5564 = vmatpush1.bf16.msra.mxu0 0
      %5565 = vmatprep.subr.bf16.mxu0 0
      %5566 = vmatpush1.bf16.msra.mxu0 0
      %5567 = vmatprep.subr.bf16.mxu0 0
      %5568 = vmatpush1.bf16.msra.mxu0 0
      %5569 = vmatprep.subr.bf16.mxu0 0
      %5570 = vmatpush1.bf16.msra.mxu0 0
      %5571 = vmatprep.mubr.bf16.mxu0 0
      %5572 = vmatmul.mubr.bf16.gmra.mrb[0].mxu0 %v5406
      %v5573 = vpop.f32.mrb[0].mxu0
      %v5574 = vadd.f32 %v5490, %v5573
      %v5575 = vpop.f32.mrb[0].mxu0
      %v5576 = vpop.f32.mrb[0].mxu0
      %v5577 = vadd.f32 %v5490, %v5576
      %v5578 = vpop.f32.mrb[0].mxu0
      %5579 = vmatprep.mubr.bf16.mxu0 0
      %5580 = vmatmul.mubr.bf16.gmra.mrb[0].mxu0 %v5407
      %v5581 = vpop.f32.mrb[0].mxu0
      %v5582 = vadd.f32 %v5490, %v5581
      %v5583 = vpop.f32.mrb[0].mxu0
      %v5584 = vpop.f32.mrb[0].mxu0
      %v5585 = vadd.f32 %v5490, %v5584
      %v5586 = vpop.f32.mrb[0].mxu0
      %5587 = vmatprep.mubr.bf16.mxu0 0
      %5588 = vmatmul.mubr.bf16.gmra.mrb[0].mxu0 %v5408
      %v5589 = vpop.f32.mrb[0].mxu0
      %v5590 = vadd.f32 %v5490, %v5589
      %v5591 = vpop.f32.mrb[0].mxu0
      %v5592 = vpop.f32.mrb[0].mxu0
      %v5593 = vadd.f32 %v5490, %v5592
      %v5594 = vpop.f32.mrb[0].mxu0
      %5595 = vmatprep.mubr.bf16.mxu0 0
      %5596 = vmatmul.mubr.bf16.gmra.mrb[0].mxu0 %v5409
      %v5597 = vpop.f32.mrb[0].mxu0
      %v5598 = vadd.f32 %v5490, %v5597
      %v5599 = vpop.f32.mrb[0].mxu0
      %v5600 = vpop.f32.mrb[0].mxu0
      %v5601 = vadd.f32 %v5490, %v5600
      %v5602 = vpop.f32.mrb[0].mxu0
      %5603 = vmatprep.mubr.bf16.mxu0 0
      %5604 = vmatmul.mubr.bf16.gmra.mrb[0].mxu0 %v5410
      %v5605 = vpop.f32.mrb[0].mxu0
      %v5606 = vadd.f32 %v5490, %v5605
      %v5607 = vpop.f32.mrb[0].mxu0
      %v5608 = vpop.f32.mrb[0].mxu0
      %v5609 = vadd.f32 %v5490, %v5608
      %v5610 = vpop.f32.mrb[0].mxu0
      %5611 = vmatprep.mubr.bf16.mxu0 0
      %5612 = vmatmul.mubr.bf16.gmra.mrb[0].mxu0 %v5411
      %v5613 = vpop.f32.mrb[0].mxu0
      %v5614 = vadd.f32 %v5490, %v5613
      %v5615 = vpop.f32.mrb[0].mxu0
      %v5616 = vpop.f32.mrb[0].mxu0
      %v5617 = vadd.f32 %v5490, %v5616
      %v5618 = vpop.f32.mrb[0].mxu0
      %5619 = vmatprep.mubr.bf16.mxu0 0
      %5620 = vmatmul.mubr.bf16.gmra.mrb[0].mxu0 %v5412
      %v5621 = vpop.f32.mrb[0].mxu0
      %v5622 = vadd.f32 %v5490, %v5621
      %v5623 = vpop.f32.mrb[0].mxu0
      %v5624 = vpop.f32.mrb[0].mxu0
      %v5625 = vadd.f32 %v5490, %v5624
      %v5626 = vpop.f32.mrb[0].mxu0
      %5627 = vmatprep.mubr.bf16.mxu0 0
      %5628 = vmatmul.mubr.bf16.gmra.mrb[0].mxu0 %v5413
      %v5629 = vpop.f32.mrb[0].mxu0
      %v5630 = vadd.f32 %v5490, %v5629
      %v5631 = vpop.f32.mrb[0].mxu0
      %v5632 = vpop.f32.mrb[0].mxu0
      %v5633 = vadd.f32 %v5490, %v5632
      %v5634 = vpop.f32.mrb[0].mxu0
      %5635 = vmatprep.mubr.bf16.mxu0 0
      %5636 = vmatmul.mubr.bf16.gmra.mrb[0].mxu0 %v5414
      %v5637 = vpop.f32.mrb[0].mxu0
      %v5638 = vadd.f32 %v5490, %v5637
      %v5639 = vpop.f32.mrb[0].mxu0
      %v5640 = vpop.f32.mrb[0].mxu0
      %v5641 = vadd.f32 %v5490, %v5640
      %v5642 = vpop.f32.mrb[0].mxu0
      %5643 = vmatprep.mubr.bf16.mxu0 0
      %5644 = vmatmul.mubr.bf16.gmra.mrb[0].mxu0 %v5415
      %v5645 = vpop.f32.mrb[0].mxu0
      %v5646 = vadd.f32 %v5490, %v5645
      %v5647 = vpop.f32.mrb[0].mxu0
      %v5648 = vpop.f32.mrb[0].mxu0
      %v5649 = vadd.f32 %v5490, %v5648
      %v5650 = vpop.f32.mrb[0].mxu0
      %5651 = vmatprep.mubr.bf16.mxu0 0
      %5652 = vmatmul.mubr.bf16.gmra.mrb[0].mxu0 %v5416
      %v5653 = vpop.f32.mrb[0].mxu0
      %v5654 = vadd.f32 %v5490, %v5653
      %v5655 = vpop.f32.mrb[0].mxu0
      %v5656 = vpop.f32.mrb[0].mxu0
      %v5657 = vadd.f32 %v5490, %v5656
      %v5658 = vpop.f32.mrb[0].mxu0
      %5659 = vmatprep.mubr.bf16.mxu0 0
      %5660 = vmatmul.mubr.bf16.gmra.mrb[0].mxu0 %v5417
      %v5661 = vpop.f32.mrb[0].mxu0
      %v5662 = vadd.f32 %v5490, %v5661
      %v5663 = vpop.f32.mrb[0].mxu0
      %v5664 = vpop.f32.mrb[0].mxu0
      %v5665 = vadd.f32 %v5490, %v5664
      %v5666 = vpop.f32.mrb[0].mxu0
      %5667 = vmatprep.mubr.bf16.mxu0 0
      %5668 = vmatmul.mubr.bf16.gmra.mrb[0].mxu0 %v5418
      %v5669 = vpop.f32.mrb[0].mxu0
      %v5670 = vadd.f32 %v5490, %v5669
      %v5671 = vpop.f32.mrb[0].mxu0
      %v5672 = vpop.f32.mrb[0].mxu0
      %v5673 = vadd.f32 %v5490, %v5672
      %v5674 = vpop.f32.mrb[0].mxu0
      %5675 = vmatprep.mubr.bf16.mxu0 0
      %5676 = vmatmul.mubr.bf16.gmra.mrb[0].mxu0 %v5419
      %v5677 = vpop.f32.mrb[0].mxu0
      %v5678 = vadd.f32 %v5490, %v5677
      %v5679 = vpop.f32.mrb[0].mxu0
      %v5680 = vpop.f32.mrb[0].mxu0
      %v5681 = vadd.f32 %v5490, %v5680
      %v5682 = vpop.f32.mrb[0].mxu0
      %5683 = vmatprep.mubr.bf16.mxu0 0
      %5684 = vmatmul.mubr.bf16.gmra.mrb[0].mxu0 %v5420
      %v5685 = vpop.f32.mrb[0].mxu0
      %v5686 = vadd.f32 %v5490, %v5685
      %v5687 = vpop.f32.mrb[0].mxu0
      %v5688 = vpop.f32.mrb[0].mxu0
      %v5689 = vadd.f32 %v5490, %v5688
      %v5690 = vpop.f32.mrb[0].mxu0
      %5691 = vmatprep.mubr.bf16.mxu0 0
      %5692 = vmatmul.mubr.bf16.gmra.mrb[0].mxu0 %v5421
      %v5693 = vpop.f32.mrb[0].mxu0
      %v5694 = vadd.f32 %v5490, %v5693
      %v5695 = vpop.f32.mrb[0].mxu0
      %v5696 = vpop.f32.mrb[0].mxu0
      %v5697 = vadd.f32 %v5490, %v5696
      %v5698 = vpop.f32.mrb[0].mxu0
      %5699 = vmatprep.mubr.bf16.mxu0 0
      %5700 = vmatmul.mubr.bf16.gmra.mrb[0].mxu0 %v5422
      %v5701 = vpop.f32.mrb[0].mxu0
      %v5702 = vadd.f32 %v5490, %v5701
      %v5703 = vpop.f32.mrb[0].mxu0
      %v5704 = vpop.f32.mrb[0].mxu0
      %v5705 = vadd.f32 %v5490, %v5704
      %v5706 = vpop.f32.mrb[0].mxu0
      %5707 = vmatprep.mubr.bf16.mxu0 0
      %5708 = vmatmul.mubr.bf16.gmra.mrb[0].mxu0 %v5423
      %v5709 = vpop.f32.mrb[0].mxu0
      %v5710 = vadd.f32 %v5490, %v5709
      %v5711 = vpop.f32.mrb[0].mxu0
      %v5712 = vpop.f32.mrb[0].mxu0
      %v5713 = vadd.f32 %v5490, %v5712
      %v5714 = vpop.f32.mrb[0].mxu0
      %5715 = vmatprep.mubr.bf16.mxu0 0
      %5716 = vmatmul.mubr.bf16.gmra.mrb[0].mxu0 %v5424
      %v5717 = vpop.f32.mrb[0].mxu0
      %v5718 = vadd.f32 %v5490, %v5717
      %v5719 = vpop.f32.mrb[0].mxu0
      %v5720 = vpop.f32.mrb[0].mxu0
      %v5721 = vadd.f32 %v5490, %v5720
      %v5722 = vpop.f32.mrb[0].mxu0
      %5723 = vmatprep.mubr.bf16.mxu0 0
      %5724 = vmatmul.mubr.bf16.gmra.mrb[0].mxu0 %v5425
      %v5725 = vpop.f32.mrb[0].mxu0
      %v5726 = vadd.f32 %v5490, %v5725
      %v5727 = vpop.f32.mrb[0].mxu0
      %v5728 = vpop.f32.mrb[0].mxu0
      %v5729 = vadd.f32 %v5490, %v5728
      %v5730 = vpop.f32.mrb[0].mxu0
      %5731 = vmatprep.mubr.bf16.mxu0 0
      %5732 = vmatmul.mubr.bf16.gmra.mrb[0].mxu0 %v5426
      %v5733 = vpop.f32.mrb[0].mxu0
      %v5734 = vadd.f32 %v5490, %v5733
      %v5735 = vpop.f32.mrb[0].mxu0
      %v5736 = vpop.f32.mrb[0].mxu0
      %v5737 = vadd.f32 %v5490, %v5736
      %v5738 = vpop.f32.mrb[0].mxu0
      %5739 = vmatprep.mubr.bf16.mxu0 0
      %5740 = vmatmul.mubr.bf16.gmra.mrb[0].mxu0 %v5427
      %v5741 = vpop.f32.mrb[0].mxu0
      %v5742 = vadd.f32 %v5490, %v5741
      %v5743 = vpop.f32.mrb[0].mxu0
      %v5744 = vpop.f32.mrb[0].mxu0
      %v5745 = vadd.f32 %v5490, %v5744
      %v5746 = vpop.f32.mrb[0].mxu0
      %5747 = vmatprep.mubr.bf16.mxu0 0
      %5748 = vmatmul.mubr.bf16.gmra.mrb[0].mxu0 %v5428
      %v5749 = vpop.f32.mrb[0].mxu0
      %v5750 = vadd.f32 %v5490, %v5749
      %v5751 = vpop.f32.mrb[0].mxu0
      %v5752 = vpop.f32.mrb[0].mxu0
      %v5753 = vadd.f32 %v5490, %v5752
      %v5754 = vpop.f32.mrb[0].mxu0
      %5755 = vmatprep.mubr.bf16.mxu0 0
      %5756 = vmatmul.mubr.bf16.gmra.mrb[0].mxu0 %v5429
      %v5757 = vpop.f32.mrb[0].mxu0
      %v5758 = vadd.f32 %v5490, %v5757
      %v5759 = vpop.f32.mrb[0].mxu0
      %v5760 = vpop.f32.mrb[0].mxu0
      %v5761 = vadd.f32 %v5490, %v5760
      %v5762 = vpop.f32.mrb[0].mxu0
      %5763 = vmatprep.mubr.bf16.mxu0 0
      %5764 = vmatmul.mubr.bf16.gmra.mrb[0].mxu0 %v5430
      %v5765 = vpop.f32.mrb[0].mxu0
      %v5766 = vadd.f32 %v5490, %v5765
      %v5767 = vpop.f32.mrb[0].mxu0
      %v5768 = vpop.f32.mrb[0].mxu0
      %v5769 = vadd.f32 %v5490, %v5768
      %v5770 = vpop.f32.mrb[0].mxu0
      %5771 = vmatprep.mubr.bf16.mxu0 0
      %5772 = vmatmul.mubr.bf16.gmra.mrb[0].mxu0 %v5431
      %v5773 = vpop.f32.mrb[0].mxu0
      %v5774 = vadd.f32 %v5490, %v5773
      %v5775 = vpop.f32.mrb[0].mxu0
      %v5776 = vpop.f32.mrb[0].mxu0
      %v5777 = vadd.f32 %v5490, %v5776
      %v5778 = vpop.f32.mrb[0].mxu0
      %5779 = vmatprep.mubr.bf16.mxu0 0
      %5780 = vmatmul.mubr.bf16.gmra.mrb[0].mxu0 %v5432
      %v5781 = vpop.f32.mrb[0].mxu0
      %v5782 = vadd.f32 %v5490, %v5781
      %v5783 = vpop.f32.mrb[0].mxu0
      %v5784 = vpop.f32.mrb[0].mxu0
      %v5785 = vadd.f32 %v5490, %v5784
      %v5786 = vpop.f32.mrb[0].mxu0
      %5787 = vmatprep.mubr.bf16.mxu0 0
      %5788 = vmatmul.mubr.bf16.gmra.mrb[0].mxu0 %v5433
      %v5789 = vpop.f32.mrb[0].mxu0
      %v5790 = vadd.f32 %v5490, %v5789
      %v5791 = vpop.f32.mrb[0].mxu0
      %v5792 = vpop.f32.mrb[0].mxu0
      %v5793 = vadd.f32 %v5490, %v5792
      %v5794 = vpop.f32.mrb[0].mxu0
      %5795 = vmatprep.mubr.bf16.mxu0 0
      %5796 = vmatmul.mubr.bf16.gmra.mrb[0].mxu0 %v5434
      %v5797 = vpop.f32.mrb[0].mxu0
      %v5798 = vadd.f32 %v5490, %v5797
      %v5799 = vpop.f32.mrb[0].mxu0
      %v5800 = vpop.f32.mrb[0].mxu0
      %v5801 = vadd.f32 %v5490, %v5800
      %v5802 = vpop.f32.mrb[0].mxu0
      %5803 = vmatprep.mubr.bf16.mxu0 0
      %5804 = vmatmul.mubr.bf16.gmra.mrb[0].mxu0 %v5435
      %v5805 = vpop.f32.mrb[0].mxu0
      %v5806 = vadd.f32 %v5490, %v5805
      %v5807 = vpop.f32.mrb[0].mxu0
      %v5808 = vpop.f32.mrb[0].mxu0
      %v5809 = vadd.f32 %v5490, %v5808
      %v5810 = vpop.f32.mrb[0].mxu0
      %5811 = vmatprep.mubr.bf16.mxu0 0
      %5812 = vmatmul.mubr.bf16.gmra.mrb[0].mxu0 %v5436
      %v5813 = vpop.f32.mrb[0].mxu0
      %v5814 = vadd.f32 %v5490, %v5813
      %v5815 = vpop.f32.mrb[0].mxu0
      %v5816 = vpop.f32.mrb[0].mxu0
      %v5817 = vadd.f32 %v5490, %v5816
      %v5818 = vpop.f32.mrb[0].mxu0
      %5819 = vmatprep.mubr.bf16.mxu0 0
      %5820 = vmatmul.mubr.bf16.gmra.mrb[0].mxu0 %v5437
      %v5821 = vpop.f32.mrb[0].mxu0
      %v5822 = vadd.f32 %v5490, %v5821
      %v5823 = vpop.f32.mrb[0].mxu0
      %v5824 = vpop.f32.mrb[0].mxu0
      %v5825 = vadd.f32 %v5490, %v5824
      %v5826 = vpop.f32.mrb[0].mxu0
      %5827 = vmatprep.mubr.bf16.mxu0 0
      %5828 = vmatmul.mubr.bf16.gmra.mrb[0].mxu0 %v5438
      %v5829 = vpop.f32.mrb[0].mxu0
      %v5830 = vadd.f32 %v5490, %v5829
      %v5831 = vpop.f32.mrb[0].mxu0
      %v5832 = vpop.f32.mrb[0].mxu0
      %v5833 = vadd.f32 %v5490, %v5832
      %v5834 = vpop.f32.mrb[0].mxu0
      %5835 = vmatprep.mubr.bf16.mxu0 0
      %5836 = vmatmul.mubr.bf16.gmra.mrb[0].mxu0 %v5439
      %v5837 = vpop.f32.mrb[0].mxu0
      %v5838 = vadd.f32 %v5490, %v5837
      %v5839 = vpop.f32.mrb[0].mxu0
      %v5840 = vpop.f32.mrb[0].mxu0
      %v5841 = vadd.f32 %v5490, %v5840
      %v5842 = vpop.f32.mrb[0].mxu0
      %5843 = vmatprep.mubr.bf16.mxu0 0
      %5844 = vmatmul.mubr.bf16.gmra.mrb[0].mxu0 %v5440
      %v5845 = vpop.f32.mrb[0].mxu0
      %v5846 = vadd.f32 %v5490, %v5845
      %v5847 = vpop.f32.mrb[0].mxu0
      %v5848 = vpop.f32.mrb[0].mxu0
      %v5849 = vadd.f32 %v5490, %v5848
      %v5850 = vpop.f32.mrb[0].mxu0
      %5851 = vmatprep.mubr.bf16.mxu0 0
      %5852 = vmatmul.mubr.bf16.gmra.mrb[0].mxu0 %v5441
      %v5853 = vpop.f32.mrb[0].mxu0
      %v5854 = vadd.f32 %v5490, %v5853
      %v5855 = vpop.f32.mrb[0].mxu0
      %v5856 = vpop.f32.mrb[0].mxu0
      %v5857 = vadd.f32 %v5490, %v5856
      %v5858 = vpop.f32.mrb[0].mxu0
      %5859 = vmatprep.mubr.bf16.mxu0 0
      %5860 = vmatmul.mubr.bf16.gmra.mrb[0].mxu0 %v5442
      %v5861 = vpop.f32.mrb[0].mxu0
      %v5862 = vadd.f32 %v5490, %v5861
      %v5863 = vpop.f32.mrb[0].mxu0
      %v5864 = vpop.f32.mrb[0].mxu0
      %v5865 = vadd.f32 %v5490, %v5864
      %v5866 = vpop.f32.mrb[0].mxu0
      %5867 = vmatprep.mubr.bf16.mxu0 0
      %5868 = vmatmul.mubr.bf16.gmra.mrb[0].mxu0 %v5443
      %v5869 = vpop.f32.mrb[0].mxu0
      %v5870 = vadd.f32 %v5490, %v5869
      %v5871 = vpop.f32.mrb[0].mxu0
      %v5872 = vpop.f32.mrb[0].mxu0
      %v5873 = vadd.f32 %v5490, %v5872
      %v5874 = vpop.f32.mrb[0].mxu0
      %5875 = vmatprep.mubr.bf16.mxu0 0
      %5876 = vmatmul.mubr.bf16.gmra.mrb[0].mxu0 %v5444
      %v5877 = vpop.f32.mrb[0].mxu0
      %v5878 = vadd.f32 %v5490, %v5877
      %v5879 = vpop.f32.mrb[0].mxu0
      %v5880 = vpop.f32.mrb[0].mxu0
      %v5881 = vadd.f32 %v5490, %v5880
      %v5882 = vpop.f32.mrb[0].mxu0
      %5883 = vmatprep.mubr.bf16.mxu0 0
      %5884 = vmatmul.mubr.bf16.gmra.mrb[0].mxu0 %v5445
      %v5885 = vpop.f32.mrb[0].mxu0
      %v5886 = vadd.f32 %v5490, %v5885
      %v5887 = vpop.f32.mrb[0].mxu0
      %v5888 = vpop.f32.mrb[0].mxu0
      %v5889 = vadd.f32 %v5490, %v5888
      %v5890 = vpop.f32.mrb[0].mxu0
      %5891 = vmatprep.mubr.bf16.mxu0 0
      %5892 = vmatmul.mubr.bf16.gmra.mrb[0].mxu0 %v5446
      %v5893 = vpop.f32.mrb[0].mxu0
      %v5894 = vadd.f32 %v5490, %v5893
      %v5895 = vpop.f32.mrb[0].mxu0
      %v5896 = vpop.f32.mrb[0].mxu0
      %v5897 = vadd.f32 %v5490, %v5896
      %v5898 = vpop.f32.mrb[0].mxu0
      %5899 = vmatprep.mubr.bf16.mxu0 0
      %5900 = vmatmul.mubr.bf16.gmra.mrb[0].mxu0 %v5447
      %v5901 = vpop.f32.mrb[0].mxu0
      %v5902 = vadd.f32 %v5490, %v5901
      %v5903 = vpop.f32.mrb[0].mxu0
      %v5904 = vpop.f32.mrb[0].mxu0
      %v5905 = vadd.f32 %v5490, %v5904
      %v5906 = vpop.f32.mrb[0].mxu0
      %5907 = vmatprep.mubr.bf16.mxu0 0
      %5908 = vmatmul.mubr.bf16.gmra.mrb[0].mxu0 %v5448
      %v5909 = vpop.f32.mrb[0].mxu0
      %v5910 = vadd.f32 %v5490, %v5909
      %v5911 = vpop.f32.mrb[0].mxu0
      %v5912 = vpop.f32.mrb[0].mxu0
      %v5913 = vadd.f32 %v5490, %v5912
      %v5914 = vpop.f32.mrb[0].mxu0
      %5915 = vmatprep.mubr.bf16.mxu0 0
      %5916 = vmatmul.mubr.bf16.gmra.mrb[0].mxu0 %v5449
      %v5917 = vpop.f32.mrb[0].mxu0
      %v5918 = vadd.f32 %v5490, %v5917
      %v5919 = vpop.f32.mrb[0].mxu0
      %v5920 = vpop.f32.mrb[0].mxu0
      %v5921 = vadd.f32 %v5490, %v5920
      %v5922 = vpop.f32.mrb[0].mxu0
      %5923 = vmatprep.mubr.bf16.mxu0 0
      %5924 = vmatmul.mubr.bf16.gmra.mrb[0].mxu0 %v5450
      %v5925 = vpop.f32.mrb[0].mxu0
      %v5926 = vadd.f32 %v5490, %v5925
      %v5927 = vpop.f32.mrb[0].mxu0
      %v5928 = vpop.f32.mrb[0].mxu0
      %v5929 = vadd.f32 %v5490, %v5928
      %v5930 = vpop.f32.mrb[0].mxu0
      %5931 = vmatprep.mubr.bf16.mxu0 0
      %5932 = vmatmul.mubr.bf16.gmra.mrb[0].mxu0 %v5451
      %v5933 = vpop.f32.mrb[0].mxu0
      %v5934 = vadd.f32 %v5490, %v5933
      %v5935 = vpop.f32.mrb[0].mxu0
      %v5936 = vpop.f32.mrb[0].mxu0
      %v5937 = vadd.f32 %v5490, %v5936
      %v5938 = vpop.f32.mrb[0].mxu0
      %5939 = vmatprep.mubr.bf16.mxu0 0
      %5940 = vmatmul.mubr.bf16.gmra.mrb[0].mxu0 %v5452
      %v5941 = vpop.f32.mrb[0].mxu0
      %v5942 = vadd.f32 %v5490, %v5941
      %v5943 = vpop.f32.mrb[0].mxu0
      %v5944 = vpop.f32.mrb[0].mxu0
      %v5945 = vadd.f32 %v5490, %v5944
      %v5946 = vpop.f32.mrb[0].mxu0
      %5947 = vmatprep.mubr.bf16.mxu0 0
      %5948 = vmatmul.mubr.bf16.gmra.mrb[0].mxu0 %v5453
      %v5949 = vpop.f32.mrb[0].mxu0
      %v5950 = vadd.f32 %v5490, %v5949
      %v5951 = vpop.f32.mrb[0].mxu0
      %v5952 = vpop.f32.mrb[0].mxu0
      %v5953 = vadd.f32 %v5490, %v5952
      %v5954 = vpop.f32.mrb[0].mxu0
      %5955 = vmatprep.mubr.bf16.mxu0 0
      %5956 = vmatmul.mubr.bf16.gmra.mrb[0].mxu0 %v5454
      %v5957 = vpop.f32.mrb[0].mxu0
      %v5958 = vadd.f32 %v5490, %v5957
      %v5959 = vpop.f32.mrb[0].mxu0
      %v5960 = vpop.f32.mrb[0].mxu0
      %v5961 = vadd.f32 %v5490, %v5960
      %v5962 = vpop.f32.mrb[0].mxu0
      %5963 = vmatprep.mubr.bf16.mxu0 0
      %5964 = vmatmul.mubr.bf16.gmra.mrb[0].mxu0 %v5455
      %v5965 = vpop.f32.mrb[0].mxu0
      %v5966 = vadd.f32 %v5490, %v5965
      %v5967 = vpop.f32.mrb[0].mxu0
      %v5968 = vpop.f32.mrb[0].mxu0
      %v5969 = vadd.f32 %v5490, %v5968
      %v5970 = vpop.f32.mrb[0].mxu0
      %5971 = vmatprep.mubr.bf16.mxu0 0
      %5972 = vmatmul.mubr.bf16.gmra.mrb[0].mxu0 %v5456
      %v5973 = vpop.f32.mrb[0].mxu0
      %v5974 = vadd.f32 %v5490, %v5973
      %v5975 = vpop.f32.mrb[0].mxu0
      %v5976 = vpop.f32.mrb[0].mxu0
      %v5977 = vadd.f32 %v5490, %v5976
      %v5978 = vpop.f32.mrb[0].mxu0
      %5979 = vmatprep.mubr.bf16.mxu0 0
      %5980 = vmatmul.mubr.bf16.gmra.mrb[0].mxu0 %v5457
      %v5981 = vpop.f32.mrb[0].mxu0
      %v5982 = vadd.f32 %v5490, %v5981
      %v5983 = vpop.f32.mrb[0].mxu0
      %v5984 = vpop.f32.mrb[0].mxu0
      %v5985 = vadd.f32 %v5490, %v5984
      %v5986 = vpop.f32.mrb[0].mxu0
      %5987 = vmatprep.mubr.bf16.mxu0 0
      %5988 = vmatmul.mubr.bf16.gmra.mrb[0].mxu0 %v5458
      %v5989 = vpop.f32.mrb[0].mxu0
      %v5990 = vadd.f32 %v5490, %v5989
      %v5991 = vpop.f32.mrb[0].mxu0
      %v5992 = vpop.f32.mrb[0].mxu0
      %v5993 = vadd.f32 %v5490, %v5992
      %v5994 = vpop.f32.mrb[0].mxu0
      %5995 = vmatprep.mubr.bf16.mxu0 0
      %5996 = vmatmul.mubr.bf16.gmra.mrb[0].mxu0 %v5459
      %v5997 = vpop.f32.mrb[0].mxu0
      %v5998 = vadd.f32 %v5490, %v5997
      %v5999 = vpop.f32.mrb[0].mxu0
      %v6000 = vpop.f32.mrb[0].mxu0
      %v6001 = vadd.f32 %v5490, %v6000
      %v6002 = vpop.f32.mrb[0].mxu0
      %6003 = vmatprep.mubr.bf16.mxu0 0
      %6004 = vmatmul.mubr.bf16.gmra.mrb[0].mxu0 %v5460
      %v6005 = vpop.f32.mrb[0].mxu0
      %v6006 = vadd.f32 %v5490, %v6005
      %v6007 = vpop.f32.mrb[0].mxu0
      %v6008 = vpop.f32.mrb[0].mxu0
      %v6009 = vadd.f32 %v5490, %v6008
      %v6010 = vpop.f32.mrb[0].mxu0
      %6011 = vmatprep.mubr.bf16.mxu0 0
      %6012 = vmatmul.mubr.bf16.gmra.mrb[0].mxu0 %v5461
      %v6013 = vpop.f32.mrb[0].mxu0
      %v6014 = vadd.f32 %v5490, %v6013
      %v6015 = vpop.f32.mrb[0].mxu0
      %v6016 = vpop.f32.mrb[0].mxu0
      %v6017 = vadd.f32 %v5490, %v6016
      %v6018 = vpop.f32.mrb[0].mxu0
      %6019 = vmatprep.mubr.bf16.mxu0 0
      %6020 = vmatmul.mubr.bf16.gmra.mrb[0].mxu0 %v5462
      %v6021 = vpop.f32.mrb[0].mxu0
      %v6022 = vadd.f32 %v5490, %v6021
      %v6023 = vpop.f32.mrb[0].mxu0
      %v6024 = vpop.f32.mrb[0].mxu0
      %v6025 = vadd.f32 %v5490, %v6024
      %v6026 = vpop.f32.mrb[0].mxu0
      %6027 = vmatprep.mubr.bf16.mxu0 0
      %6028 = vmatmul.mubr.bf16.gmra.mrb[0].mxu0 %v5463
      %v6029 = vpop.f32.mrb[0].mxu0
      %v6030 = vadd.f32 %v5490, %v6029
      %v6031 = vpop.f32.mrb[0].mxu0
      %v6032 = vpop.f32.mrb[0].mxu0
      %v6033 = vadd.f32 %v5490, %v6032
      %v6034 = vpop.f32.mrb[0].mxu0
      %6035 = vmatprep.mubr.bf16.mxu0 0
      %6036 = vmatmul.mubr.bf16.gmra.mrb[0].mxu0 %v5464
      %v6037 = vpop.f32.mrb[0].mxu0
      %v6038 = vadd.f32 %v5490, %v6037
      %v6039 = vpop.f32.mrb[0].mxu0
      %v6040 = vpop.f32.mrb[0].mxu0
      %v6041 = vadd.f32 %v5490, %v6040
      %v6042 = vpop.f32.mrb[0].mxu0
      %6043 = vmatprep.mubr.bf16.mxu0 0
      %6044 = vmatmul.mubr.bf16.gmra.mrb[0].mxu0 %v5465
      %v6045 = vpop.f32.mrb[0].mxu0
      %v6046 = vadd.f32 %v5490, %v6045
      %v6047 = vpop.f32.mrb[0].mxu0
      %v6048 = vpop.f32.mrb[0].mxu0
      %v6049 = vadd.f32 %v5490, %v6048
      %v6050 = vpop.f32.mrb[0].mxu0
      %6051 = vmatprep.mubr.bf16.mxu0 0
      %6052 = vmatmul.mubr.bf16.gmra.mrb[0].mxu0 %v5466
      %v6053 = vpop.f32.mrb[0].mxu0
      %v6054 = vadd.f32 %v5490, %v6053
      %v6055 = vpop.f32.mrb[0].mxu0
      %v6056 = vpop.f32.mrb[0].mxu0
      %v6057 = vadd.f32 %v5490, %v6056
      %v6058 = vpop.f32.mrb[0].mxu0
      %6059 = vmatprep.mubr.bf16.mxu0 0
      %6060 = vmatmul.mubr.bf16.gmra.mrb[0].mxu0 %v5467
      %v6061 = vpop.f32.mrb[0].mxu0
      %v6062 = vadd.f32 %v5490, %v6061
      %v6063 = vpop.f32.mrb[0].mxu0
      %v6064 = vpop.f32.mrb[0].mxu0
      %v6065 = vadd.f32 %v5490, %v6064
      %v6066 = vpop.f32.mrb[0].mxu0
      %6067 = vmatprep.mubr.bf16.mxu0 0
      %6068 = vmatmul.mubr.bf16.gmra.mrb[0].mxu0 %v5468
      %v6069 = vpop.f32.mrb[0].mxu0
      %v6070 = vadd.f32 %v5490, %v6069
      %v6071 = vpop.f32.mrb[0].mxu0
      %v6072 = vpop.f32.mrb[0].mxu0
      %v6073 = vadd.f32 %v5490, %v6072
      %v6074 = vpop.f32.mrb[0].mxu0
      %6075 = vmatprep.mubr.bf16.mxu0 0
      %6076 = vmatmul.mubr.bf16.gmra.mrb[0].mxu0 %v5469
      %v6077 = vpop.f32.mrb[0].mxu0
      %v6078 = vadd.f32 %v5490, %v6077
      %v6079 = vpop.f32.mrb[0].mxu0
      %v6080 = vpop.f32.mrb[0].mxu0
      %v6081 = vadd.f32 %v5490, %v6080
      %v6082 = vpop.f32.mrb[0].mxu0
      %6083 = vdwg.mxu0
      %v6084 = vld [vmem:[%s224] sm:$0xf]
      %v6085 = vld [vmem:[%s224 + $0x4] sm:$0xf]
      %v6086 = vld [vmem:[%s224 + $0x8] sm:$0xf]
      %v6087 = vld [vmem:[%s224 + $0xc] sm:$0xf]
      %v6088 = vld [vmem:[%s224 + $0x10] sm:$0xf]
      %v6089 = vld [vmem:[%s224 + $0x14] sm:$0xf]
      %v6090 = vld [vmem:[%s224 + $0x18] sm:$0xf]
      %v6091 = vld [vmem:[%s224 + $0x1c] sm:$0xf]
      %v6092 = vld [vmem:[%s224 + $0x20] sm:$0xf]
      %v6093 = vld [vmem:[%s224 + $0x24] sm:$0xf]
      %v6094 = vld [vmem:[%s224 + $0x28] sm:$0xf]
      %v6095 = vld [vmem:[%s224 + $0x2c] sm:$0xf]
      %v6096 = vld [vmem:[%s224 + $0x30] sm:$0xf]
      %v6097 = vld [vmem:[%s224 + $0x34] sm:$0xf]
      %v6098 = vld [vmem:[%s224 + $0x38] sm:$0xf]
      %v6099 = vld [vmem:[%s224 + $0x3c] sm:$0xf]
      %v6100 = vld [vmem:[%s224 + $0x40] sm:$0xf]
      %v6101 = vld [vmem:[%s224 + $0x44] sm:$0xf]
      %v6102 = vld [vmem:[%s224 + $0x48] sm:$0xf]
      %v6103 = vld [vmem:[%s224 + $0x4c] sm:$0xf]
      %v6104 = vld [vmem:[%s224 + $0x50] sm:$0xf]
      %v6105 = vld [vmem:[%s224 + $0x54] sm:$0xf]
      %v6106 = vld [vmem:[%s224 + $0x58] sm:$0xf]
      %v6107 = vld [vmem:[%s224 + $0x5c] sm:$0xf]
      %v6108 = vld [vmem:[%s224 + $0x60] sm:$0xf]
      %v6109 = vld [vmem:[%s224 + $0x64] sm:$0xf]
      %v6110 = vld [vmem:[%s224 + $0x68] sm:$0xf]
      %v6111 = vld [vmem:[%s224 + $0x6c] sm:$0xf]
      %v6112 = vld [vmem:[%s224 + $0x70] sm:$0xf]
      %v6113 = vld [vmem:[%s224 + $0x74] sm:$0xf]
      %v6114 = vld [vmem:[%s224 + $0x78] sm:$0xf]
      %v6115 = vld [vmem:[%s224 + $0x7c] sm:$0xf]
      %v6116 = vld [vmem:[%s224 + $0x80] sm:$0xf]
      %v6117 = vld [vmem:[%s224 + $0x84] sm:$0xf]
      %v6118 = vld [vmem:[%s224 + $0x88] sm:$0xf]
      %v6119 = vld [vmem:[%s224 + $0x8c] sm:$0xf]
      %v6120 = vld [vmem:[%s224 + $0x90] sm:$0xf]
      %v6121 = vld [vmem:[%s224 + $0x94] sm:$0xf]
      %v6122 = vld [vmem:[%s224 + $0x98] sm:$0xf]
      %v6123 = vld [vmem:[%s224 + $0x9c] sm:$0xf]
      %v6124 = vld [vmem:[%s224 + $0xa0] sm:$0xf]
      %v6125 = vld [vmem:[%s224 + $0xa4] sm:$0xf]
      %v6126 = vld [vmem:[%s224 + $0xa8] sm:$0xf]
      %v6127 = vld [vmem:[%s224 + $0xac] sm:$0xf]
      %v6128 = vld [vmem:[%s224 + $0xb0] sm:$0xf]
      %v6129 = vld [vmem:[%s224 + $0xb4] sm:$0xf]
      %v6130 = vld [vmem:[%s224 + $0xb8] sm:$0xf]
      %v6131 = vld [vmem:[%s224 + $0xbc] sm:$0xf]
      %v6132 = vld [vmem:[%s224 + $0xc0] sm:$0xf]
      %v6133 = vld [vmem:[%s224 + $0xc4] sm:$0xf]
      %v6134 = vld [vmem:[%s224 + $0xc8] sm:$0xf]
      %v6135 = vld [vmem:[%s224 + $0xcc] sm:$0xf]
      %v6136 = vld [vmem:[%s224 + $0xd0] sm:$0xf]
      %v6137 = vld [vmem:[%s224 + $0xd4] sm:$0xf]
      %v6138 = vld [vmem:[%s224 + $0xd8] sm:$0xf]
      %v6139 = vld [vmem:[%s224 + $0xdc] sm:$0xf]
      %v6140 = vld [vmem:[%s224 + $0xe0] sm:$0xf]
      %v6141 = vld [vmem:[%s224 + $0xe4] sm:$0xf]
      %v6142 = vld [vmem:[%s224 + $0xe8] sm:$0xf]
      %v6143 = vld [vmem:[%s224 + $0xec] sm:$0xf]
      %v6144 = vld [vmem:[%s224 + $0xf0] sm:$0xf]
      %v6145 = vld [vmem:[%s224 + $0xf4] sm:$0xf]
      %v6146 = vld [vmem:[%s224 + $0xf8] sm:$0xf]
      %v6147 = vld [vmem:[%s224 + $0xfc] sm:$0xf]
      %v6148 = vld [vmem:[%s224 + $0x100] sm:$0xf]
      %v6149 = vld [vmem:[%s224 + $0x104] sm:$0xf]
      %v6150 = vld [vmem:[%s224 + $0x108] sm:$0xf]
      %v6151 = vld [vmem:[%s224 + $0x10c] sm:$0xf]
      %v6152 = vld [vmem:[%s224 + $0x110] sm:$0xf]
      %v6153 = vld [vmem:[%s224 + $0x114] sm:$0xf]
      %v6154 = vld [vmem:[%s224 + $0x118] sm:$0xf]
      %v6155 = vld [vmem:[%s224 + $0x11c] sm:$0xf]
      %v6156 = vld [vmem:[%s224 + $0x120] sm:$0xf]
      %v6157 = vld [vmem:[%s224 + $0x124] sm:$0xf]
      %v6158 = vld [vmem:[%s224 + $0x128] sm:$0xf]
      %v6159 = vld [vmem:[%s224 + $0x12c] sm:$0xf]
      %v6160 = vld [vmem:[%s224 + $0x130] sm:$0xf]
      %v6161 = vld [vmem:[%s224 + $0x134] sm:$0xf]
      %v6162 = vld [vmem:[%s224 + $0x138] sm:$0xf]
      %v6163 = vld [vmem:[%s224 + $0x13c] sm:$0xf]
      %v6164 = vld [vmem:[%s224 + $0x140] sm:$0xf]
      %v6165 = vld [vmem:[%s224 + $0x144] sm:$0xf]
      %v6166 = vld [vmem:[%s224 + $0x148] sm:$0xf]
      %v6167 = vld [vmem:[%s224 + $0x14c] sm:$0xf]
      %v6168 = vld [vmem:[%s224 + $0x150] sm:$0xf]
      %v6169 = vld [vmem:[%s224 + $0x154] sm:$0xf]
      %v6170 = vld [vmem:[%s224 + $0x158] sm:$0xf]
      %v6171 = vld [vmem:[%s224 + $0x15c] sm:$0xf]
      %v6172 = vld [vmem:[%s224 + $0x160] sm:$0xf]
      %v6173 = vld [vmem:[%s224 + $0x164] sm:$0xf]
      %v6174 = vld [vmem:[%s224 + $0x168] sm:$0xf]
      %v6175 = vld [vmem:[%s224 + $0x16c] sm:$0xf]
      %v6176 = vld [vmem:[%s224 + $0x170] sm:$0xf]
      %v6177 = vld [vmem:[%s224 + $0x174] sm:$0xf]
      %v6178 = vld [vmem:[%s224 + $0x178] sm:$0xf]
      %v6179 = vld [vmem:[%s224 + $0x17c] sm:$0xf]
      %v6180 = vld [vmem:[%s224 + $0x180] sm:$0xf]
      %v6181 = vld [vmem:[%s224 + $0x184] sm:$0xf]
      %v6182 = vld [vmem:[%s224 + $0x188] sm:$0xf]
      %v6183 = vld [vmem:[%s224 + $0x18c] sm:$0xf]
      %v6184 = vld [vmem:[%s224 + $0x190] sm:$0xf]
      %v6185 = vld [vmem:[%s224 + $0x194] sm:$0xf]
      %v6186 = vld [vmem:[%s224 + $0x198] sm:$0xf]
      %v6187 = vld [vmem:[%s224 + $0x19c] sm:$0xf]
      %v6188 = vld [vmem:[%s224 + $0x1a0] sm:$0xf]
      %v6189 = vld [vmem:[%s224 + $0x1a4] sm:$0xf]
      %v6190 = vld [vmem:[%s224 + $0x1a8] sm:$0xf]
      %v6191 = vld [vmem:[%s224 + $0x1ac] sm:$0xf]
      %v6192 = vld [vmem:[%s224 + $0x1b0] sm:$0xf]
      %v6193 = vld [vmem:[%s224 + $0x1b4] sm:$0xf]
      %v6194 = vld [vmem:[%s224 + $0x1b8] sm:$0xf]
      %v6195 = vld [vmem:[%s224 + $0x1bc] sm:$0xf]
      %v6196 = vld [vmem:[%s224 + $0x1c0] sm:$0xf]
      %v6197 = vld [vmem:[%s224 + $0x1c4] sm:$0xf]
      %v6198 = vld [vmem:[%s224 + $0x1c8] sm:$0xf]
      %v6199 = vld [vmem:[%s224 + $0x1cc] sm:$0xf]
      %v6200 = vld [vmem:[%s224 + $0x1d0] sm:$0xf]
      %v6201 = vld [vmem:[%s224 + $0x1d4] sm:$0xf]
      %v6202 = vld [vmem:[%s224 + $0x1d8] sm:$0xf]
      %v6203 = vld [vmem:[%s224 + $0x1dc] sm:$0xf]
      %v6204 = vld [vmem:[%s224 + $0x1e0] sm:$0xf]
      %v6205 = vld [vmem:[%s224 + $0x1e4] sm:$0xf]
      %v6206 = vld [vmem:[%s224 + $0x1e8] sm:$0xf]
      %v6207 = vld [vmem:[%s224 + $0x1ec] sm:$0xf]
      %v6208 = vld [vmem:[%s224 + $0x1f0] sm:$0xf]
      %v6209 = vld [vmem:[%s224 + $0x1f4] sm:$0xf]
      %v6210 = vld [vmem:[%s224 + $0x1f8] sm:$0xf]
      %v6211 = vld [vmem:[%s224 + $0x1fc] sm:$0xf]
      %v6212 = vunpack.c.l.bf16 %v6084
      %v6213 = vunpack.c.l.bf16 %v6085
      %v6214 = vunpack.c.l.bf16 %v6086
      %v6215 = vunpack.c.l.bf16 %v6087
      %v6216 = vunpack.c.l.bf16 %v6088
      %v6217 = vunpack.c.l.bf16 %v6089
      %v6218 = vunpack.c.l.bf16 %v6090
      %v6219 = vunpack.c.l.bf16 %v6091
      %v6220 = vunpack.c.l.bf16 %v6092
      %v6221 = vunpack.c.l.bf16 %v6093
      %v6222 = vunpack.c.l.bf16 %v6094
      %v6223 = vunpack.c.l.bf16 %v6095
      %v6224 = vunpack.c.l.bf16 %v6096
      %v6225 = vunpack.c.l.bf16 %v6097
      %v6226 = vunpack.c.l.bf16 %v6098
      %v6227 = vunpack.c.l.bf16 %v6099
      %v6228 = vunpack.c.l.bf16 %v6100
      %v6229 = vunpack.c.l.bf16 %v6101
      %v6230 = vunpack.c.l.bf16 %v6102
      %v6231 = vunpack.c.l.bf16 %v6103
      %v6232 = vunpack.c.l.bf16 %v6104
      %v6233 = vunpack.c.l.bf16 %v6105
      %v6234 = vunpack.c.l.bf16 %v6106
      %v6235 = vunpack.c.l.bf16 %v6107
      %v6236 = vunpack.c.l.bf16 %v6108
      %v6237 = vunpack.c.l.bf16 %v6109
      %v6238 = vunpack.c.l.bf16 %v6110
      %v6239 = vunpack.c.l.bf16 %v6111
      %v6240 = vunpack.c.l.bf16 %v6112
      %v6241 = vunpack.c.l.bf16 %v6113
      %v6242 = vunpack.c.l.bf16 %v6114
      %v6243 = vunpack.c.l.bf16 %v6115
      %v6244 = vunpack.c.l.bf16 %v6116
      %v6245 = vunpack.c.l.bf16 %v6117
      %v6246 = vunpack.c.l.bf16 %v6118
      %v6247 = vunpack.c.l.bf16 %v6119
      %v6248 = vunpack.c.l.bf16 %v6120
      %v6249 = vunpack.c.l.bf16 %v6121
      %v6250 = vunpack.c.l.bf16 %v6122
      %v6251 = vunpack.c.l.bf16 %v6123
      %v6252 = vunpack.c.l.bf16 %v6124
      %v6253 = vunpack.c.l.bf16 %v6125
      %v6254 = vunpack.c.l.bf16 %v6126
      %v6255 = vunpack.c.l.bf16 %v6127
      %v6256 = vunpack.c.l.bf16 %v6128
      %v6257 = vunpack.c.l.bf16 %v6129
      %v6258 = vunpack.c.l.bf16 %v6130
      %v6259 = vunpack.c.l.bf16 %v6131
      %v6260 = vunpack.c.l.bf16 %v6132
      %v6261 = vunpack.c.l.bf16 %v6133
      %v6262 = vunpack.c.l.bf16 %v6134
      %v6263 = vunpack.c.l.bf16 %v6135
      %v6264 = vunpack.c.l.bf16 %v6136
      %v6265 = vunpack.c.l.bf16 %v6137
      %v6266 = vunpack.c.l.bf16 %v6138
      %v6267 = vunpack.c.l.bf16 %v6139
      %v6268 = vunpack.c.l.bf16 %v6140
      %v6269 = vunpack.c.l.bf16 %v6141
      %v6270 = vunpack.c.l.bf16 %v6142
      %v6271 = vunpack.c.l.bf16 %v6143
      %v6272 = vunpack.c.l.bf16 %v6144
      %v6273 = vunpack.c.l.bf16 %v6145
      %v6274 = vunpack.c.l.bf16 %v6146
      %v6275 = vunpack.c.l.bf16 %v6147
      %v6276 = vunpack.c.l.bf16 %v6148
      %v6277 = vunpack.c.l.bf16 %v6149
      %v6278 = vunpack.c.l.bf16 %v6150
      %v6279 = vunpack.c.l.bf16 %v6151
      %v6280 = vunpack.c.l.bf16 %v6152
      %v6281 = vunpack.c.l.bf16 %v6153
      %v6282 = vunpack.c.l.bf16 %v6154
      %v6283 = vunpack.c.l.bf16 %v6155
      %v6284 = vunpack.c.l.bf16 %v6156
      %v6285 = vunpack.c.l.bf16 %v6157
      %v6286 = vunpack.c.l.bf16 %v6158
      %v6287 = vunpack.c.l.bf16 %v6159
      %v6288 = vunpack.c.l.bf16 %v6160
      %v6289 = vunpack.c.l.bf16 %v6161
      %v6290 = vunpack.c.l.bf16 %v6162
      %v6291 = vunpack.c.l.bf16 %v6163
      %v6292 = vunpack.c.l.bf16 %v6164
      %v6293 = vunpack.c.l.bf16 %v6165
      %v6294 = vunpack.c.l.bf16 %v6166
      %v6295 = vunpack.c.l.bf16 %v6167
      %v6296 = vunpack.c.l.bf16 %v6168
      %v6297 = vunpack.c.l.bf16 %v6169
      %v6298 = vunpack.c.l.bf16 %v6170
      %v6299 = vunpack.c.l.bf16 %v6171
      %v6300 = vunpack.c.l.bf16 %v6172
      %v6301 = vunpack.c.l.bf16 %v6173
      %v6302 = vunpack.c.l.bf16 %v6174
      %v6303 = vunpack.c.l.bf16 %v6175
      %v6304 = vunpack.c.l.bf16 %v6176
      %v6305 = vunpack.c.l.bf16 %v6177
      %v6306 = vunpack.c.l.bf16 %v6178
      %v6307 = vunpack.c.l.bf16 %v6179
      %v6308 = vunpack.c.l.bf16 %v6180
      %v6309 = vunpack.c.l.bf16 %v6181
      %v6310 = vunpack.c.l.bf16 %v6182
      %v6311 = vunpack.c.l.bf16 %v6183
      %v6312 = vunpack.c.l.bf16 %v6184
      %v6313 = vunpack.c.l.bf16 %v6185
      %v6314 = vunpack.c.l.bf16 %v6186
      %v6315 = vunpack.c.l.bf16 %v6187
      %v6316 = vunpack.c.l.bf16 %v6188
      %v6317 = vunpack.c.l.bf16 %v6189
      %v6318 = vunpack.c.l.bf16 %v6190
      %v6319 = vunpack.c.l.bf16 %v6191
      %v6320 = vunpack.c.l.bf16 %v6192
      %v6321 = vunpack.c.l.bf16 %v6193
      %v6322 = vunpack.c.l.bf16 %v6194
      %v6323 = vunpack.c.l.bf16 %v6195
      %v6324 = vunpack.c.l.bf16 %v6196
      %v6325 = vunpack.c.l.bf16 %v6197
      %v6326 = vunpack.c.l.bf16 %v6198
      %v6327 = vunpack.c.l.bf16 %v6199
      %v6328 = vunpack.c.l.bf16 %v6200
      %v6329 = vunpack.c.l.bf16 %v6201
      %v6330 = vunpack.c.l.bf16 %v6202
      %v6331 = vunpack.c.l.bf16 %v6203
      %v6332 = vunpack.c.l.bf16 %v6204
      %v6333 = vunpack.c.l.bf16 %v6205
      %v6334 = vunpack.c.l.bf16 %v6206
      %v6335 = vunpack.c.l.bf16 %v6207
      %v6336 = vunpack.c.l.bf16 %v6208
      %v6337 = vunpack.c.l.bf16 %v6209
      %v6338 = vunpack.c.l.bf16 %v6210
      %v6339 = vunpack.c.l.bf16 %v6211
      %v6340 = vadd.f32 %v5574, %v6212
      %v6341 = vadd.f32 %v5577, %v6213
      %v6342 = vadd.f32 %v5582, %v6214
      %v6343 = vadd.f32 %v5585, %v6215
      %v6344 = vadd.f32 %v5590, %v6216
      %v6345 = vadd.f32 %v5593, %v6217
      %v6346 = vadd.f32 %v5598, %v6218
      %v6347 = vadd.f32 %v5601, %v6219
      %v6348 = vadd.f32 %v5606, %v6220
      %v6349 = vadd.f32 %v5609, %v6221
      %v6350 = vadd.f32 %v5614, %v6222
      %v6351 = vadd.f32 %v5617, %v6223
      %v6352 = vadd.f32 %v5622, %v6224
      %v6353 = vadd.f32 %v5625, %v6225
      %v6354 = vadd.f32 %v5630, %v6226
      %v6355 = vadd.f32 %v5633, %v6227
      %v6356 = vadd.f32 %v5638, %v6228
      %v6357 = vadd.f32 %v5641, %v6229
      %v6358 = vadd.f32 %v5646, %v6230
      %v6359 = vadd.f32 %v5649, %v6231
      %v6360 = vadd.f32 %v5654, %v6232
      %v6361 = vadd.f32 %v5657, %v6233
      %v6362 = vadd.f32 %v5662, %v6234
      %v6363 = vadd.f32 %v5665, %v6235
      %v6364 = vadd.f32 %v5670, %v6236
      %v6365 = vadd.f32 %v5673, %v6237
      %v6366 = vadd.f32 %v5678, %v6238
      %v6367 = vadd.f32 %v5681, %v6239
      %v6368 = vadd.f32 %v5686, %v6240
      %v6369 = vadd.f32 %v5689, %v6241
      %v6370 = vadd.f32 %v5694, %v6242
      %v6371 = vadd.f32 %v5697, %v6243
      %v6372 = vadd.f32 %v5702, %v6244
      %v6373 = vadd.f32 %v5705, %v6245
      %v6374 = vadd.f32 %v5710, %v6246
      %v6375 = vadd.f32 %v5713, %v6247
      %v6376 = vadd.f32 %v5718, %v6248
      %v6377 = vadd.f32 %v5721, %v6249
      %v6378 = vadd.f32 %v5726, %v6250
      %v6379 = vadd.f32 %v5729, %v6251
      %v6380 = vadd.f32 %v5734, %v6252
      %v6381 = vadd.f32 %v5737, %v6253
      %v6382 = vadd.f32 %v5742, %v6254
      %v6383 = vadd.f32 %v5745, %v6255
      %v6384 = vadd.f32 %v5750, %v6256
      %v6385 = vadd.f32 %v5753, %v6257
      %v6386 = vadd.f32 %v5758, %v6258
      %v6387 = vadd.f32 %v5761, %v6259
      %v6388 = vadd.f32 %v5766, %v6260
      %v6389 = vadd.f32 %v5769, %v6261
      %v6390 = vadd.f32 %v5774, %v6262
      %v6391 = vadd.f32 %v5777, %v6263
      %v6392 = vadd.f32 %v5782, %v6264
      %v6393 = vadd.f32 %v5785, %v6265
      %v6394 = vadd.f32 %v5790, %v6266
      %v6395 = vadd.f32 %v5793, %v6267
      %v6396 = vadd.f32 %v5798, %v6268
      %v6397 = vadd.f32 %v5801, %v6269
      %v6398 = vadd.f32 %v5806, %v6270
      %v6399 = vadd.f32 %v5809, %v6271
      %v6400 = vadd.f32 %v5814, %v6272
      %v6401 = vadd.f32 %v5817, %v6273
      %v6402 = vadd.f32 %v5822, %v6274
      %v6403 = vadd.f32 %v5825, %v6275
      %v6404 = vadd.f32 %v5830, %v6276
      %v6405 = vadd.f32 %v5833, %v6277
      %v6406 = vadd.f32 %v5838, %v6278
      %v6407 = vadd.f32 %v5841, %v6279
      %v6408 = vadd.f32 %v5846, %v6280
      %v6409 = vadd.f32 %v5849, %v6281
      %v6410 = vadd.f32 %v5854, %v6282
      %v6411 = vadd.f32 %v5857, %v6283
      %v6412 = vadd.f32 %v5862, %v6284
      %v6413 = vadd.f32 %v5865, %v6285
      %v6414 = vadd.f32 %v5870, %v6286
      %v6415 = vadd.f32 %v5873, %v6287
      %v6416 = vadd.f32 %v5878, %v6288
      %v6417 = vadd.f32 %v5881, %v6289
      %v6418 = vadd.f32 %v5886, %v6290
      %v6419 = vadd.f32 %v5889, %v6291
      %v6420 = vadd.f32 %v5894, %v6292
      %v6421 = vadd.f32 %v5897, %v6293
      %v6422 = vadd.f32 %v5902, %v6294
      %v6423 = vadd.f32 %v5905, %v6295
      %v6424 = vadd.f32 %v5910, %v6296
      %v6425 = vadd.f32 %v5913, %v6297
      %v6426 = vadd.f32 %v5918, %v6298
      %v6427 = vadd.f32 %v5921, %v6299
      %v6428 = vadd.f32 %v5926, %v6300
      %v6429 = vadd.f32 %v5929, %v6301
      %v6430 = vadd.f32 %v5934, %v6302
      %v6431 = vadd.f32 %v5937, %v6303
      %v6432 = vadd.f32 %v5942, %v6304
      %v6433 = vadd.f32 %v5945, %v6305
      %v6434 = vadd.f32 %v5950, %v6306
      %v6435 = vadd.f32 %v5953, %v6307
      %v6436 = vadd.f32 %v5958, %v6308
      %v6437 = vadd.f32 %v5961, %v6309
      %v6438 = vadd.f32 %v5966, %v6310
      %v6439 = vadd.f32 %v5969, %v6311
      %v6440 = vadd.f32 %v5974, %v6312
      %v6441 = vadd.f32 %v5977, %v6313
      %v6442 = vadd.f32 %v5982, %v6314
      %v6443 = vadd.f32 %v5985, %v6315
      %v6444 = vadd.f32 %v5990, %v6316
      %v6445 = vadd.f32 %v5993, %v6317
      %v6446 = vadd.f32 %v5998, %v6318
      %v6447 = vadd.f32 %v6001, %v6319
      %v6448 = vadd.f32 %v6006, %v6320
      %v6449 = vadd.f32 %v6009, %v6321
      %v6450 = vadd.f32 %v6014, %v6322
      %v6451 = vadd.f32 %v6017, %v6323
      %v6452 = vadd.f32 %v6022, %v6324
      %v6453 = vadd.f32 %v6025, %v6325
      %v6454 = vadd.f32 %v6030, %v6326
      %v6455 = vadd.f32 %v6033, %v6327
      %v6456 = vadd.f32 %v6038, %v6328
      %v6457 = vadd.f32 %v6041, %v6329
      %v6458 = vadd.f32 %v6046, %v6330
      %v6459 = vadd.f32 %v6049, %v6331
      %v6460 = vadd.f32 %v6054, %v6332
      %v6461 = vadd.f32 %v6057, %v6333
      %v6462 = vadd.f32 %v6062, %v6334
      %v6463 = vadd.f32 %v6065, %v6335
      %v6464 = vadd.f32 %v6070, %v6336
      %v6465 = vadd.f32 %v6073, %v6337
      %v6466 = vadd.f32 %v6078, %v6338
      %v6467 = vadd.f32 %v6081, %v6339
      %v6468 = vpack.c.bf16 %v6341, %v6340
      %v6469 = vpack.c.bf16 %v6343, %v6342
      %v6470 = vpack.c.bf16 %v6345, %v6344
      %v6471 = vpack.c.bf16 %v6347, %v6346
      %v6472 = vpack.c.bf16 %v6349, %v6348
      %v6473 = vpack.c.bf16 %v6351, %v6350
      %v6474 = vpack.c.bf16 %v6353, %v6352
      %v6475 = vpack.c.bf16 %v6355, %v6354
      %v6476 = vpack.c.bf16 %v6357, %v6356
      %v6477 = vpack.c.bf16 %v6359, %v6358
      %v6478 = vpack.c.bf16 %v6361, %v6360
      %v6479 = vpack.c.bf16 %v6363, %v6362
      %v6480 = vpack.c.bf16 %v6365, %v6364
      %v6481 = vpack.c.bf16 %v6367, %v6366
      %v6482 = vpack.c.bf16 %v6369, %v6368
      %v6483 = vpack.c.bf16 %v6371, %v6370
      %v6484 = vpack.c.bf16 %v6373, %v6372
      %v6485 = vpack.c.bf16 %v6375, %v6374
      %v6486 = vpack.c.bf16 %v6377, %v6376
      %v6487 = vpack.c.bf16 %v6379, %v6378
      %v6488 = vpack.c.bf16 %v6381, %v6380
      %v6489 = vpack.c.bf16 %v6383, %v6382
      %v6490 = vpack.c.bf16 %v6385, %v6384
      %v6491 = vpack.c.bf16 %v6387, %v6386
      %v6492 = vpack.c.bf16 %v6389, %v6388
      %v6493 = vpack.c.bf16 %v6391, %v6390
      %v6494 = vpack.c.bf16 %v6393, %v6392
      %v6495 = vpack.c.bf16 %v6395, %v6394
      %v6496 = vpack.c.bf16 %v6397, %v6396
      %v6497 = vpack.c.bf16 %v6399, %v6398
      %v6498 = vpack.c.bf16 %v6401, %v6400
      %v6499 = vpack.c.bf16 %v6403, %v6402
      %v6500 = vpack.c.bf16 %v6405, %v6404
      %v6501 = vpack.c.bf16 %v6407, %v6406
      %v6502 = vpack.c.bf16 %v6409, %v6408
      %v6503 = vpack.c.bf16 %v6411, %v6410
      %v6504 = vpack.c.bf16 %v6413, %v6412
      %v6505 = vpack.c.bf16 %v6415, %v6414
      %v6506 = vpack.c.bf16 %v6417, %v6416
      %v6507 = vpack.c.bf16 %v6419, %v6418
      %v6508 = vpack.c.bf16 %v6421, %v6420
      %v6509 = vpack.c.bf16 %v6423, %v6422
      %v6510 = vpack.c.bf16 %v6425, %v6424
      %v6511 = vpack.c.bf16 %v6427, %v6426
      %v6512 = vpack.c.bf16 %v6429, %v6428
      %v6513 = vpack.c.bf16 %v6431, %v6430
      %v6514 = vpack.c.bf16 %v6433, %v6432
      %v6515 = vpack.c.bf16 %v6435, %v6434
      %v6516 = vpack.c.bf16 %v6437, %v6436
      %v6517 = vpack.c.bf16 %v6439, %v6438
      %v6518 = vpack.c.bf16 %v6441, %v6440
      %v6519 = vpack.c.bf16 %v6443, %v6442
      %v6520 = vpack.c.bf16 %v6445, %v6444
      %v6521 = vpack.c.bf16 %v6447, %v6446
      %v6522 = vpack.c.bf16 %v6449, %v6448
      %v6523 = vpack.c.bf16 %v6451, %v6450
      %v6524 = vpack.c.bf16 %v6453, %v6452
      %v6525 = vpack.c.bf16 %v6455, %v6454
      %v6526 = vpack.c.bf16 %v6457, %v6456
      %v6527 = vpack.c.bf16 %v6459, %v6458
      %v6528 = vpack.c.bf16 %v6461, %v6460
      %v6529 = vpack.c.bf16 %v6463, %v6462
      %v6530 = vpack.c.bf16 %v6465, %v6464
      %v6531 = vpack.c.bf16 %v6467, %v6466
      %v6596 = vunpack.c.l.b16 %v6468
      %v6597 = vunpack.c.h.b16 %v6468
      %v6598 = vunpack.c.l.b16 %v6469
      %v6599 = vunpack.c.h.b16 %v6469
      %v6600 = vunpack.c.l.b16 %v6470
      %v6601 = vunpack.c.h.b16 %v6470
      %v6602 = vunpack.c.l.b16 %v6471
      %v6603 = vunpack.c.h.b16 %v6471
      %v6604 = vunpack.c.l.b16 %v6472
      %v6605 = vunpack.c.h.b16 %v6472
      %v6606 = vunpack.c.l.b16 %v6473
      %v6607 = vunpack.c.h.b16 %v6473
      %v6608 = vunpack.c.l.b16 %v6474
      %v6609 = vunpack.c.h.b16 %v6474
      %v6610 = vunpack.c.l.b16 %v6475
      %v6611 = vunpack.c.h.b16 %v6475
      %v6612 = vunpack.c.l.b16 %v6476
      %v6613 = vunpack.c.h.b16 %v6476
      %v6614 = vunpack.c.l.b16 %v6477
      %v6615 = vunpack.c.h.b16 %v6477
      %v6616 = vunpack.c.l.b16 %v6478
      %v6617 = vunpack.c.h.b16 %v6478
      %v6618 = vunpack.c.l.b16 %v6479
      %v6619 = vunpack.c.h.b16 %v6479
      %v6620 = vunpack.c.l.b16 %v6480
      %v6621 = vunpack.c.h.b16 %v6480
      %v6622 = vunpack.c.l.b16 %v6481
      %v6623 = vunpack.c.h.b16 %v6481
      %v6624 = vunpack.c.l.b16 %v6482
      %v6625 = vunpack.c.h.b16 %v6482
      %v6626 = vunpack.c.l.b16 %v6483
      %v6627 = vunpack.c.h.b16 %v6483
      %v6628 = vunpack.c.l.b16 %v6484
      %v6629 = vunpack.c.h.b16 %v6484
      %v6630 = vunpack.c.l.b16 %v6485
      %v6631 = vunpack.c.h.b16 %v6485
      %v6632 = vunpack.c.l.b16 %v6486
      %v6633 = vunpack.c.h.b16 %v6486
      %v6634 = vunpack.c.l.b16 %v6487
      %v6635 = vunpack.c.h.b16 %v6487
      %v6636 = vunpack.c.l.b16 %v6488
      %v6637 = vunpack.c.h.b16 %v6488
      %v6638 = vunpack.c.l.b16 %v6489
      %v6639 = vunpack.c.h.b16 %v6489
      %v6640 = vunpack.c.l.b16 %v6490
      %v6641 = vunpack.c.h.b16 %v6490
      %v6642 = vunpack.c.l.b16 %v6491
      %v6643 = vunpack.c.h.b16 %v6491
      %v6644 = vunpack.c.l.b16 %v6492
      %v6645 = vunpack.c.h.b16 %v6492
      %v6646 = vunpack.c.l.b16 %v6493
      %v6647 = vunpack.c.h.b16 %v6493
      %v6648 = vunpack.c.l.b16 %v6494
      %v6649 = vunpack.c.h.b16 %v6494
      %v6650 = vunpack.c.l.b16 %v6495
      %v6651 = vunpack.c.h.b16 %v6495
      %v6652 = vunpack.c.l.b16 %v6496
      %v6653 = vunpack.c.h.b16 %v6496
      %v6654 = vunpack.c.l.b16 %v6497
      %v6655 = vunpack.c.h.b16 %v6497
      %v6656 = vunpack.c.l.b16 %v6498
      %v6657 = vunpack.c.h.b16 %v6498
      %v6658 = vunpack.c.l.b16 %v6499
      %v6659 = vunpack.c.h.b16 %v6499
      %v6660 = vunpack.c.l.b16 %v6500
      %v6661 = vunpack.c.h.b16 %v6500
      %v6662 = vunpack.c.l.b16 %v6501
      %v6663 = vunpack.c.h.b16 %v6501
      %v6664 = vunpack.c.l.b16 %v6502
      %v6665 = vunpack.c.h.b16 %v6502
      %v6666 = vunpack.c.l.b16 %v6503
      %v6667 = vunpack.c.h.b16 %v6503
      %v6668 = vunpack.c.l.b16 %v6504
      %v6669 = vunpack.c.h.b16 %v6504
      %v6670 = vunpack.c.l.b16 %v6505
      %v6671 = vunpack.c.h.b16 %v6505
      %v6672 = vunpack.c.l.b16 %v6506
      %v6673 = vunpack.c.h.b16 %v6506
      %v6674 = vunpack.c.l.b16 %v6507
      %v6675 = vunpack.c.h.b16 %v6507
      %v6676 = vunpack.c.l.b16 %v6508
      %v6677 = vunpack.c.h.b16 %v6508
      %v6678 = vunpack.c.l.b16 %v6509
      %v6679 = vunpack.c.h.b16 %v6509
      %v6680 = vunpack.c.l.b16 %v6510
      %v6681 = vunpack.c.h.b16 %v6510
      %v6682 = vunpack.c.l.b16 %v6511
      %v6683 = vunpack.c.h.b16 %v6511
      %v6684 = vunpack.c.l.b16 %v6512
      %v6685 = vunpack.c.h.b16 %v6512
      %v6686 = vunpack.c.l.b16 %v6513
      %v6687 = vunpack.c.h.b16 %v6513
      %v6688 = vunpack.c.l.b16 %v6514
      %v6689 = vunpack.c.h.b16 %v6514
      %v6690 = vunpack.c.l.b16 %v6515
      %v6691 = vunpack.c.h.b16 %v6515
      %v6692 = vunpack.c.l.b16 %v6516
      %v6693 = vunpack.c.h.b16 %v6516
      %v6694 = vunpack.c.l.b16 %v6517
      %v6695 = vunpack.c.h.b16 %v6517
      %v6696 = vunpack.c.l.b16 %v6518
      %v6697 = vunpack.c.h.b16 %v6518
      %v6698 = vunpack.c.l.b16 %v6519
      %v6699 = vunpack.c.h.b16 %v6519
      %v6700 = vunpack.c.l.b16 %v6520
      %v6701 = vunpack.c.h.b16 %v6520
      %v6702 = vunpack.c.l.b16 %v6521
      %v6703 = vunpack.c.h.b16 %v6521
      %v6704 = vunpack.c.l.b16 %v6522
      %v6705 = vunpack.c.h.b16 %v6522
      %v6706 = vunpack.c.l.b16 %v6523
      %v6707 = vunpack.c.h.b16 %v6523
      %v6708 = vunpack.c.l.b16 %v6524
      %v6709 = vunpack.c.h.b16 %v6524
      %v6710 = vunpack.c.l.b16 %v6525
      %v6711 = vunpack.c.h.b16 %v6525
      %v6712 = vunpack.c.l.b16 %v6526
      %v6713 = vunpack.c.h.b16 %v6526
      %v6714 = vunpack.c.l.b16 %v6527
      %v6715 = vunpack.c.h.b16 %v6527
      %v6716 = vunpack.c.l.b16 %v6528
      %v6717 = vunpack.c.h.b16 %v6528
      %v6718 = vunpack.c.l.b16 %v6529
      %v6719 = vunpack.c.h.b16 %v6529
      %v6720 = vunpack.c.l.b16 %v6530
      %v6721 = vunpack.c.h.b16 %v6530
      %v6722 = vunpack.c.l.b16 %v6531
      %v6723 = vunpack.c.h.b16 %v6531
      %v6724 = vpack.c.b16 %v6596, %v6596
      %v6725 = vpack.c.b16 %v6597, %v6597
      %v6726 = vpack.c.b16 %v6598, %v6598
      %v6727 = vpack.c.b16 %v6599, %v6599
      %v6728 = vpack.c.b16 %v6600, %v6600
      %v6729 = vpack.c.b16 %v6601, %v6601
      %v6730 = vpack.c.b16 %v6602, %v6602
      %v6731 = vpack.c.b16 %v6603, %v6603
      %v6732 = vpack.c.b16 %v6604, %v6604
      %v6733 = vpack.c.b16 %v6605, %v6605
      %v6734 = vpack.c.b16 %v6606, %v6606
      %v6735 = vpack.c.b16 %v6607, %v6607
      %v6736 = vpack.c.b16 %v6608, %v6608
      %v6737 = vpack.c.b16 %v6609, %v6609
      %v6738 = vpack.c.b16 %v6610, %v6610
      %v6739 = vpack.c.b16 %v6611, %v6611
      %v6740 = vpack.c.b16 %v6612, %v6612
      %v6741 = vpack.c.b16 %v6613, %v6613
      %v6742 = vpack.c.b16 %v6614, %v6614
      %v6743 = vpack.c.b16 %v6615, %v6615
      %v6744 = vpack.c.b16 %v6616, %v6616
      %v6745 = vpack.c.b16 %v6617, %v6617
      %v6746 = vpack.c.b16 %v6618, %v6618
      %v6747 = vpack.c.b16 %v6619, %v6619
      %v6748 = vpack.c.b16 %v6620, %v6620
      %v6749 = vpack.c.b16 %v6621, %v6621
      %v6750 = vpack.c.b16 %v6622, %v6622
      %v6751 = vpack.c.b16 %v6623, %v6623
      %v6752 = vpack.c.b16 %v6624, %v6624
      %v6753 = vpack.c.b16 %v6625, %v6625
      %v6754 = vpack.c.b16 %v6626, %v6626
      %v6755 = vpack.c.b16 %v6627, %v6627
      %v6756 = vpack.c.b16 %v6628, %v6628
      %v6757 = vpack.c.b16 %v6629, %v6629
      %v6758 = vpack.c.b16 %v6630, %v6630
      %v6759 = vpack.c.b16 %v6631, %v6631
      %v6760 = vpack.c.b16 %v6632, %v6632
      %v6761 = vpack.c.b16 %v6633, %v6633
      %v6762 = vpack.c.b16 %v6634, %v6634
      %v6763 = vpack.c.b16 %v6635, %v6635
      %v6764 = vpack.c.b16 %v6636, %v6636
      %v6765 = vpack.c.b16 %v6637, %v6637
      %v6766 = vpack.c.b16 %v6638, %v6638
      %v6767 = vpack.c.b16 %v6639, %v6639
      %v6768 = vpack.c.b16 %v6640, %v6640
      %v6769 = vpack.c.b16 %v6641, %v6641
      %v6770 = vpack.c.b16 %v6642, %v6642
      %v6771 = vpack.c.b16 %v6643, %v6643
      %v6772 = vpack.c.b16 %v6644, %v6644
      %v6773 = vpack.c.b16 %v6645, %v6645
      %v6774 = vpack.c.b16 %v6646, %v6646
      %v6775 = vpack.c.b16 %v6647, %v6647
      %v6776 = vpack.c.b16 %v6648, %v6648
      %v6777 = vpack.c.b16 %v6649, %v6649
      %v6778 = vpack.c.b16 %v6650, %v6650
      %v6779 = vpack.c.b16 %v6651, %v6651
      %v6780 = vpack.c.b16 %v6652, %v6652
      %v6781 = vpack.c.b16 %v6653, %v6653
      %v6782 = vpack.c.b16 %v6654, %v6654
      %v6783 = vpack.c.b16 %v6655, %v6655
      %v6784 = vpack.c.b16 %v6656, %v6656
      %v6785 = vpack.c.b16 %v6657, %v6657
      %v6786 = vpack.c.b16 %v6658, %v6658
      %v6787 = vpack.c.b16 %v6659, %v6659
      %v6788 = vpack.c.b16 %v6660, %v6660
      %v6789 = vpack.c.b16 %v6661, %v6661
      %v6790 = vpack.c.b16 %v6662, %v6662
      %v6791 = vpack.c.b16 %v6663, %v6663
      %v6792 = vpack.c.b16 %v6664, %v6664
      %v6793 = vpack.c.b16 %v6665, %v6665
      %v6794 = vpack.c.b16 %v6666, %v6666
      %v6795 = vpack.c.b16 %v6667, %v6667
      %v6796 = vpack.c.b16 %v6668, %v6668
      %v6797 = vpack.c.b16 %v6669, %v6669
      %v6798 = vpack.c.b16 %v6670, %v6670
      %v6799 = vpack.c.b16 %v6671, %v6671
      %v6800 = vpack.c.b16 %v6672, %v6672
      %v6801 = vpack.c.b16 %v6673, %v6673
      %v6802 = vpack.c.b16 %v6674, %v6674
      %v6803 = vpack.c.b16 %v6675, %v6675
      %v6804 = vpack.c.b16 %v6676, %v6676
      %v6805 = vpack.c.b16 %v6677, %v6677
      %v6806 = vpack.c.b16 %v6678, %v6678
      %v6807 = vpack.c.b16 %v6679, %v6679
      %v6808 = vpack.c.b16 %v6680, %v6680
      %v6809 = vpack.c.b16 %v6681, %v6681
      %v6810 = vpack.c.b16 %v6682, %v6682
      %v6811 = vpack.c.b16 %v6683, %v6683
      %v6812 = vpack.c.b16 %v6684, %v6684
      %v6813 = vpack.c.b16 %v6685, %v6685
      %v6814 = vpack.c.b16 %v6686, %v6686
      %v6815 = vpack.c.b16 %v6687, %v6687
      %v6816 = vpack.c.b16 %v6688, %v6688
      %v6817 = vpack.c.b16 %v6689, %v6689
      %v6818 = vpack.c.b16 %v6690, %v6690
      %v6819 = vpack.c.b16 %v6691, %v6691
      %v6820 = vpack.c.b16 %v6692, %v6692
      %v6821 = vpack.c.b16 %v6693, %v6693
      %v6822 = vpack.c.b16 %v6694, %v6694
      %v6823 = vpack.c.b16 %v6695, %v6695
      %v6824 = vpack.c.b16 %v6696, %v6696
      %v6825 = vpack.c.b16 %v6697, %v6697
      %v6826 = vpack.c.b16 %v6698, %v6698
      %v6827 = vpack.c.b16 %v6699, %v6699
      %v6828 = vpack.c.b16 %v6700, %v6700
      %v6829 = vpack.c.b16 %v6701, %v6701
      %v6830 = vpack.c.b16 %v6702, %v6702
      %v6831 = vpack.c.b16 %v6703, %v6703
      %v6832 = vpack.c.b16 %v6704, %v6704
      %v6833 = vpack.c.b16 %v6705, %v6705
      %v6834 = vpack.c.b16 %v6706, %v6706
      %v6835 = vpack.c.b16 %v6707, %v6707
      %v6836 = vpack.c.b16 %v6708, %v6708
      %v6837 = vpack.c.b16 %v6709, %v6709
      %v6838 = vpack.c.b16 %v6710, %v6710
      %v6839 = vpack.c.b16 %v6711, %v6711
      %v6840 = vpack.c.b16 %v6712, %v6712
      %v6841 = vpack.c.b16 %v6713, %v6713
      %v6842 = vpack.c.b16 %v6714, %v6714
      %v6843 = vpack.c.b16 %v6715, %v6715
      %v6844 = vpack.c.b16 %v6716, %v6716
      %v6845 = vpack.c.b16 %v6717, %v6717
      %v6846 = vpack.c.b16 %v6718, %v6718
      %v6847 = vpack.c.b16 %v6719, %v6719
      %v6848 = vpack.c.b16 %v6720, %v6720
      %v6849 = vpack.c.b16 %v6721, %v6721
      %v6850 = vpack.c.b16 %v6722, %v6722
      %v6851 = vpack.c.b16 %v6723, %v6723
      %6980 = vst [vmem:[%s231] sm:$0xf] %v6724
      %6981 = vst [vmem:[%s231 + $0x4] sm:$0xf] %v6725
      %6982 = vst [vmem:[%s231 + $0x8] sm:$0xf] %v6726
      %6983 = vst [vmem:[%s231 + $0xc] sm:$0xf] %v6727
      %6984 = vst [vmem:[%s231 + $0x10] sm:$0xf] %v6728
      %6985 = vst [vmem:[%s231 + $0x14] sm:$0xf] %v6729
      %6986 = vst [vmem:[%s231 + $0x18] sm:$0xf] %v6730
      %6987 = vst [vmem:[%s231 + $0x1c] sm:$0xf] %v6731
      %6988 = vst [vmem:[%s231 + $0x20] sm:$0xf] %v6732
      %6989 = vst [vmem:[%s231 + $0x24] sm:$0xf] %v6733
      %6990 = vst [vmem:[%s231 + $0x28] sm:$0xf] %v6734
      %6991 = vst [vmem:[%s231 + $0x2c] sm:$0xf] %v6735
      %6992 = vst [vmem:[%s231 + $0x30] sm:$0xf] %v6736
      %6993 = vst [vmem:[%s231 + $0x34] sm:$0xf] %v6737
      %6994 = vst [vmem:[%s231 + $0x38] sm:$0xf] %v6738
      %6995 = vst [vmem:[%s231 + $0x3c] sm:$0xf] %v6739
      %6996 = vst [vmem:[%s231 + $0x40] sm:$0xf] %v6740
      %6997 = vst [vmem:[%s231 + $0x44] sm:$0xf] %v6741
      %6998 = vst [vmem:[%s231 + $0x48] sm:$0xf] %v6742
      %6999 = vst [vmem:[%s231 + $0x4c] sm:$0xf] %v6743
      %7000 = vst [vmem:[%s231 + $0x50] sm:$0xf] %v6744
      %7001 = vst [vmem:[%s231 + $0x54] sm:$0xf] %v6745
      %7002 = vst [vmem:[%s231 + $0x58] sm:$0xf] %v6746
      %7003 = vst [vmem:[%s231 + $0x5c] sm:$0xf] %v6747
      %7004 = vst [vmem:[%s231 + $0x60] sm:$0xf] %v6748
      %7005 = vst [vmem:[%s231 + $0x64] sm:$0xf] %v6749
      %7006 = vst [vmem:[%s231 + $0x68] sm:$0xf] %v6750
      %7007 = vst [vmem:[%s231 + $0x6c] sm:$0xf] %v6751
      %7008 = vst [vmem:[%s231 + $0x70] sm:$0xf] %v6752
      %7009 = vst [vmem:[%s231 + $0x74] sm:$0xf] %v6753
      %7010 = vst [vmem:[%s231 + $0x78] sm:$0xf] %v6754
      %7011 = vst [vmem:[%s231 + $0x7c] sm:$0xf] %v6755
      %7012 = vst [vmem:[%s231 + $0x80] sm:$0xf] %v6756
      %7013 = vst [vmem:[%s231 + $0x84] sm:$0xf] %v6757
      %7014 = vst [vmem:[%s231 + $0x88] sm:$0xf] %v6758
      %7015 = vst [vmem:[%s231 + $0x8c] sm:$0xf] %v6759
      %7016 = vst [vmem:[%s231 + $0x90] sm:$0xf] %v6760
      %7017 = vst [vmem:[%s231 + $0x94] sm:$0xf] %v6761
      %7018 = vst [vmem:[%s231 + $0x98] sm:$0xf] %v6762
      %7019 = vst [vmem:[%s231 + $0x9c] sm:$0xf] %v6763
      %7020 = vst [vmem:[%s231 + $0xa0] sm:$0xf] %v6764
      %7021 = vst [vmem:[%s231 + $0xa4] sm:$0xf] %v6765
      %7022 = vst [vmem:[%s231 + $0xa8] sm:$0xf] %v6766
      %7023 = vst [vmem:[%s231 + $0xac] sm:$0xf] %v6767
      %7024 = vst [vmem:[%s231 + $0xb0] sm:$0xf] %v6768
      %7025 = vst [vmem:[%s231 + $0xb4] sm:$0xf] %v6769
      %7026 = vst [vmem:[%s231 + $0xb8] sm:$0xf] %v6770
      %7027 = vst [vmem:[%s231 + $0xbc] sm:$0xf] %v6771
      %7028 = vst [vmem:[%s231 + $0xc0] sm:$0xf] %v6772
      %7029 = vst [vmem:[%s231 + $0xc4] sm:$0xf] %v6773
      %7030 = vst [vmem:[%s231 + $0xc8] sm:$0xf] %v6774
      %7031 = vst [vmem:[%s231 + $0xcc] sm:$0xf] %v6775
      %7032 = vst [vmem:[%s231 + $0xd0] sm:$0xf] %v6776
      %7033 = vst [vmem:[%s231 + $0xd4] sm:$0xf] %v6777
      %7034 = vst [vmem:[%s231 + $0xd8] sm:$0xf] %v6778
      %7035 = vst [vmem:[%s231 + $0xdc] sm:$0xf] %v6779
      %7036 = vst [vmem:[%s231 + $0xe0] sm:$0xf] %v6780
      %7037 = vst [vmem:[%s231 + $0xe4] sm:$0xf] %v6781
      %7038 = vst [vmem:[%s231 + $0xe8] sm:$0xf] %v6782
      %7039 = vst [vmem:[%s231 + $0xec] sm:$0xf] %v6783
      %7040 = vst [vmem:[%s231 + $0xf0] sm:$0xf] %v6784
      %7041 = vst [vmem:[%s231 + $0xf4] sm:$0xf] %v6785
      %7042 = vst [vmem:[%s231 + $0xf8] sm:$0xf] %v6786
      %7043 = vst [vmem:[%s231 + $0xfc] sm:$0xf] %v6787
      %7044 = vst [vmem:[%s231 + $0x100] sm:$0xf] %v6788
      %7045 = vst [vmem:[%s231 + $0x104] sm:$0xf] %v6789
      %7046 = vst [vmem:[%s231 + $0x108] sm:$0xf] %v6790
      %7047 = vst [vmem:[%s231 + $0x10c] sm:$0xf] %v6791
      %7048 = vst [vmem:[%s231 + $0x110] sm:$0xf] %v6792
      %7049 = vst [vmem:[%s231 + $0x114] sm:$0xf] %v6793
      %7050 = vst [vmem:[%s231 + $0x118] sm:$0xf] %v6794
      %7051 = vst [vmem:[%s231 + $0x11c] sm:$0xf] %v6795
      %7052 = vst [vmem:[%s231 + $0x120] sm:$0xf] %v6796
      %7053 = vst [vmem:[%s231 + $0x124] sm:$0xf] %v6797
      %7054 = vst [vmem:[%s231 + $0x128] sm:$0xf] %v6798
      %7055 = vst [vmem:[%s231 + $0x12c] sm:$0xf] %v6799
      %7056 = vst [vmem:[%s231 + $0x130] sm:$0xf] %v6800
      %7057 = vst [vmem:[%s231 + $0x134] sm:$0xf] %v6801
      %7058 = vst [vmem:[%s231 + $0x138] sm:$0xf] %v6802
      %7059 = vst [vmem:[%s231 + $0x13c] sm:$0xf] %v6803
      %7060 = vst [vmem:[%s231 + $0x140] sm:$0xf] %v6804
      %7061 = vst [vmem:[%s231 + $0x144] sm:$0xf] %v6805
      %7062 = vst [vmem:[%s231 + $0x148] sm:$0xf] %v6806
      %7063 = vst [vmem:[%s231 + $0x14c] sm:$0xf] %v6807
      %7064 = vst [vmem:[%s231 + $0x150] sm:$0xf] %v6808
      %7065 = vst [vmem:[%s231 + $0x154] sm:$0xf] %v6809
      %7066 = vst [vmem:[%s231 + $0x158] sm:$0xf] %v6810
      %7067 = vst [vmem:[%s231 + $0x15c] sm:$0xf] %v6811
      %7068 = vst [vmem:[%s231 + $0x160] sm:$0xf] %v6812
      %7069 = vst [vmem:[%s231 + $0x164] sm:$0xf] %v6813
      %7070 = vst [vmem:[%s231 + $0x168] sm:$0xf] %v6814
      %7071 = vst [vmem:[%s231 + $0x16c] sm:$0xf] %v6815
      %7072 = vst [vmem:[%s231 + $0x170] sm:$0xf] %v6816
      %7073 = vst [vmem:[%s231 + $0x174] sm:$0xf] %v6817
      %7074 = vst [vmem:[%s231 + $0x178] sm:$0xf] %v6818
      %7075 = vst [vmem:[%s231 + $0x17c] sm:$0xf] %v6819
      %7076 = vst [vmem:[%s231 + $0x180] sm:$0xf] %v6820
      %7077 = vst [vmem:[%s231 + $0x184] sm:$0xf] %v6821
      %7078 = vst [vmem:[%s231 + $0x188] sm:$0xf] %v6822
      %7079 = vst [vmem:[%s231 + $0x18c] sm:$0xf] %v6823
      %7080 = vst [vmem:[%s231 + $0x190] sm:$0xf] %v6824
      %7081 = vst [vmem:[%s231 + $0x194] sm:$0xf] %v6825
      %7082 = vst [vmem:[%s231 + $0x198] sm:$0xf] %v6826
      %7083 = vst [vmem:[%s231 + $0x19c] sm:$0xf] %v6827
      %7084 = vst [vmem:[%s231 + $0x1a0] sm:$0xf] %v6828
      %7085 = vst [vmem:[%s231 + $0x1a4] sm:$0xf] %v6829
      %7086 = vst [vmem:[%s231 + $0x1a8] sm:$0xf] %v6830
      %7087 = vst [vmem:[%s231 + $0x1ac] sm:$0xf] %v6831
      %7088 = vst [vmem:[%s231 + $0x1b0] sm:$0xf] %v6832
      %7089 = vst [vmem:[%s231 + $0x1b4] sm:$0xf] %v6833
      %7090 = vst [vmem:[%s231 + $0x1b8] sm:$0xf] %v6834
      %7091 = vst [vmem:[%s231 + $0x1bc] sm:$0xf] %v6835
      %7092 = vst [vmem:[%s231 + $0x1c0] sm:$0xf] %v6836
      %7093 = vst [vmem:[%s231 + $0x1c4] sm:$0xf] %v6837
      %7094 = vst [vmem:[%s231 + $0x1c8] sm:$0xf] %v6838
      %7095 = vst [vmem:[%s231 + $0x1cc] sm:$0xf] %v6839
      %7096 = vst [vmem:[%s231 + $0x1d0] sm:$0xf] %v6840
      %7097 = vst [vmem:[%s231 + $0x1d4] sm:$0xf] %v6841
      %7098 = vst [vmem:[%s231 + $0x1d8] sm:$0xf] %v6842
      %7099 = vst [vmem:[%s231 + $0x1dc] sm:$0xf] %v6843
      %7100 = vst [vmem:[%s231 + $0x1e0] sm:$0xf] %v6844
      %7101 = vst [vmem:[%s231 + $0x1e4] sm:$0xf] %v6845
      %7102 = vst [vmem:[%s231 + $0x1e8] sm:$0xf] %v6846
      %7103 = vst [vmem:[%s231 + $0x1ec] sm:$0xf] %v6847
      %7104 = vst [vmem:[%s231 + $0x1f0] sm:$0xf] %v6848
      %7105 = vst [vmem:[%s231 + $0x1f4] sm:$0xf] %v6849
      %7106 = vst [vmem:[%s231 + $0x1f8] sm:$0xf] %v6850
      %7107 = vst [vmem:[%s231 + $0x1fc] sm:$0xf] %v6851
      %s7108 = smul.u32 4, %s16
      %p7109 = scmp.lt.s32.totalorder %s7108, 7
      %s7110 = scalar_select %p7109, %s7108, 7
      %s7111 = smul.addr %s7110, 32
      %s7112 = smul.addr %s7111, 4
      %s7113 = scalar_lea.vmem %s5, %s7112
      // Predicated region
      $region41: #{block_forward.1} parent=39 // pred_check
        %p7114 = pneg %p144
      $region42: #{block_forward.1} parent=39 // pred_check_branch
        %7116 = sbr.rel (%p7114) target = $region44
      $region43: #{block_forward.1} parent=39 // pred_region
        %s7117 = smul.u32 4, %s16
      $region44: #{block_forward.1} parent=39 // pred_fallthru
        _
    $region40: #{block_forward.1} parent=5 // pred_fallthru
      _
    %p7118 = scmp.le.s32.totalorder 2, %s11
    // Predicated region
    $region45: #{block_forward.1} parent=5 // pred_check
      %p7119 = pneg %p7118
    $region46: #{block_forward.1} parent=5 // pred_check_branch
      %7121 = sbr.rel (%p7119) target = $region48
    $region47: #{block_forward.1} parent=5 // pred_region
      %s7122 = ssub.s32 %s11, 2
      // Predicated region
      $region49: #{block_forward.1} parent=47 // pred_check
        %p7123 = pneg %p150
      $region50: #{block_forward.1} parent=47 // pred_check_branch
        %7125 = sbr.rel (%p7123) target = $region52
      $region51: #{block_forward.1} parent=47 // pred_region
        %s7126 = smul.u32 4, %s17
        %p7127 = scmp.lt.s32.totalorder %s7126, 7
        %s7128 = scalar_select %p7127, %s7126, 7
        %s7129 = smul.addr %s7128, 32
        %s7130 = smul.addr %s7129, 4
        %s7131 = scalar_lea.vmem %s5, %s7130
      $region52: #{block_forward.1} parent=47 // pred_fallthru
        _
    $region48: #{block_forward.1} parent=5 // pred_fallthru
      _
  $region6: #{block_forward.1} parent=0 // loop_footer
    %s15 = sadd.s32 1, %s11
  $region7: #{block_forward.1} parent=0 // loop_footer_branch
    %10 = sbr.rel target = $region3
  $region8: #{block_forward.1} parent=0 // loop_exit
    _

</llo_original>
